<compile_context>
chip_gen: v5e
topology: v5e:2x2
jax: 0.10.0
libtpu: 0.0.40
codegen_flags: <defaults>
</compile_context>

<pallas_src>
import functools
import math

import jax
import jax.numpy as jnp
from jax.experimental import pallas as pl
from jax.experimental.pallas import tpu as pltpu

_HIGHEST = jax.lax.Precision.HIGHEST


def _layer_norm(x, gamma, beta, eps=1e-5):
    """PyTorch nn.LayerNorm semantics: normalize last dim, biased variance."""
    mu = jnp.mean(x, axis=-1, keepdims=True)
    var = jnp.mean(jnp.square(x - mu), axis=-1, keepdims=True)
    return (x - mu) * jax.lax.rsqrt(var + eps) * gamma + beta


def sinusoidal_positional_encoding(max_seq_len, embed_dim):
    """Matches the PyTorch PositionalEncoding buffer."""
    position = jnp.arange(max_seq_len, dtype=jnp.float32)[:, None]
    div_term = jnp.exp(jnp.arange(0, embed_dim, 2, dtype=jnp.float32)
                       * (-math.log(10000.0) / embed_dim))
    pe = jnp.zeros((max_seq_len, embed_dim), dtype=jnp.float32)
    pe = pe.at[:, 0::2].set(jnp.sin(position * div_term))
    pe = pe.at[:, 1::2].set(jnp.cos(position * div_term))
    return pe


def _transformer_kernel(ids_ref, emb_ref, pe_ref, wqkv_ref, wo_ref, w1_ref,
                        w2_ref, vecs_ref, wcls_ref, o_ref,
                        *, batch, seq_len, num_heads, head_dim, num_layers):
    B, S, H, D = batch, seq_len, num_heads, head_dim
    E = H * D
    N = B * S
    Vp = emb_ref.shape[0]
    F = w1_ref.shape[2]

    # ---- in-kernel token-embedding gather: one-hot (N, Vp) @ (Vp, E) --------
    ids = ids_ref[...]                                           # (N, 1) int32
    vocab_iota = jax.lax.broadcasted_iota(jnp.int32, (N, Vp), 1)
    onehot = jnp.where(vocab_iota == ids, 1.0, 0.0)              # exact 0/1 f32
    x = jnp.dot(onehot, emb_ref[...], precision=_HIGHEST,
                preferred_element_type=jnp.float32)              # (N, E)
    x = x + pe_ref[...]                                          # + fixed PE

    for l in range(num_layers):                                  # static unroll
        vecs = vecs_ref[l]                                       # (8, max(F,E))
        b1, bo = vecs[0:1, :F], vecs[1:2, :E]
        g1, bt1 = vecs[2:3, :E], vecs[3:4, :E]
        b2, g2, bt2 = vecs[4:5, :E], vecs[5:6, :E], vecs[6:7, :E]

        # ---------------- multi-head self-attention ----------------
        # Fused QKV projection, softmax scale pre-folded into the Q columns.
        qkv = jnp.dot(x, wqkv_ref[l], precision=_HIGHEST,
                      preferred_element_type=jnp.float32)        # (N, 3E)

        ctx_rows = []
        for b in range(B):                                       # static unroll
            r0, r1 = b * S, (b + 1) * S
            # Materialize q/k/v once per batch in (S, H, D); head-batched
            # 3-D einsums (single batch dim) keep Mosaic lowering simple.
            q = qkv[r0:r1, 0 * E:1 * E].reshape(S, H, D)
            k = qkv[r0:r1, 1 * E:2 * E].reshape(S, H, D)
            v = qkv[r0:r1, 2 * E:3 * E].reshape(S, H, D)
            logits = jnp.einsum('shd,thd->hst', q, k, precision=_HIGHEST,
                                preferred_element_type=jnp.float32)
            m = jnp.max(logits, axis=-1, keepdims=True)
            p = jnp.exp(logits - m)
            attn = p / jnp.sum(p, axis=-1, keepdims=True)        # (H, S, S)
            ctx = jnp.einsum('hst,thd->shd', attn, v, precision=_HIGHEST,
                             preferred_element_type=jnp.float32)  # (S, H, D)
            ctx_rows.append(ctx.reshape(S, E))                   # head merge
        ctx = jnp.concatenate(ctx_rows, axis=0)                  # (N, E)

        # Single K=E output projection (replaces H head-batched K=D matmuls).
        attn_out = jnp.dot(ctx, wo_ref[l], precision=_HIGHEST,
                           preferred_element_type=jnp.float32) + bo
        x = _layer_norm(attn_out + x, g1, bt1)

        # ---------------- position-wise FFN ----------------
        h = jnp.dot(x, w1_ref[l], precision=_HIGHEST,
                    preferred_element_type=jnp.float32) + b1
        h = jnp.maximum(h, 0.0)                                  # ReLU
        f = jnp.dot(h, w2_ref[l], precision=_HIGHEST,
                    preferred_element_type=jnp.float32) + b2
        x = _layer_norm(f + x, g2, bt2)
        # dropout(p=0.0) == identity at inference; nothing to do.

    # ---------------- mean pool over sequence + classifier ----------------
    pooled = jnp.mean(x.reshape(B, S, E), axis=1)                # (B, E)
    wcls = wcls_ref[...]                                         # (E+1, C)
    logits = jnp.dot(pooled, wcls[:E, :], precision=_HIGHEST,
                     preferred_element_type=jnp.float32) + wcls[E:E + 1, :]
    o_ref[...] = logits.astype(o_ref.dtype)                      # (B, C)


def pack_params(params, *, num_heads):
    """One-time packing of per-layer params into kernel-friendly arrays.

    Hoisted out of the forward path (perf review #1): call once at init.
    """
    layers = params['layers']
    tok_emb = params['tok_emb']
    V, E = tok_emb.shape
    F = layers[0]['w1'].shape[1]
    D = E // num_heads
    scale = float(D) ** (-0.5)
    W = max(F, E)
    Vp = ((V + 127) // 128) * 128          # lane-align vocab for one-hot gather

    def pad_row(v):
        return jnp.pad(v.astype(jnp.float32), (0, W - v.shape[0]))[None, :]

    wqkv = jnp.stack([jnp.concatenate([l['wq'] * scale, l['wk'], l['wv']],
                                      axis=1) for l in layers])       # (L,E,3E)
    wo = jnp.stack([l['wo'] for l in layers])                          # (L,E,E)
    w1 = jnp.stack([l['w1'] for l in layers])                          # (L,E,F)
    w2 = jnp.stack([l['w2'] for l in layers])                          # (L,F,E)
    vecs = jnp.stack([jnp.concatenate(
        [pad_row(l['b1']), pad_row(l['bo']), pad_row(l['g1']),
         pad_row(l['bt1']), pad_row(l['b2']), pad_row(l['g2']),
         pad_row(l['bt2']), jnp.zeros((1, W), jnp.float32)], axis=0)
        for l in layers])                                              # (L,8,W)
    wcls = jnp.concatenate([params['wc'], params['bc']], axis=0)       # (E+1,C)
    tok_emb_p = jnp.pad(tok_emb, ((0, Vp - V), (0, 0)))                # (Vp,E)

    return dict(tok_emb=tok_emb_p, wqkv=wqkv, wo=wo, w1=w1, w2=w2,
                vecs=vecs, wcls=wcls)


@functools.partial(jax.jit, static_argnames=('num_heads',))
def transformer_classifier_forward(token_ids, packed, num_heads):
    """token_ids: (B, S) int32 -> logits (B, num_classes) float32."""
    B, S = token_ids.shape
    _, E = packed['tok_emb'].shape
    L = packed['wqkv'].shape[0]
    C = packed['wcls'].shape[1]
    D = E // num_heads

    # Input-independent under jit -> constant-folded at compile time.
    pe_tiled = jnp.tile(sinusoidal_positional_encoding(S, E), (B, 1))  # (B*S,E)
    ids = token_ids.reshape(B * S, 1).astype(jnp.int32)

    kernel = functools.partial(_transformer_kernel, batch=B, seq_len=S,
                               num_heads=num_heads, head_dim=D, num_layers=L)

    vmem = pl.BlockSpec(memory_space=pltpu.MemorySpace.VMEM)
    # Gridless call: everything (~120 KB of packed weights + activations) is
    # VMEM-resident for the whole kernel; no pipelining / double buffering.
    # TODO(synk): if S/E/L scale up, add an 'arbitrary' layer grid axis with
    # per-layer weight index maps before this all-resident design exceeds VMEM
    # (v7x's 64 MiB / 32 MiB scoped default is hit first).
    out = pl.pallas_call(
        kernel,
        out_shape=jax.ShapeDtypeStruct((B, C), jnp.float32),
        in_specs=[vmem] * 9,
        out_specs=vmem,
    )(ids, packed['tok_emb'], pe_tiled, packed['wqkv'], packed['wo'],
      packed['w1'], packed['w2'], packed['vecs'], packed['wcls'])
    return out


def _reference(token_ids, params, *, num_heads):
    """Pure-JAX reference mirroring the PyTorch TransformerClassifier (pool='mean')."""
    tok_emb = params['tok_emb']
    layers = params['layers']
    wc, bc = params['wc'], params['bc']
    B, S = token_ids.shape
    E = tok_emb.shape[1]
    D = E // num_heads
    scale = float(D) ** (-0.5)

    x = jnp.take(tok_emb, token_ids, axis=0) + sinusoidal_positional_encoding(S, E)[None]
    for l in layers:
        q, k, v = x @ l['wq'], x @ l['wk'], x @ l['wv']

        def split(t):
            return t.reshape(B, S, num_heads, D).transpose(0, 2, 1, 3)

        qh, kh, vh = split(q), split(k), split(v)
        logits = jnp.einsum('bhsd,bhtd->bhst', qh, kh) * scale
        attn = jax.nn.softmax(logits, axis=-1)
        ctx = jnp.einsum('bhst,bhtd->bhsd', attn, vh)
        ctx = ctx.transpose(0, 2, 1, 3).reshape(B, S, E)
        a_out = ctx @ l['wo'] + l['bo']
        x = _layer_norm(a_out + x, l['g1'], l['bt1'])
        h = jax.nn.relu(x @ l['w1'] + l['b1'])
        f = h @ l['w2'] + l['b2']
        x = _layer_norm(f + x, l['g2'], l['bt2'])
    pooled = x.mean(axis=1)
    return pooled @ wc + bc


def init_params(key, *, num_tokens, embed_dim, num_heads, num_layers,
                fc_dim, num_classes):
    """Deterministic synthetic parameters (weights stored as (in, out))."""
    E, F, C, L = embed_dim, fc_dim, num_classes, num_layers
    keys = jax.random.split(key, 3 + L)
    params = {
        'tok_emb': jax.random.normal(keys[0], (num_tokens, E), jnp.float32),
        'wc': jax.random.normal(keys[1], (E, C), jnp.float32) / math.sqrt(E),
        'bc': jax.random.normal(keys[2], (1, C), jnp.float32) * 0.01,
        'layers': [],
    }
    for kl in keys[3:]:
        ks = jax.random.split(kl, 13)
        params['layers'].append({
            'wq': jax.random.normal(ks[0], (E, E), jnp.float32) / math.sqrt(E),
            'wk': jax.random.normal(ks[1], (E, E), jnp.float32) / math.sqrt(E),
            'wv': jax.random.normal(ks[2], (E, E), jnp.float32) / math.sqrt(E),
            'wo': jax.random.normal(ks[3], (E, E), jnp.float32) / math.sqrt(E),
            'bo': jax.random.normal(ks[4], (E,), jnp.float32) * 0.01,
            'g1': 1.0 + 0.1 * jax.random.normal(ks[5], (E,), jnp.float32),
            'bt1': 0.05 * jax.random.normal(ks[6], (E,), jnp.float32),
            'w1': jax.random.normal(ks[7], (E, F), jnp.float32) / math.sqrt(E),
            'b1': jax.random.normal(ks[8], (F,), jnp.float32) * 0.01,
            'w2': jax.random.normal(ks[9], (F, E), jnp.float32) / math.sqrt(F),
            'b2': jax.random.normal(ks[10], (E,), jnp.float32) * 0.01,
            'g2': 1.0 + 0.1 * jax.random.normal(ks[11], (E,), jnp.float32),
            'bt2': 0.05 * jax.random.normal(ks[12], (E,), jnp.float32),
        })
    return params


if __name__ == "__main__":
    # Keep reference matmuls at full f32 precision (kernel sets it explicitly).
    jax.config.update("jax_default_matmul_precision", "highest")

    # Small shapes consistent with the module: pool='mean', pos_enc='fixed',
    # dropout=0.0 (identity at inference).
    B, S, E, H = 2, 8, 32, 4          # batch, seq_length, embed_dim, num_heads
    L, F, C, V = 2, 4 * E, 2, 100     # num_layers, fc_dim(=4E), classes, vocab

    key = jax.random.PRNGKey(0)
    k_params, k_tokens = jax.random.split(key)
    params = init_params(k_params, num_tokens=V, embed_dim=E, num_heads=H,
                         num_layers=L, fc_dim=F, num_classes=C)
    token_ids = jax.random.randint(k_tokens, (B, S), 0, V, dtype=jnp.int32)

    # One-time weight packing (hoisted out of the per-call path) + jitted forward.
    packed = pack_params(params, num_heads=H)

    out = transformer_classifier_forward(token_ids, packed, num_heads=H)
    out = jax.block_until_ready(out)

    ref = _reference(token_ids, params, num_heads=H)
    assert out.shape == (B, C)
    max_err = jnp.max(jnp.abs(out - ref))
    assert jnp.allclose(out, ref, atol=1e-3, rtol=1e-3), \
        f"Pallas output mismatch vs reference (max |diff| = {max_err})"

    print("KERNEL_OK")
</pallas_src>

<mosaic_0001>
module attributes {stable_mosaic.version = 11 : i64} {
  func.func @_transformer_kernel(%arg0: memref<16x1xi32, #tpu.memory_space<vmem>>, %arg1: memref<128x32xf32, #tpu.memory_space<vmem>>, %arg2: memref<16x32xf32, #tpu.memory_space<vmem>>, %arg3: memref<2x32x96xf32, #tpu.memory_space<vmem>>, %arg4: memref<2x32x32xf32, #tpu.memory_space<vmem>>, %arg5: memref<2x32x128xf32, #tpu.memory_space<vmem>>, %arg6: memref<2x128x32xf32, #tpu.memory_space<vmem>>, %arg7: memref<2x8x128xf32, #tpu.memory_space<vmem>>, %arg8: memref<33x2xf32, #tpu.memory_space<vmem>>, %arg9: memref<2x2xf32, #tpu.memory_space<vmem>>) attributes {dimension_semantics = [], scalar_prefetch = 0 : i64, scratch_operands = 0 : i64, tpu.core_type = #tpu.core_type<tc>} {
    %c0 = arith.constant 0 : index
    %c0_0 = arith.constant 0 : index
    %0 = vector.load %arg0[%c0, %c0_0] : memref<16x1xi32, #tpu.memory_space<vmem>>, vector<16x1xi32>
    %1 = tpu.iota {dimensions = array<i32: 1>} : vector<16x128xi32>
    %2 = vector.broadcast %0 : vector<16x1xi32> to vector<16x128xi32>
    %3 = arith.cmpi eq, %1, %2 : vector<16x128xi32>
    %cst = arith.constant 1.000000e+00 : f32
    %cst_1 = arith.constant 0.000000e+00 : f32
    %4 = vector.broadcast %cst : f32 to vector<16x128xf32>
    %5 = vector.broadcast %cst_1 : f32 to vector<16x128xf32>
    %6 = arith.select %3, %4, %5 : vector<16x128xi1>, vector<16x128xf32>
    %c0_2 = arith.constant 0 : index
    %c0_3 = arith.constant 0 : index
    %7 = vector.load %arg1[%c0_2, %c0_3] : memref<128x32xf32, #tpu.memory_space<vmem>>, vector<128x32xf32>
    %cst_4 = arith.constant dense<0.000000e+00> : vector<16x32xf32>
    %8 = tpu.matmul %6, %7, %cst_4 {dimension_numbers = #tpu.dot_dimension_numbers<[1], [0], [0], [1], [0, 0, 1, 1], [], []>, precision = #tpu.contract_precision<fp32>} : vector<16x128xf32>, vector<128x32xf32>, vector<16x32xf32> -> vector<16x32xf32>
    %c0_5 = arith.constant 0 : index
    %c0_6 = arith.constant 0 : index
    %9 = vector.load %arg2[%c0_5, %c0_6] : memref<16x32xf32, #tpu.memory_space<vmem>>, vector<16x32xf32>
    %10 = arith.addf %8, %9 : vector<16x32xf32>
    %c0_7 = arith.constant 0 : index
    %c0_8 = arith.constant 0 : index
    %c0_9 = arith.constant 0 : index
    %11 = vector.load %arg7[%c0_7, %c0_8, %c0_9] : memref<2x8x128xf32, #tpu.memory_space<vmem>>, vector<1x8x128xf32>
    %12 = vector.shape_cast %11 : vector<1x8x128xf32> to vector<8x128xf32>
    %13 = vector.extract_strided_slice %12 {offsets = [0, 0], sizes = [1, 128], strides = [1, 1]} : vector<8x128xf32> to vector<1x128xf32>
    %14 = vector.extract_strided_slice %12 {offsets = [1, 0], sizes = [1, 32], strides = [1, 1]} : vector<8x128xf32> to vector<1x32xf32>
    %15 = vector.extract_strided_slice %12 {offsets = [2, 0], sizes = [1, 32], strides = [1, 1]} : vector<8x128xf32> to vector<1x32xf32>
    %16 = vector.extract_strided_slice %12 {offsets = [3, 0], sizes = [1, 32], strides = [1, 1]} : vector<8x128xf32> to vector<1x32xf32>
    %17 = vector.extract_strided_slice %12 {offsets = [4, 0], sizes = [1, 32], strides = [1, 1]} : vector<8x128xf32> to vector<1x32xf32>
    %18 = vector.extract_strided_slice %12 {offsets = [5, 0], sizes = [1, 32], strides = [1, 1]} : vector<8x128xf32> to vector<1x32xf32>
    %19 = vector.extract_strided_slice %12 {offsets = [6, 0], sizes = [1, 32], strides = [1, 1]} : vector<8x128xf32> to vector<1x32xf32>
    %c0_10 = arith.constant 0 : index
    %c0_11 = arith.constant 0 : index
    %c0_12 = arith.constant 0 : index
    %20 = vector.load %arg3[%c0_10, %c0_11, %c0_12] : memref<2x32x96xf32, #tpu.memory_space<vmem>>, vector<1x32x96xf32>
    %21 = vector.shape_cast %20 : vector<1x32x96xf32> to vector<32x96xf32>
    %cst_13 = arith.constant dense<0.000000e+00> : vector<16x96xf32>
    %22 = tpu.matmul %10, %21, %cst_13 {dimension_numbers = #tpu.dot_dimension_numbers<[1], [0], [0], [1], [0, 0, 1, 1], [], []>, precision = #tpu.contract_precision<fp32>} : vector<16x32xf32>, vector<32x96xf32>, vector<16x96xf32> -> vector<16x96xf32>
    %23 = vector.extract_strided_slice %22 {offsets = [0, 0], sizes = [8, 32], strides = [1, 1]} : vector<16x96xf32> to vector<8x32xf32>
    %24 = vector.shape_cast %23 : vector<8x32xf32> to vector<8x4x8xf32>
    %25 = vector.extract_strided_slice %22 {offsets = [0, 32], sizes = [8, 32], strides = [1, 1]} : vector<16x96xf32> to vector<8x32xf32>
    %26 = vector.shape_cast %25 : vector<8x32xf32> to vector<8x4x8xf32>
    %27 = vector.extract_strided_slice %22 {offsets = [0, 64], sizes = [8, 32], strides = [1, 1]} : vector<16x96xf32> to vector<8x32xf32>
    %28 = vector.shape_cast %27 : vector<8x32xf32> to vector<8x4x8xf32>
    "tpu.trace_start"() <{level = 10 : i32, message = "shd,thd->hst"}> : () -> ()
    %cst_14 = arith.constant dense<0.000000e+00> : vector<4x8x8xf32>
    %29 = tpu.matmul %24, %26, %cst_14 {dimension_numbers = #tpu.dot_dimension_numbers<[2], [2], [0], [0], [0, 1, 0, 0, 1, 0], [1], [1]>, precision = #tpu.contract_precision<fp32>} : vector<8x4x8xf32>, vector<8x4x8xf32>, vector<4x8x8xf32> -> vector<4x8x8xf32>
    "tpu.trace_stop"() : () -> ()
    %cst_15 = arith.constant dense<0xFF800000> : vector<4x8xf32>
    %30 = vector.multi_reduction <maximumf>, %29, %cst_15 [2] : vector<4x8x8xf32> to vector<4x8xf32>
    %31 = vector.shape_cast %30 : vector<4x8xf32> to vector<4x8x1xf32>
    %32 = vector.broadcast %31 : vector<4x8x1xf32> to vector<4x8x8xf32>
    %33 = arith.subf %29, %32 : vector<4x8x8xf32>
    %34 = math.exp %33 : vector<4x8x8xf32>
    %cst_16 = arith.constant dense<0.000000e+00> : vector<4x8xf32>
    %35 = vector.multi_reduction <add>, %34, %cst_16 [2] : vector<4x8x8xf32> to vector<4x8xf32>
    %36 = vector.shape_cast %35 : vector<4x8xf32> to vector<4x8x1xf32>
    %37 = vector.broadcast %36 : vector<4x8x1xf32> to vector<4x8x8xf32>
    %38 = arith.divf %34, %37 : vector<4x8x8xf32>
    "tpu.trace_start"() <{level = 10 : i32, message = "hst,thd->shd"}> : () -> ()
    %cst_17 = arith.constant dense<0.000000e+00> : vector<4x8x8xf32>
    %39 = tpu.matmul %28, %38, %cst_17 {dimension_numbers = #tpu.dot_dimension_numbers<[0], [2], [2], [1], [0, 1, 0, 2, 1, 1], [1], [0]>, precision = #tpu.contract_precision<fp32>} : vector<8x4x8xf32>, vector<4x8x8xf32>, vector<4x8x8xf32> -> vector<4x8x8xf32>
    %40 = tpu.transpose %39, [2, 0, 1] : vector<4x8x8xf32> -> vector<8x4x8xf32>
    "tpu.trace_stop"() : () -> ()
    %41 = vector.shape_cast %40 : vector<8x4x8xf32> to vector<8x32xf32>
    %42 = vector.extract_strided_slice %22 {offsets = [8, 0], sizes = [8, 32], strides = [1, 1]} : vector<16x96xf32> to vector<8x32xf32>
    %43 = vector.shape_cast %42 : vector<8x32xf32> to vector<8x4x8xf32>
    %44 = vector.extract_strided_slice %22 {offsets = [8, 32], sizes = [8, 32], strides = [1, 1]} : vector<16x96xf32> to vector<8x32xf32>
    %45 = vector.shape_cast %44 : vector<8x32xf32> to vector<8x4x8xf32>
    %46 = vector.extract_strided_slice %22 {offsets = [8, 64], sizes = [8, 32], strides = [1, 1]} : vector<16x96xf32> to vector<8x32xf32>
    %47 = vector.shape_cast %46 : vector<8x32xf32> to vector<8x4x8xf32>
    "tpu.trace_start"() <{level = 10 : i32, message = "shd,thd->hst"}> : () -> ()
    %cst_18 = arith.constant dense<0.000000e+00> : vector<4x8x8xf32>
    %48 = tpu.matmul %43, %45, %cst_18 {dimension_numbers = #tpu.dot_dimension_numbers<[2], [2], [0], [0], [0, 1, 0, 0, 1, 0], [1], [1]>, precision = #tpu.contract_precision<fp32>} : vector<8x4x8xf32>, vector<8x4x8xf32>, vector<4x8x8xf32> -> vector<4x8x8xf32>
    "tpu.trace_stop"() : () -> ()
    %cst_19 = arith.constant dense<0xFF800000> : vector<4x8xf32>
    %49 = vector.multi_reduction <maximumf>, %48, %cst_19 [2] : vector<4x8x8xf32> to vector<4x8xf32>
    %50 = vector.shape_cast %49 : vector<4x8xf32> to vector<4x8x1xf32>
    %51 = vector.broadcast %50 : vector<4x8x1xf32> to vector<4x8x8xf32>
    %52 = arith.subf %48, %51 : vector<4x8x8xf32>
    %53 = math.exp %52 : vector<4x8x8xf32>
    %cst_20 = arith.constant dense<0.000000e+00> : vector<4x8xf32>
    %54 = vector.multi_reduction <add>, %53, %cst_20 [2] : vector<4x8x8xf32> to vector<4x8xf32>
    %55 = vector.shape_cast %54 : vector<4x8xf32> to vector<4x8x1xf32>
    %56 = vector.broadcast %55 : vector<4x8x1xf32> to vector<4x8x8xf32>
    %57 = arith.divf %53, %56 : vector<4x8x8xf32>
    "tpu.trace_start"() <{level = 10 : i32, message = "hst,thd->shd"}> : () -> ()
    %cst_21 = arith.constant dense<0.000000e+00> : vector<4x8x8xf32>
    %58 = tpu.matmul %47, %57, %cst_21 {dimension_numbers = #tpu.dot_dimension_numbers<[0], [2], [2], [1], [0, 1, 0, 2, 1, 1], [1], [0]>, precision = #tpu.contract_precision<fp32>} : vector<8x4x8xf32>, vector<4x8x8xf32>, vector<4x8x8xf32> -> vector<4x8x8xf32>
    %59 = tpu.transpose %58, [2, 0, 1] : vector<4x8x8xf32> -> vector<8x4x8xf32>
    "tpu.trace_stop"() : () -> ()
    %60 = vector.shape_cast %59 : vector<8x4x8xf32> to vector<8x32xf32>
    %61 = tpu.concatenate %41, %60 in 0 : vector<8x32xf32>, vector<8x32xf32> -> vector<16x32xf32>
    %c0_22 = arith.constant 0 : index
    %c0_23 = arith.constant 0 : index
    %c0_24 = arith.constant 0 : index
    %62 = vector.load %arg4[%c0_22, %c0_23, %c0_24] : memref<2x32x32xf32, #tpu.memory_space<vmem>>, vector<1x32x32xf32>
    %63 = vector.shape_cast %62 : vector<1x32x32xf32> to vector<32x32xf32>
    %cst_25 = arith.constant dense<0.000000e+00> : vector<16x32xf32>
    %64 = tpu.matmul %61, %63, %cst_25 {dimension_numbers = #tpu.dot_dimension_numbers<[1], [0], [0], [1], [0, 0, 1, 1], [], []>, precision = #tpu.contract_precision<fp32>} : vector<16x32xf32>, vector<32x32xf32>, vector<16x32xf32> -> vector<16x32xf32>
    %65 = vector.broadcast %14 : vector<1x32xf32> to vector<16x32xf32>
    %66 = arith.addf %64, %65 : vector<16x32xf32>
    %67 = arith.addf %66, %10 : vector<16x32xf32>
    %cst_26 = arith.constant dense<0.000000e+00> : vector<16xf32>
    %68 = vector.multi_reduction <add>, %67, %cst_26 [1] : vector<16x32xf32> to vector<16xf32>
    %69 = vector.shape_cast %68 : vector<16xf32> to vector<16x1xf32>
    %cst_27 = arith.constant 3.200000e+01 : f32
    %70 = vector.broadcast %cst_27 : f32 to vector<16x1xf32>
    %71 = arith.divf %69, %70 : vector<16x1xf32>
    %72 = vector.broadcast %71 : vector<16x1xf32> to vector<16x32xf32>
    %73 = arith.subf %67, %72 : vector<16x32xf32>
    %74 = arith.mulf %73, %73 : vector<16x32xf32>
    %cst_28 = arith.constant dense<0.000000e+00> : vector<16xf32>
    %75 = vector.multi_reduction <add>, %74, %cst_28 [1] : vector<16x32xf32> to vector<16xf32>
    %76 = vector.shape_cast %75 : vector<16xf32> to vector<16x1xf32>
    %cst_29 = arith.constant 3.200000e+01 : f32
    %77 = vector.broadcast %cst_29 : f32 to vector<16x1xf32>
    %78 = arith.divf %76, %77 : vector<16x1xf32>
    %79 = vector.broadcast %71 : vector<16x1xf32> to vector<16x32xf32>
    %80 = arith.subf %67, %79 : vector<16x32xf32>
    %cst_30 = arith.constant 9.99999974E-6 : f32
    %81 = vector.broadcast %cst_30 : f32 to vector<16x1xf32>
    %82 = arith.addf %78, %81 : vector<16x1xf32>
    %83 = math.rsqrt %82 : vector<16x1xf32>
    %84 = vector.broadcast %83 : vector<16x1xf32> to vector<16x32xf32>
    %85 = arith.mulf %80, %84 : vector<16x32xf32>
    %86 = vector.broadcast %15 : vector<1x32xf32> to vector<16x32xf32>
    %87 = arith.mulf %85, %86 : vector<16x32xf32>
    %88 = vector.broadcast %16 : vector<1x32xf32> to vector<16x32xf32>
    %89 = arith.addf %87, %88 : vector<16x32xf32>
    %c0_31 = arith.constant 0 : index
    %c0_32 = arith.constant 0 : index
    %c0_33 = arith.constant 0 : index
    %90 = vector.load %arg5[%c0_31, %c0_32, %c0_33] : memref<2x32x128xf32, #tpu.memory_space<vmem>>, vector<1x32x128xf32>
    %91 = vector.shape_cast %90 : vector<1x32x128xf32> to vector<32x128xf32>
    %cst_34 = arith.constant dense<0.000000e+00> : vector<16x128xf32>
    %92 = tpu.matmul %89, %91, %cst_34 {dimension_numbers = #tpu.dot_dimension_numbers<[1], [0], [0], [1], [0, 0, 1, 1], [], []>, precision = #tpu.contract_precision<fp32>} : vector<16x32xf32>, vector<32x128xf32>, vector<16x128xf32> -> vector<16x128xf32>
    %93 = vector.broadcast %13 : vector<1x128xf32> to vector<16x128xf32>
    %94 = arith.addf %92, %93 : vector<16x128xf32>
    %cst_35 = arith.constant 0.000000e+00 : f32
    %95 = vector.broadcast %cst_35 : f32 to vector<16x128xf32>
    %96 = arith.maximumf %94, %95 : vector<16x128xf32>
    %c0_36 = arith.constant 0 : index
    %c0_37 = arith.constant 0 : index
    %c0_38 = arith.constant 0 : index
    %97 = vector.load %arg6[%c0_36, %c0_37, %c0_38] : memref<2x128x32xf32, #tpu.memory_space<vmem>>, vector<1x128x32xf32>
    %98 = vector.shape_cast %97 : vector<1x128x32xf32> to vector<128x32xf32>
    %cst_39 = arith.constant dense<0.000000e+00> : vector<16x32xf32>
    %99 = tpu.matmul %96, %98, %cst_39 {dimension_numbers = #tpu.dot_dimension_numbers<[1], [0], [0], [1], [0, 0, 1, 1], [], []>, precision = #tpu.contract_precision<fp32>} : vector<16x128xf32>, vector<128x32xf32>, vector<16x32xf32> -> vector<16x32xf32>
    %100 = vector.broadcast %17 : vector<1x32xf32> to vector<16x32xf32>
    %101 = arith.addf %99, %100 : vector<16x32xf32>
    %102 = arith.addf %101, %89 : vector<16x32xf32>
    %cst_40 = arith.constant dense<0.000000e+00> : vector<16xf32>
    %103 = vector.multi_reduction <add>, %102, %cst_40 [1] : vector<16x32xf32> to vector<16xf32>
    %104 = vector.shape_cast %103 : vector<16xf32> to vector<16x1xf32>
    %cst_41 = arith.constant 3.200000e+01 : f32
    %105 = vector.broadcast %cst_41 : f32 to vector<16x1xf32>
    %106 = arith.divf %104, %105 : vector<16x1xf32>
    %107 = vector.broadcast %106 : vector<16x1xf32> to vector<16x32xf32>
    %108 = arith.subf %102, %107 : vector<16x32xf32>
    %109 = arith.mulf %108, %108 : vector<16x32xf32>
    %cst_42 = arith.constant dense<0.000000e+00> : vector<16xf32>
    %110 = vector.multi_reduction <add>, %109, %cst_42 [1] : vector<16x32xf32> to vector<16xf32>
    %111 = vector.shape_cast %110 : vector<16xf32> to vector<16x1xf32>
    %cst_43 = arith.constant 3.200000e+01 : f32
    %112 = vector.broadcast %cst_43 : f32 to vector<16x1xf32>
    %113 = arith.divf %111, %112 : vector<16x1xf32>
    %114 = vector.broadcast %106 : vector<16x1xf32> to vector<16x32xf32>
    %115 = arith.subf %102, %114 : vector<16x32xf32>
    %cst_44 = arith.constant 9.99999974E-6 : f32
    %116 = vector.broadcast %cst_44 : f32 to vector<16x1xf32>
    %117 = arith.addf %113, %116 : vector<16x1xf32>
    %118 = math.rsqrt %117 : vector<16x1xf32>
    %119 = vector.broadcast %118 : vector<16x1xf32> to vector<16x32xf32>
    %120 = arith.mulf %115, %119 : vector<16x32xf32>
    %121 = vector.broadcast %18 : vector<1x32xf32> to vector<16x32xf32>
    %122 = arith.mulf %120, %121 : vector<16x32xf32>
    %123 = vector.broadcast %19 : vector<1x32xf32> to vector<16x32xf32>
    %124 = arith.addf %122, %123 : vector<16x32xf32>
    %c1 = arith.constant 1 : index
    %c0_45 = arith.constant 0 : index
    %c0_46 = arith.constant 0 : index
    %125 = vector.load %arg7[%c1, %c0_45, %c0_46] : memref<2x8x128xf32, #tpu.memory_space<vmem>>, vector<1x8x128xf32>
    %126 = vector.shape_cast %125 : vector<1x8x128xf32> to vector<8x128xf32>
    %127 = vector.extract_strided_slice %126 {offsets = [0, 0], sizes = [1, 128], strides = [1, 1]} : vector<8x128xf32> to vector<1x128xf32>
    %128 = vector.extract_strided_slice %126 {offsets = [1, 0], sizes = [1, 32], strides = [1, 1]} : vector<8x128xf32> to vector<1x32xf32>
    %129 = vector.extract_strided_slice %126 {offsets = [2, 0], sizes = [1, 32], strides = [1, 1]} : vector<8x128xf32> to vector<1x32xf32>
    %130 = vector.extract_strided_slice %126 {offsets = [3, 0], sizes = [1, 32], strides = [1, 1]} : vector<8x128xf32> to vector<1x32xf32>
    %131 = vector.extract_strided_slice %126 {offsets = [4, 0], sizes = [1, 32], strides = [1, 1]} : vector<8x128xf32> to vector<1x32xf32>
    %132 = vector.extract_strided_slice %126 {offsets = [5, 0], sizes = [1, 32], strides = [1, 1]} : vector<8x128xf32> to vector<1x32xf32>
    %133 = vector.extract_strided_slice %126 {offsets = [6, 0], sizes = [1, 32], strides = [1, 1]} : vector<8x128xf32> to vector<1x32xf32>
    %c1_47 = arith.constant 1 : index
    %c0_48 = arith.constant 0 : index
    %c0_49 = arith.constant 0 : index
    %134 = vector.load %arg3[%c1_47, %c0_48, %c0_49] : memref<2x32x96xf32, #tpu.memory_space<vmem>>, vector<1x32x96xf32>
    %135 = vector.shape_cast %134 : vector<1x32x96xf32> to vector<32x96xf32>
    %cst_50 = arith.constant dense<0.000000e+00> : vector<16x96xf32>
    %136 = tpu.matmul %124, %135, %cst_50 {dimension_numbers = #tpu.dot_dimension_numbers<[1], [0], [0], [1], [0, 0, 1, 1], [], []>, precision = #tpu.contract_precision<fp32>} : vector<16x32xf32>, vector<32x96xf32>, vector<16x96xf32> -> vector<16x96xf32>
    %137 = vector.extract_strided_slice %136 {offsets = [0, 0], sizes = [8, 32], strides = [1, 1]} : vector<16x96xf32> to vector<8x32xf32>
    %138 = vector.shape_cast %137 : vector<8x32xf32> to vector<8x4x8xf32>
    %139 = vector.extract_strided_slice %136 {offsets = [0, 32], sizes = [8, 32], strides = [1, 1]} : vector<16x96xf32> to vector<8x32xf32>
    %140 = vector.shape_cast %139 : vector<8x32xf32> to vector<8x4x8xf32>
    %141 = vector.extract_strided_slice %136 {offsets = [0, 64], sizes = [8, 32], strides = [1, 1]} : vector<16x96xf32> to vector<8x32xf32>
    %142 = vector.shape_cast %141 : vector<8x32xf32> to vector<8x4x8xf32>
    "tpu.trace_start"() <{level = 10 : i32, message = "shd,thd->hst"}> : () -> ()
    %cst_51 = arith.constant dense<0.000000e+00> : vector<4x8x8xf32>
    %143 = tpu.matmul %138, %140, %cst_51 {dimension_numbers = #tpu.dot_dimension_numbers<[2], [2], [0], [0], [0, 1, 0, 0, 1, 0], [1], [1]>, precision = #tpu.contract_precision<fp32>} : vector<8x4x8xf32>, vector<8x4x8xf32>, vector<4x8x8xf32> -> vector<4x8x8xf32>
    "tpu.trace_stop"() : () -> ()
    %cst_52 = arith.constant dense<0xFF800000> : vector<4x8xf32>
    %144 = vector.multi_reduction <maximumf>, %143, %cst_52 [2] : vector<4x8x8xf32> to vector<4x8xf32>
    %145 = vector.shape_cast %144 : vector<4x8xf32> to vector<4x8x1xf32>
    %146 = vector.broadcast %145 : vector<4x8x1xf32> to vector<4x8x8xf32>
    %147 = arith.subf %143, %146 : vector<4x8x8xf32>
    %148 = math.exp %147 : vector<4x8x8xf32>
    %cst_53 = arith.constant dense<0.000000e+00> : vector<4x8xf32>
    %149 = vector.multi_reduction <add>, %148, %cst_53 [2] : vector<4x8x8xf32> to vector<4x8xf32>
    %150 = vector.shape_cast %149 : vector<4x8xf32> to vector<4x8x1xf32>
    %151 = vector.broadcast %150 : vector<4x8x1xf32> to vector<4x8x8xf32>
    %152 = arith.divf %148, %151 : vector<4x8x8xf32>
    "tpu.trace_start"() <{level = 10 : i32, message = "hst,thd->shd"}> : () -> ()
    %cst_54 = arith.constant dense<0.000000e+00> : vector<4x8x8xf32>
    %153 = tpu.matmul %142, %152, %cst_54 {dimension_numbers = #tpu.dot_dimension_numbers<[0], [2], [2], [1], [0, 1, 0, 2, 1, 1], [1], [0]>, precision = #tpu.contract_precision<fp32>} : vector<8x4x8xf32>, vector<4x8x8xf32>, vector<4x8x8xf32> -> vector<4x8x8xf32>
    %154 = tpu.transpose %153, [2, 0, 1] : vector<4x8x8xf32> -> vector<8x4x8xf32>
    "tpu.trace_stop"() : () -> ()
    %155 = vector.shape_cast %154 : vector<8x4x8xf32> to vector<8x32xf32>
    %156 = vector.extract_strided_slice %136 {offsets = [8, 0], sizes = [8, 32], strides = [1, 1]} : vector<16x96xf32> to vector<8x32xf32>
    %157 = vector.shape_cast %156 : vector<8x32xf32> to vector<8x4x8xf32>
    %158 = vector.extract_strided_slice %136 {offsets = [8, 32], sizes = [8, 32], strides = [1, 1]} : vector<16x96xf32> to vector<8x32xf32>
    %159 = vector.shape_cast %158 : vector<8x32xf32> to vector<8x4x8xf32>
    %160 = vector.extract_strided_slice %136 {offsets = [8, 64], sizes = [8, 32], strides = [1, 1]} : vector<16x96xf32> to vector<8x32xf32>
    %161 = vector.shape_cast %160 : vector<8x32xf32> to vector<8x4x8xf32>
    "tpu.trace_start"() <{level = 10 : i32, message = "shd,thd->hst"}> : () -> ()
    %cst_55 = arith.constant dense<0.000000e+00> : vector<4x8x8xf32>
    %162 = tpu.matmul %157, %159, %cst_55 {dimension_numbers = #tpu.dot_dimension_numbers<[2], [2], [0], [0], [0, 1, 0, 0, 1, 0], [1], [1]>, precision = #tpu.contract_precision<fp32>} : vector<8x4x8xf32>, vector<8x4x8xf32>, vector<4x8x8xf32> -> vector<4x8x8xf32>
    "tpu.trace_stop"() : () -> ()
    %cst_56 = arith.constant dense<0xFF800000> : vector<4x8xf32>
    %163 = vector.multi_reduction <maximumf>, %162, %cst_56 [2] : vector<4x8x8xf32> to vector<4x8xf32>
    %164 = vector.shape_cast %163 : vector<4x8xf32> to vector<4x8x1xf32>
    %165 = vector.broadcast %164 : vector<4x8x1xf32> to vector<4x8x8xf32>
    %166 = arith.subf %162, %165 : vector<4x8x8xf32>
    %167 = math.exp %166 : vector<4x8x8xf32>
    %cst_57 = arith.constant dense<0.000000e+00> : vector<4x8xf32>
    %168 = vector.multi_reduction <add>, %167, %cst_57 [2] : vector<4x8x8xf32> to vector<4x8xf32>
    %169 = vector.shape_cast %168 : vector<4x8xf32> to vector<4x8x1xf32>
    %170 = vector.broadcast %169 : vector<4x8x1xf32> to vector<4x8x8xf32>
    %171 = arith.divf %167, %170 : vector<4x8x8xf32>
    "tpu.trace_start"() <{level = 10 : i32, message = "hst,thd->shd"}> : () -> ()
    %cst_58 = arith.constant dense<0.000000e+00> : vector<4x8x8xf32>
    %172 = tpu.matmul %161, %171, %cst_58 {dimension_numbers = #tpu.dot_dimension_numbers<[0], [2], [2], [1], [0, 1, 0, 2, 1, 1], [1], [0]>, precision = #tpu.contract_precision<fp32>} : vector<8x4x8xf32>, vector<4x8x8xf32>, vector<4x8x8xf32> -> vector<4x8x8xf32>
    %173 = tpu.transpose %172, [2, 0, 1] : vector<4x8x8xf32> -> vector<8x4x8xf32>
    "tpu.trace_stop"() : () -> ()
    %174 = vector.shape_cast %173 : vector<8x4x8xf32> to vector<8x32xf32>
    %175 = tpu.concatenate %155, %174 in 0 : vector<8x32xf32>, vector<8x32xf32> -> vector<16x32xf32>
    %c1_59 = arith.constant 1 : index
    %c0_60 = arith.constant 0 : index
    %c0_61 = arith.constant 0 : index
    %176 = vector.load %arg4[%c1_59, %c0_60, %c0_61] : memref<2x32x32xf32, #tpu.memory_space<vmem>>, vector<1x32x32xf32>
    %177 = vector.shape_cast %176 : vector<1x32x32xf32> to vector<32x32xf32>
    %cst_62 = arith.constant dense<0.000000e+00> : vector<16x32xf32>
    %178 = tpu.matmul %175, %177, %cst_62 {dimension_numbers = #tpu.dot_dimension_numbers<[1], [0], [0], [1], [0, 0, 1, 1], [], []>, precision = #tpu.contract_precision<fp32>} : vector<16x32xf32>, vector<32x32xf32>, vector<16x32xf32> -> vector<16x32xf32>
    %179 = vector.broadcast %128 : vector<1x32xf32> to vector<16x32xf32>
    %180 = arith.addf %178, %179 : vector<16x32xf32>
    %181 = arith.addf %180, %124 : vector<16x32xf32>
    %cst_63 = arith.constant dense<0.000000e+00> : vector<16xf32>
    %182 = vector.multi_reduction <add>, %181, %cst_63 [1] : vector<16x32xf32> to vector<16xf32>
    %183 = vector.shape_cast %182 : vector<16xf32> to vector<16x1xf32>
    %cst_64 = arith.constant 3.200000e+01 : f32
    %184 = vector.broadcast %cst_64 : f32 to vector<16x1xf32>
    %185 = arith.divf %183, %184 : vector<16x1xf32>
    %186 = vector.broadcast %185 : vector<16x1xf32> to vector<16x32xf32>
    %187 = arith.subf %181, %186 : vector<16x32xf32>
    %188 = arith.mulf %187, %187 : vector<16x32xf32>
    %cst_65 = arith.constant dense<0.000000e+00> : vector<16xf32>
    %189 = vector.multi_reduction <add>, %188, %cst_65 [1] : vector<16x32xf32> to vector<16xf32>
    %190 = vector.shape_cast %189 : vector<16xf32> to vector<16x1xf32>
    %cst_66 = arith.constant 3.200000e+01 : f32
    %191 = vector.broadcast %cst_66 : f32 to vector<16x1xf32>
    %192 = arith.divf %190, %191 : vector<16x1xf32>
    %193 = vector.broadcast %185 : vector<16x1xf32> to vector<16x32xf32>
    %194 = arith.subf %181, %193 : vector<16x32xf32>
    %cst_67 = arith.constant 9.99999974E-6 : f32
    %195 = vector.broadcast %cst_67 : f32 to vector<16x1xf32>
    %196 = arith.addf %192, %195 : vector<16x1xf32>
    %197 = math.rsqrt %196 : vector<16x1xf32>
    %198 = vector.broadcast %197 : vector<16x1xf32> to vector<16x32xf32>
    %199 = arith.mulf %194, %198 : vector<16x32xf32>
    %200 = vector.broadcast %129 : vector<1x32xf32> to vector<16x32xf32>
    %201 = arith.mulf %199, %200 : vector<16x32xf32>
    %202 = vector.broadcast %130 : vector<1x32xf32> to vector<16x32xf32>
    %203 = arith.addf %201, %202 : vector<16x32xf32>
    %c1_68 = arith.constant 1 : index
    %c0_69 = arith.constant 0 : index
    %c0_70 = arith.constant 0 : index
    %204 = vector.load %arg5[%c1_68, %c0_69, %c0_70] : memref<2x32x128xf32, #tpu.memory_space<vmem>>, vector<1x32x128xf32>
    %205 = vector.shape_cast %204 : vector<1x32x128xf32> to vector<32x128xf32>
    %cst_71 = arith.constant dense<0.000000e+00> : vector<16x128xf32>
    %206 = tpu.matmul %203, %205, %cst_71 {dimension_numbers = #tpu.dot_dimension_numbers<[1], [0], [0], [1], [0, 0, 1, 1], [], []>, precision = #tpu.contract_precision<fp32>} : vector<16x32xf32>, vector<32x128xf32>, vector<16x128xf32> -> vector<16x128xf32>
    %207 = vector.broadcast %127 : vector<1x128xf32> to vector<16x128xf32>
    %208 = arith.addf %206, %207 : vector<16x128xf32>
    %cst_72 = arith.constant 0.000000e+00 : f32
    %209 = vector.broadcast %cst_72 : f32 to vector<16x128xf32>
    %210 = arith.maximumf %208, %209 : vector<16x128xf32>
    %c1_73 = arith.constant 1 : index
    %c0_74 = arith.constant 0 : index
    %c0_75 = arith.constant 0 : index
    %211 = vector.load %arg6[%c1_73, %c0_74, %c0_75] : memref<2x128x32xf32, #tpu.memory_space<vmem>>, vector<1x128x32xf32>
    %212 = vector.shape_cast %211 : vector<1x128x32xf32> to vector<128x32xf32>
    %cst_76 = arith.constant dense<0.000000e+00> : vector<16x32xf32>
    %213 = tpu.matmul %210, %212, %cst_76 {dimension_numbers = #tpu.dot_dimension_numbers<[1], [0], [0], [1], [0, 0, 1, 1], [], []>, precision = #tpu.contract_precision<fp32>} : vector<16x128xf32>, vector<128x32xf32>, vector<16x32xf32> -> vector<16x32xf32>
    %214 = vector.broadcast %131 : vector<1x32xf32> to vector<16x32xf32>
    %215 = arith.addf %213, %214 : vector<16x32xf32>
    %216 = arith.addf %215, %203 : vector<16x32xf32>
    %cst_77 = arith.constant dense<0.000000e+00> : vector<16xf32>
    %217 = vector.multi_reduction <add>, %216, %cst_77 [1] : vector<16x32xf32> to vector<16xf32>
    %218 = vector.shape_cast %217 : vector<16xf32> to vector<16x1xf32>
    %cst_78 = arith.constant 3.200000e+01 : f32
    %219 = vector.broadcast %cst_78 : f32 to vector<16x1xf32>
    %220 = arith.divf %218, %219 : vector<16x1xf32>
    %221 = vector.broadcast %220 : vector<16x1xf32> to vector<16x32xf32>
    %222 = arith.subf %216, %221 : vector<16x32xf32>
    %223 = arith.mulf %222, %222 : vector<16x32xf32>
    %cst_79 = arith.constant dense<0.000000e+00> : vector<16xf32>
    %224 = vector.multi_reduction <add>, %223, %cst_79 [1] : vector<16x32xf32> to vector<16xf32>
    %225 = vector.shape_cast %224 : vector<16xf32> to vector<16x1xf32>
    %cst_80 = arith.constant 3.200000e+01 : f32
    %226 = vector.broadcast %cst_80 : f32 to vector<16x1xf32>
    %227 = arith.divf %225, %226 : vector<16x1xf32>
    %228 = vector.broadcast %220 : vector<16x1xf32> to vector<16x32xf32>
    %229 = arith.subf %216, %228 : vector<16x32xf32>
    %cst_81 = arith.constant 9.99999974E-6 : f32
    %230 = vector.broadcast %cst_81 : f32 to vector<16x1xf32>
    %231 = arith.addf %227, %230 : vector<16x1xf32>
    %232 = math.rsqrt %231 : vector<16x1xf32>
    %233 = vector.broadcast %232 : vector<16x1xf32> to vector<16x32xf32>
    %234 = arith.mulf %229, %233 : vector<16x32xf32>
    %235 = vector.broadcast %132 : vector<1x32xf32> to vector<16x32xf32>
    %236 = arith.mulf %234, %235 : vector<16x32xf32>
    %237 = vector.broadcast %133 : vector<1x32xf32> to vector<16x32xf32>
    %238 = arith.addf %236, %237 : vector<16x32xf32>
    %239 = vector.shape_cast %238 : vector<16x32xf32> to vector<2x8x32xf32>
    %cst_82 = arith.constant dense<0.000000e+00> : vector<2x32xf32>
    %240 = vector.multi_reduction <add>, %239, %cst_82 [1] : vector<2x8x32xf32> to vector<2x32xf32>
    %cst_83 = arith.constant 8.000000e+00 : f32
    %241 = vector.broadcast %cst_83 : f32 to vector<2x32xf32>
    %242 = arith.divf %240, %241 : vector<2x32xf32>
    %c0_84 = arith.constant 0 : index
    %c0_85 = arith.constant 0 : index
    %243 = vector.load %arg8[%c0_84, %c0_85] : memref<33x2xf32, #tpu.memory_space<vmem>>, vector<33x2xf32>
    %244 = vector.extract_strided_slice %243 {offsets = [0, 0], sizes = [32, 2], strides = [1, 1]} : vector<33x2xf32> to vector<32x2xf32>
    %cst_86 = arith.constant dense<0.000000e+00> : vector<2x2xf32>
    %245 = tpu.matmul %242, %244, %cst_86 {dimension_numbers = #tpu.dot_dimension_numbers<[1], [0], [0], [1], [0, 0, 1, 1], [], []>, precision = #tpu.contract_precision<fp32>} : vector<2x32xf32>, vector<32x2xf32>, vector<2x2xf32> -> vector<2x2xf32>
    %246 = vector.extract_strided_slice %243 {offsets = [32, 0], sizes = [1, 2], strides = [1, 1]} : vector<33x2xf32> to vector<1x2xf32>
    %247 = vector.broadcast %246 : vector<1x2xf32> to vector<2x2xf32>
    %248 = arith.addf %245, %247 : vector<2x2xf32>
    %c0_87 = arith.constant 0 : index
    %c0_88 = arith.constant 0 : index
    %249 = vector.load %arg9[%c0_87, %c0_88] : memref<2x2xf32, #tpu.memory_space<vmem>>, vector<2x2xf32>
    tpu.vector_store %arg9[%c0_87, %c0_88], %248 {strides = array<i32>} : memref<2x2xf32, #tpu.memory_space<vmem>>, vector<2x2xf32>,
    return
  }
}

</mosaic_0001>

<llo_original>
// kernel: transformer_classifier_forward.1
$region0: #{transformer_classifier_forward.1}
  #allocation0 [shape = 'u32[]', space=smem, size = 0x4, offset = 0x4, fixed_abs, tag = 'smem constant byte address 0x4 - core index']
  #allocation1 [shape = 'u32[72,128]{1,0:T(1,128)}', space=vmem, size = 0x9000, scoped, tag = 'internal scratch']
  %s0 = inlined_call_operand.vmem [shape: s32[16,1], index: 0, kind: input, shape index: {}]
  %s1 = inlined_call_operand.vmem [shape: f32[128,32], index: 1, kind: input, shape index: {}]
  %s2 = inlined_call_operand.vmem [shape: f32[16,32], index: 2, kind: input, shape index: {}]
  %s3 = inlined_call_operand.vmem [shape: f32[2,32,96], index: 3, kind: input, shape index: {}]
  %s4 = inlined_call_operand.vmem [shape: f32[2,32,32], index: 4, kind: input, shape index: {}]
  %s5 = inlined_call_operand.vmem [shape: f32[2,32,128], index: 5, kind: input, shape index: {}]
  %s6 = inlined_call_operand.vmem [shape: f32[2,128,32], index: 6, kind: input, shape index: {}]
  %s7 = inlined_call_operand.vmem [shape: f32[2,8,128], index: 7, kind: input, shape index: {}]
  %s8 = inlined_call_operand.vmem [shape: f32[33,2], index: 8, kind: input, shape index: {}]
  %s9 = inlined_call_operand.hbm [shape: f32[2,2], index: 9, kind: output, shape index: {}]
  %s10 = sld [smem:[#allocation0]]
  $region46: #{transformer_classifier_forward.1} parent=0
    _
  %s12 = ssub.s32 1, %s10
  %s13 = scalar_select 0, %s12, %s10
  $region1: #{transformer_classifier_forward.1} parent=0
    #allocation2 [shape = 'u8[1024]{0}', space=vmem, size = 0x400, scoped, tag = 'output window, operand 0, single buffered']
    #allocation3 [shape = 's32[1]{0}', space=sflag, size = 0x4, scoped, tag = 'scoped memory for transformer_classifier_forward.1']
    %14 = vsyncpa [#allocation3], 0
    // Predicated region
    $region2: #{transformer_classifier_forward.1} parent=1 // pred_check
      _
    $region3: #{transformer_classifier_forward.1} parent=1 // pred_check_branch
      %16 = sbr.rel (0) target = $region5
    $region4: #{transformer_classifier_forward.1} parent=1 // pred_region
      _
    $region5: #{transformer_classifier_forward.1} parent=1 // pred_fallthru
      _
    // Predicated region
    $region6: #{transformer_classifier_forward.1} parent=1 // pred_check
      _
    $region7: #{transformer_classifier_forward.1} parent=1 // pred_check_branch
      %18 = sbr.rel (0) target = $region9
    $region8: #{transformer_classifier_forward.1} parent=1 // pred_region
      _
    $region9: #{transformer_classifier_forward.1} parent=1 // pred_fallthru
      _
    // Predicated region
    $region10: #{transformer_classifier_forward.1} parent=1 // pred_check
      _
    $region11: #{transformer_classifier_forward.1} parent=1 // pred_check_branch
      %20 = sbr.rel (0) target = $region13
    $region12: #{transformer_classifier_forward.1} parent=1 // pred_region
      _
    $region13: #{transformer_classifier_forward.1} parent=1 // pred_fallthru
      _
    // Predicated region
    $region14: #{transformer_classifier_forward.1} parent=1 // pred_check
      _
    $region15: #{transformer_classifier_forward.1} parent=1 // pred_check_branch
      %22 = sbr.rel (0) target = $region17
    $region16: #{transformer_classifier_forward.1} parent=1 // pred_region
      _
    $region17: #{transformer_classifier_forward.1} parent=1 // pred_fallthru
      _
    // Predicated region
    $region18: #{transformer_classifier_forward.1} parent=1 // pred_check
      _
    $region19: #{transformer_classifier_forward.1} parent=1 // pred_check_branch
      %24 = sbr.rel (0) target = $region21
    $region20: #{transformer_classifier_forward.1} parent=1 // pred_region
      _
    $region21: #{transformer_classifier_forward.1} parent=1 // pred_fallthru
      _
    // Predicated region
    $region22: #{transformer_classifier_forward.1} parent=1 // pred_check
      _
    $region23: #{transformer_classifier_forward.1} parent=1 // pred_check_branch
      %26 = sbr.rel (0) target = $region25
    $region24: #{transformer_classifier_forward.1} parent=1 // pred_region
      _
    $region25: #{transformer_classifier_forward.1} parent=1 // pred_fallthru
      _
    // Predicated region
    $region26: #{transformer_classifier_forward.1} parent=1 // pred_check
      _
    $region27: #{transformer_classifier_forward.1} parent=1 // pred_check_branch
      %28 = sbr.rel (0) target = $region29
    $region28: #{transformer_classifier_forward.1} parent=1 // pred_region
      _
    $region29: #{transformer_classifier_forward.1} parent=1 // pred_fallthru
      _
    // Predicated region
    $region30: #{transformer_classifier_forward.1} parent=1 // pred_check
      _
    $region31: #{transformer_classifier_forward.1} parent=1 // pred_check_branch
      %30 = sbr.rel (0) target = $region33
    $region32: #{transformer_classifier_forward.1} parent=1 // pred_region
      _
    $region33: #{transformer_classifier_forward.1} parent=1 // pred_fallthru
      _
    // Predicated region
    $region34: #{transformer_classifier_forward.1} parent=1 // pred_check
      _
    $region35: #{transformer_classifier_forward.1} parent=1 // pred_check_branch
      %32 = sbr.rel (0) target = $region37
    $region36: #{transformer_classifier_forward.1} parent=1 // pred_region
      _
    $region37: #{transformer_classifier_forward.1} parent=1 // pred_fallthru
      _
    %v33 = vld [vmem:[%s0] sm:$0xff]
    %v34 = vld [vmem:[%s0 + $0x8] sm:$0xff]
    %v35 = vlaneseq
    %v36 = vand.u32 %v35, 127
    %37 = vset.pattern.permute.xlu0 0
    %38 = vperm.xlu0 %37, %v33
    %v39 = vpop.permute.xlu0 %38
    %40 = vset.pattern.permute.xlu0 0
    %41 = vperm.xlu0 %40, %v34
    %v42 = vpop.permute.xlu0 %41
    %vm43 = vcmp.eq.s32.totalorder %v36, %v39
    %vm44 = vcmp.eq.s32.totalorder %v36, %v42
    %v45 = vsel %vm43, 1.0, 0.0
    %v46 = vsel %vm44, 1.0, 0.0
    %v47 = vld [vmem:[%s1] sm:$0xff]
    %v48 = vld [vmem:[%s1 + $0x8] sm:$0xff]
    %v49 = vld [vmem:[%s1 + $0x10] sm:$0xff]
    %v50 = vld [vmem:[%s1 + $0x18] sm:$0xff]
    %v51 = vld [vmem:[%s1 + $0x20] sm:$0xff]
    %v52 = vld [vmem:[%s1 + $0x28] sm:$0xff]
    %v53 = vld [vmem:[%s1 + $0x30] sm:$0xff]
    %v54 = vld [vmem:[%s1 + $0x38] sm:$0xff]
    %v55 = vld [vmem:[%s1 + $0x40] sm:$0xff]
    %v56 = vld [vmem:[%s1 + $0x48] sm:$0xff]
    %v57 = vld [vmem:[%s1 + $0x50] sm:$0xff]
    %v58 = vld [vmem:[%s1 + $0x58] sm:$0xff]
    %v59 = vld [vmem:[%s1 + $0x60] sm:$0xff]
    %v60 = vld [vmem:[%s1 + $0x68] sm:$0xff]
    %v61 = vld [vmem:[%s1 + $0x70] sm:$0xff]
    %v62 = vld [vmem:[%s1 + $0x78] sm:$0xff]
    %v63 = vld [vmem:[%s2] sm:$0xff]
    %v64 = vld [vmem:[%s2 + $0x8] sm:$0xff]
    %v65 = vand.u32 %v62, 4294901760
    %66 = vmatpush.msra.mxu0 %v65
    %v67 = vand.u32 %v61, 4294901760
    %68 = vmatpush.msra.mxu0 %v67
    %v69 = vand.u32 %v60, 4294901760
    %70 = vmatpush.msra.mxu0 %v69
    %v71 = vand.u32 %v59, 4294901760
    %72 = vmatpush.msra.mxu0 %v71
    %v73 = vand.u32 %v58, 4294901760
    %74 = vmatpush.msra.mxu0 %v73
    %v75 = vand.u32 %v57, 4294901760
    %76 = vmatpush.msra.mxu0 %v75
    %v77 = vand.u32 %v56, 4294901760
    %78 = vmatpush.msra.mxu0 %v77
    %v79 = vand.u32 %v55, 4294901760
    %80 = vmatpush.msra.mxu0 %v79
    %v81 = vand.u32 %v54, 4294901760
    %82 = vmatpush.msra.mxu0 %v81
    %v83 = vand.u32 %v53, 4294901760
    %84 = vmatpush.msra.mxu0 %v83
    %v85 = vand.u32 %v52, 4294901760
    %86 = vmatpush.msra.mxu0 %v85
    %v87 = vand.u32 %v51, 4294901760
    %88 = vmatpush.msra.mxu0 %v87
    %v89 = vand.u32 %v50, 4294901760
    %90 = vmatpush.msra.mxu0 %v89
    %v91 = vand.u32 %v49, 4294901760
    %92 = vmatpush.msra.mxu0 %v91
    %v93 = vand.u32 %v48, 4294901760
    %94 = vmatpush.msra.mxu0 %v93
    %v95 = vand.u32 %v47, 4294901760
    %96 = vmatpush.msra.mxu0 %v95
    %v97 = vsub.f32 %v45, %v45
    %v98 = vand.u32 %v97, 4294901760
    %v99 = vsub.f32 %v97, %v98
    %v100 = vand.u32 %v99, 4294901760
    %101 = vmatmul.f32.gmra.mxu0 %v100
    %v102 = vpop.f32.mrf.mxu0
    %v103 = vadd.f32 %v63, %v102
    %v104 = vsub.f32 %v46, %v46
    %v105 = vand.u32 %v104, 4294901760
    %v106 = vsub.f32 %v104, %v105
    %v107 = vand.u32 %v106, 4294901760
    %108 = vmatmul.f32.gmra.mxu0 %v107
    %v109 = vpop.f32.mrf.mxu0
    %v110 = vadd.f32 %v64, %v109
    %111 = vdwg.mxu0
    %v112 = vand.u32 %v62, 4294901760
    %v113 = vsub.f32 %v62, %v112
    %v114 = vand.u32 %v113, 4294901760
    %v115 = vsub.f32 %v113, %v114
    %v116 = vand.u32 %v115, 4294901760
    %117 = vmatpush.msra.mxu0 %v116
    %v118 = vand.u32 %v61, 4294901760
    %v119 = vsub.f32 %v61, %v118
    %v120 = vand.u32 %v119, 4294901760
    %v121 = vsub.f32 %v119, %v120
    %v122 = vand.u32 %v121, 4294901760
    %123 = vmatpush.msra.mxu0 %v122
    %v124 = vand.u32 %v60, 4294901760
    %v125 = vsub.f32 %v60, %v124
    %v126 = vand.u32 %v125, 4294901760
    %v127 = vsub.f32 %v125, %v126
    %v128 = vand.u32 %v127, 4294901760
    %129 = vmatpush.msra.mxu0 %v128
    %v130 = vand.u32 %v59, 4294901760
    %v131 = vsub.f32 %v59, %v130
    %v132 = vand.u32 %v131, 4294901760
    %v133 = vsub.f32 %v131, %v132
    %v134 = vand.u32 %v133, 4294901760
    %135 = vmatpush.msra.mxu0 %v134
    %v136 = vand.u32 %v58, 4294901760
    %v137 = vsub.f32 %v58, %v136
    %v138 = vand.u32 %v137, 4294901760
    %v139 = vsub.f32 %v137, %v138
    %v140 = vand.u32 %v139, 4294901760
    %141 = vmatpush.msra.mxu0 %v140
    %v142 = vand.u32 %v57, 4294901760
    %v143 = vsub.f32 %v57, %v142
    %v144 = vand.u32 %v143, 4294901760
    %v145 = vsub.f32 %v143, %v144
    %v146 = vand.u32 %v145, 4294901760
    %147 = vmatpush.msra.mxu0 %v146
    %v148 = vand.u32 %v56, 4294901760
    %v149 = vsub.f32 %v56, %v148
    %v150 = vand.u32 %v149, 4294901760
    %v151 = vsub.f32 %v149, %v150
    %v152 = vand.u32 %v151, 4294901760
    %153 = vmatpush.msra.mxu0 %v152
    %v154 = vand.u32 %v55, 4294901760
    %v155 = vsub.f32 %v55, %v154
    %v156 = vand.u32 %v155, 4294901760
    %v157 = vsub.f32 %v155, %v156
    %v158 = vand.u32 %v157, 4294901760
    %159 = vmatpush.msra.mxu0 %v158
    %v160 = vand.u32 %v54, 4294901760
    %v161 = vsub.f32 %v54, %v160
    %v162 = vand.u32 %v161, 4294901760
    %v163 = vsub.f32 %v161, %v162
    %v164 = vand.u32 %v163, 4294901760
    %165 = vmatpush.msra.mxu0 %v164
    %v166 = vand.u32 %v53, 4294901760
    %v167 = vsub.f32 %v53, %v166
    %v168 = vand.u32 %v167, 4294901760
    %v169 = vsub.f32 %v167, %v168
    %v170 = vand.u32 %v169, 4294901760
    %171 = vmatpush.msra.mxu0 %v170
    %v172 = vand.u32 %v52, 4294901760
    %v173 = vsub.f32 %v52, %v172
    %v174 = vand.u32 %v173, 4294901760
    %v175 = vsub.f32 %v173, %v174
    %v176 = vand.u32 %v175, 4294901760
    %177 = vmatpush.msra.mxu0 %v176
    %v178 = vand.u32 %v51, 4294901760
    %v179 = vsub.f32 %v51, %v178
    %v180 = vand.u32 %v179, 4294901760
    %v181 = vsub.f32 %v179, %v180
    %v182 = vand.u32 %v181, 4294901760
    %183 = vmatpush.msra.mxu0 %v182
    %v184 = vand.u32 %v50, 4294901760
    %v185 = vsub.f32 %v50, %v184
    %v186 = vand.u32 %v185, 4294901760
    %v187 = vsub.f32 %v185, %v186
    %v188 = vand.u32 %v187, 4294901760
    %189 = vmatpush.msra.mxu0 %v188
    %v190 = vand.u32 %v49, 4294901760
    %v191 = vsub.f32 %v49, %v190
    %v192 = vand.u32 %v191, 4294901760
    %v193 = vsub.f32 %v191, %v192
    %v194 = vand.u32 %v193, 4294901760
    %195 = vmatpush.msra.mxu0 %v194
    %v196 = vand.u32 %v48, 4294901760
    %v197 = vsub.f32 %v48, %v196
    %v198 = vand.u32 %v197, 4294901760
    %v199 = vsub.f32 %v197, %v198
    %v200 = vand.u32 %v199, 4294901760
    %201 = vmatpush.msra.mxu0 %v200
    %v202 = vand.u32 %v47, 4294901760
    %v203 = vsub.f32 %v47, %v202
    %v204 = vand.u32 %v203, 4294901760
    %v205 = vsub.f32 %v203, %v204
    %v206 = vand.u32 %v205, 4294901760
    %207 = vmatpush.msra.mxu0 %v206
    %208 = vmatmul.f32.gmra.mxu0 %v45
    %v209 = vpop.f32.mrf.mxu0
    %v210 = vadd.f32 %v103, %v209
    %211 = vmatmul.f32.gmra.mxu0 %v46
    %v212 = vpop.f32.mrf.mxu0
    %v213 = vadd.f32 %v110, %v212
    %214 = vdwg.mxu0
    %v215 = vand.u32 %v62, 4294901760
    %v216 = vsub.f32 %v62, %v215
    %217 = vmatpush.msra.mxu0 %v216
    %v218 = vand.u32 %v61, 4294901760
    %v219 = vsub.f32 %v61, %v218
    %220 = vmatpush.msra.mxu0 %v219
    %v221 = vand.u32 %v60, 4294901760
    %v222 = vsub.f32 %v60, %v221
    %223 = vmatpush.msra.mxu0 %v222
    %v224 = vand.u32 %v59, 4294901760
    %v225 = vsub.f32 %v59, %v224
    %226 = vmatpush.msra.mxu0 %v225
    %v227 = vand.u32 %v58, 4294901760
    %v228 = vsub.f32 %v58, %v227
    %229 = vmatpush.msra.mxu0 %v228
    %v230 = vand.u32 %v57, 4294901760
    %v231 = vsub.f32 %v57, %v230
    %232 = vmatpush.msra.mxu0 %v231
    %v233 = vand.u32 %v56, 4294901760
    %v234 = vsub.f32 %v56, %v233
    %235 = vmatpush.msra.mxu0 %v234
    %v236 = vand.u32 %v55, 4294901760
    %v237 = vsub.f32 %v55, %v236
    %238 = vmatpush.msra.mxu0 %v237
    %v239 = vand.u32 %v54, 4294901760
    %v240 = vsub.f32 %v54, %v239
    %241 = vmatpush.msra.mxu0 %v240
    %v242 = vand.u32 %v53, 4294901760
    %v243 = vsub.f32 %v53, %v242
    %244 = vmatpush.msra.mxu0 %v243
    %v245 = vand.u32 %v52, 4294901760
    %v246 = vsub.f32 %v52, %v245
    %247 = vmatpush.msra.mxu0 %v246
    %v248 = vand.u32 %v51, 4294901760
    %v249 = vsub.f32 %v51, %v248
    %250 = vmatpush.msra.mxu0 %v249
    %v251 = vand.u32 %v50, 4294901760
    %v252 = vsub.f32 %v50, %v251
    %253 = vmatpush.msra.mxu0 %v252
    %v254 = vand.u32 %v49, 4294901760
    %v255 = vsub.f32 %v49, %v254
    %256 = vmatpush.msra.mxu0 %v255
    %v257 = vand.u32 %v48, 4294901760
    %v258 = vsub.f32 %v48, %v257
    %259 = vmatpush.msra.mxu0 %v258
    %v260 = vand.u32 %v47, 4294901760
    %v261 = vsub.f32 %v47, %v260
    %262 = vmatpush.msra.mxu0 %v261
    %v263 = vsub.f32 %v45, %v45
    %264 = vmatmul.f32.gmra.mxu0 %v263
    %v265 = vpop.f32.mrf.mxu0
    %v266 = vadd.f32 %v210, %v265
    %v267 = vsub.f32 %v46, %v46
    %268 = vmatmul.f32.gmra.mxu0 %v267
    %v269 = vpop.f32.mrf.mxu0
    %v270 = vadd.f32 %v213, %v269
    %271 = vdwg.mxu0
    %v272 = vand.u32 %v62, 4294901760
    %273 = vmatpush.msra.mxu0 %v272
    %v274 = vand.u32 %v61, 4294901760
    %275 = vmatpush.msra.mxu0 %v274
    %v276 = vand.u32 %v60, 4294901760
    %277 = vmatpush.msra.mxu0 %v276
    %v278 = vand.u32 %v59, 4294901760
    %279 = vmatpush.msra.mxu0 %v278
    %v280 = vand.u32 %v58, 4294901760
    %281 = vmatpush.msra.mxu0 %v280
    %v282 = vand.u32 %v57, 4294901760
    %283 = vmatpush.msra.mxu0 %v282
    %v284 = vand.u32 %v56, 4294901760
    %285 = vmatpush.msra.mxu0 %v284
    %v286 = vand.u32 %v55, 4294901760
    %287 = vmatpush.msra.mxu0 %v286
    %v288 = vand.u32 %v54, 4294901760
    %289 = vmatpush.msra.mxu0 %v288
    %v290 = vand.u32 %v53, 4294901760
    %291 = vmatpush.msra.mxu0 %v290
    %v292 = vand.u32 %v52, 4294901760
    %293 = vmatpush.msra.mxu0 %v292
    %v294 = vand.u32 %v51, 4294901760
    %295 = vmatpush.msra.mxu0 %v294
    %v296 = vand.u32 %v50, 4294901760
    %297 = vmatpush.msra.mxu0 %v296
    %v298 = vand.u32 %v49, 4294901760
    %299 = vmatpush.msra.mxu0 %v298
    %v300 = vand.u32 %v48, 4294901760
    %301 = vmatpush.msra.mxu0 %v300
    %v302 = vand.u32 %v47, 4294901760
    %303 = vmatpush.msra.mxu0 %v302
    %v304 = vsub.f32 %v45, %v45
    %v305 = vand.u32 %v304, 4294901760
    %306 = vmatmul.f32.gmra.mxu0 %v305
    %v307 = vpop.f32.mrf.mxu0
    %v308 = vadd.f32 %v266, %v307
    %v309 = vsub.f32 %v46, %v46
    %v310 = vand.u32 %v309, 4294901760
    %311 = vmatmul.f32.gmra.mxu0 %v310
    %v312 = vpop.f32.mrf.mxu0
    %v313 = vadd.f32 %v270, %v312
    %314 = vdwg.mxu0
    %v315 = vand.u32 %v62, 4294901760
    %v316 = vsub.f32 %v62, %v315
    %v317 = vand.u32 %v316, 4294901760
    %318 = vmatpush.msra.mxu0 %v317
    %v319 = vand.u32 %v61, 4294901760
    %v320 = vsub.f32 %v61, %v319
    %v321 = vand.u32 %v320, 4294901760
    %322 = vmatpush.msra.mxu0 %v321
    %v323 = vand.u32 %v60, 4294901760
    %v324 = vsub.f32 %v60, %v323
    %v325 = vand.u32 %v324, 4294901760
    %326 = vmatpush.msra.mxu0 %v325
    %v327 = vand.u32 %v59, 4294901760
    %v328 = vsub.f32 %v59, %v327
    %v329 = vand.u32 %v328, 4294901760
    %330 = vmatpush.msra.mxu0 %v329
    %v331 = vand.u32 %v58, 4294901760
    %v332 = vsub.f32 %v58, %v331
    %v333 = vand.u32 %v332, 4294901760
    %334 = vmatpush.msra.mxu0 %v333
    %v335 = vand.u32 %v57, 4294901760
    %v336 = vsub.f32 %v57, %v335
    %v337 = vand.u32 %v336, 4294901760
    %338 = vmatpush.msra.mxu0 %v337
    %v339 = vand.u32 %v56, 4294901760
    %v340 = vsub.f32 %v56, %v339
    %v341 = vand.u32 %v340, 4294901760
    %342 = vmatpush.msra.mxu0 %v341
    %v343 = vand.u32 %v55, 4294901760
    %v344 = vsub.f32 %v55, %v343
    %v345 = vand.u32 %v344, 4294901760
    %346 = vmatpush.msra.mxu0 %v345
    %v347 = vand.u32 %v54, 4294901760
    %v348 = vsub.f32 %v54, %v347
    %v349 = vand.u32 %v348, 4294901760
    %350 = vmatpush.msra.mxu0 %v349
    %v351 = vand.u32 %v53, 4294901760
    %v352 = vsub.f32 %v53, %v351
    %v353 = vand.u32 %v352, 4294901760
    %354 = vmatpush.msra.mxu0 %v353
    %v355 = vand.u32 %v52, 4294901760
    %v356 = vsub.f32 %v52, %v355
    %v357 = vand.u32 %v356, 4294901760
    %358 = vmatpush.msra.mxu0 %v357
    %v359 = vand.u32 %v51, 4294901760
    %v360 = vsub.f32 %v51, %v359
    %v361 = vand.u32 %v360, 4294901760
    %362 = vmatpush.msra.mxu0 %v361
    %v363 = vand.u32 %v50, 4294901760
    %v364 = vsub.f32 %v50, %v363
    %v365 = vand.u32 %v364, 4294901760
    %366 = vmatpush.msra.mxu0 %v365
    %v367 = vand.u32 %v49, 4294901760
    %v368 = vsub.f32 %v49, %v367
    %v369 = vand.u32 %v368, 4294901760
    %370 = vmatpush.msra.mxu0 %v369
    %v371 = vand.u32 %v48, 4294901760
    %v372 = vsub.f32 %v48, %v371
    %v373 = vand.u32 %v372, 4294901760
    %374 = vmatpush.msra.mxu0 %v373
    %v375 = vand.u32 %v47, 4294901760
    %v376 = vsub.f32 %v47, %v375
    %v377 = vand.u32 %v376, 4294901760
    %378 = vmatpush.msra.mxu0 %v377
    %379 = vmatmul.f32.gmra.mxu0 %v45
    %v380 = vpop.f32.mrf.mxu0
    %v381 = vadd.f32 %v308, %v380
    %382 = vmatmul.f32.gmra.mxu0 %v46
    %v383 = vpop.f32.mrf.mxu0
    %v384 = vadd.f32 %v313, %v383
    %385 = vdwg.mxu0
    %v386 = vand.u32 %v62, 4294901760
    %387 = vmatpush.msra.mxu0 %v386
    %v388 = vand.u32 %v61, 4294901760
    %389 = vmatpush.msra.mxu0 %v388
    %v390 = vand.u32 %v60, 4294901760
    %391 = vmatpush.msra.mxu0 %v390
    %v392 = vand.u32 %v59, 4294901760
    %393 = vmatpush.msra.mxu0 %v392
    %v394 = vand.u32 %v58, 4294901760
    %395 = vmatpush.msra.mxu0 %v394
    %v396 = vand.u32 %v57, 4294901760
    %397 = vmatpush.msra.mxu0 %v396
    %v398 = vand.u32 %v56, 4294901760
    %399 = vmatpush.msra.mxu0 %v398
    %v400 = vand.u32 %v55, 4294901760
    %401 = vmatpush.msra.mxu0 %v400
    %v402 = vand.u32 %v54, 4294901760
    %403 = vmatpush.msra.mxu0 %v402
    %v404 = vand.u32 %v53, 4294901760
    %405 = vmatpush.msra.mxu0 %v404
    %v406 = vand.u32 %v52, 4294901760
    %407 = vmatpush.msra.mxu0 %v406
    %v408 = vand.u32 %v51, 4294901760
    %409 = vmatpush.msra.mxu0 %v408
    %v410 = vand.u32 %v50, 4294901760
    %411 = vmatpush.msra.mxu0 %v410
    %v412 = vand.u32 %v49, 4294901760
    %413 = vmatpush.msra.mxu0 %v412
    %v414 = vand.u32 %v48, 4294901760
    %415 = vmatpush.msra.mxu0 %v414
    %v416 = vand.u32 %v47, 4294901760
    %417 = vmatpush.msra.mxu0 %v416
    %418 = vmatmul.f32.gmra.mxu0 %v45
    %v419 = vpop.f32.mrf.mxu0
    %v420 = vadd.f32 %v381, %v419
    %421 = vmatmul.f32.gmra.mxu0 %v46
    %v422 = vpop.f32.mrf.mxu0
    %v423 = vadd.f32 %v384, %v422
    %424 = vdwg.mxu0
    %v425 = vld [vmem:[%s7] sm:$0xff]
    %v426 = vld [vmem:[%s3] sm:$0xff]
    %v427 = vld [vmem:[%s3 + $0x8] sm:$0xff]
    %v428 = vld [vmem:[%s3 + $0x10] sm:$0xff]
    %v429 = vld [vmem:[%s3 + $0x18] sm:$0xff]
    %vm430 = vcmask 261120
    %v432 = vsel %vm430, %v420, 0
    %v435 = vsel %vm430, %v423, 0
    %437 = vmatpush.msra.mxu0 0.0
    %438 = vmatpush.msra.mxu0 0.0
    %439 = vmatpush.msra.mxu0 0.0
    %440 = vmatpush.msra.mxu0 0.0
    %441 = vmatpush.msra.mxu0 0.0
    %442 = vmatpush.msra.mxu0 0.0
    %443 = vmatpush.msra.mxu0 0.0
    %444 = vmatpush.msra.mxu0 0.0
    %445 = vmatpush.msra.mxu0 0.0
    %446 = vmatpush.msra.mxu0 0.0
    %447 = vmatpush.msra.mxu0 0.0
    %448 = vmatpush.msra.mxu0 0.0
    %v449 = vand.u32 %v429, 4294901760
    %450 = vmatpush.msra.mxu0 %v449
    %v451 = vand.u32 %v428, 4294901760
    %452 = vmatpush.msra.mxu0 %v451
    %v453 = vand.u32 %v427, 4294901760
    %454 = vmatpush.msra.mxu0 %v453
    %v455 = vand.u32 %v426, 4294901760
    %456 = vmatpush.msra.mxu0 %v455
    %v457 = vand.u32 %v432, 4294901760
    %v458 = vsub.f32 %v432, %v457
    %v459 = vand.u32 %v458, 4294901760
    %v460 = vsub.f32 %v458, %v459
    %v461 = vand.u32 %v460, 4294901760
    %462 = vmatmul.f32.gmra.mxu0 %v461
    %v463 = vpop.f32.mrf.mxu0
    %v464 = vadd.f32 0.0, %v463
    %v465 = vand.u32 %v435, 4294901760
    %v466 = vsub.f32 %v435, %v465
    %v467 = vand.u32 %v466, 4294901760
    %v468 = vsub.f32 %v466, %v467
    %v469 = vand.u32 %v468, 4294901760
    %470 = vmatmul.f32.gmra.mxu0 %v469
    %v471 = vpop.f32.mrf.mxu0
    %v472 = vadd.f32 0.0, %v471
    %473 = vdwg.mxu0
    %474 = vmatpush.msra.mxu0 0.0
    %475 = vmatpush.msra.mxu0 0.0
    %476 = vmatpush.msra.mxu0 0.0
    %477 = vmatpush.msra.mxu0 0.0
    %478 = vmatpush.msra.mxu0 0.0
    %479 = vmatpush.msra.mxu0 0.0
    %480 = vmatpush.msra.mxu0 0.0
    %481 = vmatpush.msra.mxu0 0.0
    %482 = vmatpush.msra.mxu0 0.0
    %483 = vmatpush.msra.mxu0 0.0
    %484 = vmatpush.msra.mxu0 0.0
    %485 = vmatpush.msra.mxu0 0.0
    %v486 = vand.u32 %v429, 4294901760
    %v487 = vsub.f32 %v429, %v486
    %v488 = vand.u32 %v487, 4294901760
    %v489 = vsub.f32 %v487, %v488
    %v490 = vand.u32 %v489, 4294901760
    %491 = vmatpush.msra.mxu0 %v490
    %v492 = vand.u32 %v428, 4294901760
    %v493 = vsub.f32 %v428, %v492
    %v494 = vand.u32 %v493, 4294901760
    %v495 = vsub.f32 %v493, %v494
    %v496 = vand.u32 %v495, 4294901760
    %497 = vmatpush.msra.mxu0 %v496
    %v498 = vand.u32 %v427, 4294901760
    %v499 = vsub.f32 %v427, %v498
    %v500 = vand.u32 %v499, 4294901760
    %v501 = vsub.f32 %v499, %v500
    %v502 = vand.u32 %v501, 4294901760
    %503 = vmatpush.msra.mxu0 %v502
    %v504 = vand.u32 %v426, 4294901760
    %v505 = vsub.f32 %v426, %v504
    %v506 = vand.u32 %v505, 4294901760
    %v507 = vsub.f32 %v505, %v506
    %v508 = vand.u32 %v507, 4294901760
    %509 = vmatpush.msra.mxu0 %v508
    %v510 = vand.u32 %v432, 4294901760
    %511 = vmatmul.f32.gmra.mxu0 %v510
    %v512 = vpop.f32.mrf.mxu0
    %v513 = vadd.f32 %v464, %v512
    %v514 = vand.u32 %v435, 4294901760
    %515 = vmatmul.f32.gmra.mxu0 %v514
    %v516 = vpop.f32.mrf.mxu0
    %v517 = vadd.f32 %v472, %v516
    %518 = vdwg.mxu0
    %519 = vmatpush.msra.mxu0 0.0
    %520 = vmatpush.msra.mxu0 0.0
    %521 = vmatpush.msra.mxu0 0.0
    %522 = vmatpush.msra.mxu0 0.0
    %523 = vmatpush.msra.mxu0 0.0
    %524 = vmatpush.msra.mxu0 0.0
    %525 = vmatpush.msra.mxu0 0.0
    %526 = vmatpush.msra.mxu0 0.0
    %527 = vmatpush.msra.mxu0 0.0
    %528 = vmatpush.msra.mxu0 0.0
    %529 = vmatpush.msra.mxu0 0.0
    %530 = vmatpush.msra.mxu0 0.0
    %v531 = vand.u32 %v429, 4294901760
    %v532 = vsub.f32 %v429, %v531
    %533 = vmatpush.msra.mxu0 %v532
    %v534 = vand.u32 %v428, 4294901760
    %v535 = vsub.f32 %v428, %v534
    %536 = vmatpush.msra.mxu0 %v535
    %v537 = vand.u32 %v427, 4294901760
    %v538 = vsub.f32 %v427, %v537
    %539 = vmatpush.msra.mxu0 %v538
    %v540 = vand.u32 %v426, 4294901760
    %v541 = vsub.f32 %v426, %v540
    %542 = vmatpush.msra.mxu0 %v541
    %v543 = vand.u32 %v432, 4294901760
    %v544 = vsub.f32 %v432, %v543
    %545 = vmatmul.f32.gmra.mxu0 %v544
    %v546 = vpop.f32.mrf.mxu0
    %v547 = vadd.f32 %v513, %v546
    %v548 = vand.u32 %v435, 4294901760
    %v549 = vsub.f32 %v435, %v548
    %550 = vmatmul.f32.gmra.mxu0 %v549
    %v551 = vpop.f32.mrf.mxu0
    %v552 = vadd.f32 %v517, %v551
    %553 = vdwg.mxu0
    %554 = vmatpush.msra.mxu0 0.0
    %555 = vmatpush.msra.mxu0 0.0
    %556 = vmatpush.msra.mxu0 0.0
    %557 = vmatpush.msra.mxu0 0.0
    %558 = vmatpush.msra.mxu0 0.0
    %559 = vmatpush.msra.mxu0 0.0
    %560 = vmatpush.msra.mxu0 0.0
    %561 = vmatpush.msra.mxu0 0.0
    %562 = vmatpush.msra.mxu0 0.0
    %563 = vmatpush.msra.mxu0 0.0
    %564 = vmatpush.msra.mxu0 0.0
    %565 = vmatpush.msra.mxu0 0.0
    %v566 = vand.u32 %v429, 4294901760
    %567 = vmatpush.msra.mxu0 %v566
    %v568 = vand.u32 %v428, 4294901760
    %569 = vmatpush.msra.mxu0 %v568
    %v570 = vand.u32 %v427, 4294901760
    %571 = vmatpush.msra.mxu0 %v570
    %v572 = vand.u32 %v426, 4294901760
    %573 = vmatpush.msra.mxu0 %v572
    %v574 = vand.u32 %v432, 4294901760
    %v575 = vsub.f32 %v432, %v574
    %v576 = vand.u32 %v575, 4294901760
    %577 = vmatmul.f32.gmra.mxu0 %v576
    %v578 = vpop.f32.mrf.mxu0
    %v579 = vadd.f32 %v547, %v578
    %v580 = vand.u32 %v435, 4294901760
    %v581 = vsub.f32 %v435, %v580
    %v582 = vand.u32 %v581, 4294901760
    %583 = vmatmul.f32.gmra.mxu0 %v582
    %v584 = vpop.f32.mrf.mxu0
    %v585 = vadd.f32 %v552, %v584
    %586 = vdwg.mxu0
    %587 = vmatpush.msra.mxu0 0.0
    %588 = vmatpush.msra.mxu0 0.0
    %589 = vmatpush.msra.mxu0 0.0
    %590 = vmatpush.msra.mxu0 0.0
    %591 = vmatpush.msra.mxu0 0.0
    %592 = vmatpush.msra.mxu0 0.0
    %593 = vmatpush.msra.mxu0 0.0
    %594 = vmatpush.msra.mxu0 0.0
    %595 = vmatpush.msra.mxu0 0.0
    %596 = vmatpush.msra.mxu0 0.0
    %597 = vmatpush.msra.mxu0 0.0
    %598 = vmatpush.msra.mxu0 0.0
    %v599 = vand.u32 %v429, 4294901760
    %v600 = vsub.f32 %v429, %v599
    %v601 = vand.u32 %v600, 4294901760
    %602 = vmatpush.msra.mxu0 %v601
    %v603 = vand.u32 %v428, 4294901760
    %v604 = vsub.f32 %v428, %v603
    %v605 = vand.u32 %v604, 4294901760
    %606 = vmatpush.msra.mxu0 %v605
    %v607 = vand.u32 %v427, 4294901760
    %v608 = vsub.f32 %v427, %v607
    %v609 = vand.u32 %v608, 4294901760
    %610 = vmatpush.msra.mxu0 %v609
    %v611 = vand.u32 %v426, 4294901760
    %v612 = vsub.f32 %v426, %v611
    %v613 = vand.u32 %v612, 4294901760
    %614 = vmatpush.msra.mxu0 %v613
    %v615 = vand.u32 %v432, 4294901760
    %616 = vmatmul.f32.gmra.mxu0 %v615
    %v617 = vpop.f32.mrf.mxu0
    %v618 = vadd.f32 %v579, %v617
    %v619 = vand.u32 %v435, 4294901760
    %620 = vmatmul.f32.gmra.mxu0 %v619
    %v621 = vpop.f32.mrf.mxu0
    %v622 = vadd.f32 %v585, %v621
    %623 = vdwg.mxu0
    %624 = vmatpush.msra.mxu0 0.0
    %625 = vmatpush.msra.mxu0 0.0
    %626 = vmatpush.msra.mxu0 0.0
    %627 = vmatpush.msra.mxu0 0.0
    %628 = vmatpush.msra.mxu0 0.0
    %629 = vmatpush.msra.mxu0 0.0
    %630 = vmatpush.msra.mxu0 0.0
    %631 = vmatpush.msra.mxu0 0.0
    %632 = vmatpush.msra.mxu0 0.0
    %633 = vmatpush.msra.mxu0 0.0
    %634 = vmatpush.msra.mxu0 0.0
    %635 = vmatpush.msra.mxu0 0.0
    %v636 = vand.u32 %v429, 4294901760
    %637 = vmatpush.msra.mxu0 %v636
    %v638 = vand.u32 %v428, 4294901760
    %639 = vmatpush.msra.mxu0 %v638
    %v640 = vand.u32 %v427, 4294901760
    %641 = vmatpush.msra.mxu0 %v640
    %v642 = vand.u32 %v426, 4294901760
    %643 = vmatpush.msra.mxu0 %v642
    %v644 = vand.u32 %v432, 4294901760
    %645 = vmatmul.f32.gmra.mxu0 %v644
    %v646 = vpop.f32.mrf.mxu0
    %v647 = vadd.f32 %v618, %v646
    %v648 = vand.u32 %v435, 4294901760
    %649 = vmatmul.f32.gmra.mxu0 %v648
    %v650 = vpop.f32.mrf.mxu0
    %v651 = vadd.f32 %v622, %v650
    %652 = vdwg.mxu0
    %654 = vrot.lane.b32.xlu0 %v647, 120
    %v655 = vpop.permute.xlu0 %654
    %656 = vrot.lane.b32.xlu0 %v647, 112
    %v657 = vpop.permute.xlu0 %656
    %658 = vrot.lane.b32.xlu0 %v647, 104
    %v659 = vpop.permute.xlu0 %658
    %660 = vrot.lane.b32.xlu0 %v647, 96
    %v661 = vpop.permute.xlu0 %660
    %662 = vrot.lane.b32.xlu0 %v655, 96
    %v663 = vpop.permute.xlu0 %662
    %664 = vrot.lane.b32.xlu0 %v657, 96
    %v665 = vpop.permute.xlu0 %664
    %666 = vrot.lane.b32.xlu0 %v659, 96
    %v667 = vpop.permute.xlu0 %666
    %672 = vxpose.xlu0.b32.start [1/16] %v661, 128
    %673 = vxpose.xlu0.b32.cont [2/16] 0.0, 128
    %674 = vxpose.xlu0.b32.cont [3/16] 0.0, 128
    %675 = vxpose.xlu0.b32.cont [4/16] 0.0, 128
    %676 = vxpose.xlu0.b32.cont [5/16] 0.0, 128
    %677 = vxpose.xlu0.b32.cont [6/16] 0.0, 128
    %678 = vxpose.xlu0.b32.cont [7/16] 0.0, 128
    %679 = vxpose.xlu0.b32.cont [8/16] 0.0, 128
    %680 = vxpose.xlu0.b32.cont [9/16] 0.0, 128
    %681 = vxpose.xlu0.b32.cont [10/16] 0.0, 128
    %682 = vxpose.xlu0.b32.cont [11/16] 0.0, 128
    %683 = vxpose.xlu0.b32.cont [12/16] 0.0, 128
    %684 = vxpose.xlu0.b32.cont [13/16] 0.0, 128
    %685 = vxpose.xlu0.b32.cont [14/16] 0.0, 128
    %686 = vxpose.xlu0.b32.cont [15/16] 0.0, 128
    %687 = vxpose.xlu0.b32.end [16/16] 0.0, 128
    %v688 = vpop.trf.xlu0
    %v689 = vpop.trf.xlu0
    %v690 = vpop.trf.xlu0
    %v691 = vpop.trf.xlu0
    %v692 = vpop.trf.xlu0
    %v693 = vpop.trf.xlu0
    %v694 = vpop.trf.xlu0
    %v695 = vpop.trf.xlu0
    %v696 = vpop.trf.xlu0
    %v697 = vpop.trf.xlu0
    %v698 = vpop.trf.xlu0
    %v699 = vpop.trf.xlu0
    %v700 = vpop.trf.xlu0
    %v701 = vpop.trf.xlu0
    %v702 = vpop.trf.xlu0
    %v703 = vpop.trf.xlu0
    %704 = vxpose.xlu0.b32.start [1/16] %v663, 128
    %705 = vxpose.xlu0.b32.cont [2/16] 0.0, 128
    %706 = vxpose.xlu0.b32.cont [3/16] 0.0, 128
    %707 = vxpose.xlu0.b32.cont [4/16] 0.0, 128
    %708 = vxpose.xlu0.b32.cont [5/16] 0.0, 128
    %709 = vxpose.xlu0.b32.cont [6/16] 0.0, 128
    %710 = vxpose.xlu0.b32.cont [7/16] 0.0, 128
    %711 = vxpose.xlu0.b32.cont [8/16] 0.0, 128
    %712 = vxpose.xlu0.b32.cont [9/16] 0.0, 128
    %713 = vxpose.xlu0.b32.cont [10/16] 0.0, 128
    %714 = vxpose.xlu0.b32.cont [11/16] 0.0, 128
    %715 = vxpose.xlu0.b32.cont [12/16] 0.0, 128
    %716 = vxpose.xlu0.b32.cont [13/16] 0.0, 128
    %717 = vxpose.xlu0.b32.cont [14/16] 0.0, 128
    %718 = vxpose.xlu0.b32.cont [15/16] 0.0, 128
    %719 = vxpose.xlu0.b32.end [16/16] 0.0, 128
    %v720 = vpop.trf.xlu0
    %v721 = vpop.trf.xlu0
    %v722 = vpop.trf.xlu0
    %v723 = vpop.trf.xlu0
    %v724 = vpop.trf.xlu0
    %v725 = vpop.trf.xlu0
    %v726 = vpop.trf.xlu0
    %v727 = vpop.trf.xlu0
    %v728 = vpop.trf.xlu0
    %v729 = vpop.trf.xlu0
    %v730 = vpop.trf.xlu0
    %v731 = vpop.trf.xlu0
    %v732 = vpop.trf.xlu0
    %v733 = vpop.trf.xlu0
    %v734 = vpop.trf.xlu0
    %v735 = vpop.trf.xlu0
    %736 = vxpose.xlu0.b32.start [1/16] %v665, 128
    %737 = vxpose.xlu0.b32.cont [2/16] 0.0, 128
    %738 = vxpose.xlu0.b32.cont [3/16] 0.0, 128
    %739 = vxpose.xlu0.b32.cont [4/16] 0.0, 128
    %740 = vxpose.xlu0.b32.cont [5/16] 0.0, 128
    %741 = vxpose.xlu0.b32.cont [6/16] 0.0, 128
    %742 = vxpose.xlu0.b32.cont [7/16] 0.0, 128
    %743 = vxpose.xlu0.b32.cont [8/16] 0.0, 128
    %744 = vxpose.xlu0.b32.cont [9/16] 0.0, 128
    %745 = vxpose.xlu0.b32.cont [10/16] 0.0, 128
    %746 = vxpose.xlu0.b32.cont [11/16] 0.0, 128
    %747 = vxpose.xlu0.b32.cont [12/16] 0.0, 128
    %748 = vxpose.xlu0.b32.cont [13/16] 0.0, 128
    %749 = vxpose.xlu0.b32.cont [14/16] 0.0, 128
    %750 = vxpose.xlu0.b32.cont [15/16] 0.0, 128
    %751 = vxpose.xlu0.b32.end [16/16] 0.0, 128
    %v752 = vpop.trf.xlu0
    %v753 = vpop.trf.xlu0
    %v754 = vpop.trf.xlu0
    %v755 = vpop.trf.xlu0
    %v756 = vpop.trf.xlu0
    %v757 = vpop.trf.xlu0
    %v758 = vpop.trf.xlu0
    %v759 = vpop.trf.xlu0
    %v760 = vpop.trf.xlu0
    %v761 = vpop.trf.xlu0
    %v762 = vpop.trf.xlu0
    %v763 = vpop.trf.xlu0
    %v764 = vpop.trf.xlu0
    %v765 = vpop.trf.xlu0
    %v766 = vpop.trf.xlu0
    %v767 = vpop.trf.xlu0
    %768 = vxpose.xlu0.b32.start [1/16] %v667, 128
    %769 = vxpose.xlu0.b32.cont [2/16] 0.0, 128
    %770 = vxpose.xlu0.b32.cont [3/16] 0.0, 128
    %771 = vxpose.xlu0.b32.cont [4/16] 0.0, 128
    %772 = vxpose.xlu0.b32.cont [5/16] 0.0, 128
    %773 = vxpose.xlu0.b32.cont [6/16] 0.0, 128
    %774 = vxpose.xlu0.b32.cont [7/16] 0.0, 128
    %775 = vxpose.xlu0.b32.cont [8/16] 0.0, 128
    %776 = vxpose.xlu0.b32.cont [9/16] 0.0, 128
    %777 = vxpose.xlu0.b32.cont [10/16] 0.0, 128
    %778 = vxpose.xlu0.b32.cont [11/16] 0.0, 128
    %779 = vxpose.xlu0.b32.cont [12/16] 0.0, 128
    %780 = vxpose.xlu0.b32.cont [13/16] 0.0, 128
    %781 = vxpose.xlu0.b32.cont [14/16] 0.0, 128
    %782 = vxpose.xlu0.b32.cont [15/16] 0.0, 128
    %783 = vxpose.xlu0.b32.end [16/16] 0.0, 128
    %v784 = vpop.trf.xlu0
    %v785 = vpop.trf.xlu0
    %v786 = vpop.trf.xlu0
    %v787 = vpop.trf.xlu0
    %v788 = vpop.trf.xlu0
    %v789 = vpop.trf.xlu0
    %v790 = vpop.trf.xlu0
    %v791 = vpop.trf.xlu0
    %v792 = vpop.trf.xlu0
    %v793 = vpop.trf.xlu0
    %v794 = vpop.trf.xlu0
    %v795 = vpop.trf.xlu0
    %v796 = vpop.trf.xlu0
    %v797 = vpop.trf.xlu0
    %v798 = vpop.trf.xlu0
    %v799 = vpop.trf.xlu0
    %vm800 = vcmask 64512
    %v801 = vsel %vm800, %v647, 0
    %803 = vmatpush.msra.mxu0 0.0
    %804 = vmatpush.msra.mxu0 0.0
    %805 = vmatpush.msra.mxu0 0.0
    %806 = vmatpush.msra.mxu0 0.0
    %807 = vmatpush.msra.mxu0 0.0
    %808 = vmatpush.msra.mxu0 0.0
    %809 = vmatpush.msra.mxu0 0.0
    %810 = vmatpush.msra.mxu0 0.0
    %811 = vmatpush.msra.mxu0 0.0
    %812 = vmatpush.msra.mxu0 0.0
    %813 = vmatpush.msra.mxu0 0.0
    %814 = vmatpush.msra.mxu0 0.0
    %815 = vmatpush.msra.mxu0 0.0
    %816 = vmatpush.msra.mxu0 0.0
    %817 = vmatpush.msra.mxu0 0.0
    %v818 = vand.u32 %v688, 4294901760
    %819 = vmatpush.msra.mxu0 %v818
    %v820 = vand.u32 %v801, 4294901760
    %v821 = vsub.f32 %v801, %v820
    %v822 = vand.u32 %v821, 4294901760
    %v823 = vsub.f32 %v821, %v822
    %v824 = vand.u32 %v823, 4294901760
    %825 = vmatmul.f32.gmra.mxu0 %v824
    %v826 = vpop.f32.mrf.mxu0
    %v827 = vadd.f32 0.0, %v826
    %828 = vdwg.mxu0
    %829 = vmatpush.msra.mxu0 0.0
    %830 = vmatpush.msra.mxu0 0.0
    %831 = vmatpush.msra.mxu0 0.0
    %832 = vmatpush.msra.mxu0 0.0
    %833 = vmatpush.msra.mxu0 0.0
    %834 = vmatpush.msra.mxu0 0.0
    %835 = vmatpush.msra.mxu0 0.0
    %836 = vmatpush.msra.mxu0 0.0
    %837 = vmatpush.msra.mxu0 0.0
    %838 = vmatpush.msra.mxu0 0.0
    %839 = vmatpush.msra.mxu0 0.0
    %840 = vmatpush.msra.mxu0 0.0
    %841 = vmatpush.msra.mxu0 0.0
    %842 = vmatpush.msra.mxu0 0.0
    %843 = vmatpush.msra.mxu0 0.0
    %v844 = vand.u32 %v688, 4294901760
    %v845 = vsub.f32 %v688, %v844
    %v846 = vand.u32 %v845, 4294901760
    %v847 = vsub.f32 %v845, %v846
    %v848 = vand.u32 %v847, 4294901760
    %849 = vmatpush.msra.mxu0 %v848
    %v850 = vand.u32 %v801, 4294901760
    %851 = vmatmul.f32.gmra.mxu0 %v850
    %v852 = vpop.f32.mrf.mxu0
    %v853 = vadd.f32 %v827, %v852
    %854 = vdwg.mxu0
    %855 = vmatpush.msra.mxu0 0.0
    %856 = vmatpush.msra.mxu0 0.0
    %857 = vmatpush.msra.mxu0 0.0
    %858 = vmatpush.msra.mxu0 0.0
    %859 = vmatpush.msra.mxu0 0.0
    %860 = vmatpush.msra.mxu0 0.0
    %861 = vmatpush.msra.mxu0 0.0
    %862 = vmatpush.msra.mxu0 0.0
    %863 = vmatpush.msra.mxu0 0.0
    %864 = vmatpush.msra.mxu0 0.0
    %865 = vmatpush.msra.mxu0 0.0
    %866 = vmatpush.msra.mxu0 0.0
    %867 = vmatpush.msra.mxu0 0.0
    %868 = vmatpush.msra.mxu0 0.0
    %869 = vmatpush.msra.mxu0 0.0
    %v870 = vand.u32 %v688, 4294901760
    %v871 = vsub.f32 %v688, %v870
    %872 = vmatpush.msra.mxu0 %v871
    %v873 = vand.u32 %v801, 4294901760
    %v874 = vsub.f32 %v801, %v873
    %875 = vmatmul.f32.gmra.mxu0 %v874
    %v876 = vpop.f32.mrf.mxu0
    %v877 = vadd.f32 %v853, %v876
    %878 = vdwg.mxu0
    %879 = vmatpush.msra.mxu0 0.0
    %880 = vmatpush.msra.mxu0 0.0
    %881 = vmatpush.msra.mxu0 0.0
    %882 = vmatpush.msra.mxu0 0.0
    %883 = vmatpush.msra.mxu0 0.0
    %884 = vmatpush.msra.mxu0 0.0
    %885 = vmatpush.msra.mxu0 0.0
    %886 = vmatpush.msra.mxu0 0.0
    %887 = vmatpush.msra.mxu0 0.0
    %888 = vmatpush.msra.mxu0 0.0
    %889 = vmatpush.msra.mxu0 0.0
    %890 = vmatpush.msra.mxu0 0.0
    %891 = vmatpush.msra.mxu0 0.0
    %892 = vmatpush.msra.mxu0 0.0
    %893 = vmatpush.msra.mxu0 0.0
    %v894 = vand.u32 %v688, 4294901760
    %895 = vmatpush.msra.mxu0 %v894
    %v896 = vand.u32 %v801, 4294901760
    %v897 = vsub.f32 %v801, %v896
    %v898 = vand.u32 %v897, 4294901760
    %899 = vmatmul.f32.gmra.mxu0 %v898
    %v900 = vpop.f32.mrf.mxu0
    %v901 = vadd.f32 %v877, %v900
    %902 = vdwg.mxu0
    %903 = vmatpush.msra.mxu0 0.0
    %904 = vmatpush.msra.mxu0 0.0
    %905 = vmatpush.msra.mxu0 0.0
    %906 = vmatpush.msra.mxu0 0.0
    %907 = vmatpush.msra.mxu0 0.0
    %908 = vmatpush.msra.mxu0 0.0
    %909 = vmatpush.msra.mxu0 0.0
    %910 = vmatpush.msra.mxu0 0.0
    %911 = vmatpush.msra.mxu0 0.0
    %912 = vmatpush.msra.mxu0 0.0
    %913 = vmatpush.msra.mxu0 0.0
    %914 = vmatpush.msra.mxu0 0.0
    %915 = vmatpush.msra.mxu0 0.0
    %916 = vmatpush.msra.mxu0 0.0
    %917 = vmatpush.msra.mxu0 0.0
    %v918 = vand.u32 %v688, 4294901760
    %v919 = vsub.f32 %v688, %v918
    %v920 = vand.u32 %v919, 4294901760
    %921 = vmatpush.msra.mxu0 %v920
    %v922 = vand.u32 %v801, 4294901760
    %923 = vmatmul.f32.gmra.mxu0 %v922
    %v924 = vpop.f32.mrf.mxu0
    %v925 = vadd.f32 %v901, %v924
    %926 = vdwg.mxu0
    %927 = vmatpush.msra.mxu0 0.0
    %928 = vmatpush.msra.mxu0 0.0
    %929 = vmatpush.msra.mxu0 0.0
    %930 = vmatpush.msra.mxu0 0.0
    %931 = vmatpush.msra.mxu0 0.0
    %932 = vmatpush.msra.mxu0 0.0
    %933 = vmatpush.msra.mxu0 0.0
    %934 = vmatpush.msra.mxu0 0.0
    %935 = vmatpush.msra.mxu0 0.0
    %936 = vmatpush.msra.mxu0 0.0
    %937 = vmatpush.msra.mxu0 0.0
    %938 = vmatpush.msra.mxu0 0.0
    %939 = vmatpush.msra.mxu0 0.0
    %940 = vmatpush.msra.mxu0 0.0
    %941 = vmatpush.msra.mxu0 0.0
    %v942 = vand.u32 %v688, 4294901760
    %943 = vmatpush.msra.mxu0 %v942
    %v944 = vand.u32 %v801, 4294901760
    %945 = vmatmul.f32.gmra.mxu0 %v944
    %v946 = vpop.f32.mrf.mxu0
    %v947 = vadd.f32 %v925, %v946
    %948 = vdwg.mxu0
    %v949 = vsel %vm800, %v655, 0
    %951 = vmatpush.msra.mxu0 0.0
    %952 = vmatpush.msra.mxu0 0.0
    %953 = vmatpush.msra.mxu0 0.0
    %954 = vmatpush.msra.mxu0 0.0
    %955 = vmatpush.msra.mxu0 0.0
    %956 = vmatpush.msra.mxu0 0.0
    %957 = vmatpush.msra.mxu0 0.0
    %958 = vmatpush.msra.mxu0 0.0
    %959 = vmatpush.msra.mxu0 0.0
    %960 = vmatpush.msra.mxu0 0.0
    %961 = vmatpush.msra.mxu0 0.0
    %962 = vmatpush.msra.mxu0 0.0
    %963 = vmatpush.msra.mxu0 0.0
    %964 = vmatpush.msra.mxu0 0.0
    %965 = vmatpush.msra.mxu0 0.0
    %v966 = vand.u32 %v720, 4294901760
    %967 = vmatpush.msra.mxu0 %v966
    %v968 = vand.u32 %v949, 4294901760
    %v969 = vsub.f32 %v949, %v968
    %v970 = vand.u32 %v969, 4294901760
    %v971 = vsub.f32 %v969, %v970
    %v972 = vand.u32 %v971, 4294901760
    %973 = vmatmul.f32.gmra.mxu0 %v972
    %v974 = vpop.f32.mrf.mxu0
    %v975 = vadd.f32 0.0, %v974
    %976 = vdwg.mxu0
    %977 = vmatpush.msra.mxu0 0.0
    %978 = vmatpush.msra.mxu0 0.0
    %979 = vmatpush.msra.mxu0 0.0
    %980 = vmatpush.msra.mxu0 0.0
    %981 = vmatpush.msra.mxu0 0.0
    %982 = vmatpush.msra.mxu0 0.0
    %983 = vmatpush.msra.mxu0 0.0
    %984 = vmatpush.msra.mxu0 0.0
    %985 = vmatpush.msra.mxu0 0.0
    %986 = vmatpush.msra.mxu0 0.0
    %987 = vmatpush.msra.mxu0 0.0
    %988 = vmatpush.msra.mxu0 0.0
    %989 = vmatpush.msra.mxu0 0.0
    %990 = vmatpush.msra.mxu0 0.0
    %991 = vmatpush.msra.mxu0 0.0
    %v992 = vand.u32 %v720, 4294901760
    %v993 = vsub.f32 %v720, %v992
    %v994 = vand.u32 %v993, 4294901760
    %v995 = vsub.f32 %v993, %v994
    %v996 = vand.u32 %v995, 4294901760
    %997 = vmatpush.msra.mxu0 %v996
    %v998 = vand.u32 %v949, 4294901760
    %999 = vmatmul.f32.gmra.mxu0 %v998
    %v1000 = vpop.f32.mrf.mxu0
    %v1001 = vadd.f32 %v975, %v1000
    %1002 = vdwg.mxu0
    %1003 = vmatpush.msra.mxu0 0.0
    %1004 = vmatpush.msra.mxu0 0.0
    %1005 = vmatpush.msra.mxu0 0.0
    %1006 = vmatpush.msra.mxu0 0.0
    %1007 = vmatpush.msra.mxu0 0.0
    %1008 = vmatpush.msra.mxu0 0.0
    %1009 = vmatpush.msra.mxu0 0.0
    %1010 = vmatpush.msra.mxu0 0.0
    %1011 = vmatpush.msra.mxu0 0.0
    %1012 = vmatpush.msra.mxu0 0.0
    %1013 = vmatpush.msra.mxu0 0.0
    %1014 = vmatpush.msra.mxu0 0.0
    %1015 = vmatpush.msra.mxu0 0.0
    %1016 = vmatpush.msra.mxu0 0.0
    %1017 = vmatpush.msra.mxu0 0.0
    %v1018 = vand.u32 %v720, 4294901760
    %v1019 = vsub.f32 %v720, %v1018
    %1020 = vmatpush.msra.mxu0 %v1019
    %v1021 = vand.u32 %v949, 4294901760
    %v1022 = vsub.f32 %v949, %v1021
    %1023 = vmatmul.f32.gmra.mxu0 %v1022
    %v1024 = vpop.f32.mrf.mxu0
    %v1025 = vadd.f32 %v1001, %v1024
    %1026 = vdwg.mxu0
    %1027 = vmatpush.msra.mxu0 0.0
    %1028 = vmatpush.msra.mxu0 0.0
    %1029 = vmatpush.msra.mxu0 0.0
    %1030 = vmatpush.msra.mxu0 0.0
    %1031 = vmatpush.msra.mxu0 0.0
    %1032 = vmatpush.msra.mxu0 0.0
    %1033 = vmatpush.msra.mxu0 0.0
    %1034 = vmatpush.msra.mxu0 0.0
    %1035 = vmatpush.msra.mxu0 0.0
    %1036 = vmatpush.msra.mxu0 0.0
    %1037 = vmatpush.msra.mxu0 0.0
    %1038 = vmatpush.msra.mxu0 0.0
    %1039 = vmatpush.msra.mxu0 0.0
    %1040 = vmatpush.msra.mxu0 0.0
    %1041 = vmatpush.msra.mxu0 0.0
    %v1042 = vand.u32 %v720, 4294901760
    %1043 = vmatpush.msra.mxu0 %v1042
    %v1044 = vand.u32 %v949, 4294901760
    %v1045 = vsub.f32 %v949, %v1044
    %v1046 = vand.u32 %v1045, 4294901760
    %1047 = vmatmul.f32.gmra.mxu0 %v1046
    %v1048 = vpop.f32.mrf.mxu0
    %v1049 = vadd.f32 %v1025, %v1048
    %1050 = vdwg.mxu0
    %1051 = vmatpush.msra.mxu0 0.0
    %1052 = vmatpush.msra.mxu0 0.0
    %1053 = vmatpush.msra.mxu0 0.0
    %1054 = vmatpush.msra.mxu0 0.0
    %1055 = vmatpush.msra.mxu0 0.0
    %1056 = vmatpush.msra.mxu0 0.0
    %1057 = vmatpush.msra.mxu0 0.0
    %1058 = vmatpush.msra.mxu0 0.0
    %1059 = vmatpush.msra.mxu0 0.0
    %1060 = vmatpush.msra.mxu0 0.0
    %1061 = vmatpush.msra.mxu0 0.0
    %1062 = vmatpush.msra.mxu0 0.0
    %1063 = vmatpush.msra.mxu0 0.0
    %1064 = vmatpush.msra.mxu0 0.0
    %1065 = vmatpush.msra.mxu0 0.0
    %v1066 = vand.u32 %v720, 4294901760
    %v1067 = vsub.f32 %v720, %v1066
    %v1068 = vand.u32 %v1067, 4294901760
    %1069 = vmatpush.msra.mxu0 %v1068
    %v1070 = vand.u32 %v949, 4294901760
    %1071 = vmatmul.f32.gmra.mxu0 %v1070
    %v1072 = vpop.f32.mrf.mxu0
    %v1073 = vadd.f32 %v1049, %v1072
    %1074 = vdwg.mxu0
    %1075 = vmatpush.msra.mxu0 0.0
    %1076 = vmatpush.msra.mxu0 0.0
    %1077 = vmatpush.msra.mxu0 0.0
    %1078 = vmatpush.msra.mxu0 0.0
    %1079 = vmatpush.msra.mxu0 0.0
    %1080 = vmatpush.msra.mxu0 0.0
    %1081 = vmatpush.msra.mxu0 0.0
    %1082 = vmatpush.msra.mxu0 0.0
    %1083 = vmatpush.msra.mxu0 0.0
    %1084 = vmatpush.msra.mxu0 0.0
    %1085 = vmatpush.msra.mxu0 0.0
    %1086 = vmatpush.msra.mxu0 0.0
    %1087 = vmatpush.msra.mxu0 0.0
    %1088 = vmatpush.msra.mxu0 0.0
    %1089 = vmatpush.msra.mxu0 0.0
    %v1090 = vand.u32 %v720, 4294901760
    %1091 = vmatpush.msra.mxu0 %v1090
    %v1092 = vand.u32 %v949, 4294901760
    %1093 = vmatmul.f32.gmra.mxu0 %v1092
    %v1094 = vpop.f32.mrf.mxu0
    %v1095 = vadd.f32 %v1073, %v1094
    %1096 = vdwg.mxu0
    %v1097 = vsel %vm800, %v657, 0
    %1099 = vmatpush.msra.mxu0 0.0
    %1100 = vmatpush.msra.mxu0 0.0
    %1101 = vmatpush.msra.mxu0 0.0
    %1102 = vmatpush.msra.mxu0 0.0
    %1103 = vmatpush.msra.mxu0 0.0
    %1104 = vmatpush.msra.mxu0 0.0
    %1105 = vmatpush.msra.mxu0 0.0
    %1106 = vmatpush.msra.mxu0 0.0
    %1107 = vmatpush.msra.mxu0 0.0
    %1108 = vmatpush.msra.mxu0 0.0
    %1109 = vmatpush.msra.mxu0 0.0
    %1110 = vmatpush.msra.mxu0 0.0
    %1111 = vmatpush.msra.mxu0 0.0
    %1112 = vmatpush.msra.mxu0 0.0
    %1113 = vmatpush.msra.mxu0 0.0
    %v1114 = vand.u32 %v752, 4294901760
    %1115 = vmatpush.msra.mxu0 %v1114
    %v1116 = vand.u32 %v1097, 4294901760
    %v1117 = vsub.f32 %v1097, %v1116
    %v1118 = vand.u32 %v1117, 4294901760
    %v1119 = vsub.f32 %v1117, %v1118
    %v1120 = vand.u32 %v1119, 4294901760
    %1121 = vmatmul.f32.gmra.mxu0 %v1120
    %v1122 = vpop.f32.mrf.mxu0
    %v1123 = vadd.f32 0.0, %v1122
    %1124 = vdwg.mxu0
    %1125 = vmatpush.msra.mxu0 0.0
    %1126 = vmatpush.msra.mxu0 0.0
    %1127 = vmatpush.msra.mxu0 0.0
    %1128 = vmatpush.msra.mxu0 0.0
    %1129 = vmatpush.msra.mxu0 0.0
    %1130 = vmatpush.msra.mxu0 0.0
    %1131 = vmatpush.msra.mxu0 0.0
    %1132 = vmatpush.msra.mxu0 0.0
    %1133 = vmatpush.msra.mxu0 0.0
    %1134 = vmatpush.msra.mxu0 0.0
    %1135 = vmatpush.msra.mxu0 0.0
    %1136 = vmatpush.msra.mxu0 0.0
    %1137 = vmatpush.msra.mxu0 0.0
    %1138 = vmatpush.msra.mxu0 0.0
    %1139 = vmatpush.msra.mxu0 0.0
    %v1140 = vand.u32 %v752, 4294901760
    %v1141 = vsub.f32 %v752, %v1140
    %v1142 = vand.u32 %v1141, 4294901760
    %v1143 = vsub.f32 %v1141, %v1142
    %v1144 = vand.u32 %v1143, 4294901760
    %1145 = vmatpush.msra.mxu0 %v1144
    %v1146 = vand.u32 %v1097, 4294901760
    %1147 = vmatmul.f32.gmra.mxu0 %v1146
    %v1148 = vpop.f32.mrf.mxu0
    %v1149 = vadd.f32 %v1123, %v1148
    %1150 = vdwg.mxu0
    %1151 = vmatpush.msra.mxu0 0.0
    %1152 = vmatpush.msra.mxu0 0.0
    %1153 = vmatpush.msra.mxu0 0.0
    %1154 = vmatpush.msra.mxu0 0.0
    %1155 = vmatpush.msra.mxu0 0.0
    %1156 = vmatpush.msra.mxu0 0.0
    %1157 = vmatpush.msra.mxu0 0.0
    %1158 = vmatpush.msra.mxu0 0.0
    %1159 = vmatpush.msra.mxu0 0.0
    %1160 = vmatpush.msra.mxu0 0.0
    %1161 = vmatpush.msra.mxu0 0.0
    %1162 = vmatpush.msra.mxu0 0.0
    %1163 = vmatpush.msra.mxu0 0.0
    %1164 = vmatpush.msra.mxu0 0.0
    %1165 = vmatpush.msra.mxu0 0.0
    %v1166 = vand.u32 %v752, 4294901760
    %v1167 = vsub.f32 %v752, %v1166
    %1168 = vmatpush.msra.mxu0 %v1167
    %v1169 = vand.u32 %v1097, 4294901760
    %v1170 = vsub.f32 %v1097, %v1169
    %1171 = vmatmul.f32.gmra.mxu0 %v1170
    %v1172 = vpop.f32.mrf.mxu0
    %v1173 = vadd.f32 %v1149, %v1172
    %1174 = vdwg.mxu0
    %1175 = vmatpush.msra.mxu0 0.0
    %1176 = vmatpush.msra.mxu0 0.0
    %1177 = vmatpush.msra.mxu0 0.0
    %1178 = vmatpush.msra.mxu0 0.0
    %1179 = vmatpush.msra.mxu0 0.0
    %1180 = vmatpush.msra.mxu0 0.0
    %1181 = vmatpush.msra.mxu0 0.0
    %1182 = vmatpush.msra.mxu0 0.0
    %1183 = vmatpush.msra.mxu0 0.0
    %1184 = vmatpush.msra.mxu0 0.0
    %1185 = vmatpush.msra.mxu0 0.0
    %1186 = vmatpush.msra.mxu0 0.0
    %1187 = vmatpush.msra.mxu0 0.0
    %1188 = vmatpush.msra.mxu0 0.0
    %1189 = vmatpush.msra.mxu0 0.0
    %v1190 = vand.u32 %v752, 4294901760
    %1191 = vmatpush.msra.mxu0 %v1190
    %v1192 = vand.u32 %v1097, 4294901760
    %v1193 = vsub.f32 %v1097, %v1192
    %v1194 = vand.u32 %v1193, 4294901760
    %1195 = vmatmul.f32.gmra.mxu0 %v1194
    %v1196 = vpop.f32.mrf.mxu0
    %v1197 = vadd.f32 %v1173, %v1196
    %1198 = vdwg.mxu0
    %1199 = vmatpush.msra.mxu0 0.0
    %1200 = vmatpush.msra.mxu0 0.0
    %1201 = vmatpush.msra.mxu0 0.0
    %1202 = vmatpush.msra.mxu0 0.0
    %1203 = vmatpush.msra.mxu0 0.0
    %1204 = vmatpush.msra.mxu0 0.0
    %1205 = vmatpush.msra.mxu0 0.0
    %1206 = vmatpush.msra.mxu0 0.0
    %1207 = vmatpush.msra.mxu0 0.0
    %1208 = vmatpush.msra.mxu0 0.0
    %1209 = vmatpush.msra.mxu0 0.0
    %1210 = vmatpush.msra.mxu0 0.0
    %1211 = vmatpush.msra.mxu0 0.0
    %1212 = vmatpush.msra.mxu0 0.0
    %1213 = vmatpush.msra.mxu0 0.0
    %v1214 = vand.u32 %v752, 4294901760
    %v1215 = vsub.f32 %v752, %v1214
    %v1216 = vand.u32 %v1215, 4294901760
    %1217 = vmatpush.msra.mxu0 %v1216
    %v1218 = vand.u32 %v1097, 4294901760
    %1219 = vmatmul.f32.gmra.mxu0 %v1218
    %v1220 = vpop.f32.mrf.mxu0
    %v1221 = vadd.f32 %v1197, %v1220
    %1222 = vdwg.mxu0
    %1223 = vmatpush.msra.mxu0 0.0
    %1224 = vmatpush.msra.mxu0 0.0
    %1225 = vmatpush.msra.mxu0 0.0
    %1226 = vmatpush.msra.mxu0 0.0
    %1227 = vmatpush.msra.mxu0 0.0
    %1228 = vmatpush.msra.mxu0 0.0
    %1229 = vmatpush.msra.mxu0 0.0
    %1230 = vmatpush.msra.mxu0 0.0
    %1231 = vmatpush.msra.mxu0 0.0
    %1232 = vmatpush.msra.mxu0 0.0
    %1233 = vmatpush.msra.mxu0 0.0
    %1234 = vmatpush.msra.mxu0 0.0
    %1235 = vmatpush.msra.mxu0 0.0
    %1236 = vmatpush.msra.mxu0 0.0
    %1237 = vmatpush.msra.mxu0 0.0
    %v1238 = vand.u32 %v752, 4294901760
    %1239 = vmatpush.msra.mxu0 %v1238
    %v1240 = vand.u32 %v1097, 4294901760
    %1241 = vmatmul.f32.gmra.mxu0 %v1240
    %v1242 = vpop.f32.mrf.mxu0
    %v1243 = vadd.f32 %v1221, %v1242
    %1244 = vdwg.mxu0
    %v1245 = vsel %vm800, %v659, 0
    %1247 = vmatpush.msra.mxu0 0.0
    %1248 = vmatpush.msra.mxu0 0.0
    %1249 = vmatpush.msra.mxu0 0.0
    %1250 = vmatpush.msra.mxu0 0.0
    %1251 = vmatpush.msra.mxu0 0.0
    %1252 = vmatpush.msra.mxu0 0.0
    %1253 = vmatpush.msra.mxu0 0.0
    %1254 = vmatpush.msra.mxu0 0.0
    %1255 = vmatpush.msra.mxu0 0.0
    %1256 = vmatpush.msra.mxu0 0.0
    %1257 = vmatpush.msra.mxu0 0.0
    %1258 = vmatpush.msra.mxu0 0.0
    %1259 = vmatpush.msra.mxu0 0.0
    %1260 = vmatpush.msra.mxu0 0.0
    %1261 = vmatpush.msra.mxu0 0.0
    %v1262 = vand.u32 %v784, 4294901760
    %1263 = vmatpush.msra.mxu0 %v1262
    %v1264 = vand.u32 %v1245, 4294901760
    %v1265 = vsub.f32 %v1245, %v1264
    %v1266 = vand.u32 %v1265, 4294901760
    %v1267 = vsub.f32 %v1265, %v1266
    %v1268 = vand.u32 %v1267, 4294901760
    %1269 = vmatmul.f32.gmra.mxu0 %v1268
    %v1270 = vpop.f32.mrf.mxu0
    %v1271 = vadd.f32 0.0, %v1270
    %1272 = vdwg.mxu0
    %1273 = vmatpush.msra.mxu0 0.0
    %1274 = vmatpush.msra.mxu0 0.0
    %1275 = vmatpush.msra.mxu0 0.0
    %1276 = vmatpush.msra.mxu0 0.0
    %1277 = vmatpush.msra.mxu0 0.0
    %1278 = vmatpush.msra.mxu0 0.0
    %1279 = vmatpush.msra.mxu0 0.0
    %1280 = vmatpush.msra.mxu0 0.0
    %1281 = vmatpush.msra.mxu0 0.0
    %1282 = vmatpush.msra.mxu0 0.0
    %1283 = vmatpush.msra.mxu0 0.0
    %1284 = vmatpush.msra.mxu0 0.0
    %1285 = vmatpush.msra.mxu0 0.0
    %1286 = vmatpush.msra.mxu0 0.0
    %1287 = vmatpush.msra.mxu0 0.0
    %v1288 = vand.u32 %v784, 4294901760
    %v1289 = vsub.f32 %v784, %v1288
    %v1290 = vand.u32 %v1289, 4294901760
    %v1291 = vsub.f32 %v1289, %v1290
    %v1292 = vand.u32 %v1291, 4294901760
    %1293 = vmatpush.msra.mxu0 %v1292
    %v1294 = vand.u32 %v1245, 4294901760
    %1295 = vmatmul.f32.gmra.mxu0 %v1294
    %v1296 = vpop.f32.mrf.mxu0
    %v1297 = vadd.f32 %v1271, %v1296
    %1298 = vdwg.mxu0
    %1299 = vmatpush.msra.mxu0 0.0
    %1300 = vmatpush.msra.mxu0 0.0
    %1301 = vmatpush.msra.mxu0 0.0
    %1302 = vmatpush.msra.mxu0 0.0
    %1303 = vmatpush.msra.mxu0 0.0
    %1304 = vmatpush.msra.mxu0 0.0
    %1305 = vmatpush.msra.mxu0 0.0
    %1306 = vmatpush.msra.mxu0 0.0
    %1307 = vmatpush.msra.mxu0 0.0
    %1308 = vmatpush.msra.mxu0 0.0
    %1309 = vmatpush.msra.mxu0 0.0
    %1310 = vmatpush.msra.mxu0 0.0
    %1311 = vmatpush.msra.mxu0 0.0
    %1312 = vmatpush.msra.mxu0 0.0
    %1313 = vmatpush.msra.mxu0 0.0
    %v1314 = vand.u32 %v784, 4294901760
    %v1315 = vsub.f32 %v784, %v1314
    %1316 = vmatpush.msra.mxu0 %v1315
    %v1317 = vand.u32 %v1245, 4294901760
    %v1318 = vsub.f32 %v1245, %v1317
    %1319 = vmatmul.f32.gmra.mxu0 %v1318
    %v1320 = vpop.f32.mrf.mxu0
    %v1321 = vadd.f32 %v1297, %v1320
    %1322 = vdwg.mxu0
    %1323 = vmatpush.msra.mxu0 0.0
    %1324 = vmatpush.msra.mxu0 0.0
    %1325 = vmatpush.msra.mxu0 0.0
    %1326 = vmatpush.msra.mxu0 0.0
    %1327 = vmatpush.msra.mxu0 0.0
    %1328 = vmatpush.msra.mxu0 0.0
    %1329 = vmatpush.msra.mxu0 0.0
    %1330 = vmatpush.msra.mxu0 0.0
    %1331 = vmatpush.msra.mxu0 0.0
    %1332 = vmatpush.msra.mxu0 0.0
    %1333 = vmatpush.msra.mxu0 0.0
    %1334 = vmatpush.msra.mxu0 0.0
    %1335 = vmatpush.msra.mxu0 0.0
    %1336 = vmatpush.msra.mxu0 0.0
    %1337 = vmatpush.msra.mxu0 0.0
    %v1338 = vand.u32 %v784, 4294901760
    %1339 = vmatpush.msra.mxu0 %v1338
    %v1340 = vand.u32 %v1245, 4294901760
    %v1341 = vsub.f32 %v1245, %v1340
    %v1342 = vand.u32 %v1341, 4294901760
    %1343 = vmatmul.f32.gmra.mxu0 %v1342
    %v1344 = vpop.f32.mrf.mxu0
    %v1345 = vadd.f32 %v1321, %v1344
    %1346 = vdwg.mxu0
    %1347 = vmatpush.msra.mxu0 0.0
    %1348 = vmatpush.msra.mxu0 0.0
    %1349 = vmatpush.msra.mxu0 0.0
    %1350 = vmatpush.msra.mxu0 0.0
    %1351 = vmatpush.msra.mxu0 0.0
    %1352 = vmatpush.msra.mxu0 0.0
    %1353 = vmatpush.msra.mxu0 0.0
    %1354 = vmatpush.msra.mxu0 0.0
    %1355 = vmatpush.msra.mxu0 0.0
    %1356 = vmatpush.msra.mxu0 0.0
    %1357 = vmatpush.msra.mxu0 0.0
    %1358 = vmatpush.msra.mxu0 0.0
    %1359 = vmatpush.msra.mxu0 0.0
    %1360 = vmatpush.msra.mxu0 0.0
    %1361 = vmatpush.msra.mxu0 0.0
    %v1362 = vand.u32 %v784, 4294901760
    %v1363 = vsub.f32 %v784, %v1362
    %v1364 = vand.u32 %v1363, 4294901760
    %1365 = vmatpush.msra.mxu0 %v1364
    %v1366 = vand.u32 %v1245, 4294901760
    %1367 = vmatmul.f32.gmra.mxu0 %v1366
    %v1368 = vpop.f32.mrf.mxu0
    %v1369 = vadd.f32 %v1345, %v1368
    %1370 = vdwg.mxu0
    %1371 = vmatpush.msra.mxu0 0.0
    %1372 = vmatpush.msra.mxu0 0.0
    %1373 = vmatpush.msra.mxu0 0.0
    %1374 = vmatpush.msra.mxu0 0.0
    %1375 = vmatpush.msra.mxu0 0.0
    %1376 = vmatpush.msra.mxu0 0.0
    %1377 = vmatpush.msra.mxu0 0.0
    %1378 = vmatpush.msra.mxu0 0.0
    %1379 = vmatpush.msra.mxu0 0.0
    %1380 = vmatpush.msra.mxu0 0.0
    %1381 = vmatpush.msra.mxu0 0.0
    %1382 = vmatpush.msra.mxu0 0.0
    %1383 = vmatpush.msra.mxu0 0.0
    %1384 = vmatpush.msra.mxu0 0.0
    %1385 = vmatpush.msra.mxu0 0.0
    %v1386 = vand.u32 %v784, 4294901760
    %1387 = vmatpush.msra.mxu0 %v1386
    %v1388 = vand.u32 %v1245, 4294901760
    %1389 = vmatmul.f32.gmra.mxu0 %v1388
    %v1390 = vpop.f32.mrf.mxu0
    %v1391 = vadd.f32 %v1369, %v1390
    %1392 = vdwg.mxu0
    %v1393 = vsel %vm800, %v947, -inf
    %1394 = vmax.xlane.f32.xlu0 %v1393
    %v1395 = vpop.xlane.xlu0 %1394
    %v1396 = vsel %vm800, %v1095, -inf
    %1397 = vmax.xlane.f32.xlu0 %v1396
    %v1398 = vpop.xlane.xlu0 %1397
    %v1399 = vsel %vm800, %v1243, -inf
    %1400 = vmax.xlane.f32.xlu0 %v1399
    %v1401 = vpop.xlane.xlu0 %1400
    %v1402 = vsel %vm800, %v1391, -inf
    %1403 = vmax.xlane.f32.xlu0 %v1402
    %v1404 = vpop.xlane.xlu0 %1403
    %v1405 = vsub.f32 %v947, %v1395
    %v1406 = vsub.f32 %v1095, %v1398
    %v1407 = vsub.f32 %v1243, %v1401
    %v1408 = vsub.f32 %v1391, %v1404
    %v1409 = vmul.f32 %v1405, 1.442695
    %v1410 = vpow.pop %v1409
    %v1411 = vmul.f32 %v1406, 1.442695
    %v1412 = vpow.pop %v1411
    %v1413 = vmul.f32 %v1407, 1.442695
    %v1414 = vpow.pop %v1413
    %v1415 = vmul.f32 %v1408, 1.442695
    %v1416 = vpow.pop %v1415
    %v1417 = vsel %vm800, %v1410, 0.0
    %1418 = vadd.xlane.f32.xlu0 %v1417
    %v1419 = vpop.xlane.xlu0 %1418
    %v1420 = vsel %vm800, %v1412, 0.0
    %1421 = vadd.xlane.f32.xlu0 %v1420
    %v1422 = vpop.xlane.xlu0 %1421
    %v1423 = vsel %vm800, %v1414, 0.0
    %1424 = vadd.xlane.f32.xlu0 %v1423
    %v1425 = vpop.xlane.xlu0 %1424
    %v1426 = vsel %vm800, %v1416, 0.0
    %1427 = vadd.xlane.f32.xlu0 %v1426
    %v1428 = vpop.xlane.xlu0 %1427
    %v1429 = vrcp.pop %v1419
    %v1430 = vmul.f32 %v1419, %v1429
    %v1431 = vsub.f32 1.0, %v1430
    %v1432 = vmul.f32 %v1429, %v1431
    %v1433 = vadd.f32 %v1429, %v1432
    %vm1434 = vweird.f32 %v1419
    %vm1435 = vweird.f32 %v1429
    %vm1436 = vmor %vm1434, %vm1435
    %v1437 = vsel %vm1436, %v1429, %v1433
    %v1438 = vand.u32 2147483647, %v1419
    %vm1439 = vcmp.eq.f32.partialorder %v1438, 8.507059e+37
    %v1440 = vand.u32 %v1419, 2147483648
    %v1441 = vor.u32 1.1754944e-38, %v1440
    %v1442 = vsel %vm1439, %v1441, %v1437
    %v1443 = vmul.f32 %v1410, %v1442
    %v1444 = vrcp.pop %v1422
    %v1445 = vmul.f32 %v1422, %v1444
    %v1446 = vsub.f32 1.0, %v1445
    %v1447 = vmul.f32 %v1444, %v1446
    %v1448 = vadd.f32 %v1444, %v1447
    %vm1449 = vweird.f32 %v1422
    %vm1450 = vweird.f32 %v1444
    %vm1451 = vmor %vm1449, %vm1450
    %v1452 = vsel %vm1451, %v1444, %v1448
    %v1453 = vand.u32 2147483647, %v1422
    %vm1454 = vcmp.eq.f32.partialorder %v1453, 8.507059e+37
    %v1455 = vand.u32 %v1422, 2147483648
    %v1456 = vor.u32 1.1754944e-38, %v1455
    %v1457 = vsel %vm1454, %v1456, %v1452
    %v1458 = vmul.f32 %v1412, %v1457
    %v1459 = vrcp.pop %v1425
    %v1460 = vmul.f32 %v1425, %v1459
    %v1461 = vsub.f32 1.0, %v1460
    %v1462 = vmul.f32 %v1459, %v1461
    %v1463 = vadd.f32 %v1459, %v1462
    %vm1464 = vweird.f32 %v1425
    %vm1465 = vweird.f32 %v1459
    %vm1466 = vmor %vm1464, %vm1465
    %v1467 = vsel %vm1466, %v1459, %v1463
    %v1468 = vand.u32 2147483647, %v1425
    %vm1469 = vcmp.eq.f32.partialorder %v1468, 8.507059e+37
    %v1470 = vand.u32 %v1425, 2147483648
    %v1471 = vor.u32 1.1754944e-38, %v1470
    %v1472 = vsel %vm1469, %v1471, %v1467
    %v1473 = vmul.f32 %v1414, %v1472
    %v1474 = vrcp.pop %v1428
    %v1475 = vmul.f32 %v1428, %v1474
    %v1476 = vsub.f32 1.0, %v1475
    %v1477 = vmul.f32 %v1474, %v1476
    %v1478 = vadd.f32 %v1474, %v1477
    %vm1479 = vweird.f32 %v1428
    %vm1480 = vweird.f32 %v1474
    %vm1481 = vmor %vm1479, %vm1480
    %v1482 = vsel %vm1481, %v1474, %v1478
    %v1483 = vand.u32 2147483647, %v1428
    %vm1484 = vcmp.eq.f32.partialorder %v1483, 8.507059e+37
    %v1485 = vand.u32 %v1428, 2147483648
    %v1486 = vor.u32 1.1754944e-38, %v1485
    %v1487 = vsel %vm1484, %v1486, %v1482
    %v1488 = vmul.f32 %v1416, %v1487
    %1489 = vrot.lane.b32.xlu0 %v647, 64
    %v1490 = vpop.permute.xlu0 %1489
    %1491 = vrot.lane.b32.xlu0 %v655, 64
    %v1492 = vpop.permute.xlu0 %1491
    %1493 = vrot.lane.b32.xlu0 %v657, 64
    %v1494 = vpop.permute.xlu0 %1493
    %1495 = vrot.lane.b32.xlu0 %v659, 64
    %v1496 = vpop.permute.xlu0 %1495
    %1501 = vxpose.xlu0.b32.start [1/16] %v1490, 128
    %1502 = vxpose.xlu0.b32.cont [2/16] 0.0, 128
    %1503 = vxpose.xlu0.b32.cont [3/16] 0.0, 128
    %1504 = vxpose.xlu0.b32.cont [4/16] 0.0, 128
    %1505 = vxpose.xlu0.b32.cont [5/16] 0.0, 128
    %1506 = vxpose.xlu0.b32.cont [6/16] 0.0, 128
    %1507 = vxpose.xlu0.b32.cont [7/16] 0.0, 128
    %1508 = vxpose.xlu0.b32.cont [8/16] 0.0, 128
    %1509 = vxpose.xlu0.b32.cont [9/16] 0.0, 128
    %1510 = vxpose.xlu0.b32.cont [10/16] 0.0, 128
    %1511 = vxpose.xlu0.b32.cont [11/16] 0.0, 128
    %1512 = vxpose.xlu0.b32.cont [12/16] 0.0, 128
    %1513 = vxpose.xlu0.b32.cont [13/16] 0.0, 128
    %1514 = vxpose.xlu0.b32.cont [14/16] 0.0, 128
    %1515 = vxpose.xlu0.b32.cont [15/16] 0.0, 128
    %1516 = vxpose.xlu0.b32.end [16/16] 0.0, 128
    %v1517 = vpop.trf.xlu0
    %v1518 = vpop.trf.xlu0
    %v1519 = vpop.trf.xlu0
    %v1520 = vpop.trf.xlu0
    %v1521 = vpop.trf.xlu0
    %v1522 = vpop.trf.xlu0
    %v1523 = vpop.trf.xlu0
    %v1524 = vpop.trf.xlu0
    %v1525 = vpop.trf.xlu0
    %v1526 = vpop.trf.xlu0
    %v1527 = vpop.trf.xlu0
    %v1528 = vpop.trf.xlu0
    %v1529 = vpop.trf.xlu0
    %v1530 = vpop.trf.xlu0
    %v1531 = vpop.trf.xlu0
    %v1532 = vpop.trf.xlu0
    %1533 = vxpose.xlu0.b32.start [1/16] %v1492, 128
    %1534 = vxpose.xlu0.b32.cont [2/16] 0.0, 128
    %1535 = vxpose.xlu0.b32.cont [3/16] 0.0, 128
    %1536 = vxpose.xlu0.b32.cont [4/16] 0.0, 128
    %1537 = vxpose.xlu0.b32.cont [5/16] 0.0, 128
    %1538 = vxpose.xlu0.b32.cont [6/16] 0.0, 128
    %1539 = vxpose.xlu0.b32.cont [7/16] 0.0, 128
    %1540 = vxpose.xlu0.b32.cont [8/16] 0.0, 128
    %1541 = vxpose.xlu0.b32.cont [9/16] 0.0, 128
    %1542 = vxpose.xlu0.b32.cont [10/16] 0.0, 128
    %1543 = vxpose.xlu0.b32.cont [11/16] 0.0, 128
    %1544 = vxpose.xlu0.b32.cont [12/16] 0.0, 128
    %1545 = vxpose.xlu0.b32.cont [13/16] 0.0, 128
    %1546 = vxpose.xlu0.b32.cont [14/16] 0.0, 128
    %1547 = vxpose.xlu0.b32.cont [15/16] 0.0, 128
    %1548 = vxpose.xlu0.b32.end [16/16] 0.0, 128
    %v1549 = vpop.trf.xlu0
    %v1550 = vpop.trf.xlu0
    %v1551 = vpop.trf.xlu0
    %v1552 = vpop.trf.xlu0
    %v1553 = vpop.trf.xlu0
    %v1554 = vpop.trf.xlu0
    %v1555 = vpop.trf.xlu0
    %v1556 = vpop.trf.xlu0
    %v1557 = vpop.trf.xlu0
    %v1558 = vpop.trf.xlu0
    %v1559 = vpop.trf.xlu0
    %v1560 = vpop.trf.xlu0
    %v1561 = vpop.trf.xlu0
    %v1562 = vpop.trf.xlu0
    %v1563 = vpop.trf.xlu0
    %v1564 = vpop.trf.xlu0
    %1565 = vxpose.xlu0.b32.start [1/16] %v1494, 128
    %1566 = vxpose.xlu0.b32.cont [2/16] 0.0, 128
    %1567 = vxpose.xlu0.b32.cont [3/16] 0.0, 128
    %1568 = vxpose.xlu0.b32.cont [4/16] 0.0, 128
    %1569 = vxpose.xlu0.b32.cont [5/16] 0.0, 128
    %1570 = vxpose.xlu0.b32.cont [6/16] 0.0, 128
    %1571 = vxpose.xlu0.b32.cont [7/16] 0.0, 128
    %1572 = vxpose.xlu0.b32.cont [8/16] 0.0, 128
    %1573 = vxpose.xlu0.b32.cont [9/16] 0.0, 128
    %1574 = vxpose.xlu0.b32.cont [10/16] 0.0, 128
    %1575 = vxpose.xlu0.b32.cont [11/16] 0.0, 128
    %1576 = vxpose.xlu0.b32.cont [12/16] 0.0, 128
    %1577 = vxpose.xlu0.b32.cont [13/16] 0.0, 128
    %1578 = vxpose.xlu0.b32.cont [14/16] 0.0, 128
    %1579 = vxpose.xlu0.b32.cont [15/16] 0.0, 128
    %1580 = vxpose.xlu0.b32.end [16/16] 0.0, 128
    %v1581 = vpop.trf.xlu0
    %v1582 = vpop.trf.xlu0
    %v1583 = vpop.trf.xlu0
    %v1584 = vpop.trf.xlu0
    %v1585 = vpop.trf.xlu0
    %v1586 = vpop.trf.xlu0
    %v1587 = vpop.trf.xlu0
    %v1588 = vpop.trf.xlu0
    %v1589 = vpop.trf.xlu0
    %v1590 = vpop.trf.xlu0
    %v1591 = vpop.trf.xlu0
    %v1592 = vpop.trf.xlu0
    %v1593 = vpop.trf.xlu0
    %v1594 = vpop.trf.xlu0
    %v1595 = vpop.trf.xlu0
    %v1596 = vpop.trf.xlu0
    %1597 = vxpose.xlu0.b32.start [1/16] %v1496, 128
    %1598 = vxpose.xlu0.b32.cont [2/16] 0.0, 128
    %1599 = vxpose.xlu0.b32.cont [3/16] 0.0, 128
    %1600 = vxpose.xlu0.b32.cont [4/16] 0.0, 128
    %1601 = vxpose.xlu0.b32.cont [5/16] 0.0, 128
    %1602 = vxpose.xlu0.b32.cont [6/16] 0.0, 128
    %1603 = vxpose.xlu0.b32.cont [7/16] 0.0, 128
    %1604 = vxpose.xlu0.b32.cont [8/16] 0.0, 128
    %1605 = vxpose.xlu0.b32.cont [9/16] 0.0, 128
    %1606 = vxpose.xlu0.b32.cont [10/16] 0.0, 128
    %1607 = vxpose.xlu0.b32.cont [11/16] 0.0, 128
    %1608 = vxpose.xlu0.b32.cont [12/16] 0.0, 128
    %1609 = vxpose.xlu0.b32.cont [13/16] 0.0, 128
    %1610 = vxpose.xlu0.b32.cont [14/16] 0.0, 128
    %1611 = vxpose.xlu0.b32.cont [15/16] 0.0, 128
    %1612 = vxpose.xlu0.b32.end [16/16] 0.0, 128
    %v1613 = vpop.trf.xlu0
    %v1614 = vpop.trf.xlu0
    %v1615 = vpop.trf.xlu0
    %v1616 = vpop.trf.xlu0
    %v1617 = vpop.trf.xlu0
    %v1618 = vpop.trf.xlu0
    %v1619 = vpop.trf.xlu0
    %v1620 = vpop.trf.xlu0
    %v1621 = vpop.trf.xlu0
    %v1622 = vpop.trf.xlu0
    %v1623 = vpop.trf.xlu0
    %v1624 = vpop.trf.xlu0
    %v1625 = vpop.trf.xlu0
    %v1626 = vpop.trf.xlu0
    %v1627 = vpop.trf.xlu0
    %v1628 = vpop.trf.xlu0
    %v1630 = vsel %vm800, %v1517, 0
    %v1633 = vsel %vm800, %v1443, 0
    %1635 = vmatpush.xpose.msra.mxu0 0.0
    %1636 = vmatpush.xpose.msra.mxu0 0.0
    %1637 = vmatpush.xpose.msra.mxu0 0.0
    %1638 = vmatpush.xpose.msra.mxu0 0.0
    %1639 = vmatpush.xpose.msra.mxu0 0.0
    %1640 = vmatpush.xpose.msra.mxu0 0.0
    %1641 = vmatpush.xpose.msra.mxu0 0.0
    %1642 = vmatpush.xpose.msra.mxu0 0.0
    %1643 = vmatpush.xpose.msra.mxu0 0.0
    %1644 = vmatpush.xpose.msra.mxu0 0.0
    %1645 = vmatpush.xpose.msra.mxu0 0.0
    %1646 = vmatpush.xpose.msra.mxu0 0.0
    %1647 = vmatpush.xpose.msra.mxu0 0.0
    %1648 = vmatpush.xpose.msra.mxu0 0.0
    %1649 = vmatpush.xpose.msra.mxu0 0.0
    %v1650 = vand.u32 %v1633, 4294901760
    %1651 = vmatpush.xpose.msra.mxu0 %v1650
    %v1652 = vand.u32 %v1630, 4294901760
    %v1653 = vsub.f32 %v1630, %v1652
    %v1654 = vand.u32 %v1653, 4294901760
    %v1655 = vsub.f32 %v1653, %v1654
    %v1656 = vand.u32 %v1655, 4294901760
    %1657 = vmatmul.f32.gmra.mxu0 %v1656
    %v1658 = vpop.f32.mrf.mxu0
    %v1659 = vadd.f32 0.0, %v1658
    %1660 = vdwg.mxu0
    %1661 = vmatpush.xpose.msra.mxu0 0.0
    %1662 = vmatpush.xpose.msra.mxu0 0.0
    %1663 = vmatpush.xpose.msra.mxu0 0.0
    %1664 = vmatpush.xpose.msra.mxu0 0.0
    %1665 = vmatpush.xpose.msra.mxu0 0.0
    %1666 = vmatpush.xpose.msra.mxu0 0.0
    %1667 = vmatpush.xpose.msra.mxu0 0.0
    %1668 = vmatpush.xpose.msra.mxu0 0.0
    %1669 = vmatpush.xpose.msra.mxu0 0.0
    %1670 = vmatpush.xpose.msra.mxu0 0.0
    %1671 = vmatpush.xpose.msra.mxu0 0.0
    %1672 = vmatpush.xpose.msra.mxu0 0.0
    %1673 = vmatpush.xpose.msra.mxu0 0.0
    %1674 = vmatpush.xpose.msra.mxu0 0.0
    %1675 = vmatpush.xpose.msra.mxu0 0.0
    %v1676 = vand.u32 %v1633, 4294901760
    %v1677 = vsub.f32 %v1633, %v1676
    %v1678 = vand.u32 %v1677, 4294901760
    %v1679 = vsub.f32 %v1677, %v1678
    %v1680 = vand.u32 %v1679, 4294901760
    %1681 = vmatpush.xpose.msra.mxu0 %v1680
    %v1682 = vand.u32 %v1630, 4294901760
    %1683 = vmatmul.f32.gmra.mxu0 %v1682
    %v1684 = vpop.f32.mrf.mxu0
    %v1685 = vadd.f32 %v1659, %v1684
    %1686 = vdwg.mxu0
    %1687 = vmatpush.xpose.msra.mxu0 0.0
    %1688 = vmatpush.xpose.msra.mxu0 0.0
    %1689 = vmatpush.xpose.msra.mxu0 0.0
    %1690 = vmatpush.xpose.msra.mxu0 0.0
    %1691 = vmatpush.xpose.msra.mxu0 0.0
    %1692 = vmatpush.xpose.msra.mxu0 0.0
    %1693 = vmatpush.xpose.msra.mxu0 0.0
    %1694 = vmatpush.xpose.msra.mxu0 0.0
    %1695 = vmatpush.xpose.msra.mxu0 0.0
    %1696 = vmatpush.xpose.msra.mxu0 0.0
    %1697 = vmatpush.xpose.msra.mxu0 0.0
    %1698 = vmatpush.xpose.msra.mxu0 0.0
    %1699 = vmatpush.xpose.msra.mxu0 0.0
    %1700 = vmatpush.xpose.msra.mxu0 0.0
    %1701 = vmatpush.xpose.msra.mxu0 0.0
    %v1702 = vand.u32 %v1633, 4294901760
    %v1703 = vsub.f32 %v1633, %v1702
    %1704 = vmatpush.xpose.msra.mxu0 %v1703
    %v1705 = vand.u32 %v1630, 4294901760
    %v1706 = vsub.f32 %v1630, %v1705
    %1707 = vmatmul.f32.gmra.mxu0 %v1706
    %v1708 = vpop.f32.mrf.mxu0
    %v1709 = vadd.f32 %v1685, %v1708
    %1710 = vdwg.mxu0
    %1711 = vmatpush.xpose.msra.mxu0 0.0
    %1712 = vmatpush.xpose.msra.mxu0 0.0
    %1713 = vmatpush.xpose.msra.mxu0 0.0
    %1714 = vmatpush.xpose.msra.mxu0 0.0
    %1715 = vmatpush.xpose.msra.mxu0 0.0
    %1716 = vmatpush.xpose.msra.mxu0 0.0
    %1717 = vmatpush.xpose.msra.mxu0 0.0
    %1718 = vmatpush.xpose.msra.mxu0 0.0
    %1719 = vmatpush.xpose.msra.mxu0 0.0
    %1720 = vmatpush.xpose.msra.mxu0 0.0
    %1721 = vmatpush.xpose.msra.mxu0 0.0
    %1722 = vmatpush.xpose.msra.mxu0 0.0
    %1723 = vmatpush.xpose.msra.mxu0 0.0
    %1724 = vmatpush.xpose.msra.mxu0 0.0
    %1725 = vmatpush.xpose.msra.mxu0 0.0
    %v1726 = vand.u32 %v1633, 4294901760
    %1727 = vmatpush.xpose.msra.mxu0 %v1726
    %v1728 = vand.u32 %v1630, 4294901760
    %v1729 = vsub.f32 %v1630, %v1728
    %v1730 = vand.u32 %v1729, 4294901760
    %1731 = vmatmul.f32.gmra.mxu0 %v1730
    %v1732 = vpop.f32.mrf.mxu0
    %v1733 = vadd.f32 %v1709, %v1732
    %1734 = vdwg.mxu0
    %1735 = vmatpush.xpose.msra.mxu0 0.0
    %1736 = vmatpush.xpose.msra.mxu0 0.0
    %1737 = vmatpush.xpose.msra.mxu0 0.0
    %1738 = vmatpush.xpose.msra.mxu0 0.0
    %1739 = vmatpush.xpose.msra.mxu0 0.0
    %1740 = vmatpush.xpose.msra.mxu0 0.0
    %1741 = vmatpush.xpose.msra.mxu0 0.0
    %1742 = vmatpush.xpose.msra.mxu0 0.0
    %1743 = vmatpush.xpose.msra.mxu0 0.0
    %1744 = vmatpush.xpose.msra.mxu0 0.0
    %1745 = vmatpush.xpose.msra.mxu0 0.0
    %1746 = vmatpush.xpose.msra.mxu0 0.0
    %1747 = vmatpush.xpose.msra.mxu0 0.0
    %1748 = vmatpush.xpose.msra.mxu0 0.0
    %1749 = vmatpush.xpose.msra.mxu0 0.0
    %v1750 = vand.u32 %v1633, 4294901760
    %v1751 = vsub.f32 %v1633, %v1750
    %v1752 = vand.u32 %v1751, 4294901760
    %1753 = vmatpush.xpose.msra.mxu0 %v1752
    %v1754 = vand.u32 %v1630, 4294901760
    %1755 = vmatmul.f32.gmra.mxu0 %v1754
    %v1756 = vpop.f32.mrf.mxu0
    %v1757 = vadd.f32 %v1733, %v1756
    %1758 = vdwg.mxu0
    %1759 = vmatpush.xpose.msra.mxu0 0.0
    %1760 = vmatpush.xpose.msra.mxu0 0.0
    %1761 = vmatpush.xpose.msra.mxu0 0.0
    %1762 = vmatpush.xpose.msra.mxu0 0.0
    %1763 = vmatpush.xpose.msra.mxu0 0.0
    %1764 = vmatpush.xpose.msra.mxu0 0.0
    %1765 = vmatpush.xpose.msra.mxu0 0.0
    %1766 = vmatpush.xpose.msra.mxu0 0.0
    %1767 = vmatpush.xpose.msra.mxu0 0.0
    %1768 = vmatpush.xpose.msra.mxu0 0.0
    %1769 = vmatpush.xpose.msra.mxu0 0.0
    %1770 = vmatpush.xpose.msra.mxu0 0.0
    %1771 = vmatpush.xpose.msra.mxu0 0.0
    %1772 = vmatpush.xpose.msra.mxu0 0.0
    %1773 = vmatpush.xpose.msra.mxu0 0.0
    %v1774 = vand.u32 %v1633, 4294901760
    %1775 = vmatpush.xpose.msra.mxu0 %v1774
    %v1776 = vand.u32 %v1630, 4294901760
    %1777 = vmatmul.f32.gmra.mxu0 %v1776
    %v1778 = vpop.f32.mrf.mxu0
    %v1779 = vadd.f32 %v1757, %v1778
    %1780 = vdwg.mxu0
    %v1782 = vsel %vm800, %v1549, 0
    %v1785 = vsel %vm800, %v1458, 0
    %1787 = vmatpush.xpose.msra.mxu0 0.0
    %1788 = vmatpush.xpose.msra.mxu0 0.0
    %1789 = vmatpush.xpose.msra.mxu0 0.0
    %1790 = vmatpush.xpose.msra.mxu0 0.0
    %1791 = vmatpush.xpose.msra.mxu0 0.0
    %1792 = vmatpush.xpose.msra.mxu0 0.0
    %1793 = vmatpush.xpose.msra.mxu0 0.0
    %1794 = vmatpush.xpose.msra.mxu0 0.0
    %1795 = vmatpush.xpose.msra.mxu0 0.0
    %1796 = vmatpush.xpose.msra.mxu0 0.0
    %1797 = vmatpush.xpose.msra.mxu0 0.0
    %1798 = vmatpush.xpose.msra.mxu0 0.0
    %1799 = vmatpush.xpose.msra.mxu0 0.0
    %1800 = vmatpush.xpose.msra.mxu0 0.0
    %1801 = vmatpush.xpose.msra.mxu0 0.0
    %v1802 = vand.u32 %v1785, 4294901760
    %1803 = vmatpush.xpose.msra.mxu0 %v1802
    %v1804 = vand.u32 %v1782, 4294901760
    %v1805 = vsub.f32 %v1782, %v1804
    %v1806 = vand.u32 %v1805, 4294901760
    %v1807 = vsub.f32 %v1805, %v1806
    %v1808 = vand.u32 %v1807, 4294901760
    %1809 = vmatmul.f32.gmra.mxu0 %v1808
    %v1810 = vpop.f32.mrf.mxu0
    %v1811 = vadd.f32 0.0, %v1810
    %1812 = vdwg.mxu0
    %1813 = vmatpush.xpose.msra.mxu0 0.0
    %1814 = vmatpush.xpose.msra.mxu0 0.0
    %1815 = vmatpush.xpose.msra.mxu0 0.0
    %1816 = vmatpush.xpose.msra.mxu0 0.0
    %1817 = vmatpush.xpose.msra.mxu0 0.0
    %1818 = vmatpush.xpose.msra.mxu0 0.0
    %1819 = vmatpush.xpose.msra.mxu0 0.0
    %1820 = vmatpush.xpose.msra.mxu0 0.0
    %1821 = vmatpush.xpose.msra.mxu0 0.0
    %1822 = vmatpush.xpose.msra.mxu0 0.0
    %1823 = vmatpush.xpose.msra.mxu0 0.0
    %1824 = vmatpush.xpose.msra.mxu0 0.0
    %1825 = vmatpush.xpose.msra.mxu0 0.0
    %1826 = vmatpush.xpose.msra.mxu0 0.0
    %1827 = vmatpush.xpose.msra.mxu0 0.0
    %v1828 = vand.u32 %v1785, 4294901760
    %v1829 = vsub.f32 %v1785, %v1828
    %v1830 = vand.u32 %v1829, 4294901760
    %v1831 = vsub.f32 %v1829, %v1830
    %v1832 = vand.u32 %v1831, 4294901760
    %1833 = vmatpush.xpose.msra.mxu0 %v1832
    %v1834 = vand.u32 %v1782, 4294901760
    %1835 = vmatmul.f32.gmra.mxu0 %v1834
    %v1836 = vpop.f32.mrf.mxu0
    %v1837 = vadd.f32 %v1811, %v1836
    %1838 = vdwg.mxu0
    %1839 = vmatpush.xpose.msra.mxu0 0.0
    %1840 = vmatpush.xpose.msra.mxu0 0.0
    %1841 = vmatpush.xpose.msra.mxu0 0.0
    %1842 = vmatpush.xpose.msra.mxu0 0.0
    %1843 = vmatpush.xpose.msra.mxu0 0.0
    %1844 = vmatpush.xpose.msra.mxu0 0.0
    %1845 = vmatpush.xpose.msra.mxu0 0.0
    %1846 = vmatpush.xpose.msra.mxu0 0.0
    %1847 = vmatpush.xpose.msra.mxu0 0.0
    %1848 = vmatpush.xpose.msra.mxu0 0.0
    %1849 = vmatpush.xpose.msra.mxu0 0.0
    %1850 = vmatpush.xpose.msra.mxu0 0.0
    %1851 = vmatpush.xpose.msra.mxu0 0.0
    %1852 = vmatpush.xpose.msra.mxu0 0.0
    %1853 = vmatpush.xpose.msra.mxu0 0.0
    %v1854 = vand.u32 %v1785, 4294901760
    %v1855 = vsub.f32 %v1785, %v1854
    %1856 = vmatpush.xpose.msra.mxu0 %v1855
    %v1857 = vand.u32 %v1782, 4294901760
    %v1858 = vsub.f32 %v1782, %v1857
    %1859 = vmatmul.f32.gmra.mxu0 %v1858
    %v1860 = vpop.f32.mrf.mxu0
    %v1861 = vadd.f32 %v1837, %v1860
    %1862 = vdwg.mxu0
    %1863 = vmatpush.xpose.msra.mxu0 0.0
    %1864 = vmatpush.xpose.msra.mxu0 0.0
    %1865 = vmatpush.xpose.msra.mxu0 0.0
    %1866 = vmatpush.xpose.msra.mxu0 0.0
    %1867 = vmatpush.xpose.msra.mxu0 0.0
    %1868 = vmatpush.xpose.msra.mxu0 0.0
    %1869 = vmatpush.xpose.msra.mxu0 0.0
    %1870 = vmatpush.xpose.msra.mxu0 0.0
    %1871 = vmatpush.xpose.msra.mxu0 0.0
    %1872 = vmatpush.xpose.msra.mxu0 0.0
    %1873 = vmatpush.xpose.msra.mxu0 0.0
    %1874 = vmatpush.xpose.msra.mxu0 0.0
    %1875 = vmatpush.xpose.msra.mxu0 0.0
    %1876 = vmatpush.xpose.msra.mxu0 0.0
    %1877 = vmatpush.xpose.msra.mxu0 0.0
    %v1878 = vand.u32 %v1785, 4294901760
    %1879 = vmatpush.xpose.msra.mxu0 %v1878
    %v1880 = vand.u32 %v1782, 4294901760
    %v1881 = vsub.f32 %v1782, %v1880
    %v1882 = vand.u32 %v1881, 4294901760
    %1883 = vmatmul.f32.gmra.mxu0 %v1882
    %v1884 = vpop.f32.mrf.mxu0
    %v1885 = vadd.f32 %v1861, %v1884
    %1886 = vdwg.mxu0
    %1887 = vmatpush.xpose.msra.mxu0 0.0
    %1888 = vmatpush.xpose.msra.mxu0 0.0
    %1889 = vmatpush.xpose.msra.mxu0 0.0
    %1890 = vmatpush.xpose.msra.mxu0 0.0
    %1891 = vmatpush.xpose.msra.mxu0 0.0
    %1892 = vmatpush.xpose.msra.mxu0 0.0
    %1893 = vmatpush.xpose.msra.mxu0 0.0
    %1894 = vmatpush.xpose.msra.mxu0 0.0
    %1895 = vmatpush.xpose.msra.mxu0 0.0
    %1896 = vmatpush.xpose.msra.mxu0 0.0
    %1897 = vmatpush.xpose.msra.mxu0 0.0
    %1898 = vmatpush.xpose.msra.mxu0 0.0
    %1899 = vmatpush.xpose.msra.mxu0 0.0
    %1900 = vmatpush.xpose.msra.mxu0 0.0
    %1901 = vmatpush.xpose.msra.mxu0 0.0
    %v1902 = vand.u32 %v1785, 4294901760
    %v1903 = vsub.f32 %v1785, %v1902
    %v1904 = vand.u32 %v1903, 4294901760
    %1905 = vmatpush.xpose.msra.mxu0 %v1904
    %v1906 = vand.u32 %v1782, 4294901760
    %1907 = vmatmul.f32.gmra.mxu0 %v1906
    %v1908 = vpop.f32.mrf.mxu0
    %v1909 = vadd.f32 %v1885, %v1908
    %1910 = vdwg.mxu0
    %1911 = vmatpush.xpose.msra.mxu0 0.0
    %1912 = vmatpush.xpose.msra.mxu0 0.0
    %1913 = vmatpush.xpose.msra.mxu0 0.0
    %1914 = vmatpush.xpose.msra.mxu0 0.0
    %1915 = vmatpush.xpose.msra.mxu0 0.0
    %1916 = vmatpush.xpose.msra.mxu0 0.0
    %1917 = vmatpush.xpose.msra.mxu0 0.0
    %1918 = vmatpush.xpose.msra.mxu0 0.0
    %1919 = vmatpush.xpose.msra.mxu0 0.0
    %1920 = vmatpush.xpose.msra.mxu0 0.0
    %1921 = vmatpush.xpose.msra.mxu0 0.0
    %1922 = vmatpush.xpose.msra.mxu0 0.0
    %1923 = vmatpush.xpose.msra.mxu0 0.0
    %1924 = vmatpush.xpose.msra.mxu0 0.0
    %1925 = vmatpush.xpose.msra.mxu0 0.0
    %v1926 = vand.u32 %v1785, 4294901760
    %1927 = vmatpush.xpose.msra.mxu0 %v1926
    %v1928 = vand.u32 %v1782, 4294901760
    %1929 = vmatmul.f32.gmra.mxu0 %v1928
    %v1930 = vpop.f32.mrf.mxu0
    %v1931 = vadd.f32 %v1909, %v1930
    %1932 = vdwg.mxu0
    %v1934 = vsel %vm800, %v1581, 0
    %v1937 = vsel %vm800, %v1473, 0
    %1939 = vmatpush.xpose.msra.mxu0 0.0
    %1940 = vmatpush.xpose.msra.mxu0 0.0
    %1941 = vmatpush.xpose.msra.mxu0 0.0
    %1942 = vmatpush.xpose.msra.mxu0 0.0
    %1943 = vmatpush.xpose.msra.mxu0 0.0
    %1944 = vmatpush.xpose.msra.mxu0 0.0
    %1945 = vmatpush.xpose.msra.mxu0 0.0
    %1946 = vmatpush.xpose.msra.mxu0 0.0
    %1947 = vmatpush.xpose.msra.mxu0 0.0
    %1948 = vmatpush.xpose.msra.mxu0 0.0
    %1949 = vmatpush.xpose.msra.mxu0 0.0
    %1950 = vmatpush.xpose.msra.mxu0 0.0
    %1951 = vmatpush.xpose.msra.mxu0 0.0
    %1952 = vmatpush.xpose.msra.mxu0 0.0
    %1953 = vmatpush.xpose.msra.mxu0 0.0
    %v1954 = vand.u32 %v1937, 4294901760
    %1955 = vmatpush.xpose.msra.mxu0 %v1954
    %v1956 = vand.u32 %v1934, 4294901760
    %v1957 = vsub.f32 %v1934, %v1956
    %v1958 = vand.u32 %v1957, 4294901760
    %v1959 = vsub.f32 %v1957, %v1958
    %v1960 = vand.u32 %v1959, 4294901760
    %1961 = vmatmul.f32.gmra.mxu0 %v1960
    %v1962 = vpop.f32.mrf.mxu0
    %v1963 = vadd.f32 0.0, %v1962
    %1964 = vdwg.mxu0
    %1965 = vmatpush.xpose.msra.mxu0 0.0
    %1966 = vmatpush.xpose.msra.mxu0 0.0
    %1967 = vmatpush.xpose.msra.mxu0 0.0
    %1968 = vmatpush.xpose.msra.mxu0 0.0
    %1969 = vmatpush.xpose.msra.mxu0 0.0
    %1970 = vmatpush.xpose.msra.mxu0 0.0
    %1971 = vmatpush.xpose.msra.mxu0 0.0
    %1972 = vmatpush.xpose.msra.mxu0 0.0
    %1973 = vmatpush.xpose.msra.mxu0 0.0
    %1974 = vmatpush.xpose.msra.mxu0 0.0
    %1975 = vmatpush.xpose.msra.mxu0 0.0
    %1976 = vmatpush.xpose.msra.mxu0 0.0
    %1977 = vmatpush.xpose.msra.mxu0 0.0
    %1978 = vmatpush.xpose.msra.mxu0 0.0
    %1979 = vmatpush.xpose.msra.mxu0 0.0
    %v1980 = vand.u32 %v1937, 4294901760
    %v1981 = vsub.f32 %v1937, %v1980
    %v1982 = vand.u32 %v1981, 4294901760
    %v1983 = vsub.f32 %v1981, %v1982
    %v1984 = vand.u32 %v1983, 4294901760
    %1985 = vmatpush.xpose.msra.mxu0 %v1984
    %v1986 = vand.u32 %v1934, 4294901760
    %1987 = vmatmul.f32.gmra.mxu0 %v1986
    %v1988 = vpop.f32.mrf.mxu0
    %v1989 = vadd.f32 %v1963, %v1988
    %1990 = vdwg.mxu0
    %1991 = vmatpush.xpose.msra.mxu0 0.0
    %1992 = vmatpush.xpose.msra.mxu0 0.0
    %1993 = vmatpush.xpose.msra.mxu0 0.0
    %1994 = vmatpush.xpose.msra.mxu0 0.0
    %1995 = vmatpush.xpose.msra.mxu0 0.0
    %1996 = vmatpush.xpose.msra.mxu0 0.0
    %1997 = vmatpush.xpose.msra.mxu0 0.0
    %1998 = vmatpush.xpose.msra.mxu0 0.0
    %1999 = vmatpush.xpose.msra.mxu0 0.0
    %2000 = vmatpush.xpose.msra.mxu0 0.0
    %2001 = vmatpush.xpose.msra.mxu0 0.0
    %2002 = vmatpush.xpose.msra.mxu0 0.0
    %2003 = vmatpush.xpose.msra.mxu0 0.0
    %2004 = vmatpush.xpose.msra.mxu0 0.0
    %2005 = vmatpush.xpose.msra.mxu0 0.0
    %v2006 = vand.u32 %v1937, 4294901760
    %v2007 = vsub.f32 %v1937, %v2006
    %2008 = vmatpush.xpose.msra.mxu0 %v2007
    %v2009 = vand.u32 %v1934, 4294901760
    %v2010 = vsub.f32 %v1934, %v2009
    %2011 = vmatmul.f32.gmra.mxu0 %v2010
    %v2012 = vpop.f32.mrf.mxu0
    %v2013 = vadd.f32 %v1989, %v2012
    %2014 = vdwg.mxu0
    %2015 = vmatpush.xpose.msra.mxu0 0.0
    %2016 = vmatpush.xpose.msra.mxu0 0.0
    %2017 = vmatpush.xpose.msra.mxu0 0.0
    %2018 = vmatpush.xpose.msra.mxu0 0.0
    %2019 = vmatpush.xpose.msra.mxu0 0.0
    %2020 = vmatpush.xpose.msra.mxu0 0.0
    %2021 = vmatpush.xpose.msra.mxu0 0.0
    %2022 = vmatpush.xpose.msra.mxu0 0.0
    %2023 = vmatpush.xpose.msra.mxu0 0.0
    %2024 = vmatpush.xpose.msra.mxu0 0.0
    %2025 = vmatpush.xpose.msra.mxu0 0.0
    %2026 = vmatpush.xpose.msra.mxu0 0.0
    %2027 = vmatpush.xpose.msra.mxu0 0.0
    %2028 = vmatpush.xpose.msra.mxu0 0.0
    %2029 = vmatpush.xpose.msra.mxu0 0.0
    %v2030 = vand.u32 %v1937, 4294901760
    %2031 = vmatpush.xpose.msra.mxu0 %v2030
    %v2032 = vand.u32 %v1934, 4294901760
    %v2033 = vsub.f32 %v1934, %v2032
    %v2034 = vand.u32 %v2033, 4294901760
    %2035 = vmatmul.f32.gmra.mxu0 %v2034
    %v2036 = vpop.f32.mrf.mxu0
    %v2037 = vadd.f32 %v2013, %v2036
    %2038 = vdwg.mxu0
    %2039 = vmatpush.xpose.msra.mxu0 0.0
    %2040 = vmatpush.xpose.msra.mxu0 0.0
    %2041 = vmatpush.xpose.msra.mxu0 0.0
    %2042 = vmatpush.xpose.msra.mxu0 0.0
    %2043 = vmatpush.xpose.msra.mxu0 0.0
    %2044 = vmatpush.xpose.msra.mxu0 0.0
    %2045 = vmatpush.xpose.msra.mxu0 0.0
    %2046 = vmatpush.xpose.msra.mxu0 0.0
    %2047 = vmatpush.xpose.msra.mxu0 0.0
    %2048 = vmatpush.xpose.msra.mxu0 0.0
    %2049 = vmatpush.xpose.msra.mxu0 0.0
    %2050 = vmatpush.xpose.msra.mxu0 0.0
    %2051 = vmatpush.xpose.msra.mxu0 0.0
    %2052 = vmatpush.xpose.msra.mxu0 0.0
    %2053 = vmatpush.xpose.msra.mxu0 0.0
    %v2054 = vand.u32 %v1937, 4294901760
    %v2055 = vsub.f32 %v1937, %v2054
    %v2056 = vand.u32 %v2055, 4294901760
    %2057 = vmatpush.xpose.msra.mxu0 %v2056
    %v2058 = vand.u32 %v1934, 4294901760
    %2059 = vmatmul.f32.gmra.mxu0 %v2058
    %v2060 = vpop.f32.mrf.mxu0
    %v2061 = vadd.f32 %v2037, %v2060
    %2062 = vdwg.mxu0
    %2063 = vmatpush.xpose.msra.mxu0 0.0
    %2064 = vmatpush.xpose.msra.mxu0 0.0
    %2065 = vmatpush.xpose.msra.mxu0 0.0
    %2066 = vmatpush.xpose.msra.mxu0 0.0
    %2067 = vmatpush.xpose.msra.mxu0 0.0
    %2068 = vmatpush.xpose.msra.mxu0 0.0
    %2069 = vmatpush.xpose.msra.mxu0 0.0
    %2070 = vmatpush.xpose.msra.mxu0 0.0
    %2071 = vmatpush.xpose.msra.mxu0 0.0
    %2072 = vmatpush.xpose.msra.mxu0 0.0
    %2073 = vmatpush.xpose.msra.mxu0 0.0
    %2074 = vmatpush.xpose.msra.mxu0 0.0
    %2075 = vmatpush.xpose.msra.mxu0 0.0
    %2076 = vmatpush.xpose.msra.mxu0 0.0
    %2077 = vmatpush.xpose.msra.mxu0 0.0
    %v2078 = vand.u32 %v1937, 4294901760
    %2079 = vmatpush.xpose.msra.mxu0 %v2078
    %v2080 = vand.u32 %v1934, 4294901760
    %2081 = vmatmul.f32.gmra.mxu0 %v2080
    %v2082 = vpop.f32.mrf.mxu0
    %v2083 = vadd.f32 %v2061, %v2082
    %2084 = vdwg.mxu0
    %v2086 = vsel %vm800, %v1613, 0
    %v2089 = vsel %vm800, %v1488, 0
    %2091 = vmatpush.xpose.msra.mxu0 0.0
    %2092 = vmatpush.xpose.msra.mxu0 0.0
    %2093 = vmatpush.xpose.msra.mxu0 0.0
    %2094 = vmatpush.xpose.msra.mxu0 0.0
    %2095 = vmatpush.xpose.msra.mxu0 0.0
    %2096 = vmatpush.xpose.msra.mxu0 0.0
    %2097 = vmatpush.xpose.msra.mxu0 0.0
    %2098 = vmatpush.xpose.msra.mxu0 0.0
    %2099 = vmatpush.xpose.msra.mxu0 0.0
    %2100 = vmatpush.xpose.msra.mxu0 0.0
    %2101 = vmatpush.xpose.msra.mxu0 0.0
    %2102 = vmatpush.xpose.msra.mxu0 0.0
    %2103 = vmatpush.xpose.msra.mxu0 0.0
    %2104 = vmatpush.xpose.msra.mxu0 0.0
    %2105 = vmatpush.xpose.msra.mxu0 0.0
    %v2106 = vand.u32 %v2089, 4294901760
    %2107 = vmatpush.xpose.msra.mxu0 %v2106
    %v2108 = vand.u32 %v2086, 4294901760
    %v2109 = vsub.f32 %v2086, %v2108
    %v2110 = vand.u32 %v2109, 4294901760
    %v2111 = vsub.f32 %v2109, %v2110
    %v2112 = vand.u32 %v2111, 4294901760
    %2113 = vmatmul.f32.gmra.mxu0 %v2112
    %v2114 = vpop.f32.mrf.mxu0
    %v2115 = vadd.f32 0.0, %v2114
    %2116 = vdwg.mxu0
    %2117 = vmatpush.xpose.msra.mxu0 0.0
    %2118 = vmatpush.xpose.msra.mxu0 0.0
    %2119 = vmatpush.xpose.msra.mxu0 0.0
    %2120 = vmatpush.xpose.msra.mxu0 0.0
    %2121 = vmatpush.xpose.msra.mxu0 0.0
    %2122 = vmatpush.xpose.msra.mxu0 0.0
    %2123 = vmatpush.xpose.msra.mxu0 0.0
    %2124 = vmatpush.xpose.msra.mxu0 0.0
    %2125 = vmatpush.xpose.msra.mxu0 0.0
    %2126 = vmatpush.xpose.msra.mxu0 0.0
    %2127 = vmatpush.xpose.msra.mxu0 0.0
    %2128 = vmatpush.xpose.msra.mxu0 0.0
    %2129 = vmatpush.xpose.msra.mxu0 0.0
    %2130 = vmatpush.xpose.msra.mxu0 0.0
    %2131 = vmatpush.xpose.msra.mxu0 0.0
    %v2132 = vand.u32 %v2089, 4294901760
    %v2133 = vsub.f32 %v2089, %v2132
    %v2134 = vand.u32 %v2133, 4294901760
    %v2135 = vsub.f32 %v2133, %v2134
    %v2136 = vand.u32 %v2135, 4294901760
    %2137 = vmatpush.xpose.msra.mxu0 %v2136
    %v2138 = vand.u32 %v2086, 4294901760
    %2139 = vmatmul.f32.gmra.mxu0 %v2138
    %v2140 = vpop.f32.mrf.mxu0
    %v2141 = vadd.f32 %v2115, %v2140
    %2142 = vdwg.mxu0
    %2143 = vmatpush.xpose.msra.mxu0 0.0
    %2144 = vmatpush.xpose.msra.mxu0 0.0
    %2145 = vmatpush.xpose.msra.mxu0 0.0
    %2146 = vmatpush.xpose.msra.mxu0 0.0
    %2147 = vmatpush.xpose.msra.mxu0 0.0
    %2148 = vmatpush.xpose.msra.mxu0 0.0
    %2149 = vmatpush.xpose.msra.mxu0 0.0
    %2150 = vmatpush.xpose.msra.mxu0 0.0
    %2151 = vmatpush.xpose.msra.mxu0 0.0
    %2152 = vmatpush.xpose.msra.mxu0 0.0
    %2153 = vmatpush.xpose.msra.mxu0 0.0
    %2154 = vmatpush.xpose.msra.mxu0 0.0
    %2155 = vmatpush.xpose.msra.mxu0 0.0
    %2156 = vmatpush.xpose.msra.mxu0 0.0
    %2157 = vmatpush.xpose.msra.mxu0 0.0
    %v2158 = vand.u32 %v2089, 4294901760
    %v2159 = vsub.f32 %v2089, %v2158
    %2160 = vmatpush.xpose.msra.mxu0 %v2159
    %v2161 = vand.u32 %v2086, 4294901760
    %v2162 = vsub.f32 %v2086, %v2161
    %2163 = vmatmul.f32.gmra.mxu0 %v2162
    %v2164 = vpop.f32.mrf.mxu0
    %v2165 = vadd.f32 %v2141, %v2164
    %2166 = vdwg.mxu0
    %2167 = vmatpush.xpose.msra.mxu0 0.0
    %2168 = vmatpush.xpose.msra.mxu0 0.0
    %2169 = vmatpush.xpose.msra.mxu0 0.0
    %2170 = vmatpush.xpose.msra.mxu0 0.0
    %2171 = vmatpush.xpose.msra.mxu0 0.0
    %2172 = vmatpush.xpose.msra.mxu0 0.0
    %2173 = vmatpush.xpose.msra.mxu0 0.0
    %2174 = vmatpush.xpose.msra.mxu0 0.0
    %2175 = vmatpush.xpose.msra.mxu0 0.0
    %2176 = vmatpush.xpose.msra.mxu0 0.0
    %2177 = vmatpush.xpose.msra.mxu0 0.0
    %2178 = vmatpush.xpose.msra.mxu0 0.0
    %2179 = vmatpush.xpose.msra.mxu0 0.0
    %2180 = vmatpush.xpose.msra.mxu0 0.0
    %2181 = vmatpush.xpose.msra.mxu0 0.0
    %v2182 = vand.u32 %v2089, 4294901760
    %2183 = vmatpush.xpose.msra.mxu0 %v2182
    %v2184 = vand.u32 %v2086, 4294901760
    %v2185 = vsub.f32 %v2086, %v2184
    %v2186 = vand.u32 %v2185, 4294901760
    %2187 = vmatmul.f32.gmra.mxu0 %v2186
    %v2188 = vpop.f32.mrf.mxu0
    %v2189 = vadd.f32 %v2165, %v2188
    %2190 = vdwg.mxu0
    %2191 = vmatpush.xpose.msra.mxu0 0.0
    %2192 = vmatpush.xpose.msra.mxu0 0.0
    %2193 = vmatpush.xpose.msra.mxu0 0.0
    %2194 = vmatpush.xpose.msra.mxu0 0.0
    %2195 = vmatpush.xpose.msra.mxu0 0.0
    %2196 = vmatpush.xpose.msra.mxu0 0.0
    %2197 = vmatpush.xpose.msra.mxu0 0.0
    %2198 = vmatpush.xpose.msra.mxu0 0.0
    %2199 = vmatpush.xpose.msra.mxu0 0.0
    %2200 = vmatpush.xpose.msra.mxu0 0.0
    %2201 = vmatpush.xpose.msra.mxu0 0.0
    %2202 = vmatpush.xpose.msra.mxu0 0.0
    %2203 = vmatpush.xpose.msra.mxu0 0.0
    %2204 = vmatpush.xpose.msra.mxu0 0.0
    %2205 = vmatpush.xpose.msra.mxu0 0.0
    %v2206 = vand.u32 %v2089, 4294901760
    %v2207 = vsub.f32 %v2089, %v2206
    %v2208 = vand.u32 %v2207, 4294901760
    %2209 = vmatpush.xpose.msra.mxu0 %v2208
    %v2210 = vand.u32 %v2086, 4294901760
    %2211 = vmatmul.f32.gmra.mxu0 %v2210
    %v2212 = vpop.f32.mrf.mxu0
    %v2213 = vadd.f32 %v2189, %v2212
    %2214 = vdwg.mxu0
    %2215 = vmatpush.xpose.msra.mxu0 0.0
    %2216 = vmatpush.xpose.msra.mxu0 0.0
    %2217 = vmatpush.xpose.msra.mxu0 0.0
    %2218 = vmatpush.xpose.msra.mxu0 0.0
    %2219 = vmatpush.xpose.msra.mxu0 0.0
    %2220 = vmatpush.xpose.msra.mxu0 0.0
    %2221 = vmatpush.xpose.msra.mxu0 0.0
    %2222 = vmatpush.xpose.msra.mxu0 0.0
    %2223 = vmatpush.xpose.msra.mxu0 0.0
    %2224 = vmatpush.xpose.msra.mxu0 0.0
    %2225 = vmatpush.xpose.msra.mxu0 0.0
    %2226 = vmatpush.xpose.msra.mxu0 0.0
    %2227 = vmatpush.xpose.msra.mxu0 0.0
    %2228 = vmatpush.xpose.msra.mxu0 0.0
    %2229 = vmatpush.xpose.msra.mxu0 0.0
    %v2230 = vand.u32 %v2089, 4294901760
    %2231 = vmatpush.xpose.msra.mxu0 %v2230
    %v2232 = vand.u32 %v2086, 4294901760
    %2233 = vmatmul.f32.gmra.mxu0 %v2232
    %v2234 = vpop.f32.mrf.mxu0
    %v2235 = vadd.f32 %v2213, %v2234
    %2236 = vdwg.mxu0
    %2237 = vxpose.xlu0.b32.start [1/16] %v1779, 128
    %2238 = vxpose.xlu0.b32.cont [2/16] 0.0, 128
    %2239 = vxpose.xlu0.b32.cont [3/16] 0.0, 128
    %2240 = vxpose.xlu0.b32.cont [4/16] 0.0, 128
    %2241 = vxpose.xlu0.b32.cont [5/16] 0.0, 128
    %2242 = vxpose.xlu0.b32.cont [6/16] 0.0, 128
    %2243 = vxpose.xlu0.b32.cont [7/16] 0.0, 128
    %2244 = vxpose.xlu0.b32.cont [8/16] 0.0, 128
    %2245 = vxpose.xlu0.b32.cont [9/16] 0.0, 128
    %2246 = vxpose.xlu0.b32.cont [10/16] 0.0, 128
    %2247 = vxpose.xlu0.b32.cont [11/16] 0.0, 128
    %2248 = vxpose.xlu0.b32.cont [12/16] 0.0, 128
    %2249 = vxpose.xlu0.b32.cont [13/16] 0.0, 128
    %2250 = vxpose.xlu0.b32.cont [14/16] 0.0, 128
    %2251 = vxpose.xlu0.b32.cont [15/16] 0.0, 128
    %2252 = vxpose.xlu0.b32.end [16/16] 0.0, 128
    %v2253 = vpop.trf.xlu0
    %v2254 = vpop.trf.xlu0
    %v2255 = vpop.trf.xlu0
    %v2256 = vpop.trf.xlu0
    %v2257 = vpop.trf.xlu0
    %v2258 = vpop.trf.xlu0
    %v2259 = vpop.trf.xlu0
    %v2260 = vpop.trf.xlu0
    %v2261 = vpop.trf.xlu0
    %v2262 = vpop.trf.xlu0
    %v2263 = vpop.trf.xlu0
    %v2264 = vpop.trf.xlu0
    %v2265 = vpop.trf.xlu0
    %v2266 = vpop.trf.xlu0
    %v2267 = vpop.trf.xlu0
    %v2268 = vpop.trf.xlu0
    %2269 = vxpose.xlu0.b32.start [1/16] %v1931, 128
    %2270 = vxpose.xlu0.b32.cont [2/16] 0.0, 128
    %2271 = vxpose.xlu0.b32.cont [3/16] 0.0, 128
    %2272 = vxpose.xlu0.b32.cont [4/16] 0.0, 128
    %2273 = vxpose.xlu0.b32.cont [5/16] 0.0, 128
    %2274 = vxpose.xlu0.b32.cont [6/16] 0.0, 128
    %2275 = vxpose.xlu0.b32.cont [7/16] 0.0, 128
    %2276 = vxpose.xlu0.b32.cont [8/16] 0.0, 128
    %2277 = vxpose.xlu0.b32.cont [9/16] 0.0, 128
    %2278 = vxpose.xlu0.b32.cont [10/16] 0.0, 128
    %2279 = vxpose.xlu0.b32.cont [11/16] 0.0, 128
    %2280 = vxpose.xlu0.b32.cont [12/16] 0.0, 128
    %2281 = vxpose.xlu0.b32.cont [13/16] 0.0, 128
    %2282 = vxpose.xlu0.b32.cont [14/16] 0.0, 128
    %2283 = vxpose.xlu0.b32.cont [15/16] 0.0, 128
    %2284 = vxpose.xlu0.b32.end [16/16] 0.0, 128
    %v2285 = vpop.trf.xlu0
    %v2286 = vpop.trf.xlu0
    %v2287 = vpop.trf.xlu0
    %v2288 = vpop.trf.xlu0
    %v2289 = vpop.trf.xlu0
    %v2290 = vpop.trf.xlu0
    %v2291 = vpop.trf.xlu0
    %v2292 = vpop.trf.xlu0
    %v2293 = vpop.trf.xlu0
    %v2294 = vpop.trf.xlu0
    %v2295 = vpop.trf.xlu0
    %v2296 = vpop.trf.xlu0
    %v2297 = vpop.trf.xlu0
    %v2298 = vpop.trf.xlu0
    %v2299 = vpop.trf.xlu0
    %v2300 = vpop.trf.xlu0
    %2301 = vxpose.xlu0.b32.start [1/16] %v2083, 128
    %2302 = vxpose.xlu0.b32.cont [2/16] 0.0, 128
    %2303 = vxpose.xlu0.b32.cont [3/16] 0.0, 128
    %2304 = vxpose.xlu0.b32.cont [4/16] 0.0, 128
    %2305 = vxpose.xlu0.b32.cont [5/16] 0.0, 128
    %2306 = vxpose.xlu0.b32.cont [6/16] 0.0, 128
    %2307 = vxpose.xlu0.b32.cont [7/16] 0.0, 128
    %2308 = vxpose.xlu0.b32.cont [8/16] 0.0, 128
    %2309 = vxpose.xlu0.b32.cont [9/16] 0.0, 128
    %2310 = vxpose.xlu0.b32.cont [10/16] 0.0, 128
    %2311 = vxpose.xlu0.b32.cont [11/16] 0.0, 128
    %2312 = vxpose.xlu0.b32.cont [12/16] 0.0, 128
    %2313 = vxpose.xlu0.b32.cont [13/16] 0.0, 128
    %2314 = vxpose.xlu0.b32.cont [14/16] 0.0, 128
    %2315 = vxpose.xlu0.b32.cont [15/16] 0.0, 128
    %2316 = vxpose.xlu0.b32.end [16/16] 0.0, 128
    %v2317 = vpop.trf.xlu0
    %v2318 = vpop.trf.xlu0
    %v2319 = vpop.trf.xlu0
    %v2320 = vpop.trf.xlu0
    %v2321 = vpop.trf.xlu0
    %v2322 = vpop.trf.xlu0
    %v2323 = vpop.trf.xlu0
    %v2324 = vpop.trf.xlu0
    %v2325 = vpop.trf.xlu0
    %v2326 = vpop.trf.xlu0
    %v2327 = vpop.trf.xlu0
    %v2328 = vpop.trf.xlu0
    %v2329 = vpop.trf.xlu0
    %v2330 = vpop.trf.xlu0
    %v2331 = vpop.trf.xlu0
    %v2332 = vpop.trf.xlu0
    %2333 = vxpose.xlu0.b32.start [1/16] %v2235, 128
    %2334 = vxpose.xlu0.b32.cont [2/16] 0.0, 128
    %2335 = vxpose.xlu0.b32.cont [3/16] 0.0, 128
    %2336 = vxpose.xlu0.b32.cont [4/16] 0.0, 128
    %2337 = vxpose.xlu0.b32.cont [5/16] 0.0, 128
    %2338 = vxpose.xlu0.b32.cont [6/16] 0.0, 128
    %2339 = vxpose.xlu0.b32.cont [7/16] 0.0, 128
    %2340 = vxpose.xlu0.b32.cont [8/16] 0.0, 128
    %2341 = vxpose.xlu0.b32.cont [9/16] 0.0, 128
    %2342 = vxpose.xlu0.b32.cont [10/16] 0.0, 128
    %2343 = vxpose.xlu0.b32.cont [11/16] 0.0, 128
    %2344 = vxpose.xlu0.b32.cont [12/16] 0.0, 128
    %2345 = vxpose.xlu0.b32.cont [13/16] 0.0, 128
    %2346 = vxpose.xlu0.b32.cont [14/16] 0.0, 128
    %2347 = vxpose.xlu0.b32.cont [15/16] 0.0, 128
    %2348 = vxpose.xlu0.b32.end [16/16] 0.0, 128
    %v2349 = vpop.trf.xlu0
    %v2350 = vpop.trf.xlu0
    %v2351 = vpop.trf.xlu0
    %v2352 = vpop.trf.xlu0
    %v2353 = vpop.trf.xlu0
    %v2354 = vpop.trf.xlu0
    %v2355 = vpop.trf.xlu0
    %v2356 = vpop.trf.xlu0
    %v2357 = vpop.trf.xlu0
    %v2358 = vpop.trf.xlu0
    %v2359 = vpop.trf.xlu0
    %v2360 = vpop.trf.xlu0
    %v2361 = vpop.trf.xlu0
    %v2362 = vpop.trf.xlu0
    %v2363 = vpop.trf.xlu0
    %v2364 = vpop.trf.xlu0
    %v2365 = vrot.slane %v2317, 4
    %vm2366 = vcmask 1047556
    %v2367 = vsel %vm2366, %v2365, %v2253
    %v2368 = vrot.slane %v2253, 4
    %v2369 = vsel %vm2366, %v2317, %v2368
    %v2371 = vunpack.c.l.s4 1983009808
    %v2372 = vunpack.c.0.s8 %v2371
    %v2373 = vperm.slane %v2367, %v2372
    %v2375 = vunpack.c.l.s4 1983009808
    %v2376 = vunpack.c.0.s8 %v2375
    %v2377 = vperm.slane %v2369, %v2376
    %v2378 = vrot.slane %v2349, 4
    %v2379 = vsel %vm2366, %v2378, %v2285
    %v2380 = vrot.slane %v2285, 4
    %v2381 = vsel %vm2366, %v2349, %v2380
    %v2383 = vunpack.c.l.s4 1983009808
    %v2384 = vunpack.c.0.s8 %v2383
    %v2385 = vperm.slane %v2379, %v2384
    %v2387 = vunpack.c.l.s4 1983009808
    %v2388 = vunpack.c.0.s8 %v2387
    %v2389 = vperm.slane %v2381, %v2388
    %v2390 = vrot.slane %v2385, 4
    %v2391 = vsel %vm2366, %v2390, %v2373
    %v2392 = vrot.slane %v2373, 4
    %v2393 = vsel %vm2366, %v2385, %v2392
    %v2395 = vunpack.c.l.s4 1934713408
    %v2396 = vunpack.c.0.s8 %v2395
    %v2397 = vperm.slane %v2391, %v2396
    %v2399 = vunpack.c.l.s4 1934713408
    %v2400 = vunpack.c.0.s8 %v2399
    %v2401 = vperm.slane %v2393, %v2400
    %v2402 = vrot.slane %v2389, 4
    %v2403 = vsel %vm2366, %v2402, %v2377
    %v2404 = vrot.slane %v2377, 4
    %v2405 = vsel %vm2366, %v2389, %v2404
    %v2407 = vunpack.c.l.s4 1934713408
    %v2408 = vunpack.c.0.s8 %v2407
    %v2409 = vperm.slane %v2403, %v2408
    %v2411 = vunpack.c.l.s4 1934713408
    %v2412 = vunpack.c.0.s8 %v2411
    %v2413 = vperm.slane %v2405, %v2412
    %v2414 = vrot.slane %v2397, 4
    %v2415 = vsel %vm2366, 0.0, %v2414
    %v2416 = vrot.slane %v2401, 4
    %v2417 = vsel %vm2366, 0.0, %v2416
    %v2418 = vrot.slane %v2409, 4
    %v2419 = vsel %vm2366, 0.0, %v2418
    %v2420 = vrot.slane %v2413, 4
    %v2421 = vsel %vm2366, 0.0, %v2420
    %v2422 = vsel %vm2366, %v2416, %v2397
    %v2424 = vunpack.c.l.s4 1983009808
    %v2425 = vunpack.c.0.s8 %v2424
    %v2426 = vperm.slane %v2422, %v2425
    %v2427 = vrot.slane %v2417, 4
    %v2428 = vsel %vm2366, %v2427, %v2415
    %v2430 = vunpack.c.l.s4 1983009808
    %v2431 = vunpack.c.0.s8 %v2430
    %v2432 = vperm.slane %v2428, %v2431
    %v2433 = vsel %vm2366, %v2420, %v2409
    %v2435 = vunpack.c.l.s4 1983009808
    %v2436 = vunpack.c.0.s8 %v2435
    %v2437 = vperm.slane %v2433, %v2436
    %v2438 = vrot.slane %v2421, 4
    %v2439 = vsel %vm2366, %v2438, %v2419
    %v2441 = vunpack.c.l.s4 1983009808
    %v2442 = vunpack.c.0.s8 %v2441
    %v2443 = vperm.slane %v2439, %v2442
    %v2444 = vrot.slane %v2432, 4
    %v2445 = vsel %vm2366, %v2444, %v2426
    %v2446 = vrot.slane %v2426, 4
    %v2447 = vsel %vm2366, %v2432, %v2446
    %v2449 = vunpack.c.l.s4 1934713408
    %v2450 = vunpack.c.0.s8 %v2449
    %v2451 = vperm.slane %v2445, %v2450
    %v2453 = vunpack.c.l.s4 1934713408
    %v2454 = vunpack.c.0.s8 %v2453
    %v2455 = vperm.slane %v2447, %v2454
    %v2456 = vrot.slane %v2443, 4
    %v2457 = vsel %vm2366, %v2456, %v2437
    %v2458 = vrot.slane %v2437, 4
    %v2459 = vsel %vm2366, %v2443, %v2458
    %v2461 = vunpack.c.l.s4 1934713408
    %v2462 = vunpack.c.0.s8 %v2461
    %v2463 = vperm.slane %v2457, %v2462
    %v2465 = vunpack.c.l.s4 1934713408
    %v2466 = vunpack.c.0.s8 %v2465
    %v2467 = vperm.slane %v2459, %v2466
    %v2468 = vrot.slane %v2463, 4
    %v2469 = vsel %vm2366, %v2468, %v2451
    %v2470 = vrot.slane %v2451, 4
    %v2471 = vsel %vm2366, %v2463, %v2470
    %v2472 = vrot.slane %v2467, 4
    %v2473 = vsel %vm2366, %v2472, %v2455
    %v2474 = vrot.slane %v2455, 4
    %v2475 = vsel %vm2366, %v2467, %v2474
    %2477 = vrot.lane.b32.xlu0 %v2471, 8
    %v2478 = vpop.permute.xlu0 %2477
    %2481 = vrot.lane.b32.xlu0 %v2473, 16
    %v2482 = vpop.permute.xlu0 %2481
    %2485 = vrot.lane.b32.xlu0 %v2475, 24
    %v2486 = vpop.permute.xlu0 %2485
    %v2488 = vsel %vm800, %v2469, %v2478
    %vm2489 = vcmask 130048
    %v2490 = vsel %vm2489, %v2488, %v2482
    %vm2491 = vcmask 195584
    %v2492 = vsel %vm2491, %v2490, %v2486
    %2494 = vrot.lane.b32.xlu0 %v651, 120
    %v2495 = vpop.permute.xlu0 %2494
    %2496 = vrot.lane.b32.xlu0 %v651, 112
    %v2497 = vpop.permute.xlu0 %2496
    %2498 = vrot.lane.b32.xlu0 %v651, 104
    %v2499 = vpop.permute.xlu0 %2498
    %2500 = vrot.lane.b32.xlu0 %v651, 96
    %v2501 = vpop.permute.xlu0 %2500
    %2502 = vrot.lane.b32.xlu0 %v2495, 96
    %v2503 = vpop.permute.xlu0 %2502
    %2504 = vrot.lane.b32.xlu0 %v2497, 96
    %v2505 = vpop.permute.xlu0 %2504
    %2506 = vrot.lane.b32.xlu0 %v2499, 96
    %v2507 = vpop.permute.xlu0 %2506
    %2512 = vxpose.xlu0.b32.start [1/16] %v2501, 128
    %2513 = vxpose.xlu0.b32.cont [2/16] 0.0, 128
    %2514 = vxpose.xlu0.b32.cont [3/16] 0.0, 128
    %2515 = vxpose.xlu0.b32.cont [4/16] 0.0, 128
    %2516 = vxpose.xlu0.b32.cont [5/16] 0.0, 128
    %2517 = vxpose.xlu0.b32.cont [6/16] 0.0, 128
    %2518 = vxpose.xlu0.b32.cont [7/16] 0.0, 128
    %2519 = vxpose.xlu0.b32.cont [8/16] 0.0, 128
    %2520 = vxpose.xlu0.b32.cont [9/16] 0.0, 128
    %2521 = vxpose.xlu0.b32.cont [10/16] 0.0, 128
    %2522 = vxpose.xlu0.b32.cont [11/16] 0.0, 128
    %2523 = vxpose.xlu0.b32.cont [12/16] 0.0, 128
    %2524 = vxpose.xlu0.b32.cont [13/16] 0.0, 128
    %2525 = vxpose.xlu0.b32.cont [14/16] 0.0, 128
    %2526 = vxpose.xlu0.b32.cont [15/16] 0.0, 128
    %2527 = vxpose.xlu0.b32.end [16/16] 0.0, 128
    %v2528 = vpop.trf.xlu0
    %v2529 = vpop.trf.xlu0
    %v2530 = vpop.trf.xlu0
    %v2531 = vpop.trf.xlu0
    %v2532 = vpop.trf.xlu0
    %v2533 = vpop.trf.xlu0
    %v2534 = vpop.trf.xlu0
    %v2535 = vpop.trf.xlu0
    %v2536 = vpop.trf.xlu0
    %v2537 = vpop.trf.xlu0
    %v2538 = vpop.trf.xlu0
    %v2539 = vpop.trf.xlu0
    %v2540 = vpop.trf.xlu0
    %v2541 = vpop.trf.xlu0
    %v2542 = vpop.trf.xlu0
    %v2543 = vpop.trf.xlu0
    %2544 = vxpose.xlu0.b32.start [1/16] %v2503, 128
    %2545 = vxpose.xlu0.b32.cont [2/16] 0.0, 128
    %2546 = vxpose.xlu0.b32.cont [3/16] 0.0, 128
    %2547 = vxpose.xlu0.b32.cont [4/16] 0.0, 128
    %2548 = vxpose.xlu0.b32.cont [5/16] 0.0, 128
    %2549 = vxpose.xlu0.b32.cont [6/16] 0.0, 128
    %2550 = vxpose.xlu0.b32.cont [7/16] 0.0, 128
    %2551 = vxpose.xlu0.b32.cont [8/16] 0.0, 128
    %2552 = vxpose.xlu0.b32.cont [9/16] 0.0, 128
    %2553 = vxpose.xlu0.b32.cont [10/16] 0.0, 128
    %2554 = vxpose.xlu0.b32.cont [11/16] 0.0, 128
    %2555 = vxpose.xlu0.b32.cont [12/16] 0.0, 128
    %2556 = vxpose.xlu0.b32.cont [13/16] 0.0, 128
    %2557 = vxpose.xlu0.b32.cont [14/16] 0.0, 128
    %2558 = vxpose.xlu0.b32.cont [15/16] 0.0, 128
    %2559 = vxpose.xlu0.b32.end [16/16] 0.0, 128
    %v2560 = vpop.trf.xlu0
    %v2561 = vpop.trf.xlu0
    %v2562 = vpop.trf.xlu0
    %v2563 = vpop.trf.xlu0
    %v2564 = vpop.trf.xlu0
    %v2565 = vpop.trf.xlu0
    %v2566 = vpop.trf.xlu0
    %v2567 = vpop.trf.xlu0
    %v2568 = vpop.trf.xlu0
    %v2569 = vpop.trf.xlu0
    %v2570 = vpop.trf.xlu0
    %v2571 = vpop.trf.xlu0
    %v2572 = vpop.trf.xlu0
    %v2573 = vpop.trf.xlu0
    %v2574 = vpop.trf.xlu0
    %v2575 = vpop.trf.xlu0
    %2576 = vxpose.xlu0.b32.start [1/16] %v2505, 128
    %2577 = vxpose.xlu0.b32.cont [2/16] 0.0, 128
    %2578 = vxpose.xlu0.b32.cont [3/16] 0.0, 128
    %2579 = vxpose.xlu0.b32.cont [4/16] 0.0, 128
    %2580 = vxpose.xlu0.b32.cont [5/16] 0.0, 128
    %2581 = vxpose.xlu0.b32.cont [6/16] 0.0, 128
    %2582 = vxpose.xlu0.b32.cont [7/16] 0.0, 128
    %2583 = vxpose.xlu0.b32.cont [8/16] 0.0, 128
    %2584 = vxpose.xlu0.b32.cont [9/16] 0.0, 128
    %2585 = vxpose.xlu0.b32.cont [10/16] 0.0, 128
    %2586 = vxpose.xlu0.b32.cont [11/16] 0.0, 128
    %2587 = vxpose.xlu0.b32.cont [12/16] 0.0, 128
    %2588 = vxpose.xlu0.b32.cont [13/16] 0.0, 128
    %2589 = vxpose.xlu0.b32.cont [14/16] 0.0, 128
    %2590 = vxpose.xlu0.b32.cont [15/16] 0.0, 128
    %2591 = vxpose.xlu0.b32.end [16/16] 0.0, 128
    %v2592 = vpop.trf.xlu0
    %v2593 = vpop.trf.xlu0
    %v2594 = vpop.trf.xlu0
    %v2595 = vpop.trf.xlu0
    %v2596 = vpop.trf.xlu0
    %v2597 = vpop.trf.xlu0
    %v2598 = vpop.trf.xlu0
    %v2599 = vpop.trf.xlu0
    %v2600 = vpop.trf.xlu0
    %v2601 = vpop.trf.xlu0
    %v2602 = vpop.trf.xlu0
    %v2603 = vpop.trf.xlu0
    %v2604 = vpop.trf.xlu0
    %v2605 = vpop.trf.xlu0
    %v2606 = vpop.trf.xlu0
    %v2607 = vpop.trf.xlu0
    %2608 = vxpose.xlu0.b32.start [1/16] %v2507, 128
    %2609 = vxpose.xlu0.b32.cont [2/16] 0.0, 128
    %2610 = vxpose.xlu0.b32.cont [3/16] 0.0, 128
    %2611 = vxpose.xlu0.b32.cont [4/16] 0.0, 128
    %2612 = vxpose.xlu0.b32.cont [5/16] 0.0, 128
    %2613 = vxpose.xlu0.b32.cont [6/16] 0.0, 128
    %2614 = vxpose.xlu0.b32.cont [7/16] 0.0, 128
    %2615 = vxpose.xlu0.b32.cont [8/16] 0.0, 128
    %2616 = vxpose.xlu0.b32.cont [9/16] 0.0, 128
    %2617 = vxpose.xlu0.b32.cont [10/16] 0.0, 128
    %2618 = vxpose.xlu0.b32.cont [11/16] 0.0, 128
    %2619 = vxpose.xlu0.b32.cont [12/16] 0.0, 128
    %2620 = vxpose.xlu0.b32.cont [13/16] 0.0, 128
    %2621 = vxpose.xlu0.b32.cont [14/16] 0.0, 128
    %2622 = vxpose.xlu0.b32.cont [15/16] 0.0, 128
    %2623 = vxpose.xlu0.b32.end [16/16] 0.0, 128
    %v2624 = vpop.trf.xlu0
    %v2625 = vpop.trf.xlu0
    %v2626 = vpop.trf.xlu0
    %v2627 = vpop.trf.xlu0
    %v2628 = vpop.trf.xlu0
    %v2629 = vpop.trf.xlu0
    %v2630 = vpop.trf.xlu0
    %v2631 = vpop.trf.xlu0
    %v2632 = vpop.trf.xlu0
    %v2633 = vpop.trf.xlu0
    %v2634 = vpop.trf.xlu0
    %v2635 = vpop.trf.xlu0
    %v2636 = vpop.trf.xlu0
    %v2637 = vpop.trf.xlu0
    %v2638 = vpop.trf.xlu0
    %v2639 = vpop.trf.xlu0
    %v2640 = vsel %vm800, %v651, 0
    %2642 = vmatpush.msra.mxu0 0.0
    %2643 = vmatpush.msra.mxu0 0.0
    %2644 = vmatpush.msra.mxu0 0.0
    %2645 = vmatpush.msra.mxu0 0.0
    %2646 = vmatpush.msra.mxu0 0.0
    %2647 = vmatpush.msra.mxu0 0.0
    %2648 = vmatpush.msra.mxu0 0.0
    %2649 = vmatpush.msra.mxu0 0.0
    %2650 = vmatpush.msra.mxu0 0.0
    %2651 = vmatpush.msra.mxu0 0.0
    %2652 = vmatpush.msra.mxu0 0.0
    %2653 = vmatpush.msra.mxu0 0.0
    %2654 = vmatpush.msra.mxu0 0.0
    %2655 = vmatpush.msra.mxu0 0.0
    %2656 = vmatpush.msra.mxu0 0.0
    %v2657 = vand.u32 %v2528, 4294901760
    %2658 = vmatpush.msra.mxu0 %v2657
    %v2659 = vand.u32 %v2640, 4294901760
    %v2660 = vsub.f32 %v2640, %v2659
    %v2661 = vand.u32 %v2660, 4294901760
    %v2662 = vsub.f32 %v2660, %v2661
    %v2663 = vand.u32 %v2662, 4294901760
    %2664 = vmatmul.f32.gmra.mxu0 %v2663
    %v2665 = vpop.f32.mrf.mxu0
    %v2666 = vadd.f32 0.0, %v2665
    %2667 = vdwg.mxu0
    %2668 = vmatpush.msra.mxu0 0.0
    %2669 = vmatpush.msra.mxu0 0.0
    %2670 = vmatpush.msra.mxu0 0.0
    %2671 = vmatpush.msra.mxu0 0.0
    %2672 = vmatpush.msra.mxu0 0.0
    %2673 = vmatpush.msra.mxu0 0.0
    %2674 = vmatpush.msra.mxu0 0.0
    %2675 = vmatpush.msra.mxu0 0.0
    %2676 = vmatpush.msra.mxu0 0.0
    %2677 = vmatpush.msra.mxu0 0.0
    %2678 = vmatpush.msra.mxu0 0.0
    %2679 = vmatpush.msra.mxu0 0.0
    %2680 = vmatpush.msra.mxu0 0.0
    %2681 = vmatpush.msra.mxu0 0.0
    %2682 = vmatpush.msra.mxu0 0.0
    %v2683 = vand.u32 %v2528, 4294901760
    %v2684 = vsub.f32 %v2528, %v2683
    %v2685 = vand.u32 %v2684, 4294901760
    %v2686 = vsub.f32 %v2684, %v2685
    %v2687 = vand.u32 %v2686, 4294901760
    %2688 = vmatpush.msra.mxu0 %v2687
    %v2689 = vand.u32 %v2640, 4294901760
    %2690 = vmatmul.f32.gmra.mxu0 %v2689
    %v2691 = vpop.f32.mrf.mxu0
    %v2692 = vadd.f32 %v2666, %v2691
    %2693 = vdwg.mxu0
    %2694 = vmatpush.msra.mxu0 0.0
    %2695 = vmatpush.msra.mxu0 0.0
    %2696 = vmatpush.msra.mxu0 0.0
    %2697 = vmatpush.msra.mxu0 0.0
    %2698 = vmatpush.msra.mxu0 0.0
    %2699 = vmatpush.msra.mxu0 0.0
    %2700 = vmatpush.msra.mxu0 0.0
    %2701 = vmatpush.msra.mxu0 0.0
    %2702 = vmatpush.msra.mxu0 0.0
    %2703 = vmatpush.msra.mxu0 0.0
    %2704 = vmatpush.msra.mxu0 0.0
    %2705 = vmatpush.msra.mxu0 0.0
    %2706 = vmatpush.msra.mxu0 0.0
    %2707 = vmatpush.msra.mxu0 0.0
    %2708 = vmatpush.msra.mxu0 0.0
    %v2709 = vand.u32 %v2528, 4294901760
    %v2710 = vsub.f32 %v2528, %v2709
    %2711 = vmatpush.msra.mxu0 %v2710
    %v2712 = vand.u32 %v2640, 4294901760
    %v2713 = vsub.f32 %v2640, %v2712
    %2714 = vmatmul.f32.gmra.mxu0 %v2713
    %v2715 = vpop.f32.mrf.mxu0
    %v2716 = vadd.f32 %v2692, %v2715
    %2717 = vdwg.mxu0
    %2718 = vmatpush.msra.mxu0 0.0
    %2719 = vmatpush.msra.mxu0 0.0
    %2720 = vmatpush.msra.mxu0 0.0
    %2721 = vmatpush.msra.mxu0 0.0
    %2722 = vmatpush.msra.mxu0 0.0
    %2723 = vmatpush.msra.mxu0 0.0
    %2724 = vmatpush.msra.mxu0 0.0
    %2725 = vmatpush.msra.mxu0 0.0
    %2726 = vmatpush.msra.mxu0 0.0
    %2727 = vmatpush.msra.mxu0 0.0
    %2728 = vmatpush.msra.mxu0 0.0
    %2729 = vmatpush.msra.mxu0 0.0
    %2730 = vmatpush.msra.mxu0 0.0
    %2731 = vmatpush.msra.mxu0 0.0
    %2732 = vmatpush.msra.mxu0 0.0
    %v2733 = vand.u32 %v2528, 4294901760
    %2734 = vmatpush.msra.mxu0 %v2733
    %v2735 = vand.u32 %v2640, 4294901760
    %v2736 = vsub.f32 %v2640, %v2735
    %v2737 = vand.u32 %v2736, 4294901760
    %2738 = vmatmul.f32.gmra.mxu0 %v2737
    %v2739 = vpop.f32.mrf.mxu0
    %v2740 = vadd.f32 %v2716, %v2739
    %2741 = vdwg.mxu0
    %2742 = vmatpush.msra.mxu0 0.0
    %2743 = vmatpush.msra.mxu0 0.0
    %2744 = vmatpush.msra.mxu0 0.0
    %2745 = vmatpush.msra.mxu0 0.0
    %2746 = vmatpush.msra.mxu0 0.0
    %2747 = vmatpush.msra.mxu0 0.0
    %2748 = vmatpush.msra.mxu0 0.0
    %2749 = vmatpush.msra.mxu0 0.0
    %2750 = vmatpush.msra.mxu0 0.0
    %2751 = vmatpush.msra.mxu0 0.0
    %2752 = vmatpush.msra.mxu0 0.0
    %2753 = vmatpush.msra.mxu0 0.0
    %2754 = vmatpush.msra.mxu0 0.0
    %2755 = vmatpush.msra.mxu0 0.0
    %2756 = vmatpush.msra.mxu0 0.0
    %v2757 = vand.u32 %v2528, 4294901760
    %v2758 = vsub.f32 %v2528, %v2757
    %v2759 = vand.u32 %v2758, 4294901760
    %2760 = vmatpush.msra.mxu0 %v2759
    %v2761 = vand.u32 %v2640, 4294901760
    %2762 = vmatmul.f32.gmra.mxu0 %v2761
    %v2763 = vpop.f32.mrf.mxu0
    %v2764 = vadd.f32 %v2740, %v2763
    %2765 = vdwg.mxu0
    %2766 = vmatpush.msra.mxu0 0.0
    %2767 = vmatpush.msra.mxu0 0.0
    %2768 = vmatpush.msra.mxu0 0.0
    %2769 = vmatpush.msra.mxu0 0.0
    %2770 = vmatpush.msra.mxu0 0.0
    %2771 = vmatpush.msra.mxu0 0.0
    %2772 = vmatpush.msra.mxu0 0.0
    %2773 = vmatpush.msra.mxu0 0.0
    %2774 = vmatpush.msra.mxu0 0.0
    %2775 = vmatpush.msra.mxu0 0.0
    %2776 = vmatpush.msra.mxu0 0.0
    %2777 = vmatpush.msra.mxu0 0.0
    %2778 = vmatpush.msra.mxu0 0.0
    %2779 = vmatpush.msra.mxu0 0.0
    %2780 = vmatpush.msra.mxu0 0.0
    %v2781 = vand.u32 %v2528, 4294901760
    %2782 = vmatpush.msra.mxu0 %v2781
    %v2783 = vand.u32 %v2640, 4294901760
    %2784 = vmatmul.f32.gmra.mxu0 %v2783
    %v2785 = vpop.f32.mrf.mxu0
    %v2786 = vadd.f32 %v2764, %v2785
    %2787 = vdwg.mxu0
    %v2788 = vsel %vm800, %v2495, 0
    %2790 = vmatpush.msra.mxu0 0.0
    %2791 = vmatpush.msra.mxu0 0.0
    %2792 = vmatpush.msra.mxu0 0.0
    %2793 = vmatpush.msra.mxu0 0.0
    %2794 = vmatpush.msra.mxu0 0.0
    %2795 = vmatpush.msra.mxu0 0.0
    %2796 = vmatpush.msra.mxu0 0.0
    %2797 = vmatpush.msra.mxu0 0.0
    %2798 = vmatpush.msra.mxu0 0.0
    %2799 = vmatpush.msra.mxu0 0.0
    %2800 = vmatpush.msra.mxu0 0.0
    %2801 = vmatpush.msra.mxu0 0.0
    %2802 = vmatpush.msra.mxu0 0.0
    %2803 = vmatpush.msra.mxu0 0.0
    %2804 = vmatpush.msra.mxu0 0.0
    %v2805 = vand.u32 %v2560, 4294901760
    %2806 = vmatpush.msra.mxu0 %v2805
    %v2807 = vand.u32 %v2788, 4294901760
    %v2808 = vsub.f32 %v2788, %v2807
    %v2809 = vand.u32 %v2808, 4294901760
    %v2810 = vsub.f32 %v2808, %v2809
    %v2811 = vand.u32 %v2810, 4294901760
    %2812 = vmatmul.f32.gmra.mxu0 %v2811
    %v2813 = vpop.f32.mrf.mxu0
    %v2814 = vadd.f32 0.0, %v2813
    %2815 = vdwg.mxu0
    %2816 = vmatpush.msra.mxu0 0.0
    %2817 = vmatpush.msra.mxu0 0.0
    %2818 = vmatpush.msra.mxu0 0.0
    %2819 = vmatpush.msra.mxu0 0.0
    %2820 = vmatpush.msra.mxu0 0.0
    %2821 = vmatpush.msra.mxu0 0.0
    %2822 = vmatpush.msra.mxu0 0.0
    %2823 = vmatpush.msra.mxu0 0.0
    %2824 = vmatpush.msra.mxu0 0.0
    %2825 = vmatpush.msra.mxu0 0.0
    %2826 = vmatpush.msra.mxu0 0.0
    %2827 = vmatpush.msra.mxu0 0.0
    %2828 = vmatpush.msra.mxu0 0.0
    %2829 = vmatpush.msra.mxu0 0.0
    %2830 = vmatpush.msra.mxu0 0.0
    %v2831 = vand.u32 %v2560, 4294901760
    %v2832 = vsub.f32 %v2560, %v2831
    %v2833 = vand.u32 %v2832, 4294901760
    %v2834 = vsub.f32 %v2832, %v2833
    %v2835 = vand.u32 %v2834, 4294901760
    %2836 = vmatpush.msra.mxu0 %v2835
    %v2837 = vand.u32 %v2788, 4294901760
    %2838 = vmatmul.f32.gmra.mxu0 %v2837
    %v2839 = vpop.f32.mrf.mxu0
    %v2840 = vadd.f32 %v2814, %v2839
    %2841 = vdwg.mxu0
    %2842 = vmatpush.msra.mxu0 0.0
    %2843 = vmatpush.msra.mxu0 0.0
    %2844 = vmatpush.msra.mxu0 0.0
    %2845 = vmatpush.msra.mxu0 0.0
    %2846 = vmatpush.msra.mxu0 0.0
    %2847 = vmatpush.msra.mxu0 0.0
    %2848 = vmatpush.msra.mxu0 0.0
    %2849 = vmatpush.msra.mxu0 0.0
    %2850 = vmatpush.msra.mxu0 0.0
    %2851 = vmatpush.msra.mxu0 0.0
    %2852 = vmatpush.msra.mxu0 0.0
    %2853 = vmatpush.msra.mxu0 0.0
    %2854 = vmatpush.msra.mxu0 0.0
    %2855 = vmatpush.msra.mxu0 0.0
    %2856 = vmatpush.msra.mxu0 0.0
    %v2857 = vand.u32 %v2560, 4294901760
    %v2858 = vsub.f32 %v2560, %v2857
    %2859 = vmatpush.msra.mxu0 %v2858
    %v2860 = vand.u32 %v2788, 4294901760
    %v2861 = vsub.f32 %v2788, %v2860
    %2862 = vmatmul.f32.gmra.mxu0 %v2861
    %v2863 = vpop.f32.mrf.mxu0
    %v2864 = vadd.f32 %v2840, %v2863
    %2865 = vdwg.mxu0
    %2866 = vmatpush.msra.mxu0 0.0
    %2867 = vmatpush.msra.mxu0 0.0
    %2868 = vmatpush.msra.mxu0 0.0
    %2869 = vmatpush.msra.mxu0 0.0
    %2870 = vmatpush.msra.mxu0 0.0
    %2871 = vmatpush.msra.mxu0 0.0
    %2872 = vmatpush.msra.mxu0 0.0
    %2873 = vmatpush.msra.mxu0 0.0
    %2874 = vmatpush.msra.mxu0 0.0
    %2875 = vmatpush.msra.mxu0 0.0
    %2876 = vmatpush.msra.mxu0 0.0
    %2877 = vmatpush.msra.mxu0 0.0
    %2878 = vmatpush.msra.mxu0 0.0
    %2879 = vmatpush.msra.mxu0 0.0
    %2880 = vmatpush.msra.mxu0 0.0
    %v2881 = vand.u32 %v2560, 4294901760
    %2882 = vmatpush.msra.mxu0 %v2881
    %v2883 = vand.u32 %v2788, 4294901760
    %v2884 = vsub.f32 %v2788, %v2883
    %v2885 = vand.u32 %v2884, 4294901760
    %2886 = vmatmul.f32.gmra.mxu0 %v2885
    %v2887 = vpop.f32.mrf.mxu0
    %v2888 = vadd.f32 %v2864, %v2887
    %2889 = vdwg.mxu0
    %2890 = vmatpush.msra.mxu0 0.0
    %2891 = vmatpush.msra.mxu0 0.0
    %2892 = vmatpush.msra.mxu0 0.0
    %2893 = vmatpush.msra.mxu0 0.0
    %2894 = vmatpush.msra.mxu0 0.0
    %2895 = vmatpush.msra.mxu0 0.0
    %2896 = vmatpush.msra.mxu0 0.0
    %2897 = vmatpush.msra.mxu0 0.0
    %2898 = vmatpush.msra.mxu0 0.0
    %2899 = vmatpush.msra.mxu0 0.0
    %2900 = vmatpush.msra.mxu0 0.0
    %2901 = vmatpush.msra.mxu0 0.0
    %2902 = vmatpush.msra.mxu0 0.0
    %2903 = vmatpush.msra.mxu0 0.0
    %2904 = vmatpush.msra.mxu0 0.0
    %v2905 = vand.u32 %v2560, 4294901760
    %v2906 = vsub.f32 %v2560, %v2905
    %v2907 = vand.u32 %v2906, 4294901760
    %2908 = vmatpush.msra.mxu0 %v2907
    %v2909 = vand.u32 %v2788, 4294901760
    %2910 = vmatmul.f32.gmra.mxu0 %v2909
    %v2911 = vpop.f32.mrf.mxu0
    %v2912 = vadd.f32 %v2888, %v2911
    %2913 = vdwg.mxu0
    %2914 = vmatpush.msra.mxu0 0.0
    %2915 = vmatpush.msra.mxu0 0.0
    %2916 = vmatpush.msra.mxu0 0.0
    %2917 = vmatpush.msra.mxu0 0.0
    %2918 = vmatpush.msra.mxu0 0.0
    %2919 = vmatpush.msra.mxu0 0.0
    %2920 = vmatpush.msra.mxu0 0.0
    %2921 = vmatpush.msra.mxu0 0.0
    %2922 = vmatpush.msra.mxu0 0.0
    %2923 = vmatpush.msra.mxu0 0.0
    %2924 = vmatpush.msra.mxu0 0.0
    %2925 = vmatpush.msra.mxu0 0.0
    %2926 = vmatpush.msra.mxu0 0.0
    %2927 = vmatpush.msra.mxu0 0.0
    %2928 = vmatpush.msra.mxu0 0.0
    %v2929 = vand.u32 %v2560, 4294901760
    %2930 = vmatpush.msra.mxu0 %v2929
    %v2931 = vand.u32 %v2788, 4294901760
    %2932 = vmatmul.f32.gmra.mxu0 %v2931
    %v2933 = vpop.f32.mrf.mxu0
    %v2934 = vadd.f32 %v2912, %v2933
    %2935 = vdwg.mxu0
    %v2936 = vsel %vm800, %v2497, 0
    %2938 = vmatpush.msra.mxu0 0.0
    %2939 = vmatpush.msra.mxu0 0.0
    %2940 = vmatpush.msra.mxu0 0.0
    %2941 = vmatpush.msra.mxu0 0.0
    %2942 = vmatpush.msra.mxu0 0.0
    %2943 = vmatpush.msra.mxu0 0.0
    %2944 = vmatpush.msra.mxu0 0.0
    %2945 = vmatpush.msra.mxu0 0.0
    %2946 = vmatpush.msra.mxu0 0.0
    %2947 = vmatpush.msra.mxu0 0.0
    %2948 = vmatpush.msra.mxu0 0.0
    %2949 = vmatpush.msra.mxu0 0.0
    %2950 = vmatpush.msra.mxu0 0.0
    %2951 = vmatpush.msra.mxu0 0.0
    %2952 = vmatpush.msra.mxu0 0.0
    %v2953 = vand.u32 %v2592, 4294901760
    %2954 = vmatpush.msra.mxu0 %v2953
    %v2955 = vand.u32 %v2936, 4294901760
    %v2956 = vsub.f32 %v2936, %v2955
    %v2957 = vand.u32 %v2956, 4294901760
    %v2958 = vsub.f32 %v2956, %v2957
    %v2959 = vand.u32 %v2958, 4294901760
    %2960 = vmatmul.f32.gmra.mxu0 %v2959
    %v2961 = vpop.f32.mrf.mxu0
    %v2962 = vadd.f32 0.0, %v2961
    %2963 = vdwg.mxu0
    %2964 = vmatpush.msra.mxu0 0.0
    %2965 = vmatpush.msra.mxu0 0.0
    %2966 = vmatpush.msra.mxu0 0.0
    %2967 = vmatpush.msra.mxu0 0.0
    %2968 = vmatpush.msra.mxu0 0.0
    %2969 = vmatpush.msra.mxu0 0.0
    %2970 = vmatpush.msra.mxu0 0.0
    %2971 = vmatpush.msra.mxu0 0.0
    %2972 = vmatpush.msra.mxu0 0.0
    %2973 = vmatpush.msra.mxu0 0.0
    %2974 = vmatpush.msra.mxu0 0.0
    %2975 = vmatpush.msra.mxu0 0.0
    %2976 = vmatpush.msra.mxu0 0.0
    %2977 = vmatpush.msra.mxu0 0.0
    %2978 = vmatpush.msra.mxu0 0.0
    %v2979 = vand.u32 %v2592, 4294901760
    %v2980 = vsub.f32 %v2592, %v2979
    %v2981 = vand.u32 %v2980, 4294901760
    %v2982 = vsub.f32 %v2980, %v2981
    %v2983 = vand.u32 %v2982, 4294901760
    %2984 = vmatpush.msra.mxu0 %v2983
    %v2985 = vand.u32 %v2936, 4294901760
    %2986 = vmatmul.f32.gmra.mxu0 %v2985
    %v2987 = vpop.f32.mrf.mxu0
    %v2988 = vadd.f32 %v2962, %v2987
    %2989 = vdwg.mxu0
    %2990 = vmatpush.msra.mxu0 0.0
    %2991 = vmatpush.msra.mxu0 0.0
    %2992 = vmatpush.msra.mxu0 0.0
    %2993 = vmatpush.msra.mxu0 0.0
    %2994 = vmatpush.msra.mxu0 0.0
    %2995 = vmatpush.msra.mxu0 0.0
    %2996 = vmatpush.msra.mxu0 0.0
    %2997 = vmatpush.msra.mxu0 0.0
    %2998 = vmatpush.msra.mxu0 0.0
    %2999 = vmatpush.msra.mxu0 0.0
    %3000 = vmatpush.msra.mxu0 0.0
    %3001 = vmatpush.msra.mxu0 0.0
    %3002 = vmatpush.msra.mxu0 0.0
    %3003 = vmatpush.msra.mxu0 0.0
    %3004 = vmatpush.msra.mxu0 0.0
    %v3005 = vand.u32 %v2592, 4294901760
    %v3006 = vsub.f32 %v2592, %v3005
    %3007 = vmatpush.msra.mxu0 %v3006
    %v3008 = vand.u32 %v2936, 4294901760
    %v3009 = vsub.f32 %v2936, %v3008
    %3010 = vmatmul.f32.gmra.mxu0 %v3009
    %v3011 = vpop.f32.mrf.mxu0
    %v3012 = vadd.f32 %v2988, %v3011
    %3013 = vdwg.mxu0
    %3014 = vmatpush.msra.mxu0 0.0
    %3015 = vmatpush.msra.mxu0 0.0
    %3016 = vmatpush.msra.mxu0 0.0
    %3017 = vmatpush.msra.mxu0 0.0
    %3018 = vmatpush.msra.mxu0 0.0
    %3019 = vmatpush.msra.mxu0 0.0
    %3020 = vmatpush.msra.mxu0 0.0
    %3021 = vmatpush.msra.mxu0 0.0
    %3022 = vmatpush.msra.mxu0 0.0
    %3023 = vmatpush.msra.mxu0 0.0
    %3024 = vmatpush.msra.mxu0 0.0
    %3025 = vmatpush.msra.mxu0 0.0
    %3026 = vmatpush.msra.mxu0 0.0
    %3027 = vmatpush.msra.mxu0 0.0
    %3028 = vmatpush.msra.mxu0 0.0
    %v3029 = vand.u32 %v2592, 4294901760
    %3030 = vmatpush.msra.mxu0 %v3029
    %v3031 = vand.u32 %v2936, 4294901760
    %v3032 = vsub.f32 %v2936, %v3031
    %v3033 = vand.u32 %v3032, 4294901760
    %3034 = vmatmul.f32.gmra.mxu0 %v3033
    %v3035 = vpop.f32.mrf.mxu0
    %v3036 = vadd.f32 %v3012, %v3035
    %3037 = vdwg.mxu0
    %3038 = vmatpush.msra.mxu0 0.0
    %3039 = vmatpush.msra.mxu0 0.0
    %3040 = vmatpush.msra.mxu0 0.0
    %3041 = vmatpush.msra.mxu0 0.0
    %3042 = vmatpush.msra.mxu0 0.0
    %3043 = vmatpush.msra.mxu0 0.0
    %3044 = vmatpush.msra.mxu0 0.0
    %3045 = vmatpush.msra.mxu0 0.0
    %3046 = vmatpush.msra.mxu0 0.0
    %3047 = vmatpush.msra.mxu0 0.0
    %3048 = vmatpush.msra.mxu0 0.0
    %3049 = vmatpush.msra.mxu0 0.0
    %3050 = vmatpush.msra.mxu0 0.0
    %3051 = vmatpush.msra.mxu0 0.0
    %3052 = vmatpush.msra.mxu0 0.0
    %v3053 = vand.u32 %v2592, 4294901760
    %v3054 = vsub.f32 %v2592, %v3053
    %v3055 = vand.u32 %v3054, 4294901760
    %3056 = vmatpush.msra.mxu0 %v3055
    %v3057 = vand.u32 %v2936, 4294901760
    %3058 = vmatmul.f32.gmra.mxu0 %v3057
    %v3059 = vpop.f32.mrf.mxu0
    %v3060 = vadd.f32 %v3036, %v3059
    %3061 = vdwg.mxu0
    %3062 = vmatpush.msra.mxu0 0.0
    %3063 = vmatpush.msra.mxu0 0.0
    %3064 = vmatpush.msra.mxu0 0.0
    %3065 = vmatpush.msra.mxu0 0.0
    %3066 = vmatpush.msra.mxu0 0.0
    %3067 = vmatpush.msra.mxu0 0.0
    %3068 = vmatpush.msra.mxu0 0.0
    %3069 = vmatpush.msra.mxu0 0.0
    %3070 = vmatpush.msra.mxu0 0.0
    %3071 = vmatpush.msra.mxu0 0.0
    %3072 = vmatpush.msra.mxu0 0.0
    %3073 = vmatpush.msra.mxu0 0.0
    %3074 = vmatpush.msra.mxu0 0.0
    %3075 = vmatpush.msra.mxu0 0.0
    %3076 = vmatpush.msra.mxu0 0.0
    %v3077 = vand.u32 %v2592, 4294901760
    %3078 = vmatpush.msra.mxu0 %v3077
    %v3079 = vand.u32 %v2936, 4294901760
    %3080 = vmatmul.f32.gmra.mxu0 %v3079
    %v3081 = vpop.f32.mrf.mxu0
    %v3082 = vadd.f32 %v3060, %v3081
    %3083 = vdwg.mxu0
    %v3084 = vsel %vm800, %v2499, 0
    %3086 = vmatpush.msra.mxu0 0.0
    %3087 = vmatpush.msra.mxu0 0.0
    %3088 = vmatpush.msra.mxu0 0.0
    %3089 = vmatpush.msra.mxu0 0.0
    %3090 = vmatpush.msra.mxu0 0.0
    %3091 = vmatpush.msra.mxu0 0.0
    %3092 = vmatpush.msra.mxu0 0.0
    %3093 = vmatpush.msra.mxu0 0.0
    %3094 = vmatpush.msra.mxu0 0.0
    %3095 = vmatpush.msra.mxu0 0.0
    %3096 = vmatpush.msra.mxu0 0.0
    %3097 = vmatpush.msra.mxu0 0.0
    %3098 = vmatpush.msra.mxu0 0.0
    %3099 = vmatpush.msra.mxu0 0.0
    %3100 = vmatpush.msra.mxu0 0.0
    %v3101 = vand.u32 %v2624, 4294901760
    %3102 = vmatpush.msra.mxu0 %v3101
    %v3103 = vand.u32 %v3084, 4294901760
    %v3104 = vsub.f32 %v3084, %v3103
    %v3105 = vand.u32 %v3104, 4294901760
    %v3106 = vsub.f32 %v3104, %v3105
    %v3107 = vand.u32 %v3106, 4294901760
    %3108 = vmatmul.f32.gmra.mxu0 %v3107
    %v3109 = vpop.f32.mrf.mxu0
    %v3110 = vadd.f32 0.0, %v3109
    %3111 = vdwg.mxu0
    %3112 = vmatpush.msra.mxu0 0.0
    %3113 = vmatpush.msra.mxu0 0.0
    %3114 = vmatpush.msra.mxu0 0.0
    %3115 = vmatpush.msra.mxu0 0.0
    %3116 = vmatpush.msra.mxu0 0.0
    %3117 = vmatpush.msra.mxu0 0.0
    %3118 = vmatpush.msra.mxu0 0.0
    %3119 = vmatpush.msra.mxu0 0.0
    %3120 = vmatpush.msra.mxu0 0.0
    %3121 = vmatpush.msra.mxu0 0.0
    %3122 = vmatpush.msra.mxu0 0.0
    %3123 = vmatpush.msra.mxu0 0.0
    %3124 = vmatpush.msra.mxu0 0.0
    %3125 = vmatpush.msra.mxu0 0.0
    %3126 = vmatpush.msra.mxu0 0.0
    %v3127 = vand.u32 %v2624, 4294901760
    %v3128 = vsub.f32 %v2624, %v3127
    %v3129 = vand.u32 %v3128, 4294901760
    %v3130 = vsub.f32 %v3128, %v3129
    %v3131 = vand.u32 %v3130, 4294901760
    %3132 = vmatpush.msra.mxu0 %v3131
    %v3133 = vand.u32 %v3084, 4294901760
    %3134 = vmatmul.f32.gmra.mxu0 %v3133
    %v3135 = vpop.f32.mrf.mxu0
    %v3136 = vadd.f32 %v3110, %v3135
    %3137 = vdwg.mxu0
    %3138 = vmatpush.msra.mxu0 0.0
    %3139 = vmatpush.msra.mxu0 0.0
    %3140 = vmatpush.msra.mxu0 0.0
    %3141 = vmatpush.msra.mxu0 0.0
    %3142 = vmatpush.msra.mxu0 0.0
    %3143 = vmatpush.msra.mxu0 0.0
    %3144 = vmatpush.msra.mxu0 0.0
    %3145 = vmatpush.msra.mxu0 0.0
    %3146 = vmatpush.msra.mxu0 0.0
    %3147 = vmatpush.msra.mxu0 0.0
    %3148 = vmatpush.msra.mxu0 0.0
    %3149 = vmatpush.msra.mxu0 0.0
    %3150 = vmatpush.msra.mxu0 0.0
    %3151 = vmatpush.msra.mxu0 0.0
    %3152 = vmatpush.msra.mxu0 0.0
    %v3153 = vand.u32 %v2624, 4294901760
    %v3154 = vsub.f32 %v2624, %v3153
    %3155 = vmatpush.msra.mxu0 %v3154
    %v3156 = vand.u32 %v3084, 4294901760
    %v3157 = vsub.f32 %v3084, %v3156
    %3158 = vmatmul.f32.gmra.mxu0 %v3157
    %v3159 = vpop.f32.mrf.mxu0
    %v3160 = vadd.f32 %v3136, %v3159
    %3161 = vdwg.mxu0
    %3162 = vmatpush.msra.mxu0 0.0
    %3163 = vmatpush.msra.mxu0 0.0
    %3164 = vmatpush.msra.mxu0 0.0
    %3165 = vmatpush.msra.mxu0 0.0
    %3166 = vmatpush.msra.mxu0 0.0
    %3167 = vmatpush.msra.mxu0 0.0
    %3168 = vmatpush.msra.mxu0 0.0
    %3169 = vmatpush.msra.mxu0 0.0
    %3170 = vmatpush.msra.mxu0 0.0
    %3171 = vmatpush.msra.mxu0 0.0
    %3172 = vmatpush.msra.mxu0 0.0
    %3173 = vmatpush.msra.mxu0 0.0
    %3174 = vmatpush.msra.mxu0 0.0
    %3175 = vmatpush.msra.mxu0 0.0
    %3176 = vmatpush.msra.mxu0 0.0
    %v3177 = vand.u32 %v2624, 4294901760
    %3178 = vmatpush.msra.mxu0 %v3177
    %v3179 = vand.u32 %v3084, 4294901760
    %v3180 = vsub.f32 %v3084, %v3179
    %v3181 = vand.u32 %v3180, 4294901760
    %3182 = vmatmul.f32.gmra.mxu0 %v3181
    %v3183 = vpop.f32.mrf.mxu0
    %v3184 = vadd.f32 %v3160, %v3183
    %3185 = vdwg.mxu0
    %3186 = vmatpush.msra.mxu0 0.0
    %3187 = vmatpush.msra.mxu0 0.0
    %3188 = vmatpush.msra.mxu0 0.0
    %3189 = vmatpush.msra.mxu0 0.0
    %3190 = vmatpush.msra.mxu0 0.0
    %3191 = vmatpush.msra.mxu0 0.0
    %3192 = vmatpush.msra.mxu0 0.0
    %3193 = vmatpush.msra.mxu0 0.0
    %3194 = vmatpush.msra.mxu0 0.0
    %3195 = vmatpush.msra.mxu0 0.0
    %3196 = vmatpush.msra.mxu0 0.0
    %3197 = vmatpush.msra.mxu0 0.0
    %3198 = vmatpush.msra.mxu0 0.0
    %3199 = vmatpush.msra.mxu0 0.0
    %3200 = vmatpush.msra.mxu0 0.0
    %v3201 = vand.u32 %v2624, 4294901760
    %v3202 = vsub.f32 %v2624, %v3201
    %v3203 = vand.u32 %v3202, 4294901760
    %3204 = vmatpush.msra.mxu0 %v3203
    %v3205 = vand.u32 %v3084, 4294901760
    %3206 = vmatmul.f32.gmra.mxu0 %v3205
    %v3207 = vpop.f32.mrf.mxu0
    %v3208 = vadd.f32 %v3184, %v3207
    %3209 = vdwg.mxu0
    %3210 = vmatpush.msra.mxu0 0.0
    %3211 = vmatpush.msra.mxu0 0.0
    %3212 = vmatpush.msra.mxu0 0.0
    %3213 = vmatpush.msra.mxu0 0.0
    %3214 = vmatpush.msra.mxu0 0.0
    %3215 = vmatpush.msra.mxu0 0.0
    %3216 = vmatpush.msra.mxu0 0.0
    %3217 = vmatpush.msra.mxu0 0.0
    %3218 = vmatpush.msra.mxu0 0.0
    %3219 = vmatpush.msra.mxu0 0.0
    %3220 = vmatpush.msra.mxu0 0.0
    %3221 = vmatpush.msra.mxu0 0.0
    %3222 = vmatpush.msra.mxu0 0.0
    %3223 = vmatpush.msra.mxu0 0.0
    %3224 = vmatpush.msra.mxu0 0.0
    %v3225 = vand.u32 %v2624, 4294901760
    %3226 = vmatpush.msra.mxu0 %v3225
    %v3227 = vand.u32 %v3084, 4294901760
    %3228 = vmatmul.f32.gmra.mxu0 %v3227
    %v3229 = vpop.f32.mrf.mxu0
    %v3230 = vadd.f32 %v3208, %v3229
    %3231 = vdwg.mxu0
    %v3232 = vsel %vm800, %v2786, -inf
    %3233 = vmax.xlane.f32.xlu0 %v3232
    %v3234 = vpop.xlane.xlu0 %3233
    %v3235 = vsel %vm800, %v2934, -inf
    %3236 = vmax.xlane.f32.xlu0 %v3235
    %v3237 = vpop.xlane.xlu0 %3236
    %v3238 = vsel %vm800, %v3082, -inf
    %3239 = vmax.xlane.f32.xlu0 %v3238
    %v3240 = vpop.xlane.xlu0 %3239
    %v3241 = vsel %vm800, %v3230, -inf
    %3242 = vmax.xlane.f32.xlu0 %v3241
    %v3243 = vpop.xlane.xlu0 %3242
    %v3244 = vsub.f32 %v2786, %v3234
    %v3245 = vsub.f32 %v2934, %v3237
    %v3246 = vsub.f32 %v3082, %v3240
    %v3247 = vsub.f32 %v3230, %v3243
    %v3248 = vmul.f32 %v3244, 1.442695
    %v3249 = vpow.pop %v3248
    %v3250 = vmul.f32 %v3245, 1.442695
    %v3251 = vpow.pop %v3250
    %v3252 = vmul.f32 %v3246, 1.442695
    %v3253 = vpow.pop %v3252
    %v3254 = vmul.f32 %v3247, 1.442695
    %v3255 = vpow.pop %v3254
    %v3256 = vsel %vm800, %v3249, 0.0
    %3257 = vadd.xlane.f32.xlu0 %v3256
    %v3258 = vpop.xlane.xlu0 %3257
    %v3259 = vsel %vm800, %v3251, 0.0
    %3260 = vadd.xlane.f32.xlu0 %v3259
    %v3261 = vpop.xlane.xlu0 %3260
    %v3262 = vsel %vm800, %v3253, 0.0
    %3263 = vadd.xlane.f32.xlu0 %v3262
    %v3264 = vpop.xlane.xlu0 %3263
    %v3265 = vsel %vm800, %v3255, 0.0
    %3266 = vadd.xlane.f32.xlu0 %v3265
    %v3267 = vpop.xlane.xlu0 %3266
    %v3268 = vrcp.pop %v3258
    %v3269 = vmul.f32 %v3258, %v3268
    %v3270 = vsub.f32 1.0, %v3269
    %v3271 = vmul.f32 %v3268, %v3270
    %v3272 = vadd.f32 %v3268, %v3271
    %vm3273 = vweird.f32 %v3258
    %vm3274 = vweird.f32 %v3268
    %vm3275 = vmor %vm3273, %vm3274
    %v3276 = vsel %vm3275, %v3268, %v3272
    %v3277 = vand.u32 2147483647, %v3258
    %vm3278 = vcmp.eq.f32.partialorder %v3277, 8.507059e+37
    %v3279 = vand.u32 %v3258, 2147483648
    %v3280 = vor.u32 1.1754944e-38, %v3279
    %v3281 = vsel %vm3278, %v3280, %v3276
    %v3282 = vmul.f32 %v3249, %v3281
    %v3283 = vrcp.pop %v3261
    %v3284 = vmul.f32 %v3261, %v3283
    %v3285 = vsub.f32 1.0, %v3284
    %v3286 = vmul.f32 %v3283, %v3285
    %v3287 = vadd.f32 %v3283, %v3286
    %vm3288 = vweird.f32 %v3261
    %vm3289 = vweird.f32 %v3283
    %vm3290 = vmor %vm3288, %vm3289
    %v3291 = vsel %vm3290, %v3283, %v3287
    %v3292 = vand.u32 2147483647, %v3261
    %vm3293 = vcmp.eq.f32.partialorder %v3292, 8.507059e+37
    %v3294 = vand.u32 %v3261, 2147483648
    %v3295 = vor.u32 1.1754944e-38, %v3294
    %v3296 = vsel %vm3293, %v3295, %v3291
    %v3297 = vmul.f32 %v3251, %v3296
    %v3298 = vrcp.pop %v3264
    %v3299 = vmul.f32 %v3264, %v3298
    %v3300 = vsub.f32 1.0, %v3299
    %v3301 = vmul.f32 %v3298, %v3300
    %v3302 = vadd.f32 %v3298, %v3301
    %vm3303 = vweird.f32 %v3264
    %vm3304 = vweird.f32 %v3298
    %vm3305 = vmor %vm3303, %vm3304
    %v3306 = vsel %vm3305, %v3298, %v3302
    %v3307 = vand.u32 2147483647, %v3264
    %vm3308 = vcmp.eq.f32.partialorder %v3307, 8.507059e+37
    %v3309 = vand.u32 %v3264, 2147483648
    %v3310 = vor.u32 1.1754944e-38, %v3309
    %v3311 = vsel %vm3308, %v3310, %v3306
    %v3312 = vmul.f32 %v3253, %v3311
    %v3313 = vrcp.pop %v3267
    %v3314 = vmul.f32 %v3267, %v3313
    %v3315 = vsub.f32 1.0, %v3314
    %v3316 = vmul.f32 %v3313, %v3315
    %v3317 = vadd.f32 %v3313, %v3316
    %vm3318 = vweird.f32 %v3267
    %vm3319 = vweird.f32 %v3313
    %vm3320 = vmor %vm3318, %vm3319
    %v3321 = vsel %vm3320, %v3313, %v3317
    %v3322 = vand.u32 2147483647, %v3267
    %vm3323 = vcmp.eq.f32.partialorder %v3322, 8.507059e+37
    %v3324 = vand.u32 %v3267, 2147483648
    %v3325 = vor.u32 1.1754944e-38, %v3324
    %v3326 = vsel %vm3323, %v3325, %v3321
    %v3327 = vmul.f32 %v3255, %v3326
    %3328 = vrot.lane.b32.xlu0 %v651, 64
    %v3329 = vpop.permute.xlu0 %3328
    %3330 = vrot.lane.b32.xlu0 %v2495, 64
    %v3331 = vpop.permute.xlu0 %3330
    %3332 = vrot.lane.b32.xlu0 %v2497, 64
    %v3333 = vpop.permute.xlu0 %3332
    %3334 = vrot.lane.b32.xlu0 %v2499, 64
    %v3335 = vpop.permute.xlu0 %3334
    %3340 = vxpose.xlu0.b32.start [1/16] %v3329, 128
    %3341 = vxpose.xlu0.b32.cont [2/16] 0.0, 128
    %3342 = vxpose.xlu0.b32.cont [3/16] 0.0, 128
    %3343 = vxpose.xlu0.b32.cont [4/16] 0.0, 128
    %3344 = vxpose.xlu0.b32.cont [5/16] 0.0, 128
    %3345 = vxpose.xlu0.b32.cont [6/16] 0.0, 128
    %3346 = vxpose.xlu0.b32.cont [7/16] 0.0, 128
    %3347 = vxpose.xlu0.b32.cont [8/16] 0.0, 128
    %3348 = vxpose.xlu0.b32.cont [9/16] 0.0, 128
    %3349 = vxpose.xlu0.b32.cont [10/16] 0.0, 128
    %3350 = vxpose.xlu0.b32.cont [11/16] 0.0, 128
    %3351 = vxpose.xlu0.b32.cont [12/16] 0.0, 128
    %3352 = vxpose.xlu0.b32.cont [13/16] 0.0, 128
    %3353 = vxpose.xlu0.b32.cont [14/16] 0.0, 128
    %3354 = vxpose.xlu0.b32.cont [15/16] 0.0, 128
    %3355 = vxpose.xlu0.b32.end [16/16] 0.0, 128
    %v3356 = vpop.trf.xlu0
    %v3357 = vpop.trf.xlu0
    %v3358 = vpop.trf.xlu0
    %v3359 = vpop.trf.xlu0
    %v3360 = vpop.trf.xlu0
    %v3361 = vpop.trf.xlu0
    %v3362 = vpop.trf.xlu0
    %v3363 = vpop.trf.xlu0
    %v3364 = vpop.trf.xlu0
    %v3365 = vpop.trf.xlu0
    %v3366 = vpop.trf.xlu0
    %v3367 = vpop.trf.xlu0
    %v3368 = vpop.trf.xlu0
    %v3369 = vpop.trf.xlu0
    %v3370 = vpop.trf.xlu0
    %v3371 = vpop.trf.xlu0
    %3372 = vxpose.xlu0.b32.start [1/16] %v3331, 128
    %3373 = vxpose.xlu0.b32.cont [2/16] 0.0, 128
    %3374 = vxpose.xlu0.b32.cont [3/16] 0.0, 128
    %3375 = vxpose.xlu0.b32.cont [4/16] 0.0, 128
    %3376 = vxpose.xlu0.b32.cont [5/16] 0.0, 128
    %3377 = vxpose.xlu0.b32.cont [6/16] 0.0, 128
    %3378 = vxpose.xlu0.b32.cont [7/16] 0.0, 128
    %3379 = vxpose.xlu0.b32.cont [8/16] 0.0, 128
    %3380 = vxpose.xlu0.b32.cont [9/16] 0.0, 128
    %3381 = vxpose.xlu0.b32.cont [10/16] 0.0, 128
    %3382 = vxpose.xlu0.b32.cont [11/16] 0.0, 128
    %3383 = vxpose.xlu0.b32.cont [12/16] 0.0, 128
    %3384 = vxpose.xlu0.b32.cont [13/16] 0.0, 128
    %3385 = vxpose.xlu0.b32.cont [14/16] 0.0, 128
    %3386 = vxpose.xlu0.b32.cont [15/16] 0.0, 128
    %3387 = vxpose.xlu0.b32.end [16/16] 0.0, 128
    %v3388 = vpop.trf.xlu0
    %v3389 = vpop.trf.xlu0
    %v3390 = vpop.trf.xlu0
    %v3391 = vpop.trf.xlu0
    %v3392 = vpop.trf.xlu0
    %v3393 = vpop.trf.xlu0
    %v3394 = vpop.trf.xlu0
    %v3395 = vpop.trf.xlu0
    %v3396 = vpop.trf.xlu0
    %v3397 = vpop.trf.xlu0
    %v3398 = vpop.trf.xlu0
    %v3399 = vpop.trf.xlu0
    %v3400 = vpop.trf.xlu0
    %v3401 = vpop.trf.xlu0
    %v3402 = vpop.trf.xlu0
    %v3403 = vpop.trf.xlu0
    %3404 = vxpose.xlu0.b32.start [1/16] %v3333, 128
    %3405 = vxpose.xlu0.b32.cont [2/16] 0.0, 128
    %3406 = vxpose.xlu0.b32.cont [3/16] 0.0, 128
    %3407 = vxpose.xlu0.b32.cont [4/16] 0.0, 128
    %3408 = vxpose.xlu0.b32.cont [5/16] 0.0, 128
    %3409 = vxpose.xlu0.b32.cont [6/16] 0.0, 128
    %3410 = vxpose.xlu0.b32.cont [7/16] 0.0, 128
    %3411 = vxpose.xlu0.b32.cont [8/16] 0.0, 128
    %3412 = vxpose.xlu0.b32.cont [9/16] 0.0, 128
    %3413 = vxpose.xlu0.b32.cont [10/16] 0.0, 128
    %3414 = vxpose.xlu0.b32.cont [11/16] 0.0, 128
    %3415 = vxpose.xlu0.b32.cont [12/16] 0.0, 128
    %3416 = vxpose.xlu0.b32.cont [13/16] 0.0, 128
    %3417 = vxpose.xlu0.b32.cont [14/16] 0.0, 128
    %3418 = vxpose.xlu0.b32.cont [15/16] 0.0, 128
    %3419 = vxpose.xlu0.b32.end [16/16] 0.0, 128
    %v3420 = vpop.trf.xlu0
    %v3421 = vpop.trf.xlu0
    %v3422 = vpop.trf.xlu0
    %v3423 = vpop.trf.xlu0
    %v3424 = vpop.trf.xlu0
    %v3425 = vpop.trf.xlu0
    %v3426 = vpop.trf.xlu0
    %v3427 = vpop.trf.xlu0
    %v3428 = vpop.trf.xlu0
    %v3429 = vpop.trf.xlu0
    %v3430 = vpop.trf.xlu0
    %v3431 = vpop.trf.xlu0
    %v3432 = vpop.trf.xlu0
    %v3433 = vpop.trf.xlu0
    %v3434 = vpop.trf.xlu0
    %v3435 = vpop.trf.xlu0
    %3436 = vxpose.xlu0.b32.start [1/16] %v3335, 128
    %3437 = vxpose.xlu0.b32.cont [2/16] 0.0, 128
    %3438 = vxpose.xlu0.b32.cont [3/16] 0.0, 128
    %3439 = vxpose.xlu0.b32.cont [4/16] 0.0, 128
    %3440 = vxpose.xlu0.b32.cont [5/16] 0.0, 128
    %3441 = vxpose.xlu0.b32.cont [6/16] 0.0, 128
    %3442 = vxpose.xlu0.b32.cont [7/16] 0.0, 128
    %3443 = vxpose.xlu0.b32.cont [8/16] 0.0, 128
    %3444 = vxpose.xlu0.b32.cont [9/16] 0.0, 128
    %3445 = vxpose.xlu0.b32.cont [10/16] 0.0, 128
    %3446 = vxpose.xlu0.b32.cont [11/16] 0.0, 128
    %3447 = vxpose.xlu0.b32.cont [12/16] 0.0, 128
    %3448 = vxpose.xlu0.b32.cont [13/16] 0.0, 128
    %3449 = vxpose.xlu0.b32.cont [14/16] 0.0, 128
    %3450 = vxpose.xlu0.b32.cont [15/16] 0.0, 128
    %3451 = vxpose.xlu0.b32.end [16/16] 0.0, 128
    %v3452 = vpop.trf.xlu0
    %v3453 = vpop.trf.xlu0
    %v3454 = vpop.trf.xlu0
    %v3455 = vpop.trf.xlu0
    %v3456 = vpop.trf.xlu0
    %v3457 = vpop.trf.xlu0
    %v3458 = vpop.trf.xlu0
    %v3459 = vpop.trf.xlu0
    %v3460 = vpop.trf.xlu0
    %v3461 = vpop.trf.xlu0
    %v3462 = vpop.trf.xlu0
    %v3463 = vpop.trf.xlu0
    %v3464 = vpop.trf.xlu0
    %v3465 = vpop.trf.xlu0
    %v3466 = vpop.trf.xlu0
    %v3467 = vpop.trf.xlu0
    %v3469 = vsel %vm800, %v3356, 0
    %v3472 = vsel %vm800, %v3282, 0
    %3474 = vmatpush.xpose.msra.mxu0 0.0
    %3475 = vmatpush.xpose.msra.mxu0 0.0
    %3476 = vmatpush.xpose.msra.mxu0 0.0
    %3477 = vmatpush.xpose.msra.mxu0 0.0
    %3478 = vmatpush.xpose.msra.mxu0 0.0
    %3479 = vmatpush.xpose.msra.mxu0 0.0
    %3480 = vmatpush.xpose.msra.mxu0 0.0
    %3481 = vmatpush.xpose.msra.mxu0 0.0
    %3482 = vmatpush.xpose.msra.mxu0 0.0
    %3483 = vmatpush.xpose.msra.mxu0 0.0
    %3484 = vmatpush.xpose.msra.mxu0 0.0
    %3485 = vmatpush.xpose.msra.mxu0 0.0
    %3486 = vmatpush.xpose.msra.mxu0 0.0
    %3487 = vmatpush.xpose.msra.mxu0 0.0
    %3488 = vmatpush.xpose.msra.mxu0 0.0
    %v3489 = vand.u32 %v3472, 4294901760
    %3490 = vmatpush.xpose.msra.mxu0 %v3489
    %v3491 = vand.u32 %v3469, 4294901760
    %v3492 = vsub.f32 %v3469, %v3491
    %v3493 = vand.u32 %v3492, 4294901760
    %v3494 = vsub.f32 %v3492, %v3493
    %v3495 = vand.u32 %v3494, 4294901760
    %3496 = vmatmul.f32.gmra.mxu0 %v3495
    %v3497 = vpop.f32.mrf.mxu0
    %v3498 = vadd.f32 0.0, %v3497
    %3499 = vdwg.mxu0
    %3500 = vmatpush.xpose.msra.mxu0 0.0
    %3501 = vmatpush.xpose.msra.mxu0 0.0
    %3502 = vmatpush.xpose.msra.mxu0 0.0
    %3503 = vmatpush.xpose.msra.mxu0 0.0
    %3504 = vmatpush.xpose.msra.mxu0 0.0
    %3505 = vmatpush.xpose.msra.mxu0 0.0
    %3506 = vmatpush.xpose.msra.mxu0 0.0
    %3507 = vmatpush.xpose.msra.mxu0 0.0
    %3508 = vmatpush.xpose.msra.mxu0 0.0
    %3509 = vmatpush.xpose.msra.mxu0 0.0
    %3510 = vmatpush.xpose.msra.mxu0 0.0
    %3511 = vmatpush.xpose.msra.mxu0 0.0
    %3512 = vmatpush.xpose.msra.mxu0 0.0
    %3513 = vmatpush.xpose.msra.mxu0 0.0
    %3514 = vmatpush.xpose.msra.mxu0 0.0
    %v3515 = vand.u32 %v3472, 4294901760
    %v3516 = vsub.f32 %v3472, %v3515
    %v3517 = vand.u32 %v3516, 4294901760
    %v3518 = vsub.f32 %v3516, %v3517
    %v3519 = vand.u32 %v3518, 4294901760
    %3520 = vmatpush.xpose.msra.mxu0 %v3519
    %v3521 = vand.u32 %v3469, 4294901760
    %3522 = vmatmul.f32.gmra.mxu0 %v3521
    %v3523 = vpop.f32.mrf.mxu0
    %v3524 = vadd.f32 %v3498, %v3523
    %3525 = vdwg.mxu0
    %3526 = vmatpush.xpose.msra.mxu0 0.0
    %3527 = vmatpush.xpose.msra.mxu0 0.0
    %3528 = vmatpush.xpose.msra.mxu0 0.0
    %3529 = vmatpush.xpose.msra.mxu0 0.0
    %3530 = vmatpush.xpose.msra.mxu0 0.0
    %3531 = vmatpush.xpose.msra.mxu0 0.0
    %3532 = vmatpush.xpose.msra.mxu0 0.0
    %3533 = vmatpush.xpose.msra.mxu0 0.0
    %3534 = vmatpush.xpose.msra.mxu0 0.0
    %3535 = vmatpush.xpose.msra.mxu0 0.0
    %3536 = vmatpush.xpose.msra.mxu0 0.0
    %3537 = vmatpush.xpose.msra.mxu0 0.0
    %3538 = vmatpush.xpose.msra.mxu0 0.0
    %3539 = vmatpush.xpose.msra.mxu0 0.0
    %3540 = vmatpush.xpose.msra.mxu0 0.0
    %v3541 = vand.u32 %v3472, 4294901760
    %v3542 = vsub.f32 %v3472, %v3541
    %3543 = vmatpush.xpose.msra.mxu0 %v3542
    %v3544 = vand.u32 %v3469, 4294901760
    %v3545 = vsub.f32 %v3469, %v3544
    %3546 = vmatmul.f32.gmra.mxu0 %v3545
    %v3547 = vpop.f32.mrf.mxu0
    %v3548 = vadd.f32 %v3524, %v3547
    %3549 = vdwg.mxu0
    %3550 = vmatpush.xpose.msra.mxu0 0.0
    %3551 = vmatpush.xpose.msra.mxu0 0.0
    %3552 = vmatpush.xpose.msra.mxu0 0.0
    %3553 = vmatpush.xpose.msra.mxu0 0.0
    %3554 = vmatpush.xpose.msra.mxu0 0.0
    %3555 = vmatpush.xpose.msra.mxu0 0.0
    %3556 = vmatpush.xpose.msra.mxu0 0.0
    %3557 = vmatpush.xpose.msra.mxu0 0.0
    %3558 = vmatpush.xpose.msra.mxu0 0.0
    %3559 = vmatpush.xpose.msra.mxu0 0.0
    %3560 = vmatpush.xpose.msra.mxu0 0.0
    %3561 = vmatpush.xpose.msra.mxu0 0.0
    %3562 = vmatpush.xpose.msra.mxu0 0.0
    %3563 = vmatpush.xpose.msra.mxu0 0.0
    %3564 = vmatpush.xpose.msra.mxu0 0.0
    %v3565 = vand.u32 %v3472, 4294901760
    %3566 = vmatpush.xpose.msra.mxu0 %v3565
    %v3567 = vand.u32 %v3469, 4294901760
    %v3568 = vsub.f32 %v3469, %v3567
    %v3569 = vand.u32 %v3568, 4294901760
    %3570 = vmatmul.f32.gmra.mxu0 %v3569
    %v3571 = vpop.f32.mrf.mxu0
    %v3572 = vadd.f32 %v3548, %v3571
    %3573 = vdwg.mxu0
    %3574 = vmatpush.xpose.msra.mxu0 0.0
    %3575 = vmatpush.xpose.msra.mxu0 0.0
    %3576 = vmatpush.xpose.msra.mxu0 0.0
    %3577 = vmatpush.xpose.msra.mxu0 0.0
    %3578 = vmatpush.xpose.msra.mxu0 0.0
    %3579 = vmatpush.xpose.msra.mxu0 0.0
    %3580 = vmatpush.xpose.msra.mxu0 0.0
    %3581 = vmatpush.xpose.msra.mxu0 0.0
    %3582 = vmatpush.xpose.msra.mxu0 0.0
    %3583 = vmatpush.xpose.msra.mxu0 0.0
    %3584 = vmatpush.xpose.msra.mxu0 0.0
    %3585 = vmatpush.xpose.msra.mxu0 0.0
    %3586 = vmatpush.xpose.msra.mxu0 0.0
    %3587 = vmatpush.xpose.msra.mxu0 0.0
    %3588 = vmatpush.xpose.msra.mxu0 0.0
    %v3589 = vand.u32 %v3472, 4294901760
    %v3590 = vsub.f32 %v3472, %v3589
    %v3591 = vand.u32 %v3590, 4294901760
    %3592 = vmatpush.xpose.msra.mxu0 %v3591
    %v3593 = vand.u32 %v3469, 4294901760
    %3594 = vmatmul.f32.gmra.mxu0 %v3593
    %v3595 = vpop.f32.mrf.mxu0
    %v3596 = vadd.f32 %v3572, %v3595
    %3597 = vdwg.mxu0
    %3598 = vmatpush.xpose.msra.mxu0 0.0
    %3599 = vmatpush.xpose.msra.mxu0 0.0
    %3600 = vmatpush.xpose.msra.mxu0 0.0
    %3601 = vmatpush.xpose.msra.mxu0 0.0
    %3602 = vmatpush.xpose.msra.mxu0 0.0
    %3603 = vmatpush.xpose.msra.mxu0 0.0
    %3604 = vmatpush.xpose.msra.mxu0 0.0
    %3605 = vmatpush.xpose.msra.mxu0 0.0
    %3606 = vmatpush.xpose.msra.mxu0 0.0
    %3607 = vmatpush.xpose.msra.mxu0 0.0
    %3608 = vmatpush.xpose.msra.mxu0 0.0
    %3609 = vmatpush.xpose.msra.mxu0 0.0
    %3610 = vmatpush.xpose.msra.mxu0 0.0
    %3611 = vmatpush.xpose.msra.mxu0 0.0
    %3612 = vmatpush.xpose.msra.mxu0 0.0
    %v3613 = vand.u32 %v3472, 4294901760
    %3614 = vmatpush.xpose.msra.mxu0 %v3613
    %v3615 = vand.u32 %v3469, 4294901760
    %3616 = vmatmul.f32.gmra.mxu0 %v3615
    %v3617 = vpop.f32.mrf.mxu0
    %v3618 = vadd.f32 %v3596, %v3617
    %3619 = vdwg.mxu0
    %v3621 = vsel %vm800, %v3388, 0
    %v3624 = vsel %vm800, %v3297, 0
    %3626 = vmatpush.xpose.msra.mxu0 0.0
    %3627 = vmatpush.xpose.msra.mxu0 0.0
    %3628 = vmatpush.xpose.msra.mxu0 0.0
    %3629 = vmatpush.xpose.msra.mxu0 0.0
    %3630 = vmatpush.xpose.msra.mxu0 0.0
    %3631 = vmatpush.xpose.msra.mxu0 0.0
    %3632 = vmatpush.xpose.msra.mxu0 0.0
    %3633 = vmatpush.xpose.msra.mxu0 0.0
    %3634 = vmatpush.xpose.msra.mxu0 0.0
    %3635 = vmatpush.xpose.msra.mxu0 0.0
    %3636 = vmatpush.xpose.msra.mxu0 0.0
    %3637 = vmatpush.xpose.msra.mxu0 0.0
    %3638 = vmatpush.xpose.msra.mxu0 0.0
    %3639 = vmatpush.xpose.msra.mxu0 0.0
    %3640 = vmatpush.xpose.msra.mxu0 0.0
    %v3641 = vand.u32 %v3624, 4294901760
    %3642 = vmatpush.xpose.msra.mxu0 %v3641
    %v3643 = vand.u32 %v3621, 4294901760
    %v3644 = vsub.f32 %v3621, %v3643
    %v3645 = vand.u32 %v3644, 4294901760
    %v3646 = vsub.f32 %v3644, %v3645
    %v3647 = vand.u32 %v3646, 4294901760
    %3648 = vmatmul.f32.gmra.mxu0 %v3647
    %v3649 = vpop.f32.mrf.mxu0
    %v3650 = vadd.f32 0.0, %v3649
    %3651 = vdwg.mxu0
    %3652 = vmatpush.xpose.msra.mxu0 0.0
    %3653 = vmatpush.xpose.msra.mxu0 0.0
    %3654 = vmatpush.xpose.msra.mxu0 0.0
    %3655 = vmatpush.xpose.msra.mxu0 0.0
    %3656 = vmatpush.xpose.msra.mxu0 0.0
    %3657 = vmatpush.xpose.msra.mxu0 0.0
    %3658 = vmatpush.xpose.msra.mxu0 0.0
    %3659 = vmatpush.xpose.msra.mxu0 0.0
    %3660 = vmatpush.xpose.msra.mxu0 0.0
    %3661 = vmatpush.xpose.msra.mxu0 0.0
    %3662 = vmatpush.xpose.msra.mxu0 0.0
    %3663 = vmatpush.xpose.msra.mxu0 0.0
    %3664 = vmatpush.xpose.msra.mxu0 0.0
    %3665 = vmatpush.xpose.msra.mxu0 0.0
    %3666 = vmatpush.xpose.msra.mxu0 0.0
    %v3667 = vand.u32 %v3624, 4294901760
    %v3668 = vsub.f32 %v3624, %v3667
    %v3669 = vand.u32 %v3668, 4294901760
    %v3670 = vsub.f32 %v3668, %v3669
    %v3671 = vand.u32 %v3670, 4294901760
    %3672 = vmatpush.xpose.msra.mxu0 %v3671
    %v3673 = vand.u32 %v3621, 4294901760
    %3674 = vmatmul.f32.gmra.mxu0 %v3673
    %v3675 = vpop.f32.mrf.mxu0
    %v3676 = vadd.f32 %v3650, %v3675
    %3677 = vdwg.mxu0
    %3678 = vmatpush.xpose.msra.mxu0 0.0
    %3679 = vmatpush.xpose.msra.mxu0 0.0
    %3680 = vmatpush.xpose.msra.mxu0 0.0
    %3681 = vmatpush.xpose.msra.mxu0 0.0
    %3682 = vmatpush.xpose.msra.mxu0 0.0
    %3683 = vmatpush.xpose.msra.mxu0 0.0
    %3684 = vmatpush.xpose.msra.mxu0 0.0
    %3685 = vmatpush.xpose.msra.mxu0 0.0
    %3686 = vmatpush.xpose.msra.mxu0 0.0
    %3687 = vmatpush.xpose.msra.mxu0 0.0
    %3688 = vmatpush.xpose.msra.mxu0 0.0
    %3689 = vmatpush.xpose.msra.mxu0 0.0
    %3690 = vmatpush.xpose.msra.mxu0 0.0
    %3691 = vmatpush.xpose.msra.mxu0 0.0
    %3692 = vmatpush.xpose.msra.mxu0 0.0
    %v3693 = vand.u32 %v3624, 4294901760
    %v3694 = vsub.f32 %v3624, %v3693
    %3695 = vmatpush.xpose.msra.mxu0 %v3694
    %v3696 = vand.u32 %v3621, 4294901760
    %v3697 = vsub.f32 %v3621, %v3696
    %3698 = vmatmul.f32.gmra.mxu0 %v3697
    %v3699 = vpop.f32.mrf.mxu0
    %v3700 = vadd.f32 %v3676, %v3699
    %3701 = vdwg.mxu0
    %3702 = vmatpush.xpose.msra.mxu0 0.0
    %3703 = vmatpush.xpose.msra.mxu0 0.0
    %3704 = vmatpush.xpose.msra.mxu0 0.0
    %3705 = vmatpush.xpose.msra.mxu0 0.0
    %3706 = vmatpush.xpose.msra.mxu0 0.0
    %3707 = vmatpush.xpose.msra.mxu0 0.0
    %3708 = vmatpush.xpose.msra.mxu0 0.0
    %3709 = vmatpush.xpose.msra.mxu0 0.0
    %3710 = vmatpush.xpose.msra.mxu0 0.0
    %3711 = vmatpush.xpose.msra.mxu0 0.0
    %3712 = vmatpush.xpose.msra.mxu0 0.0
    %3713 = vmatpush.xpose.msra.mxu0 0.0
    %3714 = vmatpush.xpose.msra.mxu0 0.0
    %3715 = vmatpush.xpose.msra.mxu0 0.0
    %3716 = vmatpush.xpose.msra.mxu0 0.0
    %v3717 = vand.u32 %v3624, 4294901760
    %3718 = vmatpush.xpose.msra.mxu0 %v3717
    %v3719 = vand.u32 %v3621, 4294901760
    %v3720 = vsub.f32 %v3621, %v3719
    %v3721 = vand.u32 %v3720, 4294901760
    %3722 = vmatmul.f32.gmra.mxu0 %v3721
    %v3723 = vpop.f32.mrf.mxu0
    %v3724 = vadd.f32 %v3700, %v3723
    %3725 = vdwg.mxu0
    %3726 = vmatpush.xpose.msra.mxu0 0.0
    %3727 = vmatpush.xpose.msra.mxu0 0.0
    %3728 = vmatpush.xpose.msra.mxu0 0.0
    %3729 = vmatpush.xpose.msra.mxu0 0.0
    %3730 = vmatpush.xpose.msra.mxu0 0.0
    %3731 = vmatpush.xpose.msra.mxu0 0.0
    %3732 = vmatpush.xpose.msra.mxu0 0.0
    %3733 = vmatpush.xpose.msra.mxu0 0.0
    %3734 = vmatpush.xpose.msra.mxu0 0.0
    %3735 = vmatpush.xpose.msra.mxu0 0.0
    %3736 = vmatpush.xpose.msra.mxu0 0.0
    %3737 = vmatpush.xpose.msra.mxu0 0.0
    %3738 = vmatpush.xpose.msra.mxu0 0.0
    %3739 = vmatpush.xpose.msra.mxu0 0.0
    %3740 = vmatpush.xpose.msra.mxu0 0.0
    %v3741 = vand.u32 %v3624, 4294901760
    %v3742 = vsub.f32 %v3624, %v3741
    %v3743 = vand.u32 %v3742, 4294901760
    %3744 = vmatpush.xpose.msra.mxu0 %v3743
    %v3745 = vand.u32 %v3621, 4294901760
    %3746 = vmatmul.f32.gmra.mxu0 %v3745
    %v3747 = vpop.f32.mrf.mxu0
    %v3748 = vadd.f32 %v3724, %v3747
    %3749 = vdwg.mxu0
    %3750 = vmatpush.xpose.msra.mxu0 0.0
    %3751 = vmatpush.xpose.msra.mxu0 0.0
    %3752 = vmatpush.xpose.msra.mxu0 0.0
    %3753 = vmatpush.xpose.msra.mxu0 0.0
    %3754 = vmatpush.xpose.msra.mxu0 0.0
    %3755 = vmatpush.xpose.msra.mxu0 0.0
    %3756 = vmatpush.xpose.msra.mxu0 0.0
    %3757 = vmatpush.xpose.msra.mxu0 0.0
    %3758 = vmatpush.xpose.msra.mxu0 0.0
    %3759 = vmatpush.xpose.msra.mxu0 0.0
    %3760 = vmatpush.xpose.msra.mxu0 0.0
    %3761 = vmatpush.xpose.msra.mxu0 0.0
    %3762 = vmatpush.xpose.msra.mxu0 0.0
    %3763 = vmatpush.xpose.msra.mxu0 0.0
    %3764 = vmatpush.xpose.msra.mxu0 0.0
    %v3765 = vand.u32 %v3624, 4294901760
    %3766 = vmatpush.xpose.msra.mxu0 %v3765
    %v3767 = vand.u32 %v3621, 4294901760
    %3768 = vmatmul.f32.gmra.mxu0 %v3767
    %v3769 = vpop.f32.mrf.mxu0
    %v3770 = vadd.f32 %v3748, %v3769
    %3771 = vdwg.mxu0
    %v3773 = vsel %vm800, %v3420, 0
    %v3776 = vsel %vm800, %v3312, 0
    %3778 = vmatpush.xpose.msra.mxu0 0.0
    %3779 = vmatpush.xpose.msra.mxu0 0.0
    %3780 = vmatpush.xpose.msra.mxu0 0.0
    %3781 = vmatpush.xpose.msra.mxu0 0.0
    %3782 = vmatpush.xpose.msra.mxu0 0.0
    %3783 = vmatpush.xpose.msra.mxu0 0.0
    %3784 = vmatpush.xpose.msra.mxu0 0.0
    %3785 = vmatpush.xpose.msra.mxu0 0.0
    %3786 = vmatpush.xpose.msra.mxu0 0.0
    %3787 = vmatpush.xpose.msra.mxu0 0.0
    %3788 = vmatpush.xpose.msra.mxu0 0.0
    %3789 = vmatpush.xpose.msra.mxu0 0.0
    %3790 = vmatpush.xpose.msra.mxu0 0.0
    %3791 = vmatpush.xpose.msra.mxu0 0.0
    %3792 = vmatpush.xpose.msra.mxu0 0.0
    %v3793 = vand.u32 %v3776, 4294901760
    %3794 = vmatpush.xpose.msra.mxu0 %v3793
    %v3795 = vand.u32 %v3773, 4294901760
    %v3796 = vsub.f32 %v3773, %v3795
    %v3797 = vand.u32 %v3796, 4294901760
    %v3798 = vsub.f32 %v3796, %v3797
    %v3799 = vand.u32 %v3798, 4294901760
    %3800 = vmatmul.f32.gmra.mxu0 %v3799
    %v3801 = vpop.f32.mrf.mxu0
    %v3802 = vadd.f32 0.0, %v3801
    %3803 = vdwg.mxu0
    %3804 = vmatpush.xpose.msra.mxu0 0.0
    %3805 = vmatpush.xpose.msra.mxu0 0.0
    %3806 = vmatpush.xpose.msra.mxu0 0.0
    %3807 = vmatpush.xpose.msra.mxu0 0.0
    %3808 = vmatpush.xpose.msra.mxu0 0.0
    %3809 = vmatpush.xpose.msra.mxu0 0.0
    %3810 = vmatpush.xpose.msra.mxu0 0.0
    %3811 = vmatpush.xpose.msra.mxu0 0.0
    %3812 = vmatpush.xpose.msra.mxu0 0.0
    %3813 = vmatpush.xpose.msra.mxu0 0.0
    %3814 = vmatpush.xpose.msra.mxu0 0.0
    %3815 = vmatpush.xpose.msra.mxu0 0.0
    %3816 = vmatpush.xpose.msra.mxu0 0.0
    %3817 = vmatpush.xpose.msra.mxu0 0.0
    %3818 = vmatpush.xpose.msra.mxu0 0.0
    %v3819 = vand.u32 %v3776, 4294901760
    %v3820 = vsub.f32 %v3776, %v3819
    %v3821 = vand.u32 %v3820, 4294901760
    %v3822 = vsub.f32 %v3820, %v3821
    %v3823 = vand.u32 %v3822, 4294901760
    %3824 = vmatpush.xpose.msra.mxu0 %v3823
    %v3825 = vand.u32 %v3773, 4294901760
    %3826 = vmatmul.f32.gmra.mxu0 %v3825
    %v3827 = vpop.f32.mrf.mxu0
    %v3828 = vadd.f32 %v3802, %v3827
    %3829 = vdwg.mxu0
    %3830 = vmatpush.xpose.msra.mxu0 0.0
    %3831 = vmatpush.xpose.msra.mxu0 0.0
    %3832 = vmatpush.xpose.msra.mxu0 0.0
    %3833 = vmatpush.xpose.msra.mxu0 0.0
    %3834 = vmatpush.xpose.msra.mxu0 0.0
    %3835 = vmatpush.xpose.msra.mxu0 0.0
    %3836 = vmatpush.xpose.msra.mxu0 0.0
    %3837 = vmatpush.xpose.msra.mxu0 0.0
    %3838 = vmatpush.xpose.msra.mxu0 0.0
    %3839 = vmatpush.xpose.msra.mxu0 0.0
    %3840 = vmatpush.xpose.msra.mxu0 0.0
    %3841 = vmatpush.xpose.msra.mxu0 0.0
    %3842 = vmatpush.xpose.msra.mxu0 0.0
    %3843 = vmatpush.xpose.msra.mxu0 0.0
    %3844 = vmatpush.xpose.msra.mxu0 0.0
    %v3845 = vand.u32 %v3776, 4294901760
    %v3846 = vsub.f32 %v3776, %v3845
    %3847 = vmatpush.xpose.msra.mxu0 %v3846
    %v3848 = vand.u32 %v3773, 4294901760
    %v3849 = vsub.f32 %v3773, %v3848
    %3850 = vmatmul.f32.gmra.mxu0 %v3849
    %v3851 = vpop.f32.mrf.mxu0
    %v3852 = vadd.f32 %v3828, %v3851
    %3853 = vdwg.mxu0
    %3854 = vmatpush.xpose.msra.mxu0 0.0
    %3855 = vmatpush.xpose.msra.mxu0 0.0
    %3856 = vmatpush.xpose.msra.mxu0 0.0
    %3857 = vmatpush.xpose.msra.mxu0 0.0
    %3858 = vmatpush.xpose.msra.mxu0 0.0
    %3859 = vmatpush.xpose.msra.mxu0 0.0
    %3860 = vmatpush.xpose.msra.mxu0 0.0
    %3861 = vmatpush.xpose.msra.mxu0 0.0
    %3862 = vmatpush.xpose.msra.mxu0 0.0
    %3863 = vmatpush.xpose.msra.mxu0 0.0
    %3864 = vmatpush.xpose.msra.mxu0 0.0
    %3865 = vmatpush.xpose.msra.mxu0 0.0
    %3866 = vmatpush.xpose.msra.mxu0 0.0
    %3867 = vmatpush.xpose.msra.mxu0 0.0
    %3868 = vmatpush.xpose.msra.mxu0 0.0
    %v3869 = vand.u32 %v3776, 4294901760
    %3870 = vmatpush.xpose.msra.mxu0 %v3869
    %v3871 = vand.u32 %v3773, 4294901760
    %v3872 = vsub.f32 %v3773, %v3871
    %v3873 = vand.u32 %v3872, 4294901760
    %3874 = vmatmul.f32.gmra.mxu0 %v3873
    %v3875 = vpop.f32.mrf.mxu0
    %v3876 = vadd.f32 %v3852, %v3875
    %3877 = vdwg.mxu0
    %3878 = vmatpush.xpose.msra.mxu0 0.0
    %3879 = vmatpush.xpose.msra.mxu0 0.0
    %3880 = vmatpush.xpose.msra.mxu0 0.0
    %3881 = vmatpush.xpose.msra.mxu0 0.0
    %3882 = vmatpush.xpose.msra.mxu0 0.0
    %3883 = vmatpush.xpose.msra.mxu0 0.0
    %3884 = vmatpush.xpose.msra.mxu0 0.0
    %3885 = vmatpush.xpose.msra.mxu0 0.0
    %3886 = vmatpush.xpose.msra.mxu0 0.0
    %3887 = vmatpush.xpose.msra.mxu0 0.0
    %3888 = vmatpush.xpose.msra.mxu0 0.0
    %3889 = vmatpush.xpose.msra.mxu0 0.0
    %3890 = vmatpush.xpose.msra.mxu0 0.0
    %3891 = vmatpush.xpose.msra.mxu0 0.0
    %3892 = vmatpush.xpose.msra.mxu0 0.0
    %v3893 = vand.u32 %v3776, 4294901760
    %v3894 = vsub.f32 %v3776, %v3893
    %v3895 = vand.u32 %v3894, 4294901760
    %3896 = vmatpush.xpose.msra.mxu0 %v3895
    %v3897 = vand.u32 %v3773, 4294901760
    %3898 = vmatmul.f32.gmra.mxu0 %v3897
    %v3899 = vpop.f32.mrf.mxu0
    %v3900 = vadd.f32 %v3876, %v3899
    %3901 = vdwg.mxu0
    %3902 = vmatpush.xpose.msra.mxu0 0.0
    %3903 = vmatpush.xpose.msra.mxu0 0.0
    %3904 = vmatpush.xpose.msra.mxu0 0.0
    %3905 = vmatpush.xpose.msra.mxu0 0.0
    %3906 = vmatpush.xpose.msra.mxu0 0.0
    %3907 = vmatpush.xpose.msra.mxu0 0.0
    %3908 = vmatpush.xpose.msra.mxu0 0.0
    %3909 = vmatpush.xpose.msra.mxu0 0.0
    %3910 = vmatpush.xpose.msra.mxu0 0.0
    %3911 = vmatpush.xpose.msra.mxu0 0.0
    %3912 = vmatpush.xpose.msra.mxu0 0.0
    %3913 = vmatpush.xpose.msra.mxu0 0.0
    %3914 = vmatpush.xpose.msra.mxu0 0.0
    %3915 = vmatpush.xpose.msra.mxu0 0.0
    %3916 = vmatpush.xpose.msra.mxu0 0.0
    %v3917 = vand.u32 %v3776, 4294901760
    %3918 = vmatpush.xpose.msra.mxu0 %v3917
    %v3919 = vand.u32 %v3773, 4294901760
    %3920 = vmatmul.f32.gmra.mxu0 %v3919
    %v3921 = vpop.f32.mrf.mxu0
    %v3922 = vadd.f32 %v3900, %v3921
    %3923 = vdwg.mxu0
    %v3925 = vsel %vm800, %v3452, 0
    %v3928 = vsel %vm800, %v3327, 0
    %3930 = vmatpush.xpose.msra.mxu0 0.0
    %3931 = vmatpush.xpose.msra.mxu0 0.0
    %3932 = vmatpush.xpose.msra.mxu0 0.0
    %3933 = vmatpush.xpose.msra.mxu0 0.0
    %3934 = vmatpush.xpose.msra.mxu0 0.0
    %3935 = vmatpush.xpose.msra.mxu0 0.0
    %3936 = vmatpush.xpose.msra.mxu0 0.0
    %3937 = vmatpush.xpose.msra.mxu0 0.0
    %3938 = vmatpush.xpose.msra.mxu0 0.0
    %3939 = vmatpush.xpose.msra.mxu0 0.0
    %3940 = vmatpush.xpose.msra.mxu0 0.0
    %3941 = vmatpush.xpose.msra.mxu0 0.0
    %3942 = vmatpush.xpose.msra.mxu0 0.0
    %3943 = vmatpush.xpose.msra.mxu0 0.0
    %3944 = vmatpush.xpose.msra.mxu0 0.0
    %v3945 = vand.u32 %v3928, 4294901760
    %3946 = vmatpush.xpose.msra.mxu0 %v3945
    %v3947 = vand.u32 %v3925, 4294901760
    %v3948 = vsub.f32 %v3925, %v3947
    %v3949 = vand.u32 %v3948, 4294901760
    %v3950 = vsub.f32 %v3948, %v3949
    %v3951 = vand.u32 %v3950, 4294901760
    %3952 = vmatmul.f32.gmra.mxu0 %v3951
    %v3953 = vpop.f32.mrf.mxu0
    %v3954 = vadd.f32 0.0, %v3953
    %3955 = vdwg.mxu0
    %3956 = vmatpush.xpose.msra.mxu0 0.0
    %3957 = vmatpush.xpose.msra.mxu0 0.0
    %3958 = vmatpush.xpose.msra.mxu0 0.0
    %3959 = vmatpush.xpose.msra.mxu0 0.0
    %3960 = vmatpush.xpose.msra.mxu0 0.0
    %3961 = vmatpush.xpose.msra.mxu0 0.0
    %3962 = vmatpush.xpose.msra.mxu0 0.0
    %3963 = vmatpush.xpose.msra.mxu0 0.0
    %3964 = vmatpush.xpose.msra.mxu0 0.0
    %3965 = vmatpush.xpose.msra.mxu0 0.0
    %3966 = vmatpush.xpose.msra.mxu0 0.0
    %3967 = vmatpush.xpose.msra.mxu0 0.0
    %3968 = vmatpush.xpose.msra.mxu0 0.0
    %3969 = vmatpush.xpose.msra.mxu0 0.0
    %3970 = vmatpush.xpose.msra.mxu0 0.0
    %v3971 = vand.u32 %v3928, 4294901760
    %v3972 = vsub.f32 %v3928, %v3971
    %v3973 = vand.u32 %v3972, 4294901760
    %v3974 = vsub.f32 %v3972, %v3973
    %v3975 = vand.u32 %v3974, 4294901760
    %3976 = vmatpush.xpose.msra.mxu0 %v3975
    %v3977 = vand.u32 %v3925, 4294901760
    %3978 = vmatmul.f32.gmra.mxu0 %v3977
    %v3979 = vpop.f32.mrf.mxu0
    %v3980 = vadd.f32 %v3954, %v3979
    %3981 = vdwg.mxu0
    %3982 = vmatpush.xpose.msra.mxu0 0.0
    %3983 = vmatpush.xpose.msra.mxu0 0.0
    %3984 = vmatpush.xpose.msra.mxu0 0.0
    %3985 = vmatpush.xpose.msra.mxu0 0.0
    %3986 = vmatpush.xpose.msra.mxu0 0.0
    %3987 = vmatpush.xpose.msra.mxu0 0.0
    %3988 = vmatpush.xpose.msra.mxu0 0.0
    %3989 = vmatpush.xpose.msra.mxu0 0.0
    %3990 = vmatpush.xpose.msra.mxu0 0.0
    %3991 = vmatpush.xpose.msra.mxu0 0.0
    %3992 = vmatpush.xpose.msra.mxu0 0.0
    %3993 = vmatpush.xpose.msra.mxu0 0.0
    %3994 = vmatpush.xpose.msra.mxu0 0.0
    %3995 = vmatpush.xpose.msra.mxu0 0.0
    %3996 = vmatpush.xpose.msra.mxu0 0.0
    %v3997 = vand.u32 %v3928, 4294901760
    %v3998 = vsub.f32 %v3928, %v3997
    %3999 = vmatpush.xpose.msra.mxu0 %v3998
    %v4000 = vand.u32 %v3925, 4294901760
    %v4001 = vsub.f32 %v3925, %v4000
    %4002 = vmatmul.f32.gmra.mxu0 %v4001
    %v4003 = vpop.f32.mrf.mxu0
    %v4004 = vadd.f32 %v3980, %v4003
    %4005 = vdwg.mxu0
    %4006 = vmatpush.xpose.msra.mxu0 0.0
    %4007 = vmatpush.xpose.msra.mxu0 0.0
    %4008 = vmatpush.xpose.msra.mxu0 0.0
    %4009 = vmatpush.xpose.msra.mxu0 0.0
    %4010 = vmatpush.xpose.msra.mxu0 0.0
    %4011 = vmatpush.xpose.msra.mxu0 0.0
    %4012 = vmatpush.xpose.msra.mxu0 0.0
    %4013 = vmatpush.xpose.msra.mxu0 0.0
    %4014 = vmatpush.xpose.msra.mxu0 0.0
    %4015 = vmatpush.xpose.msra.mxu0 0.0
    %4016 = vmatpush.xpose.msra.mxu0 0.0
    %4017 = vmatpush.xpose.msra.mxu0 0.0
    %4018 = vmatpush.xpose.msra.mxu0 0.0
    %4019 = vmatpush.xpose.msra.mxu0 0.0
    %4020 = vmatpush.xpose.msra.mxu0 0.0
    %v4021 = vand.u32 %v3928, 4294901760
    %4022 = vmatpush.xpose.msra.mxu0 %v4021
    %v4023 = vand.u32 %v3925, 4294901760
    %v4024 = vsub.f32 %v3925, %v4023
    %v4025 = vand.u32 %v4024, 4294901760
    %4026 = vmatmul.f32.gmra.mxu0 %v4025
    %v4027 = vpop.f32.mrf.mxu0
    %v4028 = vadd.f32 %v4004, %v4027
    %4029 = vdwg.mxu0
    %4030 = vmatpush.xpose.msra.mxu0 0.0
    %4031 = vmatpush.xpose.msra.mxu0 0.0
    %4032 = vmatpush.xpose.msra.mxu0 0.0
    %4033 = vmatpush.xpose.msra.mxu0 0.0
    %4034 = vmatpush.xpose.msra.mxu0 0.0
    %4035 = vmatpush.xpose.msra.mxu0 0.0
    %4036 = vmatpush.xpose.msra.mxu0 0.0
    %4037 = vmatpush.xpose.msra.mxu0 0.0
    %4038 = vmatpush.xpose.msra.mxu0 0.0
    %4039 = vmatpush.xpose.msra.mxu0 0.0
    %4040 = vmatpush.xpose.msra.mxu0 0.0
    %4041 = vmatpush.xpose.msra.mxu0 0.0
    %4042 = vmatpush.xpose.msra.mxu0 0.0
    %4043 = vmatpush.xpose.msra.mxu0 0.0
    %4044 = vmatpush.xpose.msra.mxu0 0.0
    %v4045 = vand.u32 %v3928, 4294901760
    %v4046 = vsub.f32 %v3928, %v4045
    %v4047 = vand.u32 %v4046, 4294901760
    %4048 = vmatpush.xpose.msra.mxu0 %v4047
    %v4049 = vand.u32 %v3925, 4294901760
    %4050 = vmatmul.f32.gmra.mxu0 %v4049
    %v4051 = vpop.f32.mrf.mxu0
    %v4052 = vadd.f32 %v4028, %v4051
    %4053 = vdwg.mxu0
    %4054 = vmatpush.xpose.msra.mxu0 0.0
    %4055 = vmatpush.xpose.msra.mxu0 0.0
    %4056 = vmatpush.xpose.msra.mxu0 0.0
    %4057 = vmatpush.xpose.msra.mxu0 0.0
    %4058 = vmatpush.xpose.msra.mxu0 0.0
    %4059 = vmatpush.xpose.msra.mxu0 0.0
    %4060 = vmatpush.xpose.msra.mxu0 0.0
    %4061 = vmatpush.xpose.msra.mxu0 0.0
    %4062 = vmatpush.xpose.msra.mxu0 0.0
    %4063 = vmatpush.xpose.msra.mxu0 0.0
    %4064 = vmatpush.xpose.msra.mxu0 0.0
    %4065 = vmatpush.xpose.msra.mxu0 0.0
    %4066 = vmatpush.xpose.msra.mxu0 0.0
    %4067 = vmatpush.xpose.msra.mxu0 0.0
    %4068 = vmatpush.xpose.msra.mxu0 0.0
    %v4069 = vand.u32 %v3928, 4294901760
    %4070 = vmatpush.xpose.msra.mxu0 %v4069
    %v4071 = vand.u32 %v3925, 4294901760
    %4072 = vmatmul.f32.gmra.mxu0 %v4071
    %v4073 = vpop.f32.mrf.mxu0
    %v4074 = vadd.f32 %v4052, %v4073
    %4075 = vdwg.mxu0
    %4076 = vxpose.xlu0.b32.start [1/16] %v3618, 128
    %4077 = vxpose.xlu0.b32.cont [2/16] 0.0, 128
    %4078 = vxpose.xlu0.b32.cont [3/16] 0.0, 128
    %4079 = vxpose.xlu0.b32.cont [4/16] 0.0, 128
    %4080 = vxpose.xlu0.b32.cont [5/16] 0.0, 128
    %4081 = vxpose.xlu0.b32.cont [6/16] 0.0, 128
    %4082 = vxpose.xlu0.b32.cont [7/16] 0.0, 128
    %4083 = vxpose.xlu0.b32.cont [8/16] 0.0, 128
    %4084 = vxpose.xlu0.b32.cont [9/16] 0.0, 128
    %4085 = vxpose.xlu0.b32.cont [10/16] 0.0, 128
    %4086 = vxpose.xlu0.b32.cont [11/16] 0.0, 128
    %4087 = vxpose.xlu0.b32.cont [12/16] 0.0, 128
    %4088 = vxpose.xlu0.b32.cont [13/16] 0.0, 128
    %4089 = vxpose.xlu0.b32.cont [14/16] 0.0, 128
    %4090 = vxpose.xlu0.b32.cont [15/16] 0.0, 128
    %4091 = vxpose.xlu0.b32.end [16/16] 0.0, 128
    %v4092 = vpop.trf.xlu0
    %v4093 = vpop.trf.xlu0
    %v4094 = vpop.trf.xlu0
    %v4095 = vpop.trf.xlu0
    %v4096 = vpop.trf.xlu0
    %v4097 = vpop.trf.xlu0
    %v4098 = vpop.trf.xlu0
    %v4099 = vpop.trf.xlu0
    %v4100 = vpop.trf.xlu0
    %v4101 = vpop.trf.xlu0
    %v4102 = vpop.trf.xlu0
    %v4103 = vpop.trf.xlu0
    %v4104 = vpop.trf.xlu0
    %v4105 = vpop.trf.xlu0
    %v4106 = vpop.trf.xlu0
    %v4107 = vpop.trf.xlu0
    %4108 = vxpose.xlu0.b32.start [1/16] %v3770, 128
    %4109 = vxpose.xlu0.b32.cont [2/16] 0.0, 128
    %4110 = vxpose.xlu0.b32.cont [3/16] 0.0, 128
    %4111 = vxpose.xlu0.b32.cont [4/16] 0.0, 128
    %4112 = vxpose.xlu0.b32.cont [5/16] 0.0, 128
    %4113 = vxpose.xlu0.b32.cont [6/16] 0.0, 128
    %4114 = vxpose.xlu0.b32.cont [7/16] 0.0, 128
    %4115 = vxpose.xlu0.b32.cont [8/16] 0.0, 128
    %4116 = vxpose.xlu0.b32.cont [9/16] 0.0, 128
    %4117 = vxpose.xlu0.b32.cont [10/16] 0.0, 128
    %4118 = vxpose.xlu0.b32.cont [11/16] 0.0, 128
    %4119 = vxpose.xlu0.b32.cont [12/16] 0.0, 128
    %4120 = vxpose.xlu0.b32.cont [13/16] 0.0, 128
    %4121 = vxpose.xlu0.b32.cont [14/16] 0.0, 128
    %4122 = vxpose.xlu0.b32.cont [15/16] 0.0, 128
    %4123 = vxpose.xlu0.b32.end [16/16] 0.0, 128
    %v4124 = vpop.trf.xlu0
    %v4125 = vpop.trf.xlu0
    %v4126 = vpop.trf.xlu0
    %v4127 = vpop.trf.xlu0
    %v4128 = vpop.trf.xlu0
    %v4129 = vpop.trf.xlu0
    %v4130 = vpop.trf.xlu0
    %v4131 = vpop.trf.xlu0
    %v4132 = vpop.trf.xlu0
    %v4133 = vpop.trf.xlu0
    %v4134 = vpop.trf.xlu0
    %v4135 = vpop.trf.xlu0
    %v4136 = vpop.trf.xlu0
    %v4137 = vpop.trf.xlu0
    %v4138 = vpop.trf.xlu0
    %v4139 = vpop.trf.xlu0
    %4140 = vxpose.xlu0.b32.start [1/16] %v3922, 128
    %4141 = vxpose.xlu0.b32.cont [2/16] 0.0, 128
    %4142 = vxpose.xlu0.b32.cont [3/16] 0.0, 128
    %4143 = vxpose.xlu0.b32.cont [4/16] 0.0, 128
    %4144 = vxpose.xlu0.b32.cont [5/16] 0.0, 128
    %4145 = vxpose.xlu0.b32.cont [6/16] 0.0, 128
    %4146 = vxpose.xlu0.b32.cont [7/16] 0.0, 128
    %4147 = vxpose.xlu0.b32.cont [8/16] 0.0, 128
    %4148 = vxpose.xlu0.b32.cont [9/16] 0.0, 128
    %4149 = vxpose.xlu0.b32.cont [10/16] 0.0, 128
    %4150 = vxpose.xlu0.b32.cont [11/16] 0.0, 128
    %4151 = vxpose.xlu0.b32.cont [12/16] 0.0, 128
    %4152 = vxpose.xlu0.b32.cont [13/16] 0.0, 128
    %4153 = vxpose.xlu0.b32.cont [14/16] 0.0, 128
    %4154 = vxpose.xlu0.b32.cont [15/16] 0.0, 128
    %4155 = vxpose.xlu0.b32.end [16/16] 0.0, 128
    %v4156 = vpop.trf.xlu0
    %v4157 = vpop.trf.xlu0
    %v4158 = vpop.trf.xlu0
    %v4159 = vpop.trf.xlu0
    %v4160 = vpop.trf.xlu0
    %v4161 = vpop.trf.xlu0
    %v4162 = vpop.trf.xlu0
    %v4163 = vpop.trf.xlu0
    %v4164 = vpop.trf.xlu0
    %v4165 = vpop.trf.xlu0
    %v4166 = vpop.trf.xlu0
    %v4167 = vpop.trf.xlu0
    %v4168 = vpop.trf.xlu0
    %v4169 = vpop.trf.xlu0
    %v4170 = vpop.trf.xlu0
    %v4171 = vpop.trf.xlu0
    %4172 = vxpose.xlu0.b32.start [1/16] %v4074, 128
    %4173 = vxpose.xlu0.b32.cont [2/16] 0.0, 128
    %4174 = vxpose.xlu0.b32.cont [3/16] 0.0, 128
    %4175 = vxpose.xlu0.b32.cont [4/16] 0.0, 128
    %4176 = vxpose.xlu0.b32.cont [5/16] 0.0, 128
    %4177 = vxpose.xlu0.b32.cont [6/16] 0.0, 128
    %4178 = vxpose.xlu0.b32.cont [7/16] 0.0, 128
    %4179 = vxpose.xlu0.b32.cont [8/16] 0.0, 128
    %4180 = vxpose.xlu0.b32.cont [9/16] 0.0, 128
    %4181 = vxpose.xlu0.b32.cont [10/16] 0.0, 128
    %4182 = vxpose.xlu0.b32.cont [11/16] 0.0, 128
    %4183 = vxpose.xlu0.b32.cont [12/16] 0.0, 128
    %4184 = vxpose.xlu0.b32.cont [13/16] 0.0, 128
    %4185 = vxpose.xlu0.b32.cont [14/16] 0.0, 128
    %4186 = vxpose.xlu0.b32.cont [15/16] 0.0, 128
    %4187 = vxpose.xlu0.b32.end [16/16] 0.0, 128
    %v4188 = vpop.trf.xlu0
    %v4189 = vpop.trf.xlu0
    %v4190 = vpop.trf.xlu0
    %v4191 = vpop.trf.xlu0
    %v4192 = vpop.trf.xlu0
    %v4193 = vpop.trf.xlu0
    %v4194 = vpop.trf.xlu0
    %v4195 = vpop.trf.xlu0
    %v4196 = vpop.trf.xlu0
    %v4197 = vpop.trf.xlu0
    %v4198 = vpop.trf.xlu0
    %v4199 = vpop.trf.xlu0
    %v4200 = vpop.trf.xlu0
    %v4201 = vpop.trf.xlu0
    %v4202 = vpop.trf.xlu0
    %v4203 = vpop.trf.xlu0
    %v4204 = vrot.slane %v4156, 4
    %v4205 = vsel %vm2366, %v4204, %v4092
    %v4206 = vrot.slane %v4092, 4
    %v4207 = vsel %vm2366, %v4156, %v4206
    %v4209 = vunpack.c.l.s4 1983009808
    %v4210 = vunpack.c.0.s8 %v4209
    %v4211 = vperm.slane %v4205, %v4210
    %v4213 = vunpack.c.l.s4 1983009808
    %v4214 = vunpack.c.0.s8 %v4213
    %v4215 = vperm.slane %v4207, %v4214
    %v4216 = vrot.slane %v4188, 4
    %v4217 = vsel %vm2366, %v4216, %v4124
    %v4218 = vrot.slane %v4124, 4
    %v4219 = vsel %vm2366, %v4188, %v4218
    %v4221 = vunpack.c.l.s4 1983009808
    %v4222 = vunpack.c.0.s8 %v4221
    %v4223 = vperm.slane %v4217, %v4222
    %v4225 = vunpack.c.l.s4 1983009808
    %v4226 = vunpack.c.0.s8 %v4225
    %v4227 = vperm.slane %v4219, %v4226
    %v4228 = vrot.slane %v4223, 4
    %v4229 = vsel %vm2366, %v4228, %v4211
    %v4230 = vrot.slane %v4211, 4
    %v4231 = vsel %vm2366, %v4223, %v4230
    %v4233 = vunpack.c.l.s4 1934713408
    %v4234 = vunpack.c.0.s8 %v4233
    %v4235 = vperm.slane %v4229, %v4234
    %v4237 = vunpack.c.l.s4 1934713408
    %v4238 = vunpack.c.0.s8 %v4237
    %v4239 = vperm.slane %v4231, %v4238
    %v4240 = vrot.slane %v4227, 4
    %v4241 = vsel %vm2366, %v4240, %v4215
    %v4242 = vrot.slane %v4215, 4
    %v4243 = vsel %vm2366, %v4227, %v4242
    %v4245 = vunpack.c.l.s4 1934713408
    %v4246 = vunpack.c.0.s8 %v4245
    %v4247 = vperm.slane %v4241, %v4246
    %v4249 = vunpack.c.l.s4 1934713408
    %v4250 = vunpack.c.0.s8 %v4249
    %v4251 = vperm.slane %v4243, %v4250
    %v4252 = vrot.slane %v4235, 4
    %v4253 = vsel %vm2366, 0.0, %v4252
    %v4254 = vrot.slane %v4239, 4
    %v4255 = vsel %vm2366, 0.0, %v4254
    %v4256 = vrot.slane %v4247, 4
    %v4257 = vsel %vm2366, 0.0, %v4256
    %v4258 = vrot.slane %v4251, 4
    %v4259 = vsel %vm2366, 0.0, %v4258
    %v4260 = vsel %vm2366, %v4254, %v4235
    %v4262 = vunpack.c.l.s4 1983009808
    %v4263 = vunpack.c.0.s8 %v4262
    %v4264 = vperm.slane %v4260, %v4263
    %v4265 = vrot.slane %v4255, 4
    %v4266 = vsel %vm2366, %v4265, %v4253
    %v4268 = vunpack.c.l.s4 1983009808
    %v4269 = vunpack.c.0.s8 %v4268
    %v4270 = vperm.slane %v4266, %v4269
    %v4271 = vsel %vm2366, %v4258, %v4247
    %v4273 = vunpack.c.l.s4 1983009808
    %v4274 = vunpack.c.0.s8 %v4273
    %v4275 = vperm.slane %v4271, %v4274
    %v4276 = vrot.slane %v4259, 4
    %v4277 = vsel %vm2366, %v4276, %v4257
    %v4279 = vunpack.c.l.s4 1983009808
    %v4280 = vunpack.c.0.s8 %v4279
    %v4281 = vperm.slane %v4277, %v4280
    %v4282 = vrot.slane %v4270, 4
    %v4283 = vsel %vm2366, %v4282, %v4264
    %v4284 = vrot.slane %v4264, 4
    %v4285 = vsel %vm2366, %v4270, %v4284
    %v4287 = vunpack.c.l.s4 1934713408
    %v4288 = vunpack.c.0.s8 %v4287
    %v4289 = vperm.slane %v4283, %v4288
    %v4291 = vunpack.c.l.s4 1934713408
    %v4292 = vunpack.c.0.s8 %v4291
    %v4293 = vperm.slane %v4285, %v4292
    %v4294 = vrot.slane %v4281, 4
    %v4295 = vsel %vm2366, %v4294, %v4275
    %v4296 = vrot.slane %v4275, 4
    %v4297 = vsel %vm2366, %v4281, %v4296
    %v4299 = vunpack.c.l.s4 1934713408
    %v4300 = vunpack.c.0.s8 %v4299
    %v4301 = vperm.slane %v4295, %v4300
    %v4303 = vunpack.c.l.s4 1934713408
    %v4304 = vunpack.c.0.s8 %v4303
    %v4305 = vperm.slane %v4297, %v4304
    %v4306 = vrot.slane %v4301, 4
    %v4307 = vsel %vm2366, %v4306, %v4289
    %v4308 = vrot.slane %v4289, 4
    %v4309 = vsel %vm2366, %v4301, %v4308
    %v4310 = vrot.slane %v4305, 4
    %v4311 = vsel %vm2366, %v4310, %v4293
    %v4312 = vrot.slane %v4293, 4
    %v4313 = vsel %vm2366, %v4305, %v4312
    %4315 = vrot.lane.b32.xlu0 %v4309, 8
    %v4316 = vpop.permute.xlu0 %4315
    %4319 = vrot.lane.b32.xlu0 %v4311, 16
    %v4320 = vpop.permute.xlu0 %4319
    %4323 = vrot.lane.b32.xlu0 %v4313, 24
    %v4324 = vpop.permute.xlu0 %4323
    %v4326 = vsel %vm800, %v4307, %v4316
    %v4327 = vsel %vm2489, %v4326, %v4320
    %v4328 = vsel %vm2491, %v4327, %v4324
    %v4329 = vld [vmem:[%s4] sm:$0xff]
    %v4330 = vld [vmem:[%s4 + $0x8] sm:$0xff]
    %v4331 = vld [vmem:[%s4 + $0x10] sm:$0xff]
    %v4332 = vld [vmem:[%s4 + $0x18] sm:$0xff]
    %v4333 = vperm.slane %v425, 1
    %v4335 = vsel %vm430, %v2492, 0
    %v4338 = vsel %vm430, %v4328, 0
    %4340 = vmatpush.msra.mxu0 0.0
    %4341 = vmatpush.msra.mxu0 0.0
    %4342 = vmatpush.msra.mxu0 0.0
    %4343 = vmatpush.msra.mxu0 0.0
    %4344 = vmatpush.msra.mxu0 0.0
    %4345 = vmatpush.msra.mxu0 0.0
    %4346 = vmatpush.msra.mxu0 0.0
    %4347 = vmatpush.msra.mxu0 0.0
    %4348 = vmatpush.msra.mxu0 0.0
    %4349 = vmatpush.msra.mxu0 0.0
    %4350 = vmatpush.msra.mxu0 0.0
    %4351 = vmatpush.msra.mxu0 0.0
    %v4352 = vand.u32 %v4332, 4294901760
    %4353 = vmatpush.msra.mxu0 %v4352
    %v4354 = vand.u32 %v4331, 4294901760
    %4355 = vmatpush.msra.mxu0 %v4354
    %v4356 = vand.u32 %v4330, 4294901760
    %4357 = vmatpush.msra.mxu0 %v4356
    %v4358 = vand.u32 %v4329, 4294901760
    %4359 = vmatpush.msra.mxu0 %v4358
    %v4360 = vand.u32 %v4335, 4294901760
    %v4361 = vsub.f32 %v4335, %v4360
    %v4362 = vand.u32 %v4361, 4294901760
    %v4363 = vsub.f32 %v4361, %v4362
    %v4364 = vand.u32 %v4363, 4294901760
    %4365 = vmatmul.f32.gmra.mxu0 %v4364
    %v4366 = vpop.f32.mrf.mxu0
    %v4367 = vadd.f32 %v4333, %v4366
    %v4368 = vand.u32 %v4338, 4294901760
    %v4369 = vsub.f32 %v4338, %v4368
    %v4370 = vand.u32 %v4369, 4294901760
    %v4371 = vsub.f32 %v4369, %v4370
    %v4372 = vand.u32 %v4371, 4294901760
    %4373 = vmatmul.f32.gmra.mxu0 %v4372
    %v4374 = vpop.f32.mrf.mxu0
    %v4375 = vadd.f32 %v4333, %v4374
    %4376 = vdwg.mxu0
    %4377 = vmatpush.msra.mxu0 0.0
    %4378 = vmatpush.msra.mxu0 0.0
    %4379 = vmatpush.msra.mxu0 0.0
    %4380 = vmatpush.msra.mxu0 0.0
    %4381 = vmatpush.msra.mxu0 0.0
    %4382 = vmatpush.msra.mxu0 0.0
    %4383 = vmatpush.msra.mxu0 0.0
    %4384 = vmatpush.msra.mxu0 0.0
    %4385 = vmatpush.msra.mxu0 0.0
    %4386 = vmatpush.msra.mxu0 0.0
    %4387 = vmatpush.msra.mxu0 0.0
    %4388 = vmatpush.msra.mxu0 0.0
    %v4389 = vand.u32 %v4332, 4294901760
    %v4390 = vsub.f32 %v4332, %v4389
    %v4391 = vand.u32 %v4390, 4294901760
    %v4392 = vsub.f32 %v4390, %v4391
    %v4393 = vand.u32 %v4392, 4294901760
    %4394 = vmatpush.msra.mxu0 %v4393
    %v4395 = vand.u32 %v4331, 4294901760
    %v4396 = vsub.f32 %v4331, %v4395
    %v4397 = vand.u32 %v4396, 4294901760
    %v4398 = vsub.f32 %v4396, %v4397
    %v4399 = vand.u32 %v4398, 4294901760
    %4400 = vmatpush.msra.mxu0 %v4399
    %v4401 = vand.u32 %v4330, 4294901760
    %v4402 = vsub.f32 %v4330, %v4401
    %v4403 = vand.u32 %v4402, 4294901760
    %v4404 = vsub.f32 %v4402, %v4403
    %v4405 = vand.u32 %v4404, 4294901760
    %4406 = vmatpush.msra.mxu0 %v4405
    %v4407 = vand.u32 %v4329, 4294901760
    %v4408 = vsub.f32 %v4329, %v4407
    %v4409 = vand.u32 %v4408, 4294901760
    %v4410 = vsub.f32 %v4408, %v4409
    %v4411 = vand.u32 %v4410, 4294901760
    %4412 = vmatpush.msra.mxu0 %v4411
    %v4413 = vand.u32 %v4335, 4294901760
    %4414 = vmatmul.f32.gmra.mxu0 %v4413
    %v4415 = vpop.f32.mrf.mxu0
    %v4416 = vadd.f32 %v4367, %v4415
    %v4417 = vand.u32 %v4338, 4294901760
    %4418 = vmatmul.f32.gmra.mxu0 %v4417
    %v4419 = vpop.f32.mrf.mxu0
    %v4420 = vadd.f32 %v4375, %v4419
    %4421 = vdwg.mxu0
    %4422 = vmatpush.msra.mxu0 0.0
    %4423 = vmatpush.msra.mxu0 0.0
    %4424 = vmatpush.msra.mxu0 0.0
    %4425 = vmatpush.msra.mxu0 0.0
    %4426 = vmatpush.msra.mxu0 0.0
    %4427 = vmatpush.msra.mxu0 0.0
    %4428 = vmatpush.msra.mxu0 0.0
    %4429 = vmatpush.msra.mxu0 0.0
    %4430 = vmatpush.msra.mxu0 0.0
    %4431 = vmatpush.msra.mxu0 0.0
    %4432 = vmatpush.msra.mxu0 0.0
    %4433 = vmatpush.msra.mxu0 0.0
    %v4434 = vand.u32 %v4332, 4294901760
    %v4435 = vsub.f32 %v4332, %v4434
    %4436 = vmatpush.msra.mxu0 %v4435
    %v4437 = vand.u32 %v4331, 4294901760
    %v4438 = vsub.f32 %v4331, %v4437
    %4439 = vmatpush.msra.mxu0 %v4438
    %v4440 = vand.u32 %v4330, 4294901760
    %v4441 = vsub.f32 %v4330, %v4440
    %4442 = vmatpush.msra.mxu0 %v4441
    %v4443 = vand.u32 %v4329, 4294901760
    %v4444 = vsub.f32 %v4329, %v4443
    %4445 = vmatpush.msra.mxu0 %v4444
    %v4446 = vand.u32 %v4335, 4294901760
    %v4447 = vsub.f32 %v4335, %v4446
    %4448 = vmatmul.f32.gmra.mxu0 %v4447
    %v4449 = vpop.f32.mrf.mxu0
    %v4450 = vadd.f32 %v4416, %v4449
    %v4451 = vand.u32 %v4338, 4294901760
    %v4452 = vsub.f32 %v4338, %v4451
    %4453 = vmatmul.f32.gmra.mxu0 %v4452
    %v4454 = vpop.f32.mrf.mxu0
    %v4455 = vadd.f32 %v4420, %v4454
    %4456 = vdwg.mxu0
    %4457 = vmatpush.msra.mxu0 0.0
    %4458 = vmatpush.msra.mxu0 0.0
    %4459 = vmatpush.msra.mxu0 0.0
    %4460 = vmatpush.msra.mxu0 0.0
    %4461 = vmatpush.msra.mxu0 0.0
    %4462 = vmatpush.msra.mxu0 0.0
    %4463 = vmatpush.msra.mxu0 0.0
    %4464 = vmatpush.msra.mxu0 0.0
    %4465 = vmatpush.msra.mxu0 0.0
    %4466 = vmatpush.msra.mxu0 0.0
    %4467 = vmatpush.msra.mxu0 0.0
    %4468 = vmatpush.msra.mxu0 0.0
    %v4469 = vand.u32 %v4332, 4294901760
    %4470 = vmatpush.msra.mxu0 %v4469
    %v4471 = vand.u32 %v4331, 4294901760
    %4472 = vmatpush.msra.mxu0 %v4471
    %v4473 = vand.u32 %v4330, 4294901760
    %4474 = vmatpush.msra.mxu0 %v4473
    %v4475 = vand.u32 %v4329, 4294901760
    %4476 = vmatpush.msra.mxu0 %v4475
    %v4477 = vand.u32 %v4335, 4294901760
    %v4478 = vsub.f32 %v4335, %v4477
    %v4479 = vand.u32 %v4478, 4294901760
    %4480 = vmatmul.f32.gmra.mxu0 %v4479
    %v4481 = vpop.f32.mrf.mxu0
    %v4482 = vadd.f32 %v4450, %v4481
    %v4483 = vand.u32 %v4338, 4294901760
    %v4484 = vsub.f32 %v4338, %v4483
    %v4485 = vand.u32 %v4484, 4294901760
    %4486 = vmatmul.f32.gmra.mxu0 %v4485
    %v4487 = vpop.f32.mrf.mxu0
    %v4488 = vadd.f32 %v4455, %v4487
    %4489 = vdwg.mxu0
    %4490 = vmatpush.msra.mxu0 0.0
    %4491 = vmatpush.msra.mxu0 0.0
    %4492 = vmatpush.msra.mxu0 0.0
    %4493 = vmatpush.msra.mxu0 0.0
    %4494 = vmatpush.msra.mxu0 0.0
    %4495 = vmatpush.msra.mxu0 0.0
    %4496 = vmatpush.msra.mxu0 0.0
    %4497 = vmatpush.msra.mxu0 0.0
    %4498 = vmatpush.msra.mxu0 0.0
    %4499 = vmatpush.msra.mxu0 0.0
    %4500 = vmatpush.msra.mxu0 0.0
    %4501 = vmatpush.msra.mxu0 0.0
    %v4502 = vand.u32 %v4332, 4294901760
    %v4503 = vsub.f32 %v4332, %v4502
    %v4504 = vand.u32 %v4503, 4294901760
    %4505 = vmatpush.msra.mxu0 %v4504
    %v4506 = vand.u32 %v4331, 4294901760
    %v4507 = vsub.f32 %v4331, %v4506
    %v4508 = vand.u32 %v4507, 4294901760
    %4509 = vmatpush.msra.mxu0 %v4508
    %v4510 = vand.u32 %v4330, 4294901760
    %v4511 = vsub.f32 %v4330, %v4510
    %v4512 = vand.u32 %v4511, 4294901760
    %4513 = vmatpush.msra.mxu0 %v4512
    %v4514 = vand.u32 %v4329, 4294901760
    %v4515 = vsub.f32 %v4329, %v4514
    %v4516 = vand.u32 %v4515, 4294901760
    %4517 = vmatpush.msra.mxu0 %v4516
    %v4518 = vand.u32 %v4335, 4294901760
    %4519 = vmatmul.f32.gmra.mxu0 %v4518
    %v4520 = vpop.f32.mrf.mxu0
    %v4521 = vadd.f32 %v4482, %v4520
    %v4522 = vand.u32 %v4338, 4294901760
    %4523 = vmatmul.f32.gmra.mxu0 %v4522
    %v4524 = vpop.f32.mrf.mxu0
    %v4525 = vadd.f32 %v4488, %v4524
    %4526 = vdwg.mxu0
    %4527 = vmatpush.msra.mxu0 0.0
    %4528 = vmatpush.msra.mxu0 0.0
    %4529 = vmatpush.msra.mxu0 0.0
    %4530 = vmatpush.msra.mxu0 0.0
    %4531 = vmatpush.msra.mxu0 0.0
    %4532 = vmatpush.msra.mxu0 0.0
    %4533 = vmatpush.msra.mxu0 0.0
    %4534 = vmatpush.msra.mxu0 0.0
    %4535 = vmatpush.msra.mxu0 0.0
    %4536 = vmatpush.msra.mxu0 0.0
    %4537 = vmatpush.msra.mxu0 0.0
    %4538 = vmatpush.msra.mxu0 0.0
    %v4539 = vand.u32 %v4332, 4294901760
    %4540 = vmatpush.msra.mxu0 %v4539
    %v4541 = vand.u32 %v4331, 4294901760
    %4542 = vmatpush.msra.mxu0 %v4541
    %v4543 = vand.u32 %v4330, 4294901760
    %4544 = vmatpush.msra.mxu0 %v4543
    %v4545 = vand.u32 %v4329, 4294901760
    %4546 = vmatpush.msra.mxu0 %v4545
    %v4547 = vand.u32 %v4335, 4294901760
    %4548 = vmatmul.f32.gmra.mxu0 %v4547
    %v4549 = vpop.f32.mrf.mxu0
    %v4550 = vadd.f32 %v4521, %v4549
    %v4551 = vand.u32 %v4338, 4294901760
    %4552 = vmatmul.f32.gmra.mxu0 %v4551
    %v4553 = vpop.f32.mrf.mxu0
    %v4554 = vadd.f32 %v4525, %v4553
    %4555 = vdwg.mxu0
    %v4556 = vadd.f32 %v4550, %v420
    %v4557 = vadd.f32 %v4554, %v423
    %v4558 = vsel %vm430, %v4556, 0.0
    %4559 = vadd.xlane.f32.xlu0 %v4558
    %v4560 = vpop.xlane.xlu0 %4559
    %v4561 = vsel %vm430, %v4557, 0.0
    %4562 = vadd.xlane.f32.xlu0 %v4561
    %v4563 = vpop.xlane.xlu0 %4562
    %v4564 = vrcp.pop 32.0
    %v4565 = vmul.f32 32.0, %v4564
    %v4566 = vsub.f32 1.0, %v4565
    %v4567 = vmul.f32 %v4564, %v4566
    %v4568 = vadd.f32 %v4564, %v4567
    %vm4569 = vweird.f32 %v4564
    %v4570 = vsel %vm4569, %v4564, %v4568
    %v4571 = vmul.f32 %v4560, %v4570
    %v4572 = vmul.f32 %v4563, %v4570
    %v4573 = vsub.f32 %v4556, %v4571
    %v4574 = vsub.f32 %v4557, %v4572
    %v4575 = vmul.f32 %v4573, %v4573
    %v4576 = vmul.f32 %v4574, %v4574
    %v4577 = vsel %vm430, %v4575, 0.0
    %4578 = vadd.xlane.f32.xlu0 %v4577
    %v4579 = vpop.xlane.xlu0 %4578
    %v4580 = vsel %vm430, %v4576, 0.0
    %4581 = vadd.xlane.f32.xlu0 %v4580
    %v4582 = vpop.xlane.xlu0 %4581
    %v4583 = vmul.f32 %v4579, %v4570
    %v4584 = vmul.f32 %v4582, %v4570
    %v4585 = vadd.f32 %v4583, 1e-05
    %v4586 = vadd.f32 %v4584, 1e-05
    %v4587 = vrsqrt.pop %v4585
    %v4588 = vmul.f32 %v4587, %v4585
    %v4589 = vmul.f32 %v4588, %v4587
    %v4590 = vmul.f32 0.5, %v4589
    %v4591 = vsub.f32 1.5, %v4590
    %v4592 = vmul.f32 %v4587, %v4591
    %vm4593 = vweird.f32 %v4585
    %vm4594 = vweird.f32 %v4587
    %vm4595 = vmor %vm4593, %vm4594
    %v4596 = vsel %vm4595, %v4587, %v4592
    %v4597 = vrsqrt.pop %v4586
    %v4598 = vmul.f32 %v4597, %v4586
    %v4599 = vmul.f32 %v4598, %v4597
    %v4600 = vmul.f32 0.5, %v4599
    %v4601 = vsub.f32 1.5, %v4600
    %v4602 = vmul.f32 %v4597, %v4601
    %vm4603 = vweird.f32 %v4586
    %vm4604 = vweird.f32 %v4597
    %vm4605 = vmor %vm4603, %vm4604
    %v4606 = vsel %vm4605, %v4597, %v4602
    %v4607 = vmul.f32 %v4573, %v4596
    %v4608 = vmul.f32 %v4574, %v4606
    %v4609 = vperm.slane %v425, 2
    %v4610 = vmul.f32 %v4607, %v4609
    %v4611 = vmul.f32 %v4608, %v4609
    %v4612 = vperm.slane %v425, 3
    %v4613 = vadd.f32 %v4610, %v4612
    %v4614 = vadd.f32 %v4611, %v4612
    %v4615 = vld [vmem:[%s5] sm:$0xff]
    %v4616 = vld [vmem:[%s5 + $0x8] sm:$0xff]
    %v4617 = vld [vmem:[%s5 + $0x10] sm:$0xff]
    %v4618 = vld [vmem:[%s5 + $0x18] sm:$0xff]
    %v4619 = vperm.slane %v425, 0
    %v4621 = vsel %vm430, %v4613, 0
    %v4624 = vsel %vm430, %v4614, 0
    %4626 = vmatpush.msra.mxu0 0.0
    %4627 = vmatpush.msra.mxu0 0.0
    %4628 = vmatpush.msra.mxu0 0.0
    %4629 = vmatpush.msra.mxu0 0.0
    %4630 = vmatpush.msra.mxu0 0.0
    %4631 = vmatpush.msra.mxu0 0.0
    %4632 = vmatpush.msra.mxu0 0.0
    %4633 = vmatpush.msra.mxu0 0.0
    %4634 = vmatpush.msra.mxu0 0.0
    %4635 = vmatpush.msra.mxu0 0.0
    %4636 = vmatpush.msra.mxu0 0.0
    %4637 = vmatpush.msra.mxu0 0.0
    %v4638 = vand.u32 %v4618, 4294901760
    %4639 = vmatpush.msra.mxu0 %v4638
    %v4640 = vand.u32 %v4617, 4294901760
    %4641 = vmatpush.msra.mxu0 %v4640
    %v4642 = vand.u32 %v4616, 4294901760
    %4643 = vmatpush.msra.mxu0 %v4642
    %v4644 = vand.u32 %v4615, 4294901760
    %4645 = vmatpush.msra.mxu0 %v4644
    %v4646 = vand.u32 %v4621, 4294901760
    %v4647 = vsub.f32 %v4621, %v4646
    %v4648 = vand.u32 %v4647, 4294901760
    %v4649 = vsub.f32 %v4647, %v4648
    %v4650 = vand.u32 %v4649, 4294901760
    %4651 = vmatmul.f32.gmra.mxu0 %v4650
    %v4652 = vpop.f32.mrf.mxu0
    %v4653 = vadd.f32 %v4619, %v4652
    %v4654 = vand.u32 %v4624, 4294901760
    %v4655 = vsub.f32 %v4624, %v4654
    %v4656 = vand.u32 %v4655, 4294901760
    %v4657 = vsub.f32 %v4655, %v4656
    %v4658 = vand.u32 %v4657, 4294901760
    %4659 = vmatmul.f32.gmra.mxu0 %v4658
    %v4660 = vpop.f32.mrf.mxu0
    %v4661 = vadd.f32 %v4619, %v4660
    %4662 = vdwg.mxu0
    %4663 = vmatpush.msra.mxu0 0.0
    %4664 = vmatpush.msra.mxu0 0.0
    %4665 = vmatpush.msra.mxu0 0.0
    %4666 = vmatpush.msra.mxu0 0.0
    %4667 = vmatpush.msra.mxu0 0.0
    %4668 = vmatpush.msra.mxu0 0.0
    %4669 = vmatpush.msra.mxu0 0.0
    %4670 = vmatpush.msra.mxu0 0.0
    %4671 = vmatpush.msra.mxu0 0.0
    %4672 = vmatpush.msra.mxu0 0.0
    %4673 = vmatpush.msra.mxu0 0.0
    %4674 = vmatpush.msra.mxu0 0.0
    %v4675 = vand.u32 %v4618, 4294901760
    %v4676 = vsub.f32 %v4618, %v4675
    %v4677 = vand.u32 %v4676, 4294901760
    %v4678 = vsub.f32 %v4676, %v4677
    %v4679 = vand.u32 %v4678, 4294901760
    %4680 = vmatpush.msra.mxu0 %v4679
    %v4681 = vand.u32 %v4617, 4294901760
    %v4682 = vsub.f32 %v4617, %v4681
    %v4683 = vand.u32 %v4682, 4294901760
    %v4684 = vsub.f32 %v4682, %v4683
    %v4685 = vand.u32 %v4684, 4294901760
    %4686 = vmatpush.msra.mxu0 %v4685
    %v4687 = vand.u32 %v4616, 4294901760
    %v4688 = vsub.f32 %v4616, %v4687
    %v4689 = vand.u32 %v4688, 4294901760
    %v4690 = vsub.f32 %v4688, %v4689
    %v4691 = vand.u32 %v4690, 4294901760
    %4692 = vmatpush.msra.mxu0 %v4691
    %v4693 = vand.u32 %v4615, 4294901760
    %v4694 = vsub.f32 %v4615, %v4693
    %v4695 = vand.u32 %v4694, 4294901760
    %v4696 = vsub.f32 %v4694, %v4695
    %v4697 = vand.u32 %v4696, 4294901760
    %4698 = vmatpush.msra.mxu0 %v4697
    %v4699 = vand.u32 %v4621, 4294901760
    %4700 = vmatmul.f32.gmra.mxu0 %v4699
    %v4701 = vpop.f32.mrf.mxu0
    %v4702 = vadd.f32 %v4653, %v4701
    %v4703 = vand.u32 %v4624, 4294901760
    %4704 = vmatmul.f32.gmra.mxu0 %v4703
    %v4705 = vpop.f32.mrf.mxu0
    %v4706 = vadd.f32 %v4661, %v4705
    %4707 = vdwg.mxu0
    %4708 = vmatpush.msra.mxu0 0.0
    %4709 = vmatpush.msra.mxu0 0.0
    %4710 = vmatpush.msra.mxu0 0.0
    %4711 = vmatpush.msra.mxu0 0.0
    %4712 = vmatpush.msra.mxu0 0.0
    %4713 = vmatpush.msra.mxu0 0.0
    %4714 = vmatpush.msra.mxu0 0.0
    %4715 = vmatpush.msra.mxu0 0.0
    %4716 = vmatpush.msra.mxu0 0.0
    %4717 = vmatpush.msra.mxu0 0.0
    %4718 = vmatpush.msra.mxu0 0.0
    %4719 = vmatpush.msra.mxu0 0.0
    %v4720 = vand.u32 %v4618, 4294901760
    %v4721 = vsub.f32 %v4618, %v4720
    %4722 = vmatpush.msra.mxu0 %v4721
    %v4723 = vand.u32 %v4617, 4294901760
    %v4724 = vsub.f32 %v4617, %v4723
    %4725 = vmatpush.msra.mxu0 %v4724
    %v4726 = vand.u32 %v4616, 4294901760
    %v4727 = vsub.f32 %v4616, %v4726
    %4728 = vmatpush.msra.mxu0 %v4727
    %v4729 = vand.u32 %v4615, 4294901760
    %v4730 = vsub.f32 %v4615, %v4729
    %4731 = vmatpush.msra.mxu0 %v4730
    %v4732 = vand.u32 %v4621, 4294901760
    %v4733 = vsub.f32 %v4621, %v4732
    %4734 = vmatmul.f32.gmra.mxu0 %v4733
    %v4735 = vpop.f32.mrf.mxu0
    %v4736 = vadd.f32 %v4702, %v4735
    %v4737 = vand.u32 %v4624, 4294901760
    %v4738 = vsub.f32 %v4624, %v4737
    %4739 = vmatmul.f32.gmra.mxu0 %v4738
    %v4740 = vpop.f32.mrf.mxu0
    %v4741 = vadd.f32 %v4706, %v4740
    %4742 = vdwg.mxu0
    %4743 = vmatpush.msra.mxu0 0.0
    %4744 = vmatpush.msra.mxu0 0.0
    %4745 = vmatpush.msra.mxu0 0.0
    %4746 = vmatpush.msra.mxu0 0.0
    %4747 = vmatpush.msra.mxu0 0.0
    %4748 = vmatpush.msra.mxu0 0.0
    %4749 = vmatpush.msra.mxu0 0.0
    %4750 = vmatpush.msra.mxu0 0.0
    %4751 = vmatpush.msra.mxu0 0.0
    %4752 = vmatpush.msra.mxu0 0.0
    %4753 = vmatpush.msra.mxu0 0.0
    %4754 = vmatpush.msra.mxu0 0.0
    %v4755 = vand.u32 %v4618, 4294901760
    %4756 = vmatpush.msra.mxu0 %v4755
    %v4757 = vand.u32 %v4617, 4294901760
    %4758 = vmatpush.msra.mxu0 %v4757
    %v4759 = vand.u32 %v4616, 4294901760
    %4760 = vmatpush.msra.mxu0 %v4759
    %v4761 = vand.u32 %v4615, 4294901760
    %4762 = vmatpush.msra.mxu0 %v4761
    %v4763 = vand.u32 %v4621, 4294901760
    %v4764 = vsub.f32 %v4621, %v4763
    %v4765 = vand.u32 %v4764, 4294901760
    %4766 = vmatmul.f32.gmra.mxu0 %v4765
    %v4767 = vpop.f32.mrf.mxu0
    %v4768 = vadd.f32 %v4736, %v4767
    %v4769 = vand.u32 %v4624, 4294901760
    %v4770 = vsub.f32 %v4624, %v4769
    %v4771 = vand.u32 %v4770, 4294901760
    %4772 = vmatmul.f32.gmra.mxu0 %v4771
    %v4773 = vpop.f32.mrf.mxu0
    %v4774 = vadd.f32 %v4741, %v4773
    %4775 = vdwg.mxu0
    %4776 = vmatpush.msra.mxu0 0.0
    %4777 = vmatpush.msra.mxu0 0.0
    %4778 = vmatpush.msra.mxu0 0.0
    %4779 = vmatpush.msra.mxu0 0.0
    %4780 = vmatpush.msra.mxu0 0.0
    %4781 = vmatpush.msra.mxu0 0.0
    %4782 = vmatpush.msra.mxu0 0.0
    %4783 = vmatpush.msra.mxu0 0.0
    %4784 = vmatpush.msra.mxu0 0.0
    %4785 = vmatpush.msra.mxu0 0.0
    %4786 = vmatpush.msra.mxu0 0.0
    %4787 = vmatpush.msra.mxu0 0.0
    %v4788 = vand.u32 %v4618, 4294901760
    %v4789 = vsub.f32 %v4618, %v4788
    %v4790 = vand.u32 %v4789, 4294901760
    %4791 = vmatpush.msra.mxu0 %v4790
    %v4792 = vand.u32 %v4617, 4294901760
    %v4793 = vsub.f32 %v4617, %v4792
    %v4794 = vand.u32 %v4793, 4294901760
    %4795 = vmatpush.msra.mxu0 %v4794
    %v4796 = vand.u32 %v4616, 4294901760
    %v4797 = vsub.f32 %v4616, %v4796
    %v4798 = vand.u32 %v4797, 4294901760
    %4799 = vmatpush.msra.mxu0 %v4798
    %v4800 = vand.u32 %v4615, 4294901760
    %v4801 = vsub.f32 %v4615, %v4800
    %v4802 = vand.u32 %v4801, 4294901760
    %4803 = vmatpush.msra.mxu0 %v4802
    %v4804 = vand.u32 %v4621, 4294901760
    %4805 = vmatmul.f32.gmra.mxu0 %v4804
    %v4806 = vpop.f32.mrf.mxu0
    %v4807 = vadd.f32 %v4768, %v4806
    %v4808 = vand.u32 %v4624, 4294901760
    %4809 = vmatmul.f32.gmra.mxu0 %v4808
    %v4810 = vpop.f32.mrf.mxu0
    %v4811 = vadd.f32 %v4774, %v4810
    %4812 = vdwg.mxu0
    %4813 = vmatpush.msra.mxu0 0.0
    %4814 = vmatpush.msra.mxu0 0.0
    %4815 = vmatpush.msra.mxu0 0.0
    %4816 = vmatpush.msra.mxu0 0.0
    %4817 = vmatpush.msra.mxu0 0.0
    %4818 = vmatpush.msra.mxu0 0.0
    %4819 = vmatpush.msra.mxu0 0.0
    %4820 = vmatpush.msra.mxu0 0.0
    %4821 = vmatpush.msra.mxu0 0.0
    %4822 = vmatpush.msra.mxu0 0.0
    %4823 = vmatpush.msra.mxu0 0.0
    %4824 = vmatpush.msra.mxu0 0.0
    %v4825 = vand.u32 %v4618, 4294901760
    %4826 = vmatpush.msra.mxu0 %v4825
    %v4827 = vand.u32 %v4617, 4294901760
    %4828 = vmatpush.msra.mxu0 %v4827
    %v4829 = vand.u32 %v4616, 4294901760
    %4830 = vmatpush.msra.mxu0 %v4829
    %v4831 = vand.u32 %v4615, 4294901760
    %4832 = vmatpush.msra.mxu0 %v4831
    %v4833 = vand.u32 %v4621, 4294901760
    %4834 = vmatmul.f32.gmra.mxu0 %v4833
    %v4835 = vpop.f32.mrf.mxu0
    %v4836 = vadd.f32 %v4807, %v4835
    %v4837 = vand.u32 %v4624, 4294901760
    %4838 = vmatmul.f32.gmra.mxu0 %v4837
    %v4839 = vpop.f32.mrf.mxu0
    %v4840 = vadd.f32 %v4811, %v4839
    %4841 = vdwg.mxu0
    %v4842 = vmax.f32 %v4836, 0.0
    %v4843 = vmax.f32 %v4840, 0.0
    %v4844 = vld [vmem:[%s6] sm:$0xff]
    %v4845 = vld [vmem:[%s6 + $0x8] sm:$0xff]
    %v4846 = vld [vmem:[%s6 + $0x10] sm:$0xff]
    %v4847 = vld [vmem:[%s6 + $0x18] sm:$0xff]
    %v4848 = vld [vmem:[%s6 + $0x20] sm:$0xff]
    %v4849 = vld [vmem:[%s6 + $0x28] sm:$0xff]
    %v4850 = vld [vmem:[%s6 + $0x30] sm:$0xff]
    %v4851 = vld [vmem:[%s6 + $0x38] sm:$0xff]
    %v4852 = vld [vmem:[%s6 + $0x40] sm:$0xff]
    %v4853 = vld [vmem:[%s6 + $0x48] sm:$0xff]
    %v4854 = vld [vmem:[%s6 + $0x50] sm:$0xff]
    %v4855 = vld [vmem:[%s6 + $0x58] sm:$0xff]
    %v4856 = vld [vmem:[%s6 + $0x60] sm:$0xff]
    %v4857 = vld [vmem:[%s6 + $0x68] sm:$0xff]
    %v4858 = vld [vmem:[%s6 + $0x70] sm:$0xff]
    %v4859 = vld [vmem:[%s6 + $0x78] sm:$0xff]
    %v4860 = vperm.slane %v425, 4
    %v4861 = vand.u32 %v4859, 4294901760
    %4862 = vmatpush.msra.mxu0 %v4861
    %v4863 = vand.u32 %v4858, 4294901760
    %4864 = vmatpush.msra.mxu0 %v4863
    %v4865 = vand.u32 %v4857, 4294901760
    %4866 = vmatpush.msra.mxu0 %v4865
    %v4867 = vand.u32 %v4856, 4294901760
    %4868 = vmatpush.msra.mxu0 %v4867
    %v4869 = vand.u32 %v4855, 4294901760
    %4870 = vmatpush.msra.mxu0 %v4869
    %v4871 = vand.u32 %v4854, 4294901760
    %4872 = vmatpush.msra.mxu0 %v4871
    %v4873 = vand.u32 %v4853, 4294901760
    %4874 = vmatpush.msra.mxu0 %v4873
    %v4875 = vand.u32 %v4852, 4294901760
    %4876 = vmatpush.msra.mxu0 %v4875
    %v4877 = vand.u32 %v4851, 4294901760
    %4878 = vmatpush.msra.mxu0 %v4877
    %v4879 = vand.u32 %v4850, 4294901760
    %4880 = vmatpush.msra.mxu0 %v4879
    %v4881 = vand.u32 %v4849, 4294901760
    %4882 = vmatpush.msra.mxu0 %v4881
    %v4883 = vand.u32 %v4848, 4294901760
    %4884 = vmatpush.msra.mxu0 %v4883
    %v4885 = vand.u32 %v4847, 4294901760
    %4886 = vmatpush.msra.mxu0 %v4885
    %v4887 = vand.u32 %v4846, 4294901760
    %4888 = vmatpush.msra.mxu0 %v4887
    %v4889 = vand.u32 %v4845, 4294901760
    %4890 = vmatpush.msra.mxu0 %v4889
    %v4891 = vand.u32 %v4844, 4294901760
    %4892 = vmatpush.msra.mxu0 %v4891
    %v4893 = vand.u32 %v4842, 4294901760
    %v4894 = vsub.f32 %v4842, %v4893
    %v4895 = vand.u32 %v4894, 4294901760
    %v4896 = vsub.f32 %v4894, %v4895
    %v4897 = vand.u32 %v4896, 4294901760
    %4898 = vmatmul.f32.gmra.mxu0 %v4897
    %v4899 = vpop.f32.mrf.mxu0
    %v4900 = vadd.f32 %v4860, %v4899
    %v4901 = vand.u32 %v4843, 4294901760
    %v4902 = vsub.f32 %v4843, %v4901
    %v4903 = vand.u32 %v4902, 4294901760
    %v4904 = vsub.f32 %v4902, %v4903
    %v4905 = vand.u32 %v4904, 4294901760
    %4906 = vmatmul.f32.gmra.mxu0 %v4905
    %v4907 = vpop.f32.mrf.mxu0
    %v4908 = vadd.f32 %v4860, %v4907
    %4909 = vdwg.mxu0
    %v4910 = vand.u32 %v4859, 4294901760
    %v4911 = vsub.f32 %v4859, %v4910
    %v4912 = vand.u32 %v4911, 4294901760
    %v4913 = vsub.f32 %v4911, %v4912
    %v4914 = vand.u32 %v4913, 4294901760
    %4915 = vmatpush.msra.mxu0 %v4914
    %v4916 = vand.u32 %v4858, 4294901760
    %v4917 = vsub.f32 %v4858, %v4916
    %v4918 = vand.u32 %v4917, 4294901760
    %v4919 = vsub.f32 %v4917, %v4918
    %v4920 = vand.u32 %v4919, 4294901760
    %4921 = vmatpush.msra.mxu0 %v4920
    %v4922 = vand.u32 %v4857, 4294901760
    %v4923 = vsub.f32 %v4857, %v4922
    %v4924 = vand.u32 %v4923, 4294901760
    %v4925 = vsub.f32 %v4923, %v4924
    %v4926 = vand.u32 %v4925, 4294901760
    %4927 = vmatpush.msra.mxu0 %v4926
    %v4928 = vand.u32 %v4856, 4294901760
    %v4929 = vsub.f32 %v4856, %v4928
    %v4930 = vand.u32 %v4929, 4294901760
    %v4931 = vsub.f32 %v4929, %v4930
    %v4932 = vand.u32 %v4931, 4294901760
    %4933 = vmatpush.msra.mxu0 %v4932
    %v4934 = vand.u32 %v4855, 4294901760
    %v4935 = vsub.f32 %v4855, %v4934
    %v4936 = vand.u32 %v4935, 4294901760
    %v4937 = vsub.f32 %v4935, %v4936
    %v4938 = vand.u32 %v4937, 4294901760
    %4939 = vmatpush.msra.mxu0 %v4938
    %v4940 = vand.u32 %v4854, 4294901760
    %v4941 = vsub.f32 %v4854, %v4940
    %v4942 = vand.u32 %v4941, 4294901760
    %v4943 = vsub.f32 %v4941, %v4942
    %v4944 = vand.u32 %v4943, 4294901760
    %4945 = vmatpush.msra.mxu0 %v4944
    %v4946 = vand.u32 %v4853, 4294901760
    %v4947 = vsub.f32 %v4853, %v4946
    %v4948 = vand.u32 %v4947, 4294901760
    %v4949 = vsub.f32 %v4947, %v4948
    %v4950 = vand.u32 %v4949, 4294901760
    %4951 = vmatpush.msra.mxu0 %v4950
    %v4952 = vand.u32 %v4852, 4294901760
    %v4953 = vsub.f32 %v4852, %v4952
    %v4954 = vand.u32 %v4953, 4294901760
    %v4955 = vsub.f32 %v4953, %v4954
    %v4956 = vand.u32 %v4955, 4294901760
    %4957 = vmatpush.msra.mxu0 %v4956
    %v4958 = vand.u32 %v4851, 4294901760
    %v4959 = vsub.f32 %v4851, %v4958
    %v4960 = vand.u32 %v4959, 4294901760
    %v4961 = vsub.f32 %v4959, %v4960
    %v4962 = vand.u32 %v4961, 4294901760
    %4963 = vmatpush.msra.mxu0 %v4962
    %v4964 = vand.u32 %v4850, 4294901760
    %v4965 = vsub.f32 %v4850, %v4964
    %v4966 = vand.u32 %v4965, 4294901760
    %v4967 = vsub.f32 %v4965, %v4966
    %v4968 = vand.u32 %v4967, 4294901760
    %4969 = vmatpush.msra.mxu0 %v4968
    %v4970 = vand.u32 %v4849, 4294901760
    %v4971 = vsub.f32 %v4849, %v4970
    %v4972 = vand.u32 %v4971, 4294901760
    %v4973 = vsub.f32 %v4971, %v4972
    %v4974 = vand.u32 %v4973, 4294901760
    %4975 = vmatpush.msra.mxu0 %v4974
    %v4976 = vand.u32 %v4848, 4294901760
    %v4977 = vsub.f32 %v4848, %v4976
    %v4978 = vand.u32 %v4977, 4294901760
    %v4979 = vsub.f32 %v4977, %v4978
    %v4980 = vand.u32 %v4979, 4294901760
    %4981 = vmatpush.msra.mxu0 %v4980
    %v4982 = vand.u32 %v4847, 4294901760
    %v4983 = vsub.f32 %v4847, %v4982
    %v4984 = vand.u32 %v4983, 4294901760
    %v4985 = vsub.f32 %v4983, %v4984
    %v4986 = vand.u32 %v4985, 4294901760
    %4987 = vmatpush.msra.mxu0 %v4986
    %v4988 = vand.u32 %v4846, 4294901760
    %v4989 = vsub.f32 %v4846, %v4988
    %v4990 = vand.u32 %v4989, 4294901760
    %v4991 = vsub.f32 %v4989, %v4990
    %v4992 = vand.u32 %v4991, 4294901760
    %4993 = vmatpush.msra.mxu0 %v4992
    %v4994 = vand.u32 %v4845, 4294901760
    %v4995 = vsub.f32 %v4845, %v4994
    %v4996 = vand.u32 %v4995, 4294901760
    %v4997 = vsub.f32 %v4995, %v4996
    %v4998 = vand.u32 %v4997, 4294901760
    %4999 = vmatpush.msra.mxu0 %v4998
    %v5000 = vand.u32 %v4844, 4294901760
    %v5001 = vsub.f32 %v4844, %v5000
    %v5002 = vand.u32 %v5001, 4294901760
    %v5003 = vsub.f32 %v5001, %v5002
    %v5004 = vand.u32 %v5003, 4294901760
    %5005 = vmatpush.msra.mxu0 %v5004
    %v5006 = vand.u32 %v4842, 4294901760
    %5007 = vmatmul.f32.gmra.mxu0 %v5006
    %v5008 = vpop.f32.mrf.mxu0
    %v5009 = vadd.f32 %v4900, %v5008
    %v5010 = vand.u32 %v4843, 4294901760
    %5011 = vmatmul.f32.gmra.mxu0 %v5010
    %v5012 = vpop.f32.mrf.mxu0
    %v5013 = vadd.f32 %v4908, %v5012
    %5014 = vdwg.mxu0
    %v5015 = vand.u32 %v4859, 4294901760
    %v5016 = vsub.f32 %v4859, %v5015
    %5017 = vmatpush.msra.mxu0 %v5016
    %v5018 = vand.u32 %v4858, 4294901760
    %v5019 = vsub.f32 %v4858, %v5018
    %5020 = vmatpush.msra.mxu0 %v5019
    %v5021 = vand.u32 %v4857, 4294901760
    %v5022 = vsub.f32 %v4857, %v5021
    %5023 = vmatpush.msra.mxu0 %v5022
    %v5024 = vand.u32 %v4856, 4294901760
    %v5025 = vsub.f32 %v4856, %v5024
    %5026 = vmatpush.msra.mxu0 %v5025
    %v5027 = vand.u32 %v4855, 4294901760
    %v5028 = vsub.f32 %v4855, %v5027
    %5029 = vmatpush.msra.mxu0 %v5028
    %v5030 = vand.u32 %v4854, 4294901760
    %v5031 = vsub.f32 %v4854, %v5030
    %5032 = vmatpush.msra.mxu0 %v5031
    %v5033 = vand.u32 %v4853, 4294901760
    %v5034 = vsub.f32 %v4853, %v5033
    %5035 = vmatpush.msra.mxu0 %v5034
    %v5036 = vand.u32 %v4852, 4294901760
    %v5037 = vsub.f32 %v4852, %v5036
    %5038 = vmatpush.msra.mxu0 %v5037
    %v5039 = vand.u32 %v4851, 4294901760
    %v5040 = vsub.f32 %v4851, %v5039
    %5041 = vmatpush.msra.mxu0 %v5040
    %v5042 = vand.u32 %v4850, 4294901760
    %v5043 = vsub.f32 %v4850, %v5042
    %5044 = vmatpush.msra.mxu0 %v5043
    %v5045 = vand.u32 %v4849, 4294901760
    %v5046 = vsub.f32 %v4849, %v5045
    %5047 = vmatpush.msra.mxu0 %v5046
    %v5048 = vand.u32 %v4848, 4294901760
    %v5049 = vsub.f32 %v4848, %v5048
    %5050 = vmatpush.msra.mxu0 %v5049
    %v5051 = vand.u32 %v4847, 4294901760
    %v5052 = vsub.f32 %v4847, %v5051
    %5053 = vmatpush.msra.mxu0 %v5052
    %v5054 = vand.u32 %v4846, 4294901760
    %v5055 = vsub.f32 %v4846, %v5054
    %5056 = vmatpush.msra.mxu0 %v5055
    %v5057 = vand.u32 %v4845, 4294901760
    %v5058 = vsub.f32 %v4845, %v5057
    %5059 = vmatpush.msra.mxu0 %v5058
    %v5060 = vand.u32 %v4844, 4294901760
    %v5061 = vsub.f32 %v4844, %v5060
    %5062 = vmatpush.msra.mxu0 %v5061
    %v5063 = vand.u32 %v4842, 4294901760
    %v5064 = vsub.f32 %v4842, %v5063
    %5065 = vmatmul.f32.gmra.mxu0 %v5064
    %v5066 = vpop.f32.mrf.mxu0
    %v5067 = vadd.f32 %v5009, %v5066
    %v5068 = vand.u32 %v4843, 4294901760
    %v5069 = vsub.f32 %v4843, %v5068
    %5070 = vmatmul.f32.gmra.mxu0 %v5069
    %v5071 = vpop.f32.mrf.mxu0
    %v5072 = vadd.f32 %v5013, %v5071
    %5073 = vdwg.mxu0
    %v5074 = vand.u32 %v4859, 4294901760
    %5075 = vmatpush.msra.mxu0 %v5074
    %v5076 = vand.u32 %v4858, 4294901760
    %5077 = vmatpush.msra.mxu0 %v5076
    %v5078 = vand.u32 %v4857, 4294901760
    %5079 = vmatpush.msra.mxu0 %v5078
    %v5080 = vand.u32 %v4856, 4294901760
    %5081 = vmatpush.msra.mxu0 %v5080
    %v5082 = vand.u32 %v4855, 4294901760
    %5083 = vmatpush.msra.mxu0 %v5082
    %v5084 = vand.u32 %v4854, 4294901760
    %5085 = vmatpush.msra.mxu0 %v5084
    %v5086 = vand.u32 %v4853, 4294901760
    %5087 = vmatpush.msra.mxu0 %v5086
    %v5088 = vand.u32 %v4852, 4294901760
    %5089 = vmatpush.msra.mxu0 %v5088
    %v5090 = vand.u32 %v4851, 4294901760
    %5091 = vmatpush.msra.mxu0 %v5090
    %v5092 = vand.u32 %v4850, 4294901760
    %5093 = vmatpush.msra.mxu0 %v5092
    %v5094 = vand.u32 %v4849, 4294901760
    %5095 = vmatpush.msra.mxu0 %v5094
    %v5096 = vand.u32 %v4848, 4294901760
    %5097 = vmatpush.msra.mxu0 %v5096
    %v5098 = vand.u32 %v4847, 4294901760
    %5099 = vmatpush.msra.mxu0 %v5098
    %v5100 = vand.u32 %v4846, 4294901760
    %5101 = vmatpush.msra.mxu0 %v5100
    %v5102 = vand.u32 %v4845, 4294901760
    %5103 = vmatpush.msra.mxu0 %v5102
    %v5104 = vand.u32 %v4844, 4294901760
    %5105 = vmatpush.msra.mxu0 %v5104
    %v5106 = vand.u32 %v4842, 4294901760
    %v5107 = vsub.f32 %v4842, %v5106
    %v5108 = vand.u32 %v5107, 4294901760
    %5109 = vmatmul.f32.gmra.mxu0 %v5108
    %v5110 = vpop.f32.mrf.mxu0
    %v5111 = vadd.f32 %v5067, %v5110
    %v5112 = vand.u32 %v4843, 4294901760
    %v5113 = vsub.f32 %v4843, %v5112
    %v5114 = vand.u32 %v5113, 4294901760
    %5115 = vmatmul.f32.gmra.mxu0 %v5114
    %v5116 = vpop.f32.mrf.mxu0
    %v5117 = vadd.f32 %v5072, %v5116
    %5118 = vdwg.mxu0
    %v5119 = vand.u32 %v4859, 4294901760
    %v5120 = vsub.f32 %v4859, %v5119
    %v5121 = vand.u32 %v5120, 4294901760
    %5122 = vmatpush.msra.mxu0 %v5121
    %v5123 = vand.u32 %v4858, 4294901760
    %v5124 = vsub.f32 %v4858, %v5123
    %v5125 = vand.u32 %v5124, 4294901760
    %5126 = vmatpush.msra.mxu0 %v5125
    %v5127 = vand.u32 %v4857, 4294901760
    %v5128 = vsub.f32 %v4857, %v5127
    %v5129 = vand.u32 %v5128, 4294901760
    %5130 = vmatpush.msra.mxu0 %v5129
    %v5131 = vand.u32 %v4856, 4294901760
    %v5132 = vsub.f32 %v4856, %v5131
    %v5133 = vand.u32 %v5132, 4294901760
    %5134 = vmatpush.msra.mxu0 %v5133
    %v5135 = vand.u32 %v4855, 4294901760
    %v5136 = vsub.f32 %v4855, %v5135
    %v5137 = vand.u32 %v5136, 4294901760
    %5138 = vmatpush.msra.mxu0 %v5137
    %v5139 = vand.u32 %v4854, 4294901760
    %v5140 = vsub.f32 %v4854, %v5139
    %v5141 = vand.u32 %v5140, 4294901760
    %5142 = vmatpush.msra.mxu0 %v5141
    %v5143 = vand.u32 %v4853, 4294901760
    %v5144 = vsub.f32 %v4853, %v5143
    %v5145 = vand.u32 %v5144, 4294901760
    %5146 = vmatpush.msra.mxu0 %v5145
    %v5147 = vand.u32 %v4852, 4294901760
    %v5148 = vsub.f32 %v4852, %v5147
    %v5149 = vand.u32 %v5148, 4294901760
    %5150 = vmatpush.msra.mxu0 %v5149
    %v5151 = vand.u32 %v4851, 4294901760
    %v5152 = vsub.f32 %v4851, %v5151
    %v5153 = vand.u32 %v5152, 4294901760
    %5154 = vmatpush.msra.mxu0 %v5153
    %v5155 = vand.u32 %v4850, 4294901760
    %v5156 = vsub.f32 %v4850, %v5155
    %v5157 = vand.u32 %v5156, 4294901760
    %5158 = vmatpush.msra.mxu0 %v5157
    %v5159 = vand.u32 %v4849, 4294901760
    %v5160 = vsub.f32 %v4849, %v5159
    %v5161 = vand.u32 %v5160, 4294901760
    %5162 = vmatpush.msra.mxu0 %v5161
    %v5163 = vand.u32 %v4848, 4294901760
    %v5164 = vsub.f32 %v4848, %v5163
    %v5165 = vand.u32 %v5164, 4294901760
    %5166 = vmatpush.msra.mxu0 %v5165
    %v5167 = vand.u32 %v4847, 4294901760
    %v5168 = vsub.f32 %v4847, %v5167
    %v5169 = vand.u32 %v5168, 4294901760
    %5170 = vmatpush.msra.mxu0 %v5169
    %v5171 = vand.u32 %v4846, 4294901760
    %v5172 = vsub.f32 %v4846, %v5171
    %v5173 = vand.u32 %v5172, 4294901760
    %5174 = vmatpush.msra.mxu0 %v5173
    %v5175 = vand.u32 %v4845, 4294901760
    %v5176 = vsub.f32 %v4845, %v5175
    %v5177 = vand.u32 %v5176, 4294901760
    %5178 = vmatpush.msra.mxu0 %v5177
    %v5179 = vand.u32 %v4844, 4294901760
    %v5180 = vsub.f32 %v4844, %v5179
    %v5181 = vand.u32 %v5180, 4294901760
    %5182 = vmatpush.msra.mxu0 %v5181
    %v5183 = vand.u32 %v4842, 4294901760
    %5184 = vmatmul.f32.gmra.mxu0 %v5183
    %v5185 = vpop.f32.mrf.mxu0
    %v5186 = vadd.f32 %v5111, %v5185
    %v5187 = vand.u32 %v4843, 4294901760
    %5188 = vmatmul.f32.gmra.mxu0 %v5187
    %v5189 = vpop.f32.mrf.mxu0
    %v5190 = vadd.f32 %v5117, %v5189
    %5191 = vdwg.mxu0
    %v5192 = vand.u32 %v4859, 4294901760
    %5193 = vmatpush.msra.mxu0 %v5192
    %v5194 = vand.u32 %v4858, 4294901760
    %5195 = vmatpush.msra.mxu0 %v5194
    %v5196 = vand.u32 %v4857, 4294901760
    %5197 = vmatpush.msra.mxu0 %v5196
    %v5198 = vand.u32 %v4856, 4294901760
    %5199 = vmatpush.msra.mxu0 %v5198
    %v5200 = vand.u32 %v4855, 4294901760
    %5201 = vmatpush.msra.mxu0 %v5200
    %v5202 = vand.u32 %v4854, 4294901760
    %5203 = vmatpush.msra.mxu0 %v5202
    %v5204 = vand.u32 %v4853, 4294901760
    %5205 = vmatpush.msra.mxu0 %v5204
    %v5206 = vand.u32 %v4852, 4294901760
    %5207 = vmatpush.msra.mxu0 %v5206
    %v5208 = vand.u32 %v4851, 4294901760
    %5209 = vmatpush.msra.mxu0 %v5208
    %v5210 = vand.u32 %v4850, 4294901760
    %5211 = vmatpush.msra.mxu0 %v5210
    %v5212 = vand.u32 %v4849, 4294901760
    %5213 = vmatpush.msra.mxu0 %v5212
    %v5214 = vand.u32 %v4848, 4294901760
    %5215 = vmatpush.msra.mxu0 %v5214
    %v5216 = vand.u32 %v4847, 4294901760
    %5217 = vmatpush.msra.mxu0 %v5216
    %v5218 = vand.u32 %v4846, 4294901760
    %5219 = vmatpush.msra.mxu0 %v5218
    %v5220 = vand.u32 %v4845, 4294901760
    %5221 = vmatpush.msra.mxu0 %v5220
    %v5222 = vand.u32 %v4844, 4294901760
    %5223 = vmatpush.msra.mxu0 %v5222
    %v5224 = vand.u32 %v4842, 4294901760
    %5225 = vmatmul.f32.gmra.mxu0 %v5224
    %v5226 = vpop.f32.mrf.mxu0
    %v5227 = vadd.f32 %v5186, %v5226
    %v5228 = vand.u32 %v4843, 4294901760
    %5229 = vmatmul.f32.gmra.mxu0 %v5228
    %v5230 = vpop.f32.mrf.mxu0
    %v5231 = vadd.f32 %v5190, %v5230
    %5232 = vdwg.mxu0
    %v5233 = vadd.f32 %v5227, %v4613
    %v5234 = vadd.f32 %v5231, %v4614
    %v5235 = vsel %vm430, %v5233, 0.0
    %5236 = vadd.xlane.f32.xlu0 %v5235
    %v5237 = vpop.xlane.xlu0 %5236
    %v5238 = vsel %vm430, %v5234, 0.0
    %5239 = vadd.xlane.f32.xlu0 %v5238
    %v5240 = vpop.xlane.xlu0 %5239
    %v5241 = vmul.f32 %v5237, %v4570
    %v5242 = vmul.f32 %v5240, %v4570
    %v5243 = vsub.f32 %v5233, %v5241
    %v5244 = vsub.f32 %v5234, %v5242
    %v5245 = vmul.f32 %v5243, %v5243
    %v5246 = vmul.f32 %v5244, %v5244
    %v5247 = vsel %vm430, %v5245, 0.0
    %5248 = vadd.xlane.f32.xlu0 %v5247
    %v5249 = vpop.xlane.xlu0 %5248
    %v5250 = vsel %vm430, %v5246, 0.0
    %5251 = vadd.xlane.f32.xlu0 %v5250
    %v5252 = vpop.xlane.xlu0 %5251
    %v5253 = vmul.f32 %v5249, %v4570
    %v5254 = vmul.f32 %v5252, %v4570
    %v5255 = vadd.f32 %v5253, 1e-05
    %v5256 = vadd.f32 %v5254, 1e-05
    %v5257 = vrsqrt.pop %v5255
    %v5258 = vmul.f32 %v5257, %v5255
    %v5259 = vmul.f32 %v5258, %v5257
    %v5260 = vmul.f32 0.5, %v5259
    %v5261 = vsub.f32 1.5, %v5260
    %v5262 = vmul.f32 %v5257, %v5261
    %vm5263 = vweird.f32 %v5255
    %vm5264 = vweird.f32 %v5257
    %vm5265 = vmor %vm5263, %vm5264
    %v5266 = vsel %vm5265, %v5257, %v5262
    %v5267 = vrsqrt.pop %v5256
    %v5268 = vmul.f32 %v5267, %v5256
    %v5269 = vmul.f32 %v5268, %v5267
    %v5270 = vmul.f32 0.5, %v5269
    %v5271 = vsub.f32 1.5, %v5270
    %v5272 = vmul.f32 %v5267, %v5271
    %vm5273 = vweird.f32 %v5256
    %vm5274 = vweird.f32 %v5267
    %vm5275 = vmor %vm5273, %vm5274
    %v5276 = vsel %vm5275, %v5267, %v5272
    %v5277 = vmul.f32 %v5243, %v5266
    %v5278 = vmul.f32 %v5244, %v5276
    %v5279 = vperm.slane %v425, 5
    %v5280 = vmul.f32 %v5277, %v5279
    %v5281 = vmul.f32 %v5278, %v5279
    %v5282 = vperm.slane %v425, 6
    %v5283 = vadd.f32 %v5280, %v5282
    %v5284 = vadd.f32 %v5281, %v5282
    %s5285 = scalar_lea.vmem %s7, 8
    %v5286 = vld [vmem:[%s5285] sm:$0xff]
    %s5287 = scalar_lea.vmem %s3, 32
    %v5288 = vld [vmem:[%s5287] sm:$0xff]
    %v5289 = vld [vmem:[%s5287 + $0x8] sm:$0xff]
    %v5290 = vld [vmem:[%s5287 + $0x10] sm:$0xff]
    %v5291 = vld [vmem:[%s5287 + $0x18] sm:$0xff]
    %v5293 = vsel %vm430, %v5283, 0
    %v5296 = vsel %vm430, %v5284, 0
    %5298 = vmatpush.msra.mxu0 0.0
    %5299 = vmatpush.msra.mxu0 0.0
    %5300 = vmatpush.msra.mxu0 0.0
    %5301 = vmatpush.msra.mxu0 0.0
    %5302 = vmatpush.msra.mxu0 0.0
    %5303 = vmatpush.msra.mxu0 0.0
    %5304 = vmatpush.msra.mxu0 0.0
    %5305 = vmatpush.msra.mxu0 0.0
    %5306 = vmatpush.msra.mxu0 0.0
    %5307 = vmatpush.msra.mxu0 0.0
    %5308 = vmatpush.msra.mxu0 0.0
    %5309 = vmatpush.msra.mxu0 0.0
    %v5310 = vand.u32 %v5291, 4294901760
    %5311 = vmatpush.msra.mxu0 %v5310
    %v5312 = vand.u32 %v5290, 4294901760
    %5313 = vmatpush.msra.mxu0 %v5312
    %v5314 = vand.u32 %v5289, 4294901760
    %5315 = vmatpush.msra.mxu0 %v5314
    %v5316 = vand.u32 %v5288, 4294901760
    %5317 = vmatpush.msra.mxu0 %v5316
    %v5318 = vand.u32 %v5293, 4294901760
    %v5319 = vsub.f32 %v5293, %v5318
    %v5320 = vand.u32 %v5319, 4294901760
    %v5321 = vsub.f32 %v5319, %v5320
    %v5322 = vand.u32 %v5321, 4294901760
    %5323 = vmatmul.f32.gmra.mxu0 %v5322
    %v5324 = vpop.f32.mrf.mxu0
    %v5325 = vadd.f32 0.0, %v5324
    %v5326 = vand.u32 %v5296, 4294901760
    %v5327 = vsub.f32 %v5296, %v5326
    %v5328 = vand.u32 %v5327, 4294901760
    %v5329 = vsub.f32 %v5327, %v5328
    %v5330 = vand.u32 %v5329, 4294901760
    %5331 = vmatmul.f32.gmra.mxu0 %v5330
    %v5332 = vpop.f32.mrf.mxu0
    %v5333 = vadd.f32 0.0, %v5332
    %5334 = vdwg.mxu0
    %5335 = vmatpush.msra.mxu0 0.0
    %5336 = vmatpush.msra.mxu0 0.0
    %5337 = vmatpush.msra.mxu0 0.0
    %5338 = vmatpush.msra.mxu0 0.0
    %5339 = vmatpush.msra.mxu0 0.0
    %5340 = vmatpush.msra.mxu0 0.0
    %5341 = vmatpush.msra.mxu0 0.0
    %5342 = vmatpush.msra.mxu0 0.0
    %5343 = vmatpush.msra.mxu0 0.0
    %5344 = vmatpush.msra.mxu0 0.0
    %5345 = vmatpush.msra.mxu0 0.0
    %5346 = vmatpush.msra.mxu0 0.0
    %v5347 = vand.u32 %v5291, 4294901760
    %v5348 = vsub.f32 %v5291, %v5347
    %v5349 = vand.u32 %v5348, 4294901760
    %v5350 = vsub.f32 %v5348, %v5349
    %v5351 = vand.u32 %v5350, 4294901760
    %5352 = vmatpush.msra.mxu0 %v5351
    %v5353 = vand.u32 %v5290, 4294901760
    %v5354 = vsub.f32 %v5290, %v5353
    %v5355 = vand.u32 %v5354, 4294901760
    %v5356 = vsub.f32 %v5354, %v5355
    %v5357 = vand.u32 %v5356, 4294901760
    %5358 = vmatpush.msra.mxu0 %v5357
    %v5359 = vand.u32 %v5289, 4294901760
    %v5360 = vsub.f32 %v5289, %v5359
    %v5361 = vand.u32 %v5360, 4294901760
    %v5362 = vsub.f32 %v5360, %v5361
    %v5363 = vand.u32 %v5362, 4294901760
    %5364 = vmatpush.msra.mxu0 %v5363
    %v5365 = vand.u32 %v5288, 4294901760
    %v5366 = vsub.f32 %v5288, %v5365
    %v5367 = vand.u32 %v5366, 4294901760
    %v5368 = vsub.f32 %v5366, %v5367
    %v5369 = vand.u32 %v5368, 4294901760
    %5370 = vmatpush.msra.mxu0 %v5369
    %v5371 = vand.u32 %v5293, 4294901760
    %5372 = vmatmul.f32.gmra.mxu0 %v5371
    %v5373 = vpop.f32.mrf.mxu0
    %v5374 = vadd.f32 %v5325, %v5373
    %v5375 = vand.u32 %v5296, 4294901760
    %5376 = vmatmul.f32.gmra.mxu0 %v5375
    %v5377 = vpop.f32.mrf.mxu0
    %v5378 = vadd.f32 %v5333, %v5377
    %5379 = vdwg.mxu0
    %5380 = vmatpush.msra.mxu0 0.0
    %5381 = vmatpush.msra.mxu0 0.0
    %5382 = vmatpush.msra.mxu0 0.0
    %5383 = vmatpush.msra.mxu0 0.0
    %5384 = vmatpush.msra.mxu0 0.0
    %5385 = vmatpush.msra.mxu0 0.0
    %5386 = vmatpush.msra.mxu0 0.0
    %5387 = vmatpush.msra.mxu0 0.0
    %5388 = vmatpush.msra.mxu0 0.0
    %5389 = vmatpush.msra.mxu0 0.0
    %5390 = vmatpush.msra.mxu0 0.0
    %5391 = vmatpush.msra.mxu0 0.0
    %v5392 = vand.u32 %v5291, 4294901760
    %v5393 = vsub.f32 %v5291, %v5392
    %5394 = vmatpush.msra.mxu0 %v5393
    %v5395 = vand.u32 %v5290, 4294901760
    %v5396 = vsub.f32 %v5290, %v5395
    %5397 = vmatpush.msra.mxu0 %v5396
    %v5398 = vand.u32 %v5289, 4294901760
    %v5399 = vsub.f32 %v5289, %v5398
    %5400 = vmatpush.msra.mxu0 %v5399
    %v5401 = vand.u32 %v5288, 4294901760
    %v5402 = vsub.f32 %v5288, %v5401
    %5403 = vmatpush.msra.mxu0 %v5402
    %v5404 = vand.u32 %v5293, 4294901760
    %v5405 = vsub.f32 %v5293, %v5404
    %5406 = vmatmul.f32.gmra.mxu0 %v5405
    %v5407 = vpop.f32.mrf.mxu0
    %v5408 = vadd.f32 %v5374, %v5407
    %v5409 = vand.u32 %v5296, 4294901760
    %v5410 = vsub.f32 %v5296, %v5409
    %5411 = vmatmul.f32.gmra.mxu0 %v5410
    %v5412 = vpop.f32.mrf.mxu0
    %v5413 = vadd.f32 %v5378, %v5412
    %5414 = vdwg.mxu0
    %5415 = vmatpush.msra.mxu0 0.0
    %5416 = vmatpush.msra.mxu0 0.0
    %5417 = vmatpush.msra.mxu0 0.0
    %5418 = vmatpush.msra.mxu0 0.0
    %5419 = vmatpush.msra.mxu0 0.0
    %5420 = vmatpush.msra.mxu0 0.0
    %5421 = vmatpush.msra.mxu0 0.0
    %5422 = vmatpush.msra.mxu0 0.0
    %5423 = vmatpush.msra.mxu0 0.0
    %5424 = vmatpush.msra.mxu0 0.0
    %5425 = vmatpush.msra.mxu0 0.0
    %5426 = vmatpush.msra.mxu0 0.0
    %v5427 = vand.u32 %v5291, 4294901760
    %5428 = vmatpush.msra.mxu0 %v5427
    %v5429 = vand.u32 %v5290, 4294901760
    %5430 = vmatpush.msra.mxu0 %v5429
    %v5431 = vand.u32 %v5289, 4294901760
    %5432 = vmatpush.msra.mxu0 %v5431
    %v5433 = vand.u32 %v5288, 4294901760
    %5434 = vmatpush.msra.mxu0 %v5433
    %v5435 = vand.u32 %v5293, 4294901760
    %v5436 = vsub.f32 %v5293, %v5435
    %v5437 = vand.u32 %v5436, 4294901760
    %5438 = vmatmul.f32.gmra.mxu0 %v5437
    %v5439 = vpop.f32.mrf.mxu0
    %v5440 = vadd.f32 %v5408, %v5439
    %v5441 = vand.u32 %v5296, 4294901760
    %v5442 = vsub.f32 %v5296, %v5441
    %v5443 = vand.u32 %v5442, 4294901760
    %5444 = vmatmul.f32.gmra.mxu0 %v5443
    %v5445 = vpop.f32.mrf.mxu0
    %v5446 = vadd.f32 %v5413, %v5445
    %5447 = vdwg.mxu0
    %5448 = vmatpush.msra.mxu0 0.0
    %5449 = vmatpush.msra.mxu0 0.0
    %5450 = vmatpush.msra.mxu0 0.0
    %5451 = vmatpush.msra.mxu0 0.0
    %5452 = vmatpush.msra.mxu0 0.0
    %5453 = vmatpush.msra.mxu0 0.0
    %5454 = vmatpush.msra.mxu0 0.0
    %5455 = vmatpush.msra.mxu0 0.0
    %5456 = vmatpush.msra.mxu0 0.0
    %5457 = vmatpush.msra.mxu0 0.0
    %5458 = vmatpush.msra.mxu0 0.0
    %5459 = vmatpush.msra.mxu0 0.0
    %v5460 = vand.u32 %v5291, 4294901760
    %v5461 = vsub.f32 %v5291, %v5460
    %v5462 = vand.u32 %v5461, 4294901760
    %5463 = vmatpush.msra.mxu0 %v5462
    %v5464 = vand.u32 %v5290, 4294901760
    %v5465 = vsub.f32 %v5290, %v5464
    %v5466 = vand.u32 %v5465, 4294901760
    %5467 = vmatpush.msra.mxu0 %v5466
    %v5468 = vand.u32 %v5289, 4294901760
    %v5469 = vsub.f32 %v5289, %v5468
    %v5470 = vand.u32 %v5469, 4294901760
    %5471 = vmatpush.msra.mxu0 %v5470
    %v5472 = vand.u32 %v5288, 4294901760
    %v5473 = vsub.f32 %v5288, %v5472
    %v5474 = vand.u32 %v5473, 4294901760
    %5475 = vmatpush.msra.mxu0 %v5474
    %v5476 = vand.u32 %v5293, 4294901760
    %5477 = vmatmul.f32.gmra.mxu0 %v5476
    %v5478 = vpop.f32.mrf.mxu0
    %v5479 = vadd.f32 %v5440, %v5478
    %v5480 = vand.u32 %v5296, 4294901760
    %5481 = vmatmul.f32.gmra.mxu0 %v5480
    %v5482 = vpop.f32.mrf.mxu0
    %v5483 = vadd.f32 %v5446, %v5482
    %5484 = vdwg.mxu0
    %5485 = vmatpush.msra.mxu0 0.0
    %5486 = vmatpush.msra.mxu0 0.0
    %5487 = vmatpush.msra.mxu0 0.0
    %5488 = vmatpush.msra.mxu0 0.0
    %5489 = vmatpush.msra.mxu0 0.0
    %5490 = vmatpush.msra.mxu0 0.0
    %5491 = vmatpush.msra.mxu0 0.0
    %5492 = vmatpush.msra.mxu0 0.0
    %5493 = vmatpush.msra.mxu0 0.0
    %5494 = vmatpush.msra.mxu0 0.0
    %5495 = vmatpush.msra.mxu0 0.0
    %5496 = vmatpush.msra.mxu0 0.0
    %v5497 = vand.u32 %v5291, 4294901760
    %5498 = vmatpush.msra.mxu0 %v5497
    %v5499 = vand.u32 %v5290, 4294901760
    %5500 = vmatpush.msra.mxu0 %v5499
    %v5501 = vand.u32 %v5289, 4294901760
    %5502 = vmatpush.msra.mxu0 %v5501
    %v5503 = vand.u32 %v5288, 4294901760
    %5504 = vmatpush.msra.mxu0 %v5503
    %v5505 = vand.u32 %v5293, 4294901760
    %5506 = vmatmul.f32.gmra.mxu0 %v5505
    %v5507 = vpop.f32.mrf.mxu0
    %v5508 = vadd.f32 %v5479, %v5507
    %v5509 = vand.u32 %v5296, 4294901760
    %5510 = vmatmul.f32.gmra.mxu0 %v5509
    %v5511 = vpop.f32.mrf.mxu0
    %v5512 = vadd.f32 %v5483, %v5511
    %5513 = vdwg.mxu0
    %5515 = vrot.lane.b32.xlu0 %v5508, 120
    %v5516 = vpop.permute.xlu0 %5515
    %5517 = vrot.lane.b32.xlu0 %v5508, 112
    %v5518 = vpop.permute.xlu0 %5517
    %5519 = vrot.lane.b32.xlu0 %v5508, 104
    %v5520 = vpop.permute.xlu0 %5519
    %5521 = vrot.lane.b32.xlu0 %v5508, 96
    %v5522 = vpop.permute.xlu0 %5521
    %5523 = vrot.lane.b32.xlu0 %v5516, 96
    %v5524 = vpop.permute.xlu0 %5523
    %5525 = vrot.lane.b32.xlu0 %v5518, 96
    %v5526 = vpop.permute.xlu0 %5525
    %5527 = vrot.lane.b32.xlu0 %v5520, 96
    %v5528 = vpop.permute.xlu0 %5527
    %5533 = vxpose.xlu0.b32.start [1/16] %v5522, 128
    %5534 = vxpose.xlu0.b32.cont [2/16] 0.0, 128
    %5535 = vxpose.xlu0.b32.cont [3/16] 0.0, 128
    %5536 = vxpose.xlu0.b32.cont [4/16] 0.0, 128
    %5537 = vxpose.xlu0.b32.cont [5/16] 0.0, 128
    %5538 = vxpose.xlu0.b32.cont [6/16] 0.0, 128
    %5539 = vxpose.xlu0.b32.cont [7/16] 0.0, 128
    %5540 = vxpose.xlu0.b32.cont [8/16] 0.0, 128
    %5541 = vxpose.xlu0.b32.cont [9/16] 0.0, 128
    %5542 = vxpose.xlu0.b32.cont [10/16] 0.0, 128
    %5543 = vxpose.xlu0.b32.cont [11/16] 0.0, 128
    %5544 = vxpose.xlu0.b32.cont [12/16] 0.0, 128
    %5545 = vxpose.xlu0.b32.cont [13/16] 0.0, 128
    %5546 = vxpose.xlu0.b32.cont [14/16] 0.0, 128
    %5547 = vxpose.xlu0.b32.cont [15/16] 0.0, 128
    %5548 = vxpose.xlu0.b32.end [16/16] 0.0, 128
    %v5549 = vpop.trf.xlu0
    %v5550 = vpop.trf.xlu0
    %v5551 = vpop.trf.xlu0
    %v5552 = vpop.trf.xlu0
    %v5553 = vpop.trf.xlu0
    %v5554 = vpop.trf.xlu0
    %v5555 = vpop.trf.xlu0
    %v5556 = vpop.trf.xlu0
    %v5557 = vpop.trf.xlu0
    %v5558 = vpop.trf.xlu0
    %v5559 = vpop.trf.xlu0
    %v5560 = vpop.trf.xlu0
    %v5561 = vpop.trf.xlu0
    %v5562 = vpop.trf.xlu0
    %v5563 = vpop.trf.xlu0
    %v5564 = vpop.trf.xlu0
    %5565 = vxpose.xlu0.b32.start [1/16] %v5524, 128
    %5566 = vxpose.xlu0.b32.cont [2/16] 0.0, 128
    %5567 = vxpose.xlu0.b32.cont [3/16] 0.0, 128
    %5568 = vxpose.xlu0.b32.cont [4/16] 0.0, 128
    %5569 = vxpose.xlu0.b32.cont [5/16] 0.0, 128
    %5570 = vxpose.xlu0.b32.cont [6/16] 0.0, 128
    %5571 = vxpose.xlu0.b32.cont [7/16] 0.0, 128
    %5572 = vxpose.xlu0.b32.cont [8/16] 0.0, 128
    %5573 = vxpose.xlu0.b32.cont [9/16] 0.0, 128
    %5574 = vxpose.xlu0.b32.cont [10/16] 0.0, 128
    %5575 = vxpose.xlu0.b32.cont [11/16] 0.0, 128
    %5576 = vxpose.xlu0.b32.cont [12/16] 0.0, 128
    %5577 = vxpose.xlu0.b32.cont [13/16] 0.0, 128
    %5578 = vxpose.xlu0.b32.cont [14/16] 0.0, 128
    %5579 = vxpose.xlu0.b32.cont [15/16] 0.0, 128
    %5580 = vxpose.xlu0.b32.end [16/16] 0.0, 128
    %v5581 = vpop.trf.xlu0
    %v5582 = vpop.trf.xlu0
    %v5583 = vpop.trf.xlu0
    %v5584 = vpop.trf.xlu0
    %v5585 = vpop.trf.xlu0
    %v5586 = vpop.trf.xlu0
    %v5587 = vpop.trf.xlu0
    %v5588 = vpop.trf.xlu0
    %v5589 = vpop.trf.xlu0
    %v5590 = vpop.trf.xlu0
    %v5591 = vpop.trf.xlu0
    %v5592 = vpop.trf.xlu0
    %v5593 = vpop.trf.xlu0
    %v5594 = vpop.trf.xlu0
    %v5595 = vpop.trf.xlu0
    %v5596 = vpop.trf.xlu0
    %5597 = vxpose.xlu0.b32.start [1/16] %v5526, 128
    %5598 = vxpose.xlu0.b32.cont [2/16] 0.0, 128
    %5599 = vxpose.xlu0.b32.cont [3/16] 0.0, 128
    %5600 = vxpose.xlu0.b32.cont [4/16] 0.0, 128
    %5601 = vxpose.xlu0.b32.cont [5/16] 0.0, 128
    %5602 = vxpose.xlu0.b32.cont [6/16] 0.0, 128
    %5603 = vxpose.xlu0.b32.cont [7/16] 0.0, 128
    %5604 = vxpose.xlu0.b32.cont [8/16] 0.0, 128
    %5605 = vxpose.xlu0.b32.cont [9/16] 0.0, 128
    %5606 = vxpose.xlu0.b32.cont [10/16] 0.0, 128
    %5607 = vxpose.xlu0.b32.cont [11/16] 0.0, 128
    %5608 = vxpose.xlu0.b32.cont [12/16] 0.0, 128
    %5609 = vxpose.xlu0.b32.cont [13/16] 0.0, 128
    %5610 = vxpose.xlu0.b32.cont [14/16] 0.0, 128
    %5611 = vxpose.xlu0.b32.cont [15/16] 0.0, 128
    %5612 = vxpose.xlu0.b32.end [16/16] 0.0, 128
    %v5613 = vpop.trf.xlu0
    %v5614 = vpop.trf.xlu0
    %v5615 = vpop.trf.xlu0
    %v5616 = vpop.trf.xlu0
    %v5617 = vpop.trf.xlu0
    %v5618 = vpop.trf.xlu0
    %v5619 = vpop.trf.xlu0
    %v5620 = vpop.trf.xlu0
    %v5621 = vpop.trf.xlu0
    %v5622 = vpop.trf.xlu0
    %v5623 = vpop.trf.xlu0
    %v5624 = vpop.trf.xlu0
    %v5625 = vpop.trf.xlu0
    %v5626 = vpop.trf.xlu0
    %v5627 = vpop.trf.xlu0
    %v5628 = vpop.trf.xlu0
    %5629 = vxpose.xlu0.b32.start [1/16] %v5528, 128
    %5630 = vxpose.xlu0.b32.cont [2/16] 0.0, 128
    %5631 = vxpose.xlu0.b32.cont [3/16] 0.0, 128
    %5632 = vxpose.xlu0.b32.cont [4/16] 0.0, 128
    %5633 = vxpose.xlu0.b32.cont [5/16] 0.0, 128
    %5634 = vxpose.xlu0.b32.cont [6/16] 0.0, 128
    %5635 = vxpose.xlu0.b32.cont [7/16] 0.0, 128
    %5636 = vxpose.xlu0.b32.cont [8/16] 0.0, 128
    %5637 = vxpose.xlu0.b32.cont [9/16] 0.0, 128
    %5638 = vxpose.xlu0.b32.cont [10/16] 0.0, 128
    %5639 = vxpose.xlu0.b32.cont [11/16] 0.0, 128
    %5640 = vxpose.xlu0.b32.cont [12/16] 0.0, 128
    %5641 = vxpose.xlu0.b32.cont [13/16] 0.0, 128
    %5642 = vxpose.xlu0.b32.cont [14/16] 0.0, 128
    %5643 = vxpose.xlu0.b32.cont [15/16] 0.0, 128
    %5644 = vxpose.xlu0.b32.end [16/16] 0.0, 128
    %v5645 = vpop.trf.xlu0
    %v5646 = vpop.trf.xlu0
    %v5647 = vpop.trf.xlu0
    %v5648 = vpop.trf.xlu0
    %v5649 = vpop.trf.xlu0
    %v5650 = vpop.trf.xlu0
    %v5651 = vpop.trf.xlu0
    %v5652 = vpop.trf.xlu0
    %v5653 = vpop.trf.xlu0
    %v5654 = vpop.trf.xlu0
    %v5655 = vpop.trf.xlu0
    %v5656 = vpop.trf.xlu0
    %v5657 = vpop.trf.xlu0
    %v5658 = vpop.trf.xlu0
    %v5659 = vpop.trf.xlu0
    %v5660 = vpop.trf.xlu0
    %v5661 = vsel %vm800, %v5508, 0
    %5663 = vmatpush.msra.mxu0 0.0
    %5664 = vmatpush.msra.mxu0 0.0
    %5665 = vmatpush.msra.mxu0 0.0
    %5666 = vmatpush.msra.mxu0 0.0
    %5667 = vmatpush.msra.mxu0 0.0
    %5668 = vmatpush.msra.mxu0 0.0
    %5669 = vmatpush.msra.mxu0 0.0
    %5670 = vmatpush.msra.mxu0 0.0
    %5671 = vmatpush.msra.mxu0 0.0
    %5672 = vmatpush.msra.mxu0 0.0
    %5673 = vmatpush.msra.mxu0 0.0
    %5674 = vmatpush.msra.mxu0 0.0
    %5675 = vmatpush.msra.mxu0 0.0
    %5676 = vmatpush.msra.mxu0 0.0
    %5677 = vmatpush.msra.mxu0 0.0
    %v5678 = vand.u32 %v5549, 4294901760
    %5679 = vmatpush.msra.mxu0 %v5678
    %v5680 = vand.u32 %v5661, 4294901760
    %v5681 = vsub.f32 %v5661, %v5680
    %v5682 = vand.u32 %v5681, 4294901760
    %v5683 = vsub.f32 %v5681, %v5682
    %v5684 = vand.u32 %v5683, 4294901760
    %5685 = vmatmul.f32.gmra.mxu0 %v5684
    %v5686 = vpop.f32.mrf.mxu0
    %v5687 = vadd.f32 0.0, %v5686
    %5688 = vdwg.mxu0
    %5689 = vmatpush.msra.mxu0 0.0
    %5690 = vmatpush.msra.mxu0 0.0
    %5691 = vmatpush.msra.mxu0 0.0
    %5692 = vmatpush.msra.mxu0 0.0
    %5693 = vmatpush.msra.mxu0 0.0
    %5694 = vmatpush.msra.mxu0 0.0
    %5695 = vmatpush.msra.mxu0 0.0
    %5696 = vmatpush.msra.mxu0 0.0
    %5697 = vmatpush.msra.mxu0 0.0
    %5698 = vmatpush.msra.mxu0 0.0
    %5699 = vmatpush.msra.mxu0 0.0
    %5700 = vmatpush.msra.mxu0 0.0
    %5701 = vmatpush.msra.mxu0 0.0
    %5702 = vmatpush.msra.mxu0 0.0
    %5703 = vmatpush.msra.mxu0 0.0
    %v5704 = vand.u32 %v5549, 4294901760
    %v5705 = vsub.f32 %v5549, %v5704
    %v5706 = vand.u32 %v5705, 4294901760
    %v5707 = vsub.f32 %v5705, %v5706
    %v5708 = vand.u32 %v5707, 4294901760
    %5709 = vmatpush.msra.mxu0 %v5708
    %v5710 = vand.u32 %v5661, 4294901760
    %5711 = vmatmul.f32.gmra.mxu0 %v5710
    %v5712 = vpop.f32.mrf.mxu0
    %v5713 = vadd.f32 %v5687, %v5712
    %5714 = vdwg.mxu0
    %5715 = vmatpush.msra.mxu0 0.0
    %5716 = vmatpush.msra.mxu0 0.0
    %5717 = vmatpush.msra.mxu0 0.0
    %5718 = vmatpush.msra.mxu0 0.0
    %5719 = vmatpush.msra.mxu0 0.0
    %5720 = vmatpush.msra.mxu0 0.0
    %5721 = vmatpush.msra.mxu0 0.0
    %5722 = vmatpush.msra.mxu0 0.0
    %5723 = vmatpush.msra.mxu0 0.0
    %5724 = vmatpush.msra.mxu0 0.0
    %5725 = vmatpush.msra.mxu0 0.0
    %5726 = vmatpush.msra.mxu0 0.0
    %5727 = vmatpush.msra.mxu0 0.0
    %5728 = vmatpush.msra.mxu0 0.0
    %5729 = vmatpush.msra.mxu0 0.0
    %v5730 = vand.u32 %v5549, 4294901760
    %v5731 = vsub.f32 %v5549, %v5730
    %5732 = vmatpush.msra.mxu0 %v5731
    %v5733 = vand.u32 %v5661, 4294901760
    %v5734 = vsub.f32 %v5661, %v5733
    %5735 = vmatmul.f32.gmra.mxu0 %v5734
    %v5736 = vpop.f32.mrf.mxu0
    %v5737 = vadd.f32 %v5713, %v5736
    %5738 = vdwg.mxu0
    %5739 = vmatpush.msra.mxu0 0.0
    %5740 = vmatpush.msra.mxu0 0.0
    %5741 = vmatpush.msra.mxu0 0.0
    %5742 = vmatpush.msra.mxu0 0.0
    %5743 = vmatpush.msra.mxu0 0.0
    %5744 = vmatpush.msra.mxu0 0.0
    %5745 = vmatpush.msra.mxu0 0.0
    %5746 = vmatpush.msra.mxu0 0.0
    %5747 = vmatpush.msra.mxu0 0.0
    %5748 = vmatpush.msra.mxu0 0.0
    %5749 = vmatpush.msra.mxu0 0.0
    %5750 = vmatpush.msra.mxu0 0.0
    %5751 = vmatpush.msra.mxu0 0.0
    %5752 = vmatpush.msra.mxu0 0.0
    %5753 = vmatpush.msra.mxu0 0.0
    %v5754 = vand.u32 %v5549, 4294901760
    %5755 = vmatpush.msra.mxu0 %v5754
    %v5756 = vand.u32 %v5661, 4294901760
    %v5757 = vsub.f32 %v5661, %v5756
    %v5758 = vand.u32 %v5757, 4294901760
    %5759 = vmatmul.f32.gmra.mxu0 %v5758
    %v5760 = vpop.f32.mrf.mxu0
    %v5761 = vadd.f32 %v5737, %v5760
    %5762 = vdwg.mxu0
    %5763 = vmatpush.msra.mxu0 0.0
    %5764 = vmatpush.msra.mxu0 0.0
    %5765 = vmatpush.msra.mxu0 0.0
    %5766 = vmatpush.msra.mxu0 0.0
    %5767 = vmatpush.msra.mxu0 0.0
    %5768 = vmatpush.msra.mxu0 0.0
    %5769 = vmatpush.msra.mxu0 0.0
    %5770 = vmatpush.msra.mxu0 0.0
    %5771 = vmatpush.msra.mxu0 0.0
    %5772 = vmatpush.msra.mxu0 0.0
    %5773 = vmatpush.msra.mxu0 0.0
    %5774 = vmatpush.msra.mxu0 0.0
    %5775 = vmatpush.msra.mxu0 0.0
    %5776 = vmatpush.msra.mxu0 0.0
    %5777 = vmatpush.msra.mxu0 0.0
    %v5778 = vand.u32 %v5549, 4294901760
    %v5779 = vsub.f32 %v5549, %v5778
    %v5780 = vand.u32 %v5779, 4294901760
    %5781 = vmatpush.msra.mxu0 %v5780
    %v5782 = vand.u32 %v5661, 4294901760
    %5783 = vmatmul.f32.gmra.mxu0 %v5782
    %v5784 = vpop.f32.mrf.mxu0
    %v5785 = vadd.f32 %v5761, %v5784
    %5786 = vdwg.mxu0
    %5787 = vmatpush.msra.mxu0 0.0
    %5788 = vmatpush.msra.mxu0 0.0
    %5789 = vmatpush.msra.mxu0 0.0
    %5790 = vmatpush.msra.mxu0 0.0
    %5791 = vmatpush.msra.mxu0 0.0
    %5792 = vmatpush.msra.mxu0 0.0
    %5793 = vmatpush.msra.mxu0 0.0
    %5794 = vmatpush.msra.mxu0 0.0
    %5795 = vmatpush.msra.mxu0 0.0
    %5796 = vmatpush.msra.mxu0 0.0
    %5797 = vmatpush.msra.mxu0 0.0
    %5798 = vmatpush.msra.mxu0 0.0
    %5799 = vmatpush.msra.mxu0 0.0
    %5800 = vmatpush.msra.mxu0 0.0
    %5801 = vmatpush.msra.mxu0 0.0
    %v5802 = vand.u32 %v5549, 4294901760
    %5803 = vmatpush.msra.mxu0 %v5802
    %v5804 = vand.u32 %v5661, 4294901760
    %5805 = vmatmul.f32.gmra.mxu0 %v5804
    %v5806 = vpop.f32.mrf.mxu0
    %v5807 = vadd.f32 %v5785, %v5806
    %5808 = vdwg.mxu0
    %v5809 = vsel %vm800, %v5516, 0
    %5811 = vmatpush.msra.mxu0 0.0
    %5812 = vmatpush.msra.mxu0 0.0
    %5813 = vmatpush.msra.mxu0 0.0
    %5814 = vmatpush.msra.mxu0 0.0
    %5815 = vmatpush.msra.mxu0 0.0
    %5816 = vmatpush.msra.mxu0 0.0
    %5817 = vmatpush.msra.mxu0 0.0
    %5818 = vmatpush.msra.mxu0 0.0
    %5819 = vmatpush.msra.mxu0 0.0
    %5820 = vmatpush.msra.mxu0 0.0
    %5821 = vmatpush.msra.mxu0 0.0
    %5822 = vmatpush.msra.mxu0 0.0
    %5823 = vmatpush.msra.mxu0 0.0
    %5824 = vmatpush.msra.mxu0 0.0
    %5825 = vmatpush.msra.mxu0 0.0
    %v5826 = vand.u32 %v5581, 4294901760
    %5827 = vmatpush.msra.mxu0 %v5826
    %v5828 = vand.u32 %v5809, 4294901760
    %v5829 = vsub.f32 %v5809, %v5828
    %v5830 = vand.u32 %v5829, 4294901760
    %v5831 = vsub.f32 %v5829, %v5830
    %v5832 = vand.u32 %v5831, 4294901760
    %5833 = vmatmul.f32.gmra.mxu0 %v5832
    %v5834 = vpop.f32.mrf.mxu0
    %v5835 = vadd.f32 0.0, %v5834
    %5836 = vdwg.mxu0
    %5837 = vmatpush.msra.mxu0 0.0
    %5838 = vmatpush.msra.mxu0 0.0
    %5839 = vmatpush.msra.mxu0 0.0
    %5840 = vmatpush.msra.mxu0 0.0
    %5841 = vmatpush.msra.mxu0 0.0
    %5842 = vmatpush.msra.mxu0 0.0
    %5843 = vmatpush.msra.mxu0 0.0
    %5844 = vmatpush.msra.mxu0 0.0
    %5845 = vmatpush.msra.mxu0 0.0
    %5846 = vmatpush.msra.mxu0 0.0
    %5847 = vmatpush.msra.mxu0 0.0
    %5848 = vmatpush.msra.mxu0 0.0
    %5849 = vmatpush.msra.mxu0 0.0
    %5850 = vmatpush.msra.mxu0 0.0
    %5851 = vmatpush.msra.mxu0 0.0
    %v5852 = vand.u32 %v5581, 4294901760
    %v5853 = vsub.f32 %v5581, %v5852
    %v5854 = vand.u32 %v5853, 4294901760
    %v5855 = vsub.f32 %v5853, %v5854
    %v5856 = vand.u32 %v5855, 4294901760
    %5857 = vmatpush.msra.mxu0 %v5856
    %v5858 = vand.u32 %v5809, 4294901760
    %5859 = vmatmul.f32.gmra.mxu0 %v5858
    %v5860 = vpop.f32.mrf.mxu0
    %v5861 = vadd.f32 %v5835, %v5860
    %5862 = vdwg.mxu0
    %5863 = vmatpush.msra.mxu0 0.0
    %5864 = vmatpush.msra.mxu0 0.0
    %5865 = vmatpush.msra.mxu0 0.0
    %5866 = vmatpush.msra.mxu0 0.0
    %5867 = vmatpush.msra.mxu0 0.0
    %5868 = vmatpush.msra.mxu0 0.0
    %5869 = vmatpush.msra.mxu0 0.0
    %5870 = vmatpush.msra.mxu0 0.0
    %5871 = vmatpush.msra.mxu0 0.0
    %5872 = vmatpush.msra.mxu0 0.0
    %5873 = vmatpush.msra.mxu0 0.0
    %5874 = vmatpush.msra.mxu0 0.0
    %5875 = vmatpush.msra.mxu0 0.0
    %5876 = vmatpush.msra.mxu0 0.0
    %5877 = vmatpush.msra.mxu0 0.0
    %v5878 = vand.u32 %v5581, 4294901760
    %v5879 = vsub.f32 %v5581, %v5878
    %5880 = vmatpush.msra.mxu0 %v5879
    %v5881 = vand.u32 %v5809, 4294901760
    %v5882 = vsub.f32 %v5809, %v5881
    %5883 = vmatmul.f32.gmra.mxu0 %v5882
    %v5884 = vpop.f32.mrf.mxu0
    %v5885 = vadd.f32 %v5861, %v5884
    %5886 = vdwg.mxu0
    %5887 = vmatpush.msra.mxu0 0.0
    %5888 = vmatpush.msra.mxu0 0.0
    %5889 = vmatpush.msra.mxu0 0.0
    %5890 = vmatpush.msra.mxu0 0.0
    %5891 = vmatpush.msra.mxu0 0.0
    %5892 = vmatpush.msra.mxu0 0.0
    %5893 = vmatpush.msra.mxu0 0.0
    %5894 = vmatpush.msra.mxu0 0.0
    %5895 = vmatpush.msra.mxu0 0.0
    %5896 = vmatpush.msra.mxu0 0.0
    %5897 = vmatpush.msra.mxu0 0.0
    %5898 = vmatpush.msra.mxu0 0.0
    %5899 = vmatpush.msra.mxu0 0.0
    %5900 = vmatpush.msra.mxu0 0.0
    %5901 = vmatpush.msra.mxu0 0.0
    %v5902 = vand.u32 %v5581, 4294901760
    %5903 = vmatpush.msra.mxu0 %v5902
    %v5904 = vand.u32 %v5809, 4294901760
    %v5905 = vsub.f32 %v5809, %v5904
    %v5906 = vand.u32 %v5905, 4294901760
    %5907 = vmatmul.f32.gmra.mxu0 %v5906
    %v5908 = vpop.f32.mrf.mxu0
    %v5909 = vadd.f32 %v5885, %v5908
    %5910 = vdwg.mxu0
    %5911 = vmatpush.msra.mxu0 0.0
    %5912 = vmatpush.msra.mxu0 0.0
    %5913 = vmatpush.msra.mxu0 0.0
    %5914 = vmatpush.msra.mxu0 0.0
    %5915 = vmatpush.msra.mxu0 0.0
    %5916 = vmatpush.msra.mxu0 0.0
    %5917 = vmatpush.msra.mxu0 0.0
    %5918 = vmatpush.msra.mxu0 0.0
    %5919 = vmatpush.msra.mxu0 0.0
    %5920 = vmatpush.msra.mxu0 0.0
    %5921 = vmatpush.msra.mxu0 0.0
    %5922 = vmatpush.msra.mxu0 0.0
    %5923 = vmatpush.msra.mxu0 0.0
    %5924 = vmatpush.msra.mxu0 0.0
    %5925 = vmatpush.msra.mxu0 0.0
    %v5926 = vand.u32 %v5581, 4294901760
    %v5927 = vsub.f32 %v5581, %v5926
    %v5928 = vand.u32 %v5927, 4294901760
    %5929 = vmatpush.msra.mxu0 %v5928
    %v5930 = vand.u32 %v5809, 4294901760
    %5931 = vmatmul.f32.gmra.mxu0 %v5930
    %v5932 = vpop.f32.mrf.mxu0
    %v5933 = vadd.f32 %v5909, %v5932
    %5934 = vdwg.mxu0
    %5935 = vmatpush.msra.mxu0 0.0
    %5936 = vmatpush.msra.mxu0 0.0
    %5937 = vmatpush.msra.mxu0 0.0
    %5938 = vmatpush.msra.mxu0 0.0
    %5939 = vmatpush.msra.mxu0 0.0
    %5940 = vmatpush.msra.mxu0 0.0
    %5941 = vmatpush.msra.mxu0 0.0
    %5942 = vmatpush.msra.mxu0 0.0
    %5943 = vmatpush.msra.mxu0 0.0
    %5944 = vmatpush.msra.mxu0 0.0
    %5945 = vmatpush.msra.mxu0 0.0
    %5946 = vmatpush.msra.mxu0 0.0
    %5947 = vmatpush.msra.mxu0 0.0
    %5948 = vmatpush.msra.mxu0 0.0
    %5949 = vmatpush.msra.mxu0 0.0
    %v5950 = vand.u32 %v5581, 4294901760
    %5951 = vmatpush.msra.mxu0 %v5950
    %v5952 = vand.u32 %v5809, 4294901760
    %5953 = vmatmul.f32.gmra.mxu0 %v5952
    %v5954 = vpop.f32.mrf.mxu0
    %v5955 = vadd.f32 %v5933, %v5954
    %5956 = vdwg.mxu0
    %v5957 = vsel %vm800, %v5518, 0
    %5959 = vmatpush.msra.mxu0 0.0
    %5960 = vmatpush.msra.mxu0 0.0
    %5961 = vmatpush.msra.mxu0 0.0
    %5962 = vmatpush.msra.mxu0 0.0
    %5963 = vmatpush.msra.mxu0 0.0
    %5964 = vmatpush.msra.mxu0 0.0
    %5965 = vmatpush.msra.mxu0 0.0
    %5966 = vmatpush.msra.mxu0 0.0
    %5967 = vmatpush.msra.mxu0 0.0
    %5968 = vmatpush.msra.mxu0 0.0
    %5969 = vmatpush.msra.mxu0 0.0
    %5970 = vmatpush.msra.mxu0 0.0
    %5971 = vmatpush.msra.mxu0 0.0
    %5972 = vmatpush.msra.mxu0 0.0
    %5973 = vmatpush.msra.mxu0 0.0
    %v5974 = vand.u32 %v5613, 4294901760
    %5975 = vmatpush.msra.mxu0 %v5974
    %v5976 = vand.u32 %v5957, 4294901760
    %v5977 = vsub.f32 %v5957, %v5976
    %v5978 = vand.u32 %v5977, 4294901760
    %v5979 = vsub.f32 %v5977, %v5978
    %v5980 = vand.u32 %v5979, 4294901760
    %5981 = vmatmul.f32.gmra.mxu0 %v5980
    %v5982 = vpop.f32.mrf.mxu0
    %v5983 = vadd.f32 0.0, %v5982
    %5984 = vdwg.mxu0
    %5985 = vmatpush.msra.mxu0 0.0
    %5986 = vmatpush.msra.mxu0 0.0
    %5987 = vmatpush.msra.mxu0 0.0
    %5988 = vmatpush.msra.mxu0 0.0
    %5989 = vmatpush.msra.mxu0 0.0
    %5990 = vmatpush.msra.mxu0 0.0
    %5991 = vmatpush.msra.mxu0 0.0
    %5992 = vmatpush.msra.mxu0 0.0
    %5993 = vmatpush.msra.mxu0 0.0
    %5994 = vmatpush.msra.mxu0 0.0
    %5995 = vmatpush.msra.mxu0 0.0
    %5996 = vmatpush.msra.mxu0 0.0
    %5997 = vmatpush.msra.mxu0 0.0
    %5998 = vmatpush.msra.mxu0 0.0
    %5999 = vmatpush.msra.mxu0 0.0
    %v6000 = vand.u32 %v5613, 4294901760
    %v6001 = vsub.f32 %v5613, %v6000
    %v6002 = vand.u32 %v6001, 4294901760
    %v6003 = vsub.f32 %v6001, %v6002
    %v6004 = vand.u32 %v6003, 4294901760
    %6005 = vmatpush.msra.mxu0 %v6004
    %v6006 = vand.u32 %v5957, 4294901760
    %6007 = vmatmul.f32.gmra.mxu0 %v6006
    %v6008 = vpop.f32.mrf.mxu0
    %v6009 = vadd.f32 %v5983, %v6008
    %6010 = vdwg.mxu0
    %6011 = vmatpush.msra.mxu0 0.0
    %6012 = vmatpush.msra.mxu0 0.0
    %6013 = vmatpush.msra.mxu0 0.0
    %6014 = vmatpush.msra.mxu0 0.0
    %6015 = vmatpush.msra.mxu0 0.0
    %6016 = vmatpush.msra.mxu0 0.0
    %6017 = vmatpush.msra.mxu0 0.0
    %6018 = vmatpush.msra.mxu0 0.0
    %6019 = vmatpush.msra.mxu0 0.0
    %6020 = vmatpush.msra.mxu0 0.0
    %6021 = vmatpush.msra.mxu0 0.0
    %6022 = vmatpush.msra.mxu0 0.0
    %6023 = vmatpush.msra.mxu0 0.0
    %6024 = vmatpush.msra.mxu0 0.0
    %6025 = vmatpush.msra.mxu0 0.0
    %v6026 = vand.u32 %v5613, 4294901760
    %v6027 = vsub.f32 %v5613, %v6026
    %6028 = vmatpush.msra.mxu0 %v6027
    %v6029 = vand.u32 %v5957, 4294901760
    %v6030 = vsub.f32 %v5957, %v6029
    %6031 = vmatmul.f32.gmra.mxu0 %v6030
    %v6032 = vpop.f32.mrf.mxu0
    %v6033 = vadd.f32 %v6009, %v6032
    %6034 = vdwg.mxu0
    %6035 = vmatpush.msra.mxu0 0.0
    %6036 = vmatpush.msra.mxu0 0.0
    %6037 = vmatpush.msra.mxu0 0.0
    %6038 = vmatpush.msra.mxu0 0.0
    %6039 = vmatpush.msra.mxu0 0.0
    %6040 = vmatpush.msra.mxu0 0.0
    %6041 = vmatpush.msra.mxu0 0.0
    %6042 = vmatpush.msra.mxu0 0.0
    %6043 = vmatpush.msra.mxu0 0.0
    %6044 = vmatpush.msra.mxu0 0.0
    %6045 = vmatpush.msra.mxu0 0.0
    %6046 = vmatpush.msra.mxu0 0.0
    %6047 = vmatpush.msra.mxu0 0.0
    %6048 = vmatpush.msra.mxu0 0.0
    %6049 = vmatpush.msra.mxu0 0.0
    %v6050 = vand.u32 %v5613, 4294901760
    %6051 = vmatpush.msra.mxu0 %v6050
    %v6052 = vand.u32 %v5957, 4294901760
    %v6053 = vsub.f32 %v5957, %v6052
    %v6054 = vand.u32 %v6053, 4294901760
    %6055 = vmatmul.f32.gmra.mxu0 %v6054
    %v6056 = vpop.f32.mrf.mxu0
    %v6057 = vadd.f32 %v6033, %v6056
    %6058 = vdwg.mxu0
    %6059 = vmatpush.msra.mxu0 0.0
    %6060 = vmatpush.msra.mxu0 0.0
    %6061 = vmatpush.msra.mxu0 0.0
    %6062 = vmatpush.msra.mxu0 0.0
    %6063 = vmatpush.msra.mxu0 0.0
    %6064 = vmatpush.msra.mxu0 0.0
    %6065 = vmatpush.msra.mxu0 0.0
    %6066 = vmatpush.msra.mxu0 0.0
    %6067 = vmatpush.msra.mxu0 0.0
    %6068 = vmatpush.msra.mxu0 0.0
    %6069 = vmatpush.msra.mxu0 0.0
    %6070 = vmatpush.msra.mxu0 0.0
    %6071 = vmatpush.msra.mxu0 0.0
    %6072 = vmatpush.msra.mxu0 0.0
    %6073 = vmatpush.msra.mxu0 0.0
    %v6074 = vand.u32 %v5613, 4294901760
    %v6075 = vsub.f32 %v5613, %v6074
    %v6076 = vand.u32 %v6075, 4294901760
    %6077 = vmatpush.msra.mxu0 %v6076
    %v6078 = vand.u32 %v5957, 4294901760
    %6079 = vmatmul.f32.gmra.mxu0 %v6078
    %v6080 = vpop.f32.mrf.mxu0
    %v6081 = vadd.f32 %v6057, %v6080
    %6082 = vdwg.mxu0
    %6083 = vmatpush.msra.mxu0 0.0
    %6084 = vmatpush.msra.mxu0 0.0
    %6085 = vmatpush.msra.mxu0 0.0
    %6086 = vmatpush.msra.mxu0 0.0
    %6087 = vmatpush.msra.mxu0 0.0
    %6088 = vmatpush.msra.mxu0 0.0
    %6089 = vmatpush.msra.mxu0 0.0
    %6090 = vmatpush.msra.mxu0 0.0
    %6091 = vmatpush.msra.mxu0 0.0
    %6092 = vmatpush.msra.mxu0 0.0
    %6093 = vmatpush.msra.mxu0 0.0
    %6094 = vmatpush.msra.mxu0 0.0
    %6095 = vmatpush.msra.mxu0 0.0
    %6096 = vmatpush.msra.mxu0 0.0
    %6097 = vmatpush.msra.mxu0 0.0
    %v6098 = vand.u32 %v5613, 4294901760
    %6099 = vmatpush.msra.mxu0 %v6098
    %v6100 = vand.u32 %v5957, 4294901760
    %6101 = vmatmul.f32.gmra.mxu0 %v6100
    %v6102 = vpop.f32.mrf.mxu0
    %v6103 = vadd.f32 %v6081, %v6102
    %6104 = vdwg.mxu0
    %v6105 = vsel %vm800, %v5520, 0
    %6107 = vmatpush.msra.mxu0 0.0
    %6108 = vmatpush.msra.mxu0 0.0
    %6109 = vmatpush.msra.mxu0 0.0
    %6110 = vmatpush.msra.mxu0 0.0
    %6111 = vmatpush.msra.mxu0 0.0
    %6112 = vmatpush.msra.mxu0 0.0
    %6113 = vmatpush.msra.mxu0 0.0
    %6114 = vmatpush.msra.mxu0 0.0
    %6115 = vmatpush.msra.mxu0 0.0
    %6116 = vmatpush.msra.mxu0 0.0
    %6117 = vmatpush.msra.mxu0 0.0
    %6118 = vmatpush.msra.mxu0 0.0
    %6119 = vmatpush.msra.mxu0 0.0
    %6120 = vmatpush.msra.mxu0 0.0
    %6121 = vmatpush.msra.mxu0 0.0
    %v6122 = vand.u32 %v5645, 4294901760
    %6123 = vmatpush.msra.mxu0 %v6122
    %v6124 = vand.u32 %v6105, 4294901760
    %v6125 = vsub.f32 %v6105, %v6124
    %v6126 = vand.u32 %v6125, 4294901760
    %v6127 = vsub.f32 %v6125, %v6126
    %v6128 = vand.u32 %v6127, 4294901760
    %6129 = vmatmul.f32.gmra.mxu0 %v6128
    %v6130 = vpop.f32.mrf.mxu0
    %v6131 = vadd.f32 0.0, %v6130
    %6132 = vdwg.mxu0
    %6133 = vmatpush.msra.mxu0 0.0
    %6134 = vmatpush.msra.mxu0 0.0
    %6135 = vmatpush.msra.mxu0 0.0
    %6136 = vmatpush.msra.mxu0 0.0
    %6137 = vmatpush.msra.mxu0 0.0
    %6138 = vmatpush.msra.mxu0 0.0
    %6139 = vmatpush.msra.mxu0 0.0
    %6140 = vmatpush.msra.mxu0 0.0
    %6141 = vmatpush.msra.mxu0 0.0
    %6142 = vmatpush.msra.mxu0 0.0
    %6143 = vmatpush.msra.mxu0 0.0
    %6144 = vmatpush.msra.mxu0 0.0
    %6145 = vmatpush.msra.mxu0 0.0
    %6146 = vmatpush.msra.mxu0 0.0
    %6147 = vmatpush.msra.mxu0 0.0
    %v6148 = vand.u32 %v5645, 4294901760
    %v6149 = vsub.f32 %v5645, %v6148
    %v6150 = vand.u32 %v6149, 4294901760
    %v6151 = vsub.f32 %v6149, %v6150
    %v6152 = vand.u32 %v6151, 4294901760
    %6153 = vmatpush.msra.mxu0 %v6152
    %v6154 = vand.u32 %v6105, 4294901760
    %6155 = vmatmul.f32.gmra.mxu0 %v6154
    %v6156 = vpop.f32.mrf.mxu0
    %v6157 = vadd.f32 %v6131, %v6156
    %6158 = vdwg.mxu0
    %6159 = vmatpush.msra.mxu0 0.0
    %6160 = vmatpush.msra.mxu0 0.0
    %6161 = vmatpush.msra.mxu0 0.0
    %6162 = vmatpush.msra.mxu0 0.0
    %6163 = vmatpush.msra.mxu0 0.0
    %6164 = vmatpush.msra.mxu0 0.0
    %6165 = vmatpush.msra.mxu0 0.0
    %6166 = vmatpush.msra.mxu0 0.0
    %6167 = vmatpush.msra.mxu0 0.0
    %6168 = vmatpush.msra.mxu0 0.0
    %6169 = vmatpush.msra.mxu0 0.0
    %6170 = vmatpush.msra.mxu0 0.0
    %6171 = vmatpush.msra.mxu0 0.0
    %6172 = vmatpush.msra.mxu0 0.0
    %6173 = vmatpush.msra.mxu0 0.0
    %v6174 = vand.u32 %v5645, 4294901760
    %v6175 = vsub.f32 %v5645, %v6174
    %6176 = vmatpush.msra.mxu0 %v6175
    %v6177 = vand.u32 %v6105, 4294901760
    %v6178 = vsub.f32 %v6105, %v6177
    %6179 = vmatmul.f32.gmra.mxu0 %v6178
    %v6180 = vpop.f32.mrf.mxu0
    %v6181 = vadd.f32 %v6157, %v6180
    %6182 = vdwg.mxu0
    %6183 = vmatpush.msra.mxu0 0.0
    %6184 = vmatpush.msra.mxu0 0.0
    %6185 = vmatpush.msra.mxu0 0.0
    %6186 = vmatpush.msra.mxu0 0.0
    %6187 = vmatpush.msra.mxu0 0.0
    %6188 = vmatpush.msra.mxu0 0.0
    %6189 = vmatpush.msra.mxu0 0.0
    %6190 = vmatpush.msra.mxu0 0.0
    %6191 = vmatpush.msra.mxu0 0.0
    %6192 = vmatpush.msra.mxu0 0.0
    %6193 = vmatpush.msra.mxu0 0.0
    %6194 = vmatpush.msra.mxu0 0.0
    %6195 = vmatpush.msra.mxu0 0.0
    %6196 = vmatpush.msra.mxu0 0.0
    %6197 = vmatpush.msra.mxu0 0.0
    %v6198 = vand.u32 %v5645, 4294901760
    %6199 = vmatpush.msra.mxu0 %v6198
    %v6200 = vand.u32 %v6105, 4294901760
    %v6201 = vsub.f32 %v6105, %v6200
    %v6202 = vand.u32 %v6201, 4294901760
    %6203 = vmatmul.f32.gmra.mxu0 %v6202
    %v6204 = vpop.f32.mrf.mxu0
    %v6205 = vadd.f32 %v6181, %v6204
    %6206 = vdwg.mxu0
    %6207 = vmatpush.msra.mxu0 0.0
    %6208 = vmatpush.msra.mxu0 0.0
    %6209 = vmatpush.msra.mxu0 0.0
    %6210 = vmatpush.msra.mxu0 0.0
    %6211 = vmatpush.msra.mxu0 0.0
    %6212 = vmatpush.msra.mxu0 0.0
    %6213 = vmatpush.msra.mxu0 0.0
    %6214 = vmatpush.msra.mxu0 0.0
    %6215 = vmatpush.msra.mxu0 0.0
    %6216 = vmatpush.msra.mxu0 0.0
    %6217 = vmatpush.msra.mxu0 0.0
    %6218 = vmatpush.msra.mxu0 0.0
    %6219 = vmatpush.msra.mxu0 0.0
    %6220 = vmatpush.msra.mxu0 0.0
    %6221 = vmatpush.msra.mxu0 0.0
    %v6222 = vand.u32 %v5645, 4294901760
    %v6223 = vsub.f32 %v5645, %v6222
    %v6224 = vand.u32 %v6223, 4294901760
    %6225 = vmatpush.msra.mxu0 %v6224
    %v6226 = vand.u32 %v6105, 4294901760
    %6227 = vmatmul.f32.gmra.mxu0 %v6226
    %v6228 = vpop.f32.mrf.mxu0
    %v6229 = vadd.f32 %v6205, %v6228
    %6230 = vdwg.mxu0
    %6231 = vmatpush.msra.mxu0 0.0
    %6232 = vmatpush.msra.mxu0 0.0
    %6233 = vmatpush.msra.mxu0 0.0
    %6234 = vmatpush.msra.mxu0 0.0
    %6235 = vmatpush.msra.mxu0 0.0
    %6236 = vmatpush.msra.mxu0 0.0
    %6237 = vmatpush.msra.mxu0 0.0
    %6238 = vmatpush.msra.mxu0 0.0
    %6239 = vmatpush.msra.mxu0 0.0
    %6240 = vmatpush.msra.mxu0 0.0
    %6241 = vmatpush.msra.mxu0 0.0
    %6242 = vmatpush.msra.mxu0 0.0
    %6243 = vmatpush.msra.mxu0 0.0
    %6244 = vmatpush.msra.mxu0 0.0
    %6245 = vmatpush.msra.mxu0 0.0
    %v6246 = vand.u32 %v5645, 4294901760
    %6247 = vmatpush.msra.mxu0 %v6246
    %v6248 = vand.u32 %v6105, 4294901760
    %6249 = vmatmul.f32.gmra.mxu0 %v6248
    %v6250 = vpop.f32.mrf.mxu0
    %v6251 = vadd.f32 %v6229, %v6250
    %6252 = vdwg.mxu0
    %v6253 = vsel %vm800, %v5807, -inf
    %6254 = vmax.xlane.f32.xlu0 %v6253
    %v6255 = vpop.xlane.xlu0 %6254
    %v6256 = vsel %vm800, %v5955, -inf
    %6257 = vmax.xlane.f32.xlu0 %v6256
    %v6258 = vpop.xlane.xlu0 %6257
    %v6259 = vsel %vm800, %v6103, -inf
    %6260 = vmax.xlane.f32.xlu0 %v6259
    %v6261 = vpop.xlane.xlu0 %6260
    %v6262 = vsel %vm800, %v6251, -inf
    %6263 = vmax.xlane.f32.xlu0 %v6262
    %v6264 = vpop.xlane.xlu0 %6263
    %v6265 = vsub.f32 %v5807, %v6255
    %v6266 = vsub.f32 %v5955, %v6258
    %v6267 = vsub.f32 %v6103, %v6261
    %v6268 = vsub.f32 %v6251, %v6264
    %v6269 = vmul.f32 %v6265, 1.442695
    %v6270 = vpow.pop %v6269
    %v6271 = vmul.f32 %v6266, 1.442695
    %v6272 = vpow.pop %v6271
    %v6273 = vmul.f32 %v6267, 1.442695
    %v6274 = vpow.pop %v6273
    %v6275 = vmul.f32 %v6268, 1.442695
    %v6276 = vpow.pop %v6275
    %v6277 = vsel %vm800, %v6270, 0.0
    %6278 = vadd.xlane.f32.xlu0 %v6277
    %v6279 = vpop.xlane.xlu0 %6278
    %v6280 = vsel %vm800, %v6272, 0.0
    %6281 = vadd.xlane.f32.xlu0 %v6280
    %v6282 = vpop.xlane.xlu0 %6281
    %v6283 = vsel %vm800, %v6274, 0.0
    %6284 = vadd.xlane.f32.xlu0 %v6283
    %v6285 = vpop.xlane.xlu0 %6284
    %v6286 = vsel %vm800, %v6276, 0.0
    %6287 = vadd.xlane.f32.xlu0 %v6286
    %v6288 = vpop.xlane.xlu0 %6287
    %v6289 = vrcp.pop %v6279
    %v6290 = vmul.f32 %v6279, %v6289
    %v6291 = vsub.f32 1.0, %v6290
    %v6292 = vmul.f32 %v6289, %v6291
    %v6293 = vadd.f32 %v6289, %v6292
    %vm6294 = vweird.f32 %v6279
    %vm6295 = vweird.f32 %v6289
    %vm6296 = vmor %vm6294, %vm6295
    %v6297 = vsel %vm6296, %v6289, %v6293
    %v6298 = vand.u32 2147483647, %v6279
    %vm6299 = vcmp.eq.f32.partialorder %v6298, 8.507059e+37
    %v6300 = vand.u32 %v6279, 2147483648
    %v6301 = vor.u32 1.1754944e-38, %v6300
    %v6302 = vsel %vm6299, %v6301, %v6297
    %v6303 = vmul.f32 %v6270, %v6302
    %v6304 = vrcp.pop %v6282
    %v6305 = vmul.f32 %v6282, %v6304
    %v6306 = vsub.f32 1.0, %v6305
    %v6307 = vmul.f32 %v6304, %v6306
    %v6308 = vadd.f32 %v6304, %v6307
    %vm6309 = vweird.f32 %v6282
    %vm6310 = vweird.f32 %v6304
    %vm6311 = vmor %vm6309, %vm6310
    %v6312 = vsel %vm6311, %v6304, %v6308
    %v6313 = vand.u32 2147483647, %v6282
    %vm6314 = vcmp.eq.f32.partialorder %v6313, 8.507059e+37
    %v6315 = vand.u32 %v6282, 2147483648
    %v6316 = vor.u32 1.1754944e-38, %v6315
    %v6317 = vsel %vm6314, %v6316, %v6312
    %v6318 = vmul.f32 %v6272, %v6317
    %v6319 = vrcp.pop %v6285
    %v6320 = vmul.f32 %v6285, %v6319
    %v6321 = vsub.f32 1.0, %v6320
    %v6322 = vmul.f32 %v6319, %v6321
    %v6323 = vadd.f32 %v6319, %v6322
    %vm6324 = vweird.f32 %v6285
    %vm6325 = vweird.f32 %v6319
    %vm6326 = vmor %vm6324, %vm6325
    %v6327 = vsel %vm6326, %v6319, %v6323
    %v6328 = vand.u32 2147483647, %v6285
    %vm6329 = vcmp.eq.f32.partialorder %v6328, 8.507059e+37
    %v6330 = vand.u32 %v6285, 2147483648
    %v6331 = vor.u32 1.1754944e-38, %v6330
    %v6332 = vsel %vm6329, %v6331, %v6327
    %v6333 = vmul.f32 %v6274, %v6332
    %v6334 = vrcp.pop %v6288
    %v6335 = vmul.f32 %v6288, %v6334
    %v6336 = vsub.f32 1.0, %v6335
    %v6337 = vmul.f32 %v6334, %v6336
    %v6338 = vadd.f32 %v6334, %v6337
    %vm6339 = vweird.f32 %v6288
    %vm6340 = vweird.f32 %v6334
    %vm6341 = vmor %vm6339, %vm6340
    %v6342 = vsel %vm6341, %v6334, %v6338
    %v6343 = vand.u32 2147483647, %v6288
    %vm6344 = vcmp.eq.f32.partialorder %v6343, 8.507059e+37
    %v6345 = vand.u32 %v6288, 2147483648
    %v6346 = vor.u32 1.1754944e-38, %v6345
    %v6347 = vsel %vm6344, %v6346, %v6342
    %v6348 = vmul.f32 %v6276, %v6347
    %6349 = vrot.lane.b32.xlu0 %v5508, 64
    %v6350 = vpop.permute.xlu0 %6349
    %6351 = vrot.lane.b32.xlu0 %v5516, 64
    %v6352 = vpop.permute.xlu0 %6351
    %6353 = vrot.lane.b32.xlu0 %v5518, 64
    %v6354 = vpop.permute.xlu0 %6353
    %6355 = vrot.lane.b32.xlu0 %v5520, 64
    %v6356 = vpop.permute.xlu0 %6355
    %6361 = vxpose.xlu0.b32.start [1/16] %v6350, 128
    %6362 = vxpose.xlu0.b32.cont [2/16] 0.0, 128
    %6363 = vxpose.xlu0.b32.cont [3/16] 0.0, 128
    %6364 = vxpose.xlu0.b32.cont [4/16] 0.0, 128
    %6365 = vxpose.xlu0.b32.cont [5/16] 0.0, 128
    %6366 = vxpose.xlu0.b32.cont [6/16] 0.0, 128
    %6367 = vxpose.xlu0.b32.cont [7/16] 0.0, 128
    %6368 = vxpose.xlu0.b32.cont [8/16] 0.0, 128
    %6369 = vxpose.xlu0.b32.cont [9/16] 0.0, 128
    %6370 = vxpose.xlu0.b32.cont [10/16] 0.0, 128
    %6371 = vxpose.xlu0.b32.cont [11/16] 0.0, 128
    %6372 = vxpose.xlu0.b32.cont [12/16] 0.0, 128
    %6373 = vxpose.xlu0.b32.cont [13/16] 0.0, 128
    %6374 = vxpose.xlu0.b32.cont [14/16] 0.0, 128
    %6375 = vxpose.xlu0.b32.cont [15/16] 0.0, 128
    %6376 = vxpose.xlu0.b32.end [16/16] 0.0, 128
    %v6377 = vpop.trf.xlu0
    %v6378 = vpop.trf.xlu0
    %v6379 = vpop.trf.xlu0
    %v6380 = vpop.trf.xlu0
    %v6381 = vpop.trf.xlu0
    %v6382 = vpop.trf.xlu0
    %v6383 = vpop.trf.xlu0
    %v6384 = vpop.trf.xlu0
    %v6385 = vpop.trf.xlu0
    %v6386 = vpop.trf.xlu0
    %v6387 = vpop.trf.xlu0
    %v6388 = vpop.trf.xlu0
    %v6389 = vpop.trf.xlu0
    %v6390 = vpop.trf.xlu0
    %v6391 = vpop.trf.xlu0
    %v6392 = vpop.trf.xlu0
    %6393 = vxpose.xlu0.b32.start [1/16] %v6352, 128
    %6394 = vxpose.xlu0.b32.cont [2/16] 0.0, 128
    %6395 = vxpose.xlu0.b32.cont [3/16] 0.0, 128
    %6396 = vxpose.xlu0.b32.cont [4/16] 0.0, 128
    %6397 = vxpose.xlu0.b32.cont [5/16] 0.0, 128
    %6398 = vxpose.xlu0.b32.cont [6/16] 0.0, 128
    %6399 = vxpose.xlu0.b32.cont [7/16] 0.0, 128
    %6400 = vxpose.xlu0.b32.cont [8/16] 0.0, 128
    %6401 = vxpose.xlu0.b32.cont [9/16] 0.0, 128
    %6402 = vxpose.xlu0.b32.cont [10/16] 0.0, 128
    %6403 = vxpose.xlu0.b32.cont [11/16] 0.0, 128
    %6404 = vxpose.xlu0.b32.cont [12/16] 0.0, 128
    %6405 = vxpose.xlu0.b32.cont [13/16] 0.0, 128
    %6406 = vxpose.xlu0.b32.cont [14/16] 0.0, 128
    %6407 = vxpose.xlu0.b32.cont [15/16] 0.0, 128
    %6408 = vxpose.xlu0.b32.end [16/16] 0.0, 128
    %v6409 = vpop.trf.xlu0
    %v6410 = vpop.trf.xlu0
    %v6411 = vpop.trf.xlu0
    %v6412 = vpop.trf.xlu0
    %v6413 = vpop.trf.xlu0
    %v6414 = vpop.trf.xlu0
    %v6415 = vpop.trf.xlu0
    %v6416 = vpop.trf.xlu0
    %v6417 = vpop.trf.xlu0
    %v6418 = vpop.trf.xlu0
    %v6419 = vpop.trf.xlu0
    %v6420 = vpop.trf.xlu0
    %v6421 = vpop.trf.xlu0
    %v6422 = vpop.trf.xlu0
    %v6423 = vpop.trf.xlu0
    %v6424 = vpop.trf.xlu0
    %6425 = vxpose.xlu0.b32.start [1/16] %v6354, 128
    %6426 = vxpose.xlu0.b32.cont [2/16] 0.0, 128
    %6427 = vxpose.xlu0.b32.cont [3/16] 0.0, 128
    %6428 = vxpose.xlu0.b32.cont [4/16] 0.0, 128
    %6429 = vxpose.xlu0.b32.cont [5/16] 0.0, 128
    %6430 = vxpose.xlu0.b32.cont [6/16] 0.0, 128
    %6431 = vxpose.xlu0.b32.cont [7/16] 0.0, 128
    %6432 = vxpose.xlu0.b32.cont [8/16] 0.0, 128
    %6433 = vxpose.xlu0.b32.cont [9/16] 0.0, 128
    %6434 = vxpose.xlu0.b32.cont [10/16] 0.0, 128
    %6435 = vxpose.xlu0.b32.cont [11/16] 0.0, 128
    %6436 = vxpose.xlu0.b32.cont [12/16] 0.0, 128
    %6437 = vxpose.xlu0.b32.cont [13/16] 0.0, 128
    %6438 = vxpose.xlu0.b32.cont [14/16] 0.0, 128
    %6439 = vxpose.xlu0.b32.cont [15/16] 0.0, 128
    %6440 = vxpose.xlu0.b32.end [16/16] 0.0, 128
    %v6441 = vpop.trf.xlu0
    %v6442 = vpop.trf.xlu0
    %v6443 = vpop.trf.xlu0
    %v6444 = vpop.trf.xlu0
    %v6445 = vpop.trf.xlu0
    %v6446 = vpop.trf.xlu0
    %v6447 = vpop.trf.xlu0
    %v6448 = vpop.trf.xlu0
    %v6449 = vpop.trf.xlu0
    %v6450 = vpop.trf.xlu0
    %v6451 = vpop.trf.xlu0
    %v6452 = vpop.trf.xlu0
    %v6453 = vpop.trf.xlu0
    %v6454 = vpop.trf.xlu0
    %v6455 = vpop.trf.xlu0
    %v6456 = vpop.trf.xlu0
    %6457 = vxpose.xlu0.b32.start [1/16] %v6356, 128
    %6458 = vxpose.xlu0.b32.cont [2/16] 0.0, 128
    %6459 = vxpose.xlu0.b32.cont [3/16] 0.0, 128
    %6460 = vxpose.xlu0.b32.cont [4/16] 0.0, 128
    %6461 = vxpose.xlu0.b32.cont [5/16] 0.0, 128
    %6462 = vxpose.xlu0.b32.cont [6/16] 0.0, 128
    %6463 = vxpose.xlu0.b32.cont [7/16] 0.0, 128
    %6464 = vxpose.xlu0.b32.cont [8/16] 0.0, 128
    %6465 = vxpose.xlu0.b32.cont [9/16] 0.0, 128
    %6466 = vxpose.xlu0.b32.cont [10/16] 0.0, 128
    %6467 = vxpose.xlu0.b32.cont [11/16] 0.0, 128
    %6468 = vxpose.xlu0.b32.cont [12/16] 0.0, 128
    %6469 = vxpose.xlu0.b32.cont [13/16] 0.0, 128
    %6470 = vxpose.xlu0.b32.cont [14/16] 0.0, 128
    %6471 = vxpose.xlu0.b32.cont [15/16] 0.0, 128
    %6472 = vxpose.xlu0.b32.end [16/16] 0.0, 128
    %v6473 = vpop.trf.xlu0
    %v6474 = vpop.trf.xlu0
    %v6475 = vpop.trf.xlu0
    %v6476 = vpop.trf.xlu0
    %v6477 = vpop.trf.xlu0
    %v6478 = vpop.trf.xlu0
    %v6479 = vpop.trf.xlu0
    %v6480 = vpop.trf.xlu0
    %v6481 = vpop.trf.xlu0
    %v6482 = vpop.trf.xlu0
    %v6483 = vpop.trf.xlu0
    %v6484 = vpop.trf.xlu0
    %v6485 = vpop.trf.xlu0
    %v6486 = vpop.trf.xlu0
    %v6487 = vpop.trf.xlu0
    %v6488 = vpop.trf.xlu0
    %v6490 = vsel %vm800, %v6377, 0
    %v6493 = vsel %vm800, %v6303, 0
    %6495 = vmatpush.xpose.msra.mxu0 0.0
    %6496 = vmatpush.xpose.msra.mxu0 0.0
    %6497 = vmatpush.xpose.msra.mxu0 0.0
    %6498 = vmatpush.xpose.msra.mxu0 0.0
    %6499 = vmatpush.xpose.msra.mxu0 0.0
    %6500 = vmatpush.xpose.msra.mxu0 0.0
    %6501 = vmatpush.xpose.msra.mxu0 0.0
    %6502 = vmatpush.xpose.msra.mxu0 0.0
    %6503 = vmatpush.xpose.msra.mxu0 0.0
    %6504 = vmatpush.xpose.msra.mxu0 0.0
    %6505 = vmatpush.xpose.msra.mxu0 0.0
    %6506 = vmatpush.xpose.msra.mxu0 0.0
    %6507 = vmatpush.xpose.msra.mxu0 0.0
    %6508 = vmatpush.xpose.msra.mxu0 0.0
    %6509 = vmatpush.xpose.msra.mxu0 0.0
    %v6510 = vand.u32 %v6493, 4294901760
    %6511 = vmatpush.xpose.msra.mxu0 %v6510
    %v6512 = vand.u32 %v6490, 4294901760
    %v6513 = vsub.f32 %v6490, %v6512
    %v6514 = vand.u32 %v6513, 4294901760
    %v6515 = vsub.f32 %v6513, %v6514
    %v6516 = vand.u32 %v6515, 4294901760
    %6517 = vmatmul.f32.gmra.mxu0 %v6516
    %v6518 = vpop.f32.mrf.mxu0
    %v6519 = vadd.f32 0.0, %v6518
    %6520 = vdwg.mxu0
    %6521 = vmatpush.xpose.msra.mxu0 0.0
    %6522 = vmatpush.xpose.msra.mxu0 0.0
    %6523 = vmatpush.xpose.msra.mxu0 0.0
    %6524 = vmatpush.xpose.msra.mxu0 0.0
    %6525 = vmatpush.xpose.msra.mxu0 0.0
    %6526 = vmatpush.xpose.msra.mxu0 0.0
    %6527 = vmatpush.xpose.msra.mxu0 0.0
    %6528 = vmatpush.xpose.msra.mxu0 0.0
    %6529 = vmatpush.xpose.msra.mxu0 0.0
    %6530 = vmatpush.xpose.msra.mxu0 0.0
    %6531 = vmatpush.xpose.msra.mxu0 0.0
    %6532 = vmatpush.xpose.msra.mxu0 0.0
    %6533 = vmatpush.xpose.msra.mxu0 0.0
    %6534 = vmatpush.xpose.msra.mxu0 0.0
    %6535 = vmatpush.xpose.msra.mxu0 0.0
    %v6536 = vand.u32 %v6493, 4294901760
    %v6537 = vsub.f32 %v6493, %v6536
    %v6538 = vand.u32 %v6537, 4294901760
    %v6539 = vsub.f32 %v6537, %v6538
    %v6540 = vand.u32 %v6539, 4294901760
    %6541 = vmatpush.xpose.msra.mxu0 %v6540
    %v6542 = vand.u32 %v6490, 4294901760
    %6543 = vmatmul.f32.gmra.mxu0 %v6542
    %v6544 = vpop.f32.mrf.mxu0
    %v6545 = vadd.f32 %v6519, %v6544
    %6546 = vdwg.mxu0
    %6547 = vmatpush.xpose.msra.mxu0 0.0
    %6548 = vmatpush.xpose.msra.mxu0 0.0
    %6549 = vmatpush.xpose.msra.mxu0 0.0
    %6550 = vmatpush.xpose.msra.mxu0 0.0
    %6551 = vmatpush.xpose.msra.mxu0 0.0
    %6552 = vmatpush.xpose.msra.mxu0 0.0
    %6553 = vmatpush.xpose.msra.mxu0 0.0
    %6554 = vmatpush.xpose.msra.mxu0 0.0
    %6555 = vmatpush.xpose.msra.mxu0 0.0
    %6556 = vmatpush.xpose.msra.mxu0 0.0
    %6557 = vmatpush.xpose.msra.mxu0 0.0
    %6558 = vmatpush.xpose.msra.mxu0 0.0
    %6559 = vmatpush.xpose.msra.mxu0 0.0
    %6560 = vmatpush.xpose.msra.mxu0 0.0
    %6561 = vmatpush.xpose.msra.mxu0 0.0
    %v6562 = vand.u32 %v6493, 4294901760
    %v6563 = vsub.f32 %v6493, %v6562
    %6564 = vmatpush.xpose.msra.mxu0 %v6563
    %v6565 = vand.u32 %v6490, 4294901760
    %v6566 = vsub.f32 %v6490, %v6565
    %6567 = vmatmul.f32.gmra.mxu0 %v6566
    %v6568 = vpop.f32.mrf.mxu0
    %v6569 = vadd.f32 %v6545, %v6568
    %6570 = vdwg.mxu0
    %6571 = vmatpush.xpose.msra.mxu0 0.0
    %6572 = vmatpush.xpose.msra.mxu0 0.0
    %6573 = vmatpush.xpose.msra.mxu0 0.0
    %6574 = vmatpush.xpose.msra.mxu0 0.0
    %6575 = vmatpush.xpose.msra.mxu0 0.0
    %6576 = vmatpush.xpose.msra.mxu0 0.0
    %6577 = vmatpush.xpose.msra.mxu0 0.0
    %6578 = vmatpush.xpose.msra.mxu0 0.0
    %6579 = vmatpush.xpose.msra.mxu0 0.0
    %6580 = vmatpush.xpose.msra.mxu0 0.0
    %6581 = vmatpush.xpose.msra.mxu0 0.0
    %6582 = vmatpush.xpose.msra.mxu0 0.0
    %6583 = vmatpush.xpose.msra.mxu0 0.0
    %6584 = vmatpush.xpose.msra.mxu0 0.0
    %6585 = vmatpush.xpose.msra.mxu0 0.0
    %v6586 = vand.u32 %v6493, 4294901760
    %6587 = vmatpush.xpose.msra.mxu0 %v6586
    %v6588 = vand.u32 %v6490, 4294901760
    %v6589 = vsub.f32 %v6490, %v6588
    %v6590 = vand.u32 %v6589, 4294901760
    %6591 = vmatmul.f32.gmra.mxu0 %v6590
    %v6592 = vpop.f32.mrf.mxu0
    %v6593 = vadd.f32 %v6569, %v6592
    %6594 = vdwg.mxu0
    %6595 = vmatpush.xpose.msra.mxu0 0.0
    %6596 = vmatpush.xpose.msra.mxu0 0.0
    %6597 = vmatpush.xpose.msra.mxu0 0.0
    %6598 = vmatpush.xpose.msra.mxu0 0.0
    %6599 = vmatpush.xpose.msra.mxu0 0.0
    %6600 = vmatpush.xpose.msra.mxu0 0.0
    %6601 = vmatpush.xpose.msra.mxu0 0.0
    %6602 = vmatpush.xpose.msra.mxu0 0.0
    %6603 = vmatpush.xpose.msra.mxu0 0.0
    %6604 = vmatpush.xpose.msra.mxu0 0.0
    %6605 = vmatpush.xpose.msra.mxu0 0.0
    %6606 = vmatpush.xpose.msra.mxu0 0.0
    %6607 = vmatpush.xpose.msra.mxu0 0.0
    %6608 = vmatpush.xpose.msra.mxu0 0.0
    %6609 = vmatpush.xpose.msra.mxu0 0.0
    %v6610 = vand.u32 %v6493, 4294901760
    %v6611 = vsub.f32 %v6493, %v6610
    %v6612 = vand.u32 %v6611, 4294901760
    %6613 = vmatpush.xpose.msra.mxu0 %v6612
    %v6614 = vand.u32 %v6490, 4294901760
    %6615 = vmatmul.f32.gmra.mxu0 %v6614
    %v6616 = vpop.f32.mrf.mxu0
    %v6617 = vadd.f32 %v6593, %v6616
    %6618 = vdwg.mxu0
    %6619 = vmatpush.xpose.msra.mxu0 0.0
    %6620 = vmatpush.xpose.msra.mxu0 0.0
    %6621 = vmatpush.xpose.msra.mxu0 0.0
    %6622 = vmatpush.xpose.msra.mxu0 0.0
    %6623 = vmatpush.xpose.msra.mxu0 0.0
    %6624 = vmatpush.xpose.msra.mxu0 0.0
    %6625 = vmatpush.xpose.msra.mxu0 0.0
    %6626 = vmatpush.xpose.msra.mxu0 0.0
    %6627 = vmatpush.xpose.msra.mxu0 0.0
    %6628 = vmatpush.xpose.msra.mxu0 0.0
    %6629 = vmatpush.xpose.msra.mxu0 0.0
    %6630 = vmatpush.xpose.msra.mxu0 0.0
    %6631 = vmatpush.xpose.msra.mxu0 0.0
    %6632 = vmatpush.xpose.msra.mxu0 0.0
    %6633 = vmatpush.xpose.msra.mxu0 0.0
    %v6634 = vand.u32 %v6493, 4294901760
    %6635 = vmatpush.xpose.msra.mxu0 %v6634
    %v6636 = vand.u32 %v6490, 4294901760
    %6637 = vmatmul.f32.gmra.mxu0 %v6636
    %v6638 = vpop.f32.mrf.mxu0
    %v6639 = vadd.f32 %v6617, %v6638
    %6640 = vdwg.mxu0
    %v6642 = vsel %vm800, %v6409, 0
    %v6645 = vsel %vm800, %v6318, 0
    %6647 = vmatpush.xpose.msra.mxu0 0.0
    %6648 = vmatpush.xpose.msra.mxu0 0.0
    %6649 = vmatpush.xpose.msra.mxu0 0.0
    %6650 = vmatpush.xpose.msra.mxu0 0.0
    %6651 = vmatpush.xpose.msra.mxu0 0.0
    %6652 = vmatpush.xpose.msra.mxu0 0.0
    %6653 = vmatpush.xpose.msra.mxu0 0.0
    %6654 = vmatpush.xpose.msra.mxu0 0.0
    %6655 = vmatpush.xpose.msra.mxu0 0.0
    %6656 = vmatpush.xpose.msra.mxu0 0.0
    %6657 = vmatpush.xpose.msra.mxu0 0.0
    %6658 = vmatpush.xpose.msra.mxu0 0.0
    %6659 = vmatpush.xpose.msra.mxu0 0.0
    %6660 = vmatpush.xpose.msra.mxu0 0.0
    %6661 = vmatpush.xpose.msra.mxu0 0.0
    %v6662 = vand.u32 %v6645, 4294901760
    %6663 = vmatpush.xpose.msra.mxu0 %v6662
    %v6664 = vand.u32 %v6642, 4294901760
    %v6665 = vsub.f32 %v6642, %v6664
    %v6666 = vand.u32 %v6665, 4294901760
    %v6667 = vsub.f32 %v6665, %v6666
    %v6668 = vand.u32 %v6667, 4294901760
    %6669 = vmatmul.f32.gmra.mxu0 %v6668
    %v6670 = vpop.f32.mrf.mxu0
    %v6671 = vadd.f32 0.0, %v6670
    %6672 = vdwg.mxu0
    %6673 = vmatpush.xpose.msra.mxu0 0.0
    %6674 = vmatpush.xpose.msra.mxu0 0.0
    %6675 = vmatpush.xpose.msra.mxu0 0.0
    %6676 = vmatpush.xpose.msra.mxu0 0.0
    %6677 = vmatpush.xpose.msra.mxu0 0.0
    %6678 = vmatpush.xpose.msra.mxu0 0.0
    %6679 = vmatpush.xpose.msra.mxu0 0.0
    %6680 = vmatpush.xpose.msra.mxu0 0.0
    %6681 = vmatpush.xpose.msra.mxu0 0.0
    %6682 = vmatpush.xpose.msra.mxu0 0.0
    %6683 = vmatpush.xpose.msra.mxu0 0.0
    %6684 = vmatpush.xpose.msra.mxu0 0.0
    %6685 = vmatpush.xpose.msra.mxu0 0.0
    %6686 = vmatpush.xpose.msra.mxu0 0.0
    %6687 = vmatpush.xpose.msra.mxu0 0.0
    %v6688 = vand.u32 %v6645, 4294901760
    %v6689 = vsub.f32 %v6645, %v6688
    %v6690 = vand.u32 %v6689, 4294901760
    %v6691 = vsub.f32 %v6689, %v6690
    %v6692 = vand.u32 %v6691, 4294901760
    %6693 = vmatpush.xpose.msra.mxu0 %v6692
    %v6694 = vand.u32 %v6642, 4294901760
    %6695 = vmatmul.f32.gmra.mxu0 %v6694
    %v6696 = vpop.f32.mrf.mxu0
    %v6697 = vadd.f32 %v6671, %v6696
    %6698 = vdwg.mxu0
    %6699 = vmatpush.xpose.msra.mxu0 0.0
    %6700 = vmatpush.xpose.msra.mxu0 0.0
    %6701 = vmatpush.xpose.msra.mxu0 0.0
    %6702 = vmatpush.xpose.msra.mxu0 0.0
    %6703 = vmatpush.xpose.msra.mxu0 0.0
    %6704 = vmatpush.xpose.msra.mxu0 0.0
    %6705 = vmatpush.xpose.msra.mxu0 0.0
    %6706 = vmatpush.xpose.msra.mxu0 0.0
    %6707 = vmatpush.xpose.msra.mxu0 0.0
    %6708 = vmatpush.xpose.msra.mxu0 0.0
    %6709 = vmatpush.xpose.msra.mxu0 0.0
    %6710 = vmatpush.xpose.msra.mxu0 0.0
    %6711 = vmatpush.xpose.msra.mxu0 0.0
    %6712 = vmatpush.xpose.msra.mxu0 0.0
    %6713 = vmatpush.xpose.msra.mxu0 0.0
    %v6714 = vand.u32 %v6645, 4294901760
    %v6715 = vsub.f32 %v6645, %v6714
    %6716 = vmatpush.xpose.msra.mxu0 %v6715
    %v6717 = vand.u32 %v6642, 4294901760
    %v6718 = vsub.f32 %v6642, %v6717
    %6719 = vmatmul.f32.gmra.mxu0 %v6718
    %v6720 = vpop.f32.mrf.mxu0
    %v6721 = vadd.f32 %v6697, %v6720
    %6722 = vdwg.mxu0
    %6723 = vmatpush.xpose.msra.mxu0 0.0
    %6724 = vmatpush.xpose.msra.mxu0 0.0
    %6725 = vmatpush.xpose.msra.mxu0 0.0
    %6726 = vmatpush.xpose.msra.mxu0 0.0
    %6727 = vmatpush.xpose.msra.mxu0 0.0
    %6728 = vmatpush.xpose.msra.mxu0 0.0
    %6729 = vmatpush.xpose.msra.mxu0 0.0
    %6730 = vmatpush.xpose.msra.mxu0 0.0
    %6731 = vmatpush.xpose.msra.mxu0 0.0
    %6732 = vmatpush.xpose.msra.mxu0 0.0
    %6733 = vmatpush.xpose.msra.mxu0 0.0
    %6734 = vmatpush.xpose.msra.mxu0 0.0
    %6735 = vmatpush.xpose.msra.mxu0 0.0
    %6736 = vmatpush.xpose.msra.mxu0 0.0
    %6737 = vmatpush.xpose.msra.mxu0 0.0
    %v6738 = vand.u32 %v6645, 4294901760
    %6739 = vmatpush.xpose.msra.mxu0 %v6738
    %v6740 = vand.u32 %v6642, 4294901760
    %v6741 = vsub.f32 %v6642, %v6740
    %v6742 = vand.u32 %v6741, 4294901760
    %6743 = vmatmul.f32.gmra.mxu0 %v6742
    %v6744 = vpop.f32.mrf.mxu0
    %v6745 = vadd.f32 %v6721, %v6744
    %6746 = vdwg.mxu0
    %6747 = vmatpush.xpose.msra.mxu0 0.0
    %6748 = vmatpush.xpose.msra.mxu0 0.0
    %6749 = vmatpush.xpose.msra.mxu0 0.0
    %6750 = vmatpush.xpose.msra.mxu0 0.0
    %6751 = vmatpush.xpose.msra.mxu0 0.0
    %6752 = vmatpush.xpose.msra.mxu0 0.0
    %6753 = vmatpush.xpose.msra.mxu0 0.0
    %6754 = vmatpush.xpose.msra.mxu0 0.0
    %6755 = vmatpush.xpose.msra.mxu0 0.0
    %6756 = vmatpush.xpose.msra.mxu0 0.0
    %6757 = vmatpush.xpose.msra.mxu0 0.0
    %6758 = vmatpush.xpose.msra.mxu0 0.0
    %6759 = vmatpush.xpose.msra.mxu0 0.0
    %6760 = vmatpush.xpose.msra.mxu0 0.0
    %6761 = vmatpush.xpose.msra.mxu0 0.0
    %v6762 = vand.u32 %v6645, 4294901760
    %v6763 = vsub.f32 %v6645, %v6762
    %v6764 = vand.u32 %v6763, 4294901760
    %6765 = vmatpush.xpose.msra.mxu0 %v6764
    %v6766 = vand.u32 %v6642, 4294901760
    %6767 = vmatmul.f32.gmra.mxu0 %v6766
    %v6768 = vpop.f32.mrf.mxu0
    %v6769 = vadd.f32 %v6745, %v6768
    %6770 = vdwg.mxu0
    %6771 = vmatpush.xpose.msra.mxu0 0.0
    %6772 = vmatpush.xpose.msra.mxu0 0.0
    %6773 = vmatpush.xpose.msra.mxu0 0.0
    %6774 = vmatpush.xpose.msra.mxu0 0.0
    %6775 = vmatpush.xpose.msra.mxu0 0.0
    %6776 = vmatpush.xpose.msra.mxu0 0.0
    %6777 = vmatpush.xpose.msra.mxu0 0.0
    %6778 = vmatpush.xpose.msra.mxu0 0.0
    %6779 = vmatpush.xpose.msra.mxu0 0.0
    %6780 = vmatpush.xpose.msra.mxu0 0.0
    %6781 = vmatpush.xpose.msra.mxu0 0.0
    %6782 = vmatpush.xpose.msra.mxu0 0.0
    %6783 = vmatpush.xpose.msra.mxu0 0.0
    %6784 = vmatpush.xpose.msra.mxu0 0.0
    %6785 = vmatpush.xpose.msra.mxu0 0.0
    %v6786 = vand.u32 %v6645, 4294901760
    %6787 = vmatpush.xpose.msra.mxu0 %v6786
    %v6788 = vand.u32 %v6642, 4294901760
    %6789 = vmatmul.f32.gmra.mxu0 %v6788
    %v6790 = vpop.f32.mrf.mxu0
    %v6791 = vadd.f32 %v6769, %v6790
    %6792 = vdwg.mxu0
    %v6794 = vsel %vm800, %v6441, 0
    %v6797 = vsel %vm800, %v6333, 0
    %6799 = vmatpush.xpose.msra.mxu0 0.0
    %6800 = vmatpush.xpose.msra.mxu0 0.0
    %6801 = vmatpush.xpose.msra.mxu0 0.0
    %6802 = vmatpush.xpose.msra.mxu0 0.0
    %6803 = vmatpush.xpose.msra.mxu0 0.0
    %6804 = vmatpush.xpose.msra.mxu0 0.0
    %6805 = vmatpush.xpose.msra.mxu0 0.0
    %6806 = vmatpush.xpose.msra.mxu0 0.0
    %6807 = vmatpush.xpose.msra.mxu0 0.0
    %6808 = vmatpush.xpose.msra.mxu0 0.0
    %6809 = vmatpush.xpose.msra.mxu0 0.0
    %6810 = vmatpush.xpose.msra.mxu0 0.0
    %6811 = vmatpush.xpose.msra.mxu0 0.0
    %6812 = vmatpush.xpose.msra.mxu0 0.0
    %6813 = vmatpush.xpose.msra.mxu0 0.0
    %v6814 = vand.u32 %v6797, 4294901760
    %6815 = vmatpush.xpose.msra.mxu0 %v6814
    %v6816 = vand.u32 %v6794, 4294901760
    %v6817 = vsub.f32 %v6794, %v6816
    %v6818 = vand.u32 %v6817, 4294901760
    %v6819 = vsub.f32 %v6817, %v6818
    %v6820 = vand.u32 %v6819, 4294901760
    %6821 = vmatmul.f32.gmra.mxu0 %v6820
    %v6822 = vpop.f32.mrf.mxu0
    %v6823 = vadd.f32 0.0, %v6822
    %6824 = vdwg.mxu0
    %6825 = vmatpush.xpose.msra.mxu0 0.0
    %6826 = vmatpush.xpose.msra.mxu0 0.0
    %6827 = vmatpush.xpose.msra.mxu0 0.0
    %6828 = vmatpush.xpose.msra.mxu0 0.0
    %6829 = vmatpush.xpose.msra.mxu0 0.0
    %6830 = vmatpush.xpose.msra.mxu0 0.0
    %6831 = vmatpush.xpose.msra.mxu0 0.0
    %6832 = vmatpush.xpose.msra.mxu0 0.0
    %6833 = vmatpush.xpose.msra.mxu0 0.0
    %6834 = vmatpush.xpose.msra.mxu0 0.0
    %6835 = vmatpush.xpose.msra.mxu0 0.0
    %6836 = vmatpush.xpose.msra.mxu0 0.0
    %6837 = vmatpush.xpose.msra.mxu0 0.0
    %6838 = vmatpush.xpose.msra.mxu0 0.0
    %6839 = vmatpush.xpose.msra.mxu0 0.0
    %v6840 = vand.u32 %v6797, 4294901760
    %v6841 = vsub.f32 %v6797, %v6840
    %v6842 = vand.u32 %v6841, 4294901760
    %v6843 = vsub.f32 %v6841, %v6842
    %v6844 = vand.u32 %v6843, 4294901760
    %6845 = vmatpush.xpose.msra.mxu0 %v6844
    %v6846 = vand.u32 %v6794, 4294901760
    %6847 = vmatmul.f32.gmra.mxu0 %v6846
    %v6848 = vpop.f32.mrf.mxu0
    %v6849 = vadd.f32 %v6823, %v6848
    %6850 = vdwg.mxu0
    %6851 = vmatpush.xpose.msra.mxu0 0.0
    %6852 = vmatpush.xpose.msra.mxu0 0.0
    %6853 = vmatpush.xpose.msra.mxu0 0.0
    %6854 = vmatpush.xpose.msra.mxu0 0.0
    %6855 = vmatpush.xpose.msra.mxu0 0.0
    %6856 = vmatpush.xpose.msra.mxu0 0.0
    %6857 = vmatpush.xpose.msra.mxu0 0.0
    %6858 = vmatpush.xpose.msra.mxu0 0.0
    %6859 = vmatpush.xpose.msra.mxu0 0.0
    %6860 = vmatpush.xpose.msra.mxu0 0.0
    %6861 = vmatpush.xpose.msra.mxu0 0.0
    %6862 = vmatpush.xpose.msra.mxu0 0.0
    %6863 = vmatpush.xpose.msra.mxu0 0.0
    %6864 = vmatpush.xpose.msra.mxu0 0.0
    %6865 = vmatpush.xpose.msra.mxu0 0.0
    %v6866 = vand.u32 %v6797, 4294901760
    %v6867 = vsub.f32 %v6797, %v6866
    %6868 = vmatpush.xpose.msra.mxu0 %v6867
    %v6869 = vand.u32 %v6794, 4294901760
    %v6870 = vsub.f32 %v6794, %v6869
    %6871 = vmatmul.f32.gmra.mxu0 %v6870
    %v6872 = vpop.f32.mrf.mxu0
    %v6873 = vadd.f32 %v6849, %v6872
    %6874 = vdwg.mxu0
    %6875 = vmatpush.xpose.msra.mxu0 0.0
    %6876 = vmatpush.xpose.msra.mxu0 0.0
    %6877 = vmatpush.xpose.msra.mxu0 0.0
    %6878 = vmatpush.xpose.msra.mxu0 0.0
    %6879 = vmatpush.xpose.msra.mxu0 0.0
    %6880 = vmatpush.xpose.msra.mxu0 0.0
    %6881 = vmatpush.xpose.msra.mxu0 0.0
    %6882 = vmatpush.xpose.msra.mxu0 0.0
    %6883 = vmatpush.xpose.msra.mxu0 0.0
    %6884 = vmatpush.xpose.msra.mxu0 0.0
    %6885 = vmatpush.xpose.msra.mxu0 0.0
    %6886 = vmatpush.xpose.msra.mxu0 0.0
    %6887 = vmatpush.xpose.msra.mxu0 0.0
    %6888 = vmatpush.xpose.msra.mxu0 0.0
    %6889 = vmatpush.xpose.msra.mxu0 0.0
    %v6890 = vand.u32 %v6797, 4294901760
    %6891 = vmatpush.xpose.msra.mxu0 %v6890
    %v6892 = vand.u32 %v6794, 4294901760
    %v6893 = vsub.f32 %v6794, %v6892
    %v6894 = vand.u32 %v6893, 4294901760
    %6895 = vmatmul.f32.gmra.mxu0 %v6894
    %v6896 = vpop.f32.mrf.mxu0
    %v6897 = vadd.f32 %v6873, %v6896
    %6898 = vdwg.mxu0
    %6899 = vmatpush.xpose.msra.mxu0 0.0
    %6900 = vmatpush.xpose.msra.mxu0 0.0
    %6901 = vmatpush.xpose.msra.mxu0 0.0
    %6902 = vmatpush.xpose.msra.mxu0 0.0
    %6903 = vmatpush.xpose.msra.mxu0 0.0
    %6904 = vmatpush.xpose.msra.mxu0 0.0
    %6905 = vmatpush.xpose.msra.mxu0 0.0
    %6906 = vmatpush.xpose.msra.mxu0 0.0
    %6907 = vmatpush.xpose.msra.mxu0 0.0
    %6908 = vmatpush.xpose.msra.mxu0 0.0
    %6909 = vmatpush.xpose.msra.mxu0 0.0
    %6910 = vmatpush.xpose.msra.mxu0 0.0
    %6911 = vmatpush.xpose.msra.mxu0 0.0
    %6912 = vmatpush.xpose.msra.mxu0 0.0
    %6913 = vmatpush.xpose.msra.mxu0 0.0
    %v6914 = vand.u32 %v6797, 4294901760
    %v6915 = vsub.f32 %v6797, %v6914
    %v6916 = vand.u32 %v6915, 4294901760
    %6917 = vmatpush.xpose.msra.mxu0 %v6916
    %v6918 = vand.u32 %v6794, 4294901760
    %6919 = vmatmul.f32.gmra.mxu0 %v6918
    %v6920 = vpop.f32.mrf.mxu0
    %v6921 = vadd.f32 %v6897, %v6920
    %6922 = vdwg.mxu0
    %6923 = vmatpush.xpose.msra.mxu0 0.0
    %6924 = vmatpush.xpose.msra.mxu0 0.0
    %6925 = vmatpush.xpose.msra.mxu0 0.0
    %6926 = vmatpush.xpose.msra.mxu0 0.0
    %6927 = vmatpush.xpose.msra.mxu0 0.0
    %6928 = vmatpush.xpose.msra.mxu0 0.0
    %6929 = vmatpush.xpose.msra.mxu0 0.0
    %6930 = vmatpush.xpose.msra.mxu0 0.0
    %6931 = vmatpush.xpose.msra.mxu0 0.0
    %6932 = vmatpush.xpose.msra.mxu0 0.0
    %6933 = vmatpush.xpose.msra.mxu0 0.0
    %6934 = vmatpush.xpose.msra.mxu0 0.0
    %6935 = vmatpush.xpose.msra.mxu0 0.0
    %6936 = vmatpush.xpose.msra.mxu0 0.0
    %6937 = vmatpush.xpose.msra.mxu0 0.0
    %v6938 = vand.u32 %v6797, 4294901760
    %6939 = vmatpush.xpose.msra.mxu0 %v6938
    %v6940 = vand.u32 %v6794, 4294901760
    %6941 = vmatmul.f32.gmra.mxu0 %v6940
    %v6942 = vpop.f32.mrf.mxu0
    %v6943 = vadd.f32 %v6921, %v6942
    %6944 = vdwg.mxu0
    %v6946 = vsel %vm800, %v6473, 0
    %v6949 = vsel %vm800, %v6348, 0
    %6951 = vmatpush.xpose.msra.mxu0 0.0
    %6952 = vmatpush.xpose.msra.mxu0 0.0
    %6953 = vmatpush.xpose.msra.mxu0 0.0
    %6954 = vmatpush.xpose.msra.mxu0 0.0
    %6955 = vmatpush.xpose.msra.mxu0 0.0
    %6956 = vmatpush.xpose.msra.mxu0 0.0
    %6957 = vmatpush.xpose.msra.mxu0 0.0
    %6958 = vmatpush.xpose.msra.mxu0 0.0
    %6959 = vmatpush.xpose.msra.mxu0 0.0
    %6960 = vmatpush.xpose.msra.mxu0 0.0
    %6961 = vmatpush.xpose.msra.mxu0 0.0
    %6962 = vmatpush.xpose.msra.mxu0 0.0
    %6963 = vmatpush.xpose.msra.mxu0 0.0
    %6964 = vmatpush.xpose.msra.mxu0 0.0
    %6965 = vmatpush.xpose.msra.mxu0 0.0
    %v6966 = vand.u32 %v6949, 4294901760
    %6967 = vmatpush.xpose.msra.mxu0 %v6966
    %v6968 = vand.u32 %v6946, 4294901760
    %v6969 = vsub.f32 %v6946, %v6968
    %v6970 = vand.u32 %v6969, 4294901760
    %v6971 = vsub.f32 %v6969, %v6970
    %v6972 = vand.u32 %v6971, 4294901760
    %6973 = vmatmul.f32.gmra.mxu0 %v6972
    %v6974 = vpop.f32.mrf.mxu0
    %v6975 = vadd.f32 0.0, %v6974
    %6976 = vdwg.mxu0
    %6977 = vmatpush.xpose.msra.mxu0 0.0
    %6978 = vmatpush.xpose.msra.mxu0 0.0
    %6979 = vmatpush.xpose.msra.mxu0 0.0
    %6980 = vmatpush.xpose.msra.mxu0 0.0
    %6981 = vmatpush.xpose.msra.mxu0 0.0
    %6982 = vmatpush.xpose.msra.mxu0 0.0
    %6983 = vmatpush.xpose.msra.mxu0 0.0
    %6984 = vmatpush.xpose.msra.mxu0 0.0
    %6985 = vmatpush.xpose.msra.mxu0 0.0
    %6986 = vmatpush.xpose.msra.mxu0 0.0
    %6987 = vmatpush.xpose.msra.mxu0 0.0
    %6988 = vmatpush.xpose.msra.mxu0 0.0
    %6989 = vmatpush.xpose.msra.mxu0 0.0
    %6990 = vmatpush.xpose.msra.mxu0 0.0
    %6991 = vmatpush.xpose.msra.mxu0 0.0
    %v6992 = vand.u32 %v6949, 4294901760
    %v6993 = vsub.f32 %v6949, %v6992
    %v6994 = vand.u32 %v6993, 4294901760
    %v6995 = vsub.f32 %v6993, %v6994
    %v6996 = vand.u32 %v6995, 4294901760
    %6997 = vmatpush.xpose.msra.mxu0 %v6996
    %v6998 = vand.u32 %v6946, 4294901760
    %6999 = vmatmul.f32.gmra.mxu0 %v6998
    %v7000 = vpop.f32.mrf.mxu0
    %v7001 = vadd.f32 %v6975, %v7000
    %7002 = vdwg.mxu0
    %7003 = vmatpush.xpose.msra.mxu0 0.0
    %7004 = vmatpush.xpose.msra.mxu0 0.0
    %7005 = vmatpush.xpose.msra.mxu0 0.0
    %7006 = vmatpush.xpose.msra.mxu0 0.0
    %7007 = vmatpush.xpose.msra.mxu0 0.0
    %7008 = vmatpush.xpose.msra.mxu0 0.0
    %7009 = vmatpush.xpose.msra.mxu0 0.0
    %7010 = vmatpush.xpose.msra.mxu0 0.0
    %7011 = vmatpush.xpose.msra.mxu0 0.0
    %7012 = vmatpush.xpose.msra.mxu0 0.0
    %7013 = vmatpush.xpose.msra.mxu0 0.0
    %7014 = vmatpush.xpose.msra.mxu0 0.0
    %7015 = vmatpush.xpose.msra.mxu0 0.0
    %7016 = vmatpush.xpose.msra.mxu0 0.0
    %7017 = vmatpush.xpose.msra.mxu0 0.0
    %v7018 = vand.u32 %v6949, 4294901760
    %v7019 = vsub.f32 %v6949, %v7018
    %7020 = vmatpush.xpose.msra.mxu0 %v7019
    %v7021 = vand.u32 %v6946, 4294901760
    %v7022 = vsub.f32 %v6946, %v7021
    %7023 = vmatmul.f32.gmra.mxu0 %v7022
    %v7024 = vpop.f32.mrf.mxu0
    %v7025 = vadd.f32 %v7001, %v7024
    %7026 = vdwg.mxu0
    %7027 = vmatpush.xpose.msra.mxu0 0.0
    %7028 = vmatpush.xpose.msra.mxu0 0.0
    %7029 = vmatpush.xpose.msra.mxu0 0.0
    %7030 = vmatpush.xpose.msra.mxu0 0.0
    %7031 = vmatpush.xpose.msra.mxu0 0.0
    %7032 = vmatpush.xpose.msra.mxu0 0.0
    %7033 = vmatpush.xpose.msra.mxu0 0.0
    %7034 = vmatpush.xpose.msra.mxu0 0.0
    %7035 = vmatpush.xpose.msra.mxu0 0.0
    %7036 = vmatpush.xpose.msra.mxu0 0.0
    %7037 = vmatpush.xpose.msra.mxu0 0.0
    %7038 = vmatpush.xpose.msra.mxu0 0.0
    %7039 = vmatpush.xpose.msra.mxu0 0.0
    %7040 = vmatpush.xpose.msra.mxu0 0.0
    %7041 = vmatpush.xpose.msra.mxu0 0.0
    %v7042 = vand.u32 %v6949, 4294901760
    %7043 = vmatpush.xpose.msra.mxu0 %v7042
    %v7044 = vand.u32 %v6946, 4294901760
    %v7045 = vsub.f32 %v6946, %v7044
    %v7046 = vand.u32 %v7045, 4294901760
    %7047 = vmatmul.f32.gmra.mxu0 %v7046
    %v7048 = vpop.f32.mrf.mxu0
    %v7049 = vadd.f32 %v7025, %v7048
    %7050 = vdwg.mxu0
    %7051 = vmatpush.xpose.msra.mxu0 0.0
    %7052 = vmatpush.xpose.msra.mxu0 0.0
    %7053 = vmatpush.xpose.msra.mxu0 0.0
    %7054 = vmatpush.xpose.msra.mxu0 0.0
    %7055 = vmatpush.xpose.msra.mxu0 0.0
    %7056 = vmatpush.xpose.msra.mxu0 0.0
    %7057 = vmatpush.xpose.msra.mxu0 0.0
    %7058 = vmatpush.xpose.msra.mxu0 0.0
    %7059 = vmatpush.xpose.msra.mxu0 0.0
    %7060 = vmatpush.xpose.msra.mxu0 0.0
    %7061 = vmatpush.xpose.msra.mxu0 0.0
    %7062 = vmatpush.xpose.msra.mxu0 0.0
    %7063 = vmatpush.xpose.msra.mxu0 0.0
    %7064 = vmatpush.xpose.msra.mxu0 0.0
    %7065 = vmatpush.xpose.msra.mxu0 0.0
    %v7066 = vand.u32 %v6949, 4294901760
    %v7067 = vsub.f32 %v6949, %v7066
    %v7068 = vand.u32 %v7067, 4294901760
    %7069 = vmatpush.xpose.msra.mxu0 %v7068
    %v7070 = vand.u32 %v6946, 4294901760
    %7071 = vmatmul.f32.gmra.mxu0 %v7070
    %v7072 = vpop.f32.mrf.mxu0
    %v7073 = vadd.f32 %v7049, %v7072
    %7074 = vdwg.mxu0
    %7075 = vmatpush.xpose.msra.mxu0 0.0
    %7076 = vmatpush.xpose.msra.mxu0 0.0
    %7077 = vmatpush.xpose.msra.mxu0 0.0
    %7078 = vmatpush.xpose.msra.mxu0 0.0
    %7079 = vmatpush.xpose.msra.mxu0 0.0
    %7080 = vmatpush.xpose.msra.mxu0 0.0
    %7081 = vmatpush.xpose.msra.mxu0 0.0
    %7082 = vmatpush.xpose.msra.mxu0 0.0
    %7083 = vmatpush.xpose.msra.mxu0 0.0
    %7084 = vmatpush.xpose.msra.mxu0 0.0
    %7085 = vmatpush.xpose.msra.mxu0 0.0
    %7086 = vmatpush.xpose.msra.mxu0 0.0
    %7087 = vmatpush.xpose.msra.mxu0 0.0
    %7088 = vmatpush.xpose.msra.mxu0 0.0
    %7089 = vmatpush.xpose.msra.mxu0 0.0
    %v7090 = vand.u32 %v6949, 4294901760
    %7091 = vmatpush.xpose.msra.mxu0 %v7090
    %v7092 = vand.u32 %v6946, 4294901760
    %7093 = vmatmul.f32.gmra.mxu0 %v7092
    %v7094 = vpop.f32.mrf.mxu0
    %v7095 = vadd.f32 %v7073, %v7094
    %7096 = vdwg.mxu0
    %7097 = vxpose.xlu0.b32.start [1/16] %v6639, 128
    %7098 = vxpose.xlu0.b32.cont [2/16] 0.0, 128
    %7099 = vxpose.xlu0.b32.cont [3/16] 0.0, 128
    %7100 = vxpose.xlu0.b32.cont [4/16] 0.0, 128
    %7101 = vxpose.xlu0.b32.cont [5/16] 0.0, 128
    %7102 = vxpose.xlu0.b32.cont [6/16] 0.0, 128
    %7103 = vxpose.xlu0.b32.cont [7/16] 0.0, 128
    %7104 = vxpose.xlu0.b32.cont [8/16] 0.0, 128
    %7105 = vxpose.xlu0.b32.cont [9/16] 0.0, 128
    %7106 = vxpose.xlu0.b32.cont [10/16] 0.0, 128
    %7107 = vxpose.xlu0.b32.cont [11/16] 0.0, 128
    %7108 = vxpose.xlu0.b32.cont [12/16] 0.0, 128
    %7109 = vxpose.xlu0.b32.cont [13/16] 0.0, 128
    %7110 = vxpose.xlu0.b32.cont [14/16] 0.0, 128
    %7111 = vxpose.xlu0.b32.cont [15/16] 0.0, 128
    %7112 = vxpose.xlu0.b32.end [16/16] 0.0, 128
    %v7113 = vpop.trf.xlu0
    %v7114 = vpop.trf.xlu0
    %v7115 = vpop.trf.xlu0
    %v7116 = vpop.trf.xlu0
    %v7117 = vpop.trf.xlu0
    %v7118 = vpop.trf.xlu0
    %v7119 = vpop.trf.xlu0
    %v7120 = vpop.trf.xlu0
    %v7121 = vpop.trf.xlu0
    %v7122 = vpop.trf.xlu0
    %v7123 = vpop.trf.xlu0
    %v7124 = vpop.trf.xlu0
    %v7125 = vpop.trf.xlu0
    %v7126 = vpop.trf.xlu0
    %v7127 = vpop.trf.xlu0
    %v7128 = vpop.trf.xlu0
    %7129 = vxpose.xlu0.b32.start [1/16] %v6791, 128
    %7130 = vxpose.xlu0.b32.cont [2/16] 0.0, 128
    %7131 = vxpose.xlu0.b32.cont [3/16] 0.0, 128
    %7132 = vxpose.xlu0.b32.cont [4/16] 0.0, 128
    %7133 = vxpose.xlu0.b32.cont [5/16] 0.0, 128
    %7134 = vxpose.xlu0.b32.cont [6/16] 0.0, 128
    %7135 = vxpose.xlu0.b32.cont [7/16] 0.0, 128
    %7136 = vxpose.xlu0.b32.cont [8/16] 0.0, 128
    %7137 = vxpose.xlu0.b32.cont [9/16] 0.0, 128
    %7138 = vxpose.xlu0.b32.cont [10/16] 0.0, 128
    %7139 = vxpose.xlu0.b32.cont [11/16] 0.0, 128
    %7140 = vxpose.xlu0.b32.cont [12/16] 0.0, 128
    %7141 = vxpose.xlu0.b32.cont [13/16] 0.0, 128
    %7142 = vxpose.xlu0.b32.cont [14/16] 0.0, 128
    %7143 = vxpose.xlu0.b32.cont [15/16] 0.0, 128
    %7144 = vxpose.xlu0.b32.end [16/16] 0.0, 128
    %v7145 = vpop.trf.xlu0
    %v7146 = vpop.trf.xlu0
    %v7147 = vpop.trf.xlu0
    %v7148 = vpop.trf.xlu0
    %v7149 = vpop.trf.xlu0
    %v7150 = vpop.trf.xlu0
    %v7151 = vpop.trf.xlu0
    %v7152 = vpop.trf.xlu0
    %v7153 = vpop.trf.xlu0
    %v7154 = vpop.trf.xlu0
    %v7155 = vpop.trf.xlu0
    %v7156 = vpop.trf.xlu0
    %v7157 = vpop.trf.xlu0
    %v7158 = vpop.trf.xlu0
    %v7159 = vpop.trf.xlu0
    %v7160 = vpop.trf.xlu0
    %7161 = vxpose.xlu0.b32.start [1/16] %v6943, 128
    %7162 = vxpose.xlu0.b32.cont [2/16] 0.0, 128
    %7163 = vxpose.xlu0.b32.cont [3/16] 0.0, 128
    %7164 = vxpose.xlu0.b32.cont [4/16] 0.0, 128
    %7165 = vxpose.xlu0.b32.cont [5/16] 0.0, 128
    %7166 = vxpose.xlu0.b32.cont [6/16] 0.0, 128
    %7167 = vxpose.xlu0.b32.cont [7/16] 0.0, 128
    %7168 = vxpose.xlu0.b32.cont [8/16] 0.0, 128
    %7169 = vxpose.xlu0.b32.cont [9/16] 0.0, 128
    %7170 = vxpose.xlu0.b32.cont [10/16] 0.0, 128
    %7171 = vxpose.xlu0.b32.cont [11/16] 0.0, 128
    %7172 = vxpose.xlu0.b32.cont [12/16] 0.0, 128
    %7173 = vxpose.xlu0.b32.cont [13/16] 0.0, 128
    %7174 = vxpose.xlu0.b32.cont [14/16] 0.0, 128
    %7175 = vxpose.xlu0.b32.cont [15/16] 0.0, 128
    %7176 = vxpose.xlu0.b32.end [16/16] 0.0, 128
    %v7177 = vpop.trf.xlu0
    %v7178 = vpop.trf.xlu0
    %v7179 = vpop.trf.xlu0
    %v7180 = vpop.trf.xlu0
    %v7181 = vpop.trf.xlu0
    %v7182 = vpop.trf.xlu0
    %v7183 = vpop.trf.xlu0
    %v7184 = vpop.trf.xlu0
    %v7185 = vpop.trf.xlu0
    %v7186 = vpop.trf.xlu0
    %v7187 = vpop.trf.xlu0
    %v7188 = vpop.trf.xlu0
    %v7189 = vpop.trf.xlu0
    %v7190 = vpop.trf.xlu0
    %v7191 = vpop.trf.xlu0
    %v7192 = vpop.trf.xlu0
    %7193 = vxpose.xlu0.b32.start [1/16] %v7095, 128
    %7194 = vxpose.xlu0.b32.cont [2/16] 0.0, 128
    %7195 = vxpose.xlu0.b32.cont [3/16] 0.0, 128
    %7196 = vxpose.xlu0.b32.cont [4/16] 0.0, 128
    %7197 = vxpose.xlu0.b32.cont [5/16] 0.0, 128
    %7198 = vxpose.xlu0.b32.cont [6/16] 0.0, 128
    %7199 = vxpose.xlu0.b32.cont [7/16] 0.0, 128
    %7200 = vxpose.xlu0.b32.cont [8/16] 0.0, 128
    %7201 = vxpose.xlu0.b32.cont [9/16] 0.0, 128
    %7202 = vxpose.xlu0.b32.cont [10/16] 0.0, 128
    %7203 = vxpose.xlu0.b32.cont [11/16] 0.0, 128
    %7204 = vxpose.xlu0.b32.cont [12/16] 0.0, 128
    %7205 = vxpose.xlu0.b32.cont [13/16] 0.0, 128
    %7206 = vxpose.xlu0.b32.cont [14/16] 0.0, 128
    %7207 = vxpose.xlu0.b32.cont [15/16] 0.0, 128
    %7208 = vxpose.xlu0.b32.end [16/16] 0.0, 128
    %v7209 = vpop.trf.xlu0
    %v7210 = vpop.trf.xlu0
    %v7211 = vpop.trf.xlu0
    %v7212 = vpop.trf.xlu0
    %v7213 = vpop.trf.xlu0
    %v7214 = vpop.trf.xlu0
    %v7215 = vpop.trf.xlu0
    %v7216 = vpop.trf.xlu0
    %v7217 = vpop.trf.xlu0
    %v7218 = vpop.trf.xlu0
    %v7219 = vpop.trf.xlu0
    %v7220 = vpop.trf.xlu0
    %v7221 = vpop.trf.xlu0
    %v7222 = vpop.trf.xlu0
    %v7223 = vpop.trf.xlu0
    %v7224 = vpop.trf.xlu0
    %v7225 = vrot.slane %v7177, 4
    %v7226 = vsel %vm2366, %v7225, %v7113
    %v7227 = vrot.slane %v7113, 4
    %v7228 = vsel %vm2366, %v7177, %v7227
    %v7230 = vunpack.c.l.s4 1983009808
    %v7231 = vunpack.c.0.s8 %v7230
    %v7232 = vperm.slane %v7226, %v7231
    %v7234 = vunpack.c.l.s4 1983009808
    %v7235 = vunpack.c.0.s8 %v7234
    %v7236 = vperm.slane %v7228, %v7235
    %v7237 = vrot.slane %v7209, 4
    %v7238 = vsel %vm2366, %v7237, %v7145
    %v7239 = vrot.slane %v7145, 4
    %v7240 = vsel %vm2366, %v7209, %v7239
    %v7242 = vunpack.c.l.s4 1983009808
    %v7243 = vunpack.c.0.s8 %v7242
    %v7244 = vperm.slane %v7238, %v7243
    %v7246 = vunpack.c.l.s4 1983009808
    %v7247 = vunpack.c.0.s8 %v7246
    %v7248 = vperm.slane %v7240, %v7247
    %v7249 = vrot.slane %v7244, 4
    %v7250 = vsel %vm2366, %v7249, %v7232
    %v7251 = vrot.slane %v7232, 4
    %v7252 = vsel %vm2366, %v7244, %v7251
    %v7254 = vunpack.c.l.s4 1934713408
    %v7255 = vunpack.c.0.s8 %v7254
    %v7256 = vperm.slane %v7250, %v7255
    %v7258 = vunpack.c.l.s4 1934713408
    %v7259 = vunpack.c.0.s8 %v7258
    %v7260 = vperm.slane %v7252, %v7259
    %v7261 = vrot.slane %v7248, 4
    %v7262 = vsel %vm2366, %v7261, %v7236
    %v7263 = vrot.slane %v7236, 4
    %v7264 = vsel %vm2366, %v7248, %v7263
    %v7266 = vunpack.c.l.s4 1934713408
    %v7267 = vunpack.c.0.s8 %v7266
    %v7268 = vperm.slane %v7262, %v7267
    %v7270 = vunpack.c.l.s4 1934713408
    %v7271 = vunpack.c.0.s8 %v7270
    %v7272 = vperm.slane %v7264, %v7271
    %v7273 = vrot.slane %v7256, 4
    %v7274 = vsel %vm2366, 0.0, %v7273
    %v7275 = vrot.slane %v7260, 4
    %v7276 = vsel %vm2366, 0.0, %v7275
    %v7277 = vrot.slane %v7268, 4
    %v7278 = vsel %vm2366, 0.0, %v7277
    %v7279 = vrot.slane %v7272, 4
    %v7280 = vsel %vm2366, 0.0, %v7279
    %v7281 = vsel %vm2366, %v7275, %v7256
    %v7283 = vunpack.c.l.s4 1983009808
    %v7284 = vunpack.c.0.s8 %v7283
    %v7285 = vperm.slane %v7281, %v7284
    %v7286 = vrot.slane %v7276, 4
    %v7287 = vsel %vm2366, %v7286, %v7274
    %v7289 = vunpack.c.l.s4 1983009808
    %v7290 = vunpack.c.0.s8 %v7289
    %v7291 = vperm.slane %v7287, %v7290
    %v7292 = vsel %vm2366, %v7279, %v7268
    %v7294 = vunpack.c.l.s4 1983009808
    %v7295 = vunpack.c.0.s8 %v7294
    %v7296 = vperm.slane %v7292, %v7295
    %v7297 = vrot.slane %v7280, 4
    %v7298 = vsel %vm2366, %v7297, %v7278
    %v7300 = vunpack.c.l.s4 1983009808
    %v7301 = vunpack.c.0.s8 %v7300
    %v7302 = vperm.slane %v7298, %v7301
    %v7303 = vrot.slane %v7291, 4
    %v7304 = vsel %vm2366, %v7303, %v7285
    %v7305 = vrot.slane %v7285, 4
    %v7306 = vsel %vm2366, %v7291, %v7305
    %v7308 = vunpack.c.l.s4 1934713408
    %v7309 = vunpack.c.0.s8 %v7308
    %v7310 = vperm.slane %v7304, %v7309
    %v7312 = vunpack.c.l.s4 1934713408
    %v7313 = vunpack.c.0.s8 %v7312
    %v7314 = vperm.slane %v7306, %v7313
    %v7315 = vrot.slane %v7302, 4
    %v7316 = vsel %vm2366, %v7315, %v7296
    %v7317 = vrot.slane %v7296, 4
    %v7318 = vsel %vm2366, %v7302, %v7317
    %v7320 = vunpack.c.l.s4 1934713408
    %v7321 = vunpack.c.0.s8 %v7320
    %v7322 = vperm.slane %v7316, %v7321
    %v7324 = vunpack.c.l.s4 1934713408
    %v7325 = vunpack.c.0.s8 %v7324
    %v7326 = vperm.slane %v7318, %v7325
    %v7327 = vrot.slane %v7322, 4
    %v7328 = vsel %vm2366, %v7327, %v7310
    %v7329 = vrot.slane %v7310, 4
    %v7330 = vsel %vm2366, %v7322, %v7329
    %v7331 = vrot.slane %v7326, 4
    %v7332 = vsel %vm2366, %v7331, %v7314
    %v7333 = vrot.slane %v7314, 4
    %v7334 = vsel %vm2366, %v7326, %v7333
    %7336 = vrot.lane.b32.xlu0 %v7330, 8
    %v7337 = vpop.permute.xlu0 %7336
    %7340 = vrot.lane.b32.xlu0 %v7332, 16
    %v7341 = vpop.permute.xlu0 %7340
    %7344 = vrot.lane.b32.xlu0 %v7334, 24
    %v7345 = vpop.permute.xlu0 %7344
    %v7347 = vsel %vm800, %v7328, %v7337
    %v7348 = vsel %vm2489, %v7347, %v7341
    %v7349 = vsel %vm2491, %v7348, %v7345
    %7351 = vrot.lane.b32.xlu0 %v5512, 120
    %v7352 = vpop.permute.xlu0 %7351
    %7353 = vrot.lane.b32.xlu0 %v5512, 112
    %v7354 = vpop.permute.xlu0 %7353
    %7355 = vrot.lane.b32.xlu0 %v5512, 104
    %v7356 = vpop.permute.xlu0 %7355
    %7357 = vrot.lane.b32.xlu0 %v5512, 96
    %v7358 = vpop.permute.xlu0 %7357
    %7359 = vrot.lane.b32.xlu0 %v7352, 96
    %v7360 = vpop.permute.xlu0 %7359
    %7361 = vrot.lane.b32.xlu0 %v7354, 96
    %v7362 = vpop.permute.xlu0 %7361
    %7363 = vrot.lane.b32.xlu0 %v7356, 96
    %v7364 = vpop.permute.xlu0 %7363
    %7369 = vxpose.xlu0.b32.start [1/16] %v7358, 128
    %7370 = vxpose.xlu0.b32.cont [2/16] 0.0, 128
    %7371 = vxpose.xlu0.b32.cont [3/16] 0.0, 128
    %7372 = vxpose.xlu0.b32.cont [4/16] 0.0, 128
    %7373 = vxpose.xlu0.b32.cont [5/16] 0.0, 128
    %7374 = vxpose.xlu0.b32.cont [6/16] 0.0, 128
    %7375 = vxpose.xlu0.b32.cont [7/16] 0.0, 128
    %7376 = vxpose.xlu0.b32.cont [8/16] 0.0, 128
    %7377 = vxpose.xlu0.b32.cont [9/16] 0.0, 128
    %7378 = vxpose.xlu0.b32.cont [10/16] 0.0, 128
    %7379 = vxpose.xlu0.b32.cont [11/16] 0.0, 128
    %7380 = vxpose.xlu0.b32.cont [12/16] 0.0, 128
    %7381 = vxpose.xlu0.b32.cont [13/16] 0.0, 128
    %7382 = vxpose.xlu0.b32.cont [14/16] 0.0, 128
    %7383 = vxpose.xlu0.b32.cont [15/16] 0.0, 128
    %7384 = vxpose.xlu0.b32.end [16/16] 0.0, 128
    %v7385 = vpop.trf.xlu0
    %v7386 = vpop.trf.xlu0
    %v7387 = vpop.trf.xlu0
    %v7388 = vpop.trf.xlu0
    %v7389 = vpop.trf.xlu0
    %v7390 = vpop.trf.xlu0
    %v7391 = vpop.trf.xlu0
    %v7392 = vpop.trf.xlu0
    %v7393 = vpop.trf.xlu0
    %v7394 = vpop.trf.xlu0
    %v7395 = vpop.trf.xlu0
    %v7396 = vpop.trf.xlu0
    %v7397 = vpop.trf.xlu0
    %v7398 = vpop.trf.xlu0
    %v7399 = vpop.trf.xlu0
    %v7400 = vpop.trf.xlu0
    %7401 = vxpose.xlu0.b32.start [1/16] %v7360, 128
    %7402 = vxpose.xlu0.b32.cont [2/16] 0.0, 128
    %7403 = vxpose.xlu0.b32.cont [3/16] 0.0, 128
    %7404 = vxpose.xlu0.b32.cont [4/16] 0.0, 128
    %7405 = vxpose.xlu0.b32.cont [5/16] 0.0, 128
    %7406 = vxpose.xlu0.b32.cont [6/16] 0.0, 128
    %7407 = vxpose.xlu0.b32.cont [7/16] 0.0, 128
    %7408 = vxpose.xlu0.b32.cont [8/16] 0.0, 128
    %7409 = vxpose.xlu0.b32.cont [9/16] 0.0, 128
    %7410 = vxpose.xlu0.b32.cont [10/16] 0.0, 128
    %7411 = vxpose.xlu0.b32.cont [11/16] 0.0, 128
    %7412 = vxpose.xlu0.b32.cont [12/16] 0.0, 128
    %7413 = vxpose.xlu0.b32.cont [13/16] 0.0, 128
    %7414 = vxpose.xlu0.b32.cont [14/16] 0.0, 128
    %7415 = vxpose.xlu0.b32.cont [15/16] 0.0, 128
    %7416 = vxpose.xlu0.b32.end [16/16] 0.0, 128
    %v7417 = vpop.trf.xlu0
    %v7418 = vpop.trf.xlu0
    %v7419 = vpop.trf.xlu0
    %v7420 = vpop.trf.xlu0
    %v7421 = vpop.trf.xlu0
    %v7422 = vpop.trf.xlu0
    %v7423 = vpop.trf.xlu0
    %v7424 = vpop.trf.xlu0
    %v7425 = vpop.trf.xlu0
    %v7426 = vpop.trf.xlu0
    %v7427 = vpop.trf.xlu0
    %v7428 = vpop.trf.xlu0
    %v7429 = vpop.trf.xlu0
    %v7430 = vpop.trf.xlu0
    %v7431 = vpop.trf.xlu0
    %v7432 = vpop.trf.xlu0
    %7433 = vxpose.xlu0.b32.start [1/16] %v7362, 128
    %7434 = vxpose.xlu0.b32.cont [2/16] 0.0, 128
    %7435 = vxpose.xlu0.b32.cont [3/16] 0.0, 128
    %7436 = vxpose.xlu0.b32.cont [4/16] 0.0, 128
    %7437 = vxpose.xlu0.b32.cont [5/16] 0.0, 128
    %7438 = vxpose.xlu0.b32.cont [6/16] 0.0, 128
    %7439 = vxpose.xlu0.b32.cont [7/16] 0.0, 128
    %7440 = vxpose.xlu0.b32.cont [8/16] 0.0, 128
    %7441 = vxpose.xlu0.b32.cont [9/16] 0.0, 128
    %7442 = vxpose.xlu0.b32.cont [10/16] 0.0, 128
    %7443 = vxpose.xlu0.b32.cont [11/16] 0.0, 128
    %7444 = vxpose.xlu0.b32.cont [12/16] 0.0, 128
    %7445 = vxpose.xlu0.b32.cont [13/16] 0.0, 128
    %7446 = vxpose.xlu0.b32.cont [14/16] 0.0, 128
    %7447 = vxpose.xlu0.b32.cont [15/16] 0.0, 128
    %7448 = vxpose.xlu0.b32.end [16/16] 0.0, 128
    %v7449 = vpop.trf.xlu0
    %v7450 = vpop.trf.xlu0
    %v7451 = vpop.trf.xlu0
    %v7452 = vpop.trf.xlu0
    %v7453 = vpop.trf.xlu0
    %v7454 = vpop.trf.xlu0
    %v7455 = vpop.trf.xlu0
    %v7456 = vpop.trf.xlu0
    %v7457 = vpop.trf.xlu0
    %v7458 = vpop.trf.xlu0
    %v7459 = vpop.trf.xlu0
    %v7460 = vpop.trf.xlu0
    %v7461 = vpop.trf.xlu0
    %v7462 = vpop.trf.xlu0
    %v7463 = vpop.trf.xlu0
    %v7464 = vpop.trf.xlu0
    %7465 = vxpose.xlu0.b32.start [1/16] %v7364, 128
    %7466 = vxpose.xlu0.b32.cont [2/16] 0.0, 128
    %7467 = vxpose.xlu0.b32.cont [3/16] 0.0, 128
    %7468 = vxpose.xlu0.b32.cont [4/16] 0.0, 128
    %7469 = vxpose.xlu0.b32.cont [5/16] 0.0, 128
    %7470 = vxpose.xlu0.b32.cont [6/16] 0.0, 128
    %7471 = vxpose.xlu0.b32.cont [7/16] 0.0, 128
    %7472 = vxpose.xlu0.b32.cont [8/16] 0.0, 128
    %7473 = vxpose.xlu0.b32.cont [9/16] 0.0, 128
    %7474 = vxpose.xlu0.b32.cont [10/16] 0.0, 128
    %7475 = vxpose.xlu0.b32.cont [11/16] 0.0, 128
    %7476 = vxpose.xlu0.b32.cont [12/16] 0.0, 128
    %7477 = vxpose.xlu0.b32.cont [13/16] 0.0, 128
    %7478 = vxpose.xlu0.b32.cont [14/16] 0.0, 128
    %7479 = vxpose.xlu0.b32.cont [15/16] 0.0, 128
    %7480 = vxpose.xlu0.b32.end [16/16] 0.0, 128
    %v7481 = vpop.trf.xlu0
    %v7482 = vpop.trf.xlu0
    %v7483 = vpop.trf.xlu0
    %v7484 = vpop.trf.xlu0
    %v7485 = vpop.trf.xlu0
    %v7486 = vpop.trf.xlu0
    %v7487 = vpop.trf.xlu0
    %v7488 = vpop.trf.xlu0
    %v7489 = vpop.trf.xlu0
    %v7490 = vpop.trf.xlu0
    %v7491 = vpop.trf.xlu0
    %v7492 = vpop.trf.xlu0
    %v7493 = vpop.trf.xlu0
    %v7494 = vpop.trf.xlu0
    %v7495 = vpop.trf.xlu0
    %v7496 = vpop.trf.xlu0
    %v7497 = vsel %vm800, %v5512, 0
    %7499 = vmatpush.msra.mxu0 0.0
    %7500 = vmatpush.msra.mxu0 0.0
    %7501 = vmatpush.msra.mxu0 0.0
    %7502 = vmatpush.msra.mxu0 0.0
    %7503 = vmatpush.msra.mxu0 0.0
    %7504 = vmatpush.msra.mxu0 0.0
    %7505 = vmatpush.msra.mxu0 0.0
    %7506 = vmatpush.msra.mxu0 0.0
    %7507 = vmatpush.msra.mxu0 0.0
    %7508 = vmatpush.msra.mxu0 0.0
    %7509 = vmatpush.msra.mxu0 0.0
    %7510 = vmatpush.msra.mxu0 0.0
    %7511 = vmatpush.msra.mxu0 0.0
    %7512 = vmatpush.msra.mxu0 0.0
    %7513 = vmatpush.msra.mxu0 0.0
    %v7514 = vand.u32 %v7385, 4294901760
    %7515 = vmatpush.msra.mxu0 %v7514
    %v7516 = vand.u32 %v7497, 4294901760
    %v7517 = vsub.f32 %v7497, %v7516
    %v7518 = vand.u32 %v7517, 4294901760
    %v7519 = vsub.f32 %v7517, %v7518
    %v7520 = vand.u32 %v7519, 4294901760
    %7521 = vmatmul.f32.gmra.mxu0 %v7520
    %v7522 = vpop.f32.mrf.mxu0
    %v7523 = vadd.f32 0.0, %v7522
    %7524 = vdwg.mxu0
    %7525 = vmatpush.msra.mxu0 0.0
    %7526 = vmatpush.msra.mxu0 0.0
    %7527 = vmatpush.msra.mxu0 0.0
    %7528 = vmatpush.msra.mxu0 0.0
    %7529 = vmatpush.msra.mxu0 0.0
    %7530 = vmatpush.msra.mxu0 0.0
    %7531 = vmatpush.msra.mxu0 0.0
    %7532 = vmatpush.msra.mxu0 0.0
    %7533 = vmatpush.msra.mxu0 0.0
    %7534 = vmatpush.msra.mxu0 0.0
    %7535 = vmatpush.msra.mxu0 0.0
    %7536 = vmatpush.msra.mxu0 0.0
    %7537 = vmatpush.msra.mxu0 0.0
    %7538 = vmatpush.msra.mxu0 0.0
    %7539 = vmatpush.msra.mxu0 0.0
    %v7540 = vand.u32 %v7385, 4294901760
    %v7541 = vsub.f32 %v7385, %v7540
    %v7542 = vand.u32 %v7541, 4294901760
    %v7543 = vsub.f32 %v7541, %v7542
    %v7544 = vand.u32 %v7543, 4294901760
    %7545 = vmatpush.msra.mxu0 %v7544
    %v7546 = vand.u32 %v7497, 4294901760
    %7547 = vmatmul.f32.gmra.mxu0 %v7546
    %v7548 = vpop.f32.mrf.mxu0
    %v7549 = vadd.f32 %v7523, %v7548
    %7550 = vdwg.mxu0
    %7551 = vmatpush.msra.mxu0 0.0
    %7552 = vmatpush.msra.mxu0 0.0
    %7553 = vmatpush.msra.mxu0 0.0
    %7554 = vmatpush.msra.mxu0 0.0
    %7555 = vmatpush.msra.mxu0 0.0
    %7556 = vmatpush.msra.mxu0 0.0
    %7557 = vmatpush.msra.mxu0 0.0
    %7558 = vmatpush.msra.mxu0 0.0
    %7559 = vmatpush.msra.mxu0 0.0
    %7560 = vmatpush.msra.mxu0 0.0
    %7561 = vmatpush.msra.mxu0 0.0
    %7562 = vmatpush.msra.mxu0 0.0
    %7563 = vmatpush.msra.mxu0 0.0
    %7564 = vmatpush.msra.mxu0 0.0
    %7565 = vmatpush.msra.mxu0 0.0
    %v7566 = vand.u32 %v7385, 4294901760
    %v7567 = vsub.f32 %v7385, %v7566
    %7568 = vmatpush.msra.mxu0 %v7567
    %v7569 = vand.u32 %v7497, 4294901760
    %v7570 = vsub.f32 %v7497, %v7569
    %7571 = vmatmul.f32.gmra.mxu0 %v7570
    %v7572 = vpop.f32.mrf.mxu0
    %v7573 = vadd.f32 %v7549, %v7572
    %7574 = vdwg.mxu0
    %7575 = vmatpush.msra.mxu0 0.0
    %7576 = vmatpush.msra.mxu0 0.0
    %7577 = vmatpush.msra.mxu0 0.0
    %7578 = vmatpush.msra.mxu0 0.0
    %7579 = vmatpush.msra.mxu0 0.0
    %7580 = vmatpush.msra.mxu0 0.0
    %7581 = vmatpush.msra.mxu0 0.0
    %7582 = vmatpush.msra.mxu0 0.0
    %7583 = vmatpush.msra.mxu0 0.0
    %7584 = vmatpush.msra.mxu0 0.0
    %7585 = vmatpush.msra.mxu0 0.0
    %7586 = vmatpush.msra.mxu0 0.0
    %7587 = vmatpush.msra.mxu0 0.0
    %7588 = vmatpush.msra.mxu0 0.0
    %7589 = vmatpush.msra.mxu0 0.0
    %v7590 = vand.u32 %v7385, 4294901760
    %7591 = vmatpush.msra.mxu0 %v7590
    %v7592 = vand.u32 %v7497, 4294901760
    %v7593 = vsub.f32 %v7497, %v7592
    %v7594 = vand.u32 %v7593, 4294901760
    %7595 = vmatmul.f32.gmra.mxu0 %v7594
    %v7596 = vpop.f32.mrf.mxu0
    %v7597 = vadd.f32 %v7573, %v7596
    %7598 = vdwg.mxu0
    %7599 = vmatpush.msra.mxu0 0.0
    %7600 = vmatpush.msra.mxu0 0.0
    %7601 = vmatpush.msra.mxu0 0.0
    %7602 = vmatpush.msra.mxu0 0.0
    %7603 = vmatpush.msra.mxu0 0.0
    %7604 = vmatpush.msra.mxu0 0.0
    %7605 = vmatpush.msra.mxu0 0.0
    %7606 = vmatpush.msra.mxu0 0.0
    %7607 = vmatpush.msra.mxu0 0.0
    %7608 = vmatpush.msra.mxu0 0.0
    %7609 = vmatpush.msra.mxu0 0.0
    %7610 = vmatpush.msra.mxu0 0.0
    %7611 = vmatpush.msra.mxu0 0.0
    %7612 = vmatpush.msra.mxu0 0.0
    %7613 = vmatpush.msra.mxu0 0.0
    %v7614 = vand.u32 %v7385, 4294901760
    %v7615 = vsub.f32 %v7385, %v7614
    %v7616 = vand.u32 %v7615, 4294901760
    %7617 = vmatpush.msra.mxu0 %v7616
    %v7618 = vand.u32 %v7497, 4294901760
    %7619 = vmatmul.f32.gmra.mxu0 %v7618
    %v7620 = vpop.f32.mrf.mxu0
    %v7621 = vadd.f32 %v7597, %v7620
    %7622 = vdwg.mxu0
    %7623 = vmatpush.msra.mxu0 0.0
    %7624 = vmatpush.msra.mxu0 0.0
    %7625 = vmatpush.msra.mxu0 0.0
    %7626 = vmatpush.msra.mxu0 0.0
    %7627 = vmatpush.msra.mxu0 0.0
    %7628 = vmatpush.msra.mxu0 0.0
    %7629 = vmatpush.msra.mxu0 0.0
    %7630 = vmatpush.msra.mxu0 0.0
    %7631 = vmatpush.msra.mxu0 0.0
    %7632 = vmatpush.msra.mxu0 0.0
    %7633 = vmatpush.msra.mxu0 0.0
    %7634 = vmatpush.msra.mxu0 0.0
    %7635 = vmatpush.msra.mxu0 0.0
    %7636 = vmatpush.msra.mxu0 0.0
    %7637 = vmatpush.msra.mxu0 0.0
    %v7638 = vand.u32 %v7385, 4294901760
    %7639 = vmatpush.msra.mxu0 %v7638
    %v7640 = vand.u32 %v7497, 4294901760
    %7641 = vmatmul.f32.gmra.mxu0 %v7640
    %v7642 = vpop.f32.mrf.mxu0
    %v7643 = vadd.f32 %v7621, %v7642
    %7644 = vdwg.mxu0
    %v7645 = vsel %vm800, %v7352, 0
    %7647 = vmatpush.msra.mxu0 0.0
    %7648 = vmatpush.msra.mxu0 0.0
    %7649 = vmatpush.msra.mxu0 0.0
    %7650 = vmatpush.msra.mxu0 0.0
    %7651 = vmatpush.msra.mxu0 0.0
    %7652 = vmatpush.msra.mxu0 0.0
    %7653 = vmatpush.msra.mxu0 0.0
    %7654 = vmatpush.msra.mxu0 0.0
    %7655 = vmatpush.msra.mxu0 0.0
    %7656 = vmatpush.msra.mxu0 0.0
    %7657 = vmatpush.msra.mxu0 0.0
    %7658 = vmatpush.msra.mxu0 0.0
    %7659 = vmatpush.msra.mxu0 0.0
    %7660 = vmatpush.msra.mxu0 0.0
    %7661 = vmatpush.msra.mxu0 0.0
    %v7662 = vand.u32 %v7417, 4294901760
    %7663 = vmatpush.msra.mxu0 %v7662
    %v7664 = vand.u32 %v7645, 4294901760
    %v7665 = vsub.f32 %v7645, %v7664
    %v7666 = vand.u32 %v7665, 4294901760
    %v7667 = vsub.f32 %v7665, %v7666
    %v7668 = vand.u32 %v7667, 4294901760
    %7669 = vmatmul.f32.gmra.mxu0 %v7668
    %v7670 = vpop.f32.mrf.mxu0
    %v7671 = vadd.f32 0.0, %v7670
    %7672 = vdwg.mxu0
    %7673 = vmatpush.msra.mxu0 0.0
    %7674 = vmatpush.msra.mxu0 0.0
    %7675 = vmatpush.msra.mxu0 0.0
    %7676 = vmatpush.msra.mxu0 0.0
    %7677 = vmatpush.msra.mxu0 0.0
    %7678 = vmatpush.msra.mxu0 0.0
    %7679 = vmatpush.msra.mxu0 0.0
    %7680 = vmatpush.msra.mxu0 0.0
    %7681 = vmatpush.msra.mxu0 0.0
    %7682 = vmatpush.msra.mxu0 0.0
    %7683 = vmatpush.msra.mxu0 0.0
    %7684 = vmatpush.msra.mxu0 0.0
    %7685 = vmatpush.msra.mxu0 0.0
    %7686 = vmatpush.msra.mxu0 0.0
    %7687 = vmatpush.msra.mxu0 0.0
    %v7688 = vand.u32 %v7417, 4294901760
    %v7689 = vsub.f32 %v7417, %v7688
    %v7690 = vand.u32 %v7689, 4294901760
    %v7691 = vsub.f32 %v7689, %v7690
    %v7692 = vand.u32 %v7691, 4294901760
    %7693 = vmatpush.msra.mxu0 %v7692
    %v7694 = vand.u32 %v7645, 4294901760
    %7695 = vmatmul.f32.gmra.mxu0 %v7694
    %v7696 = vpop.f32.mrf.mxu0
    %v7697 = vadd.f32 %v7671, %v7696
    %7698 = vdwg.mxu0
    %7699 = vmatpush.msra.mxu0 0.0
    %7700 = vmatpush.msra.mxu0 0.0
    %7701 = vmatpush.msra.mxu0 0.0
    %7702 = vmatpush.msra.mxu0 0.0
    %7703 = vmatpush.msra.mxu0 0.0
    %7704 = vmatpush.msra.mxu0 0.0
    %7705 = vmatpush.msra.mxu0 0.0
    %7706 = vmatpush.msra.mxu0 0.0
    %7707 = vmatpush.msra.mxu0 0.0
    %7708 = vmatpush.msra.mxu0 0.0
    %7709 = vmatpush.msra.mxu0 0.0
    %7710 = vmatpush.msra.mxu0 0.0
    %7711 = vmatpush.msra.mxu0 0.0
    %7712 = vmatpush.msra.mxu0 0.0
    %7713 = vmatpush.msra.mxu0 0.0
    %v7714 = vand.u32 %v7417, 4294901760
    %v7715 = vsub.f32 %v7417, %v7714
    %7716 = vmatpush.msra.mxu0 %v7715
    %v7717 = vand.u32 %v7645, 4294901760
    %v7718 = vsub.f32 %v7645, %v7717
    %7719 = vmatmul.f32.gmra.mxu0 %v7718
    %v7720 = vpop.f32.mrf.mxu0
    %v7721 = vadd.f32 %v7697, %v7720
    %7722 = vdwg.mxu0
    %7723 = vmatpush.msra.mxu0 0.0
    %7724 = vmatpush.msra.mxu0 0.0
    %7725 = vmatpush.msra.mxu0 0.0
    %7726 = vmatpush.msra.mxu0 0.0
    %7727 = vmatpush.msra.mxu0 0.0
    %7728 = vmatpush.msra.mxu0 0.0
    %7729 = vmatpush.msra.mxu0 0.0
    %7730 = vmatpush.msra.mxu0 0.0
    %7731 = vmatpush.msra.mxu0 0.0
    %7732 = vmatpush.msra.mxu0 0.0
    %7733 = vmatpush.msra.mxu0 0.0
    %7734 = vmatpush.msra.mxu0 0.0
    %7735 = vmatpush.msra.mxu0 0.0
    %7736 = vmatpush.msra.mxu0 0.0
    %7737 = vmatpush.msra.mxu0 0.0
    %v7738 = vand.u32 %v7417, 4294901760
    %7739 = vmatpush.msra.mxu0 %v7738
    %v7740 = vand.u32 %v7645, 4294901760
    %v7741 = vsub.f32 %v7645, %v7740
    %v7742 = vand.u32 %v7741, 4294901760
    %7743 = vmatmul.f32.gmra.mxu0 %v7742
    %v7744 = vpop.f32.mrf.mxu0
    %v7745 = vadd.f32 %v7721, %v7744
    %7746 = vdwg.mxu0
    %7747 = vmatpush.msra.mxu0 0.0
    %7748 = vmatpush.msra.mxu0 0.0
    %7749 = vmatpush.msra.mxu0 0.0
    %7750 = vmatpush.msra.mxu0 0.0
    %7751 = vmatpush.msra.mxu0 0.0
    %7752 = vmatpush.msra.mxu0 0.0
    %7753 = vmatpush.msra.mxu0 0.0
    %7754 = vmatpush.msra.mxu0 0.0
    %7755 = vmatpush.msra.mxu0 0.0
    %7756 = vmatpush.msra.mxu0 0.0
    %7757 = vmatpush.msra.mxu0 0.0
    %7758 = vmatpush.msra.mxu0 0.0
    %7759 = vmatpush.msra.mxu0 0.0
    %7760 = vmatpush.msra.mxu0 0.0
    %7761 = vmatpush.msra.mxu0 0.0
    %v7762 = vand.u32 %v7417, 4294901760
    %v7763 = vsub.f32 %v7417, %v7762
    %v7764 = vand.u32 %v7763, 4294901760
    %7765 = vmatpush.msra.mxu0 %v7764
    %v7766 = vand.u32 %v7645, 4294901760
    %7767 = vmatmul.f32.gmra.mxu0 %v7766
    %v7768 = vpop.f32.mrf.mxu0
    %v7769 = vadd.f32 %v7745, %v7768
    %7770 = vdwg.mxu0
    %7771 = vmatpush.msra.mxu0 0.0
    %7772 = vmatpush.msra.mxu0 0.0
    %7773 = vmatpush.msra.mxu0 0.0
    %7774 = vmatpush.msra.mxu0 0.0
    %7775 = vmatpush.msra.mxu0 0.0
    %7776 = vmatpush.msra.mxu0 0.0
    %7777 = vmatpush.msra.mxu0 0.0
    %7778 = vmatpush.msra.mxu0 0.0
    %7779 = vmatpush.msra.mxu0 0.0
    %7780 = vmatpush.msra.mxu0 0.0
    %7781 = vmatpush.msra.mxu0 0.0
    %7782 = vmatpush.msra.mxu0 0.0
    %7783 = vmatpush.msra.mxu0 0.0
    %7784 = vmatpush.msra.mxu0 0.0
    %7785 = vmatpush.msra.mxu0 0.0
    %v7786 = vand.u32 %v7417, 4294901760
    %7787 = vmatpush.msra.mxu0 %v7786
    %v7788 = vand.u32 %v7645, 4294901760
    %7789 = vmatmul.f32.gmra.mxu0 %v7788
    %v7790 = vpop.f32.mrf.mxu0
    %v7791 = vadd.f32 %v7769, %v7790
    %7792 = vdwg.mxu0
    %v7793 = vsel %vm800, %v7354, 0
    %7795 = vmatpush.msra.mxu0 0.0
    %7796 = vmatpush.msra.mxu0 0.0
    %7797 = vmatpush.msra.mxu0 0.0
    %7798 = vmatpush.msra.mxu0 0.0
    %7799 = vmatpush.msra.mxu0 0.0
    %7800 = vmatpush.msra.mxu0 0.0
    %7801 = vmatpush.msra.mxu0 0.0
    %7802 = vmatpush.msra.mxu0 0.0
    %7803 = vmatpush.msra.mxu0 0.0
    %7804 = vmatpush.msra.mxu0 0.0
    %7805 = vmatpush.msra.mxu0 0.0
    %7806 = vmatpush.msra.mxu0 0.0
    %7807 = vmatpush.msra.mxu0 0.0
    %7808 = vmatpush.msra.mxu0 0.0
    %7809 = vmatpush.msra.mxu0 0.0
    %v7810 = vand.u32 %v7449, 4294901760
    %7811 = vmatpush.msra.mxu0 %v7810
    %v7812 = vand.u32 %v7793, 4294901760
    %v7813 = vsub.f32 %v7793, %v7812
    %v7814 = vand.u32 %v7813, 4294901760
    %v7815 = vsub.f32 %v7813, %v7814
    %v7816 = vand.u32 %v7815, 4294901760
    %7817 = vmatmul.f32.gmra.mxu0 %v7816
    %v7818 = vpop.f32.mrf.mxu0
    %v7819 = vadd.f32 0.0, %v7818
    %7820 = vdwg.mxu0
    %7821 = vmatpush.msra.mxu0 0.0
    %7822 = vmatpush.msra.mxu0 0.0
    %7823 = vmatpush.msra.mxu0 0.0
    %7824 = vmatpush.msra.mxu0 0.0
    %7825 = vmatpush.msra.mxu0 0.0
    %7826 = vmatpush.msra.mxu0 0.0
    %7827 = vmatpush.msra.mxu0 0.0
    %7828 = vmatpush.msra.mxu0 0.0
    %7829 = vmatpush.msra.mxu0 0.0
    %7830 = vmatpush.msra.mxu0 0.0
    %7831 = vmatpush.msra.mxu0 0.0
    %7832 = vmatpush.msra.mxu0 0.0
    %7833 = vmatpush.msra.mxu0 0.0
    %7834 = vmatpush.msra.mxu0 0.0
    %7835 = vmatpush.msra.mxu0 0.0
    %v7836 = vand.u32 %v7449, 4294901760
    %v7837 = vsub.f32 %v7449, %v7836
    %v7838 = vand.u32 %v7837, 4294901760
    %v7839 = vsub.f32 %v7837, %v7838
    %v7840 = vand.u32 %v7839, 4294901760
    %7841 = vmatpush.msra.mxu0 %v7840
    %v7842 = vand.u32 %v7793, 4294901760
    %7843 = vmatmul.f32.gmra.mxu0 %v7842
    %v7844 = vpop.f32.mrf.mxu0
    %v7845 = vadd.f32 %v7819, %v7844
    %7846 = vdwg.mxu0
    %7847 = vmatpush.msra.mxu0 0.0
    %7848 = vmatpush.msra.mxu0 0.0
    %7849 = vmatpush.msra.mxu0 0.0
    %7850 = vmatpush.msra.mxu0 0.0
    %7851 = vmatpush.msra.mxu0 0.0
    %7852 = vmatpush.msra.mxu0 0.0
    %7853 = vmatpush.msra.mxu0 0.0
    %7854 = vmatpush.msra.mxu0 0.0
    %7855 = vmatpush.msra.mxu0 0.0
    %7856 = vmatpush.msra.mxu0 0.0
    %7857 = vmatpush.msra.mxu0 0.0
    %7858 = vmatpush.msra.mxu0 0.0
    %7859 = vmatpush.msra.mxu0 0.0
    %7860 = vmatpush.msra.mxu0 0.0
    %7861 = vmatpush.msra.mxu0 0.0
    %v7862 = vand.u32 %v7449, 4294901760
    %v7863 = vsub.f32 %v7449, %v7862
    %7864 = vmatpush.msra.mxu0 %v7863
    %v7865 = vand.u32 %v7793, 4294901760
    %v7866 = vsub.f32 %v7793, %v7865
    %7867 = vmatmul.f32.gmra.mxu0 %v7866
    %v7868 = vpop.f32.mrf.mxu0
    %v7869 = vadd.f32 %v7845, %v7868
    %7870 = vdwg.mxu0
    %7871 = vmatpush.msra.mxu0 0.0
    %7872 = vmatpush.msra.mxu0 0.0
    %7873 = vmatpush.msra.mxu0 0.0
    %7874 = vmatpush.msra.mxu0 0.0
    %7875 = vmatpush.msra.mxu0 0.0
    %7876 = vmatpush.msra.mxu0 0.0
    %7877 = vmatpush.msra.mxu0 0.0
    %7878 = vmatpush.msra.mxu0 0.0
    %7879 = vmatpush.msra.mxu0 0.0
    %7880 = vmatpush.msra.mxu0 0.0
    %7881 = vmatpush.msra.mxu0 0.0
    %7882 = vmatpush.msra.mxu0 0.0
    %7883 = vmatpush.msra.mxu0 0.0
    %7884 = vmatpush.msra.mxu0 0.0
    %7885 = vmatpush.msra.mxu0 0.0
    %v7886 = vand.u32 %v7449, 4294901760
    %7887 = vmatpush.msra.mxu0 %v7886
    %v7888 = vand.u32 %v7793, 4294901760
    %v7889 = vsub.f32 %v7793, %v7888
    %v7890 = vand.u32 %v7889, 4294901760
    %7891 = vmatmul.f32.gmra.mxu0 %v7890
    %v7892 = vpop.f32.mrf.mxu0
    %v7893 = vadd.f32 %v7869, %v7892
    %7894 = vdwg.mxu0
    %7895 = vmatpush.msra.mxu0 0.0
    %7896 = vmatpush.msra.mxu0 0.0
    %7897 = vmatpush.msra.mxu0 0.0
    %7898 = vmatpush.msra.mxu0 0.0
    %7899 = vmatpush.msra.mxu0 0.0
    %7900 = vmatpush.msra.mxu0 0.0
    %7901 = vmatpush.msra.mxu0 0.0
    %7902 = vmatpush.msra.mxu0 0.0
    %7903 = vmatpush.msra.mxu0 0.0
    %7904 = vmatpush.msra.mxu0 0.0
    %7905 = vmatpush.msra.mxu0 0.0
    %7906 = vmatpush.msra.mxu0 0.0
    %7907 = vmatpush.msra.mxu0 0.0
    %7908 = vmatpush.msra.mxu0 0.0
    %7909 = vmatpush.msra.mxu0 0.0
    %v7910 = vand.u32 %v7449, 4294901760
    %v7911 = vsub.f32 %v7449, %v7910
    %v7912 = vand.u32 %v7911, 4294901760
    %7913 = vmatpush.msra.mxu0 %v7912
    %v7914 = vand.u32 %v7793, 4294901760
    %7915 = vmatmul.f32.gmra.mxu0 %v7914
    %v7916 = vpop.f32.mrf.mxu0
    %v7917 = vadd.f32 %v7893, %v7916
    %7918 = vdwg.mxu0
    %7919 = vmatpush.msra.mxu0 0.0
    %7920 = vmatpush.msra.mxu0 0.0
    %7921 = vmatpush.msra.mxu0 0.0
    %7922 = vmatpush.msra.mxu0 0.0
    %7923 = vmatpush.msra.mxu0 0.0
    %7924 = vmatpush.msra.mxu0 0.0
    %7925 = vmatpush.msra.mxu0 0.0
    %7926 = vmatpush.msra.mxu0 0.0
    %7927 = vmatpush.msra.mxu0 0.0
    %7928 = vmatpush.msra.mxu0 0.0
    %7929 = vmatpush.msra.mxu0 0.0
    %7930 = vmatpush.msra.mxu0 0.0
    %7931 = vmatpush.msra.mxu0 0.0
    %7932 = vmatpush.msra.mxu0 0.0
    %7933 = vmatpush.msra.mxu0 0.0
    %v7934 = vand.u32 %v7449, 4294901760
    %7935 = vmatpush.msra.mxu0 %v7934
    %v7936 = vand.u32 %v7793, 4294901760
    %7937 = vmatmul.f32.gmra.mxu0 %v7936
    %v7938 = vpop.f32.mrf.mxu0
    %v7939 = vadd.f32 %v7917, %v7938
    %7940 = vdwg.mxu0
    %v7941 = vsel %vm800, %v7356, 0
    %7943 = vmatpush.msra.mxu0 0.0
    %7944 = vmatpush.msra.mxu0 0.0
    %7945 = vmatpush.msra.mxu0 0.0
    %7946 = vmatpush.msra.mxu0 0.0
    %7947 = vmatpush.msra.mxu0 0.0
    %7948 = vmatpush.msra.mxu0 0.0
    %7949 = vmatpush.msra.mxu0 0.0
    %7950 = vmatpush.msra.mxu0 0.0
    %7951 = vmatpush.msra.mxu0 0.0
    %7952 = vmatpush.msra.mxu0 0.0
    %7953 = vmatpush.msra.mxu0 0.0
    %7954 = vmatpush.msra.mxu0 0.0
    %7955 = vmatpush.msra.mxu0 0.0
    %7956 = vmatpush.msra.mxu0 0.0
    %7957 = vmatpush.msra.mxu0 0.0
    %v7958 = vand.u32 %v7481, 4294901760
    %7959 = vmatpush.msra.mxu0 %v7958
    %v7960 = vand.u32 %v7941, 4294901760
    %v7961 = vsub.f32 %v7941, %v7960
    %v7962 = vand.u32 %v7961, 4294901760
    %v7963 = vsub.f32 %v7961, %v7962
    %v7964 = vand.u32 %v7963, 4294901760
    %7965 = vmatmul.f32.gmra.mxu0 %v7964
    %v7966 = vpop.f32.mrf.mxu0
    %v7967 = vadd.f32 0.0, %v7966
    %7968 = vdwg.mxu0
    %7969 = vmatpush.msra.mxu0 0.0
    %7970 = vmatpush.msra.mxu0 0.0
    %7971 = vmatpush.msra.mxu0 0.0
    %7972 = vmatpush.msra.mxu0 0.0
    %7973 = vmatpush.msra.mxu0 0.0
    %7974 = vmatpush.msra.mxu0 0.0
    %7975 = vmatpush.msra.mxu0 0.0
    %7976 = vmatpush.msra.mxu0 0.0
    %7977 = vmatpush.msra.mxu0 0.0
    %7978 = vmatpush.msra.mxu0 0.0
    %7979 = vmatpush.msra.mxu0 0.0
    %7980 = vmatpush.msra.mxu0 0.0
    %7981 = vmatpush.msra.mxu0 0.0
    %7982 = vmatpush.msra.mxu0 0.0
    %7983 = vmatpush.msra.mxu0 0.0
    %v7984 = vand.u32 %v7481, 4294901760
    %v7985 = vsub.f32 %v7481, %v7984
    %v7986 = vand.u32 %v7985, 4294901760
    %v7987 = vsub.f32 %v7985, %v7986
    %v7988 = vand.u32 %v7987, 4294901760
    %7989 = vmatpush.msra.mxu0 %v7988
    %v7990 = vand.u32 %v7941, 4294901760
    %7991 = vmatmul.f32.gmra.mxu0 %v7990
    %v7992 = vpop.f32.mrf.mxu0
    %v7993 = vadd.f32 %v7967, %v7992
    %7994 = vdwg.mxu0
    %7995 = vmatpush.msra.mxu0 0.0
    %7996 = vmatpush.msra.mxu0 0.0
    %7997 = vmatpush.msra.mxu0 0.0
    %7998 = vmatpush.msra.mxu0 0.0
    %7999 = vmatpush.msra.mxu0 0.0
    %8000 = vmatpush.msra.mxu0 0.0
    %8001 = vmatpush.msra.mxu0 0.0
    %8002 = vmatpush.msra.mxu0 0.0
    %8003 = vmatpush.msra.mxu0 0.0
    %8004 = vmatpush.msra.mxu0 0.0
    %8005 = vmatpush.msra.mxu0 0.0
    %8006 = vmatpush.msra.mxu0 0.0
    %8007 = vmatpush.msra.mxu0 0.0
    %8008 = vmatpush.msra.mxu0 0.0
    %8009 = vmatpush.msra.mxu0 0.0
    %v8010 = vand.u32 %v7481, 4294901760
    %v8011 = vsub.f32 %v7481, %v8010
    %8012 = vmatpush.msra.mxu0 %v8011
    %v8013 = vand.u32 %v7941, 4294901760
    %v8014 = vsub.f32 %v7941, %v8013
    %8015 = vmatmul.f32.gmra.mxu0 %v8014
    %v8016 = vpop.f32.mrf.mxu0
    %v8017 = vadd.f32 %v7993, %v8016
    %8018 = vdwg.mxu0
    %8019 = vmatpush.msra.mxu0 0.0
    %8020 = vmatpush.msra.mxu0 0.0
    %8021 = vmatpush.msra.mxu0 0.0
    %8022 = vmatpush.msra.mxu0 0.0
    %8023 = vmatpush.msra.mxu0 0.0
    %8024 = vmatpush.msra.mxu0 0.0
    %8025 = vmatpush.msra.mxu0 0.0
    %8026 = vmatpush.msra.mxu0 0.0
    %8027 = vmatpush.msra.mxu0 0.0
    %8028 = vmatpush.msra.mxu0 0.0
    %8029 = vmatpush.msra.mxu0 0.0
    %8030 = vmatpush.msra.mxu0 0.0
    %8031 = vmatpush.msra.mxu0 0.0
    %8032 = vmatpush.msra.mxu0 0.0
    %8033 = vmatpush.msra.mxu0 0.0
    %v8034 = vand.u32 %v7481, 4294901760
    %8035 = vmatpush.msra.mxu0 %v8034
    %v8036 = vand.u32 %v7941, 4294901760
    %v8037 = vsub.f32 %v7941, %v8036
    %v8038 = vand.u32 %v8037, 4294901760
    %8039 = vmatmul.f32.gmra.mxu0 %v8038
    %v8040 = vpop.f32.mrf.mxu0
    %v8041 = vadd.f32 %v8017, %v8040
    %8042 = vdwg.mxu0
    %8043 = vmatpush.msra.mxu0 0.0
    %8044 = vmatpush.msra.mxu0 0.0
    %8045 = vmatpush.msra.mxu0 0.0
    %8046 = vmatpush.msra.mxu0 0.0
    %8047 = vmatpush.msra.mxu0 0.0
    %8048 = vmatpush.msra.mxu0 0.0
    %8049 = vmatpush.msra.mxu0 0.0
    %8050 = vmatpush.msra.mxu0 0.0
    %8051 = vmatpush.msra.mxu0 0.0
    %8052 = vmatpush.msra.mxu0 0.0
    %8053 = vmatpush.msra.mxu0 0.0
    %8054 = vmatpush.msra.mxu0 0.0
    %8055 = vmatpush.msra.mxu0 0.0
    %8056 = vmatpush.msra.mxu0 0.0
    %8057 = vmatpush.msra.mxu0 0.0
    %v8058 = vand.u32 %v7481, 4294901760
    %v8059 = vsub.f32 %v7481, %v8058
    %v8060 = vand.u32 %v8059, 4294901760
    %8061 = vmatpush.msra.mxu0 %v8060
    %v8062 = vand.u32 %v7941, 4294901760
    %8063 = vmatmul.f32.gmra.mxu0 %v8062
    %v8064 = vpop.f32.mrf.mxu0
    %v8065 = vadd.f32 %v8041, %v8064
    %8066 = vdwg.mxu0
    %8067 = vmatpush.msra.mxu0 0.0
    %8068 = vmatpush.msra.mxu0 0.0
    %8069 = vmatpush.msra.mxu0 0.0
    %8070 = vmatpush.msra.mxu0 0.0
    %8071 = vmatpush.msra.mxu0 0.0
    %8072 = vmatpush.msra.mxu0 0.0
    %8073 = vmatpush.msra.mxu0 0.0
    %8074 = vmatpush.msra.mxu0 0.0
    %8075 = vmatpush.msra.mxu0 0.0
    %8076 = vmatpush.msra.mxu0 0.0
    %8077 = vmatpush.msra.mxu0 0.0
    %8078 = vmatpush.msra.mxu0 0.0
    %8079 = vmatpush.msra.mxu0 0.0
    %8080 = vmatpush.msra.mxu0 0.0
    %8081 = vmatpush.msra.mxu0 0.0
    %v8082 = vand.u32 %v7481, 4294901760
    %8083 = vmatpush.msra.mxu0 %v8082
    %v8084 = vand.u32 %v7941, 4294901760
    %8085 = vmatmul.f32.gmra.mxu0 %v8084
    %v8086 = vpop.f32.mrf.mxu0
    %v8087 = vadd.f32 %v8065, %v8086
    %8088 = vdwg.mxu0
    %v8089 = vsel %vm800, %v7643, -inf
    %8090 = vmax.xlane.f32.xlu0 %v8089
    %v8091 = vpop.xlane.xlu0 %8090
    %v8092 = vsel %vm800, %v7791, -inf
    %8093 = vmax.xlane.f32.xlu0 %v8092
    %v8094 = vpop.xlane.xlu0 %8093
    %v8095 = vsel %vm800, %v7939, -inf
    %8096 = vmax.xlane.f32.xlu0 %v8095
    %v8097 = vpop.xlane.xlu0 %8096
    %v8098 = vsel %vm800, %v8087, -inf
    %8099 = vmax.xlane.f32.xlu0 %v8098
    %v8100 = vpop.xlane.xlu0 %8099
    %v8101 = vsub.f32 %v7643, %v8091
    %v8102 = vsub.f32 %v7791, %v8094
    %v8103 = vsub.f32 %v7939, %v8097
    %v8104 = vsub.f32 %v8087, %v8100
    %v8105 = vmul.f32 %v8101, 1.442695
    %v8106 = vpow.pop %v8105
    %v8107 = vmul.f32 %v8102, 1.442695
    %v8108 = vpow.pop %v8107
    %v8109 = vmul.f32 %v8103, 1.442695
    %v8110 = vpow.pop %v8109
    %v8111 = vmul.f32 %v8104, 1.442695
    %v8112 = vpow.pop %v8111
    %v8113 = vsel %vm800, %v8106, 0.0
    %8114 = vadd.xlane.f32.xlu0 %v8113
    %v8115 = vpop.xlane.xlu0 %8114
    %v8116 = vsel %vm800, %v8108, 0.0
    %8117 = vadd.xlane.f32.xlu0 %v8116
    %v8118 = vpop.xlane.xlu0 %8117
    %v8119 = vsel %vm800, %v8110, 0.0
    %8120 = vadd.xlane.f32.xlu0 %v8119
    %v8121 = vpop.xlane.xlu0 %8120
    %v8122 = vsel %vm800, %v8112, 0.0
    %8123 = vadd.xlane.f32.xlu0 %v8122
    %v8124 = vpop.xlane.xlu0 %8123
    %v8125 = vrcp.pop %v8115
    %v8126 = vmul.f32 %v8115, %v8125
    %v8127 = vsub.f32 1.0, %v8126
    %v8128 = vmul.f32 %v8125, %v8127
    %v8129 = vadd.f32 %v8125, %v8128
    %vm8130 = vweird.f32 %v8115
    %vm8131 = vweird.f32 %v8125
    %vm8132 = vmor %vm8130, %vm8131
    %v8133 = vsel %vm8132, %v8125, %v8129
    %v8134 = vand.u32 2147483647, %v8115
    %vm8135 = vcmp.eq.f32.partialorder %v8134, 8.507059e+37
    %v8136 = vand.u32 %v8115, 2147483648
    %v8137 = vor.u32 1.1754944e-38, %v8136
    %v8138 = vsel %vm8135, %v8137, %v8133
    %v8139 = vmul.f32 %v8106, %v8138
    %v8140 = vrcp.pop %v8118
    %v8141 = vmul.f32 %v8118, %v8140
    %v8142 = vsub.f32 1.0, %v8141
    %v8143 = vmul.f32 %v8140, %v8142
    %v8144 = vadd.f32 %v8140, %v8143
    %vm8145 = vweird.f32 %v8118
    %vm8146 = vweird.f32 %v8140
    %vm8147 = vmor %vm8145, %vm8146
    %v8148 = vsel %vm8147, %v8140, %v8144
    %v8149 = vand.u32 2147483647, %v8118
    %vm8150 = vcmp.eq.f32.partialorder %v8149, 8.507059e+37
    %v8151 = vand.u32 %v8118, 2147483648
    %v8152 = vor.u32 1.1754944e-38, %v8151
    %v8153 = vsel %vm8150, %v8152, %v8148
    %v8154 = vmul.f32 %v8108, %v8153
    %v8155 = vrcp.pop %v8121
    %v8156 = vmul.f32 %v8121, %v8155
    %v8157 = vsub.f32 1.0, %v8156
    %v8158 = vmul.f32 %v8155, %v8157
    %v8159 = vadd.f32 %v8155, %v8158
    %vm8160 = vweird.f32 %v8121
    %vm8161 = vweird.f32 %v8155
    %vm8162 = vmor %vm8160, %vm8161
    %v8163 = vsel %vm8162, %v8155, %v8159
    %v8164 = vand.u32 2147483647, %v8121
    %vm8165 = vcmp.eq.f32.partialorder %v8164, 8.507059e+37
    %v8166 = vand.u32 %v8121, 2147483648
    %v8167 = vor.u32 1.1754944e-38, %v8166
    %v8168 = vsel %vm8165, %v8167, %v8163
    %v8169 = vmul.f32 %v8110, %v8168
    %v8170 = vrcp.pop %v8124
    %v8171 = vmul.f32 %v8124, %v8170
    %v8172 = vsub.f32 1.0, %v8171
    %v8173 = vmul.f32 %v8170, %v8172
    %v8174 = vadd.f32 %v8170, %v8173
    %vm8175 = vweird.f32 %v8124
    %vm8176 = vweird.f32 %v8170
    %vm8177 = vmor %vm8175, %vm8176
    %v8178 = vsel %vm8177, %v8170, %v8174
    %v8179 = vand.u32 2147483647, %v8124
    %vm8180 = vcmp.eq.f32.partialorder %v8179, 8.507059e+37
    %v8181 = vand.u32 %v8124, 2147483648
    %v8182 = vor.u32 1.1754944e-38, %v8181
    %v8183 = vsel %vm8180, %v8182, %v8178
    %v8184 = vmul.f32 %v8112, %v8183
    %8185 = vrot.lane.b32.xlu0 %v5512, 64
    %v8186 = vpop.permute.xlu0 %8185
    %8187 = vrot.lane.b32.xlu0 %v7352, 64
    %v8188 = vpop.permute.xlu0 %8187
    %8189 = vrot.lane.b32.xlu0 %v7354, 64
    %v8190 = vpop.permute.xlu0 %8189
    %8191 = vrot.lane.b32.xlu0 %v7356, 64
    %v8192 = vpop.permute.xlu0 %8191
    %8197 = vxpose.xlu0.b32.start [1/16] %v8186, 128
    %8198 = vxpose.xlu0.b32.cont [2/16] 0.0, 128
    %8199 = vxpose.xlu0.b32.cont [3/16] 0.0, 128
    %8200 = vxpose.xlu0.b32.cont [4/16] 0.0, 128
    %8201 = vxpose.xlu0.b32.cont [5/16] 0.0, 128
    %8202 = vxpose.xlu0.b32.cont [6/16] 0.0, 128
    %8203 = vxpose.xlu0.b32.cont [7/16] 0.0, 128
    %8204 = vxpose.xlu0.b32.cont [8/16] 0.0, 128
    %8205 = vxpose.xlu0.b32.cont [9/16] 0.0, 128
    %8206 = vxpose.xlu0.b32.cont [10/16] 0.0, 128
    %8207 = vxpose.xlu0.b32.cont [11/16] 0.0, 128
    %8208 = vxpose.xlu0.b32.cont [12/16] 0.0, 128
    %8209 = vxpose.xlu0.b32.cont [13/16] 0.0, 128
    %8210 = vxpose.xlu0.b32.cont [14/16] 0.0, 128
    %8211 = vxpose.xlu0.b32.cont [15/16] 0.0, 128
    %8212 = vxpose.xlu0.b32.end [16/16] 0.0, 128
    %v8213 = vpop.trf.xlu0
    %v8214 = vpop.trf.xlu0
    %v8215 = vpop.trf.xlu0
    %v8216 = vpop.trf.xlu0
    %v8217 = vpop.trf.xlu0
    %v8218 = vpop.trf.xlu0
    %v8219 = vpop.trf.xlu0
    %v8220 = vpop.trf.xlu0
    %v8221 = vpop.trf.xlu0
    %v8222 = vpop.trf.xlu0
    %v8223 = vpop.trf.xlu0
    %v8224 = vpop.trf.xlu0
    %v8225 = vpop.trf.xlu0
    %v8226 = vpop.trf.xlu0
    %v8227 = vpop.trf.xlu0
    %v8228 = vpop.trf.xlu0
    %8229 = vxpose.xlu0.b32.start [1/16] %v8188, 128
    %8230 = vxpose.xlu0.b32.cont [2/16] 0.0, 128
    %8231 = vxpose.xlu0.b32.cont [3/16] 0.0, 128
    %8232 = vxpose.xlu0.b32.cont [4/16] 0.0, 128
    %8233 = vxpose.xlu0.b32.cont [5/16] 0.0, 128
    %8234 = vxpose.xlu0.b32.cont [6/16] 0.0, 128
    %8235 = vxpose.xlu0.b32.cont [7/16] 0.0, 128
    %8236 = vxpose.xlu0.b32.cont [8/16] 0.0, 128
    %8237 = vxpose.xlu0.b32.cont [9/16] 0.0, 128
    %8238 = vxpose.xlu0.b32.cont [10/16] 0.0, 128
    %8239 = vxpose.xlu0.b32.cont [11/16] 0.0, 128
    %8240 = vxpose.xlu0.b32.cont [12/16] 0.0, 128
    %8241 = vxpose.xlu0.b32.cont [13/16] 0.0, 128
    %8242 = vxpose.xlu0.b32.cont [14/16] 0.0, 128
    %8243 = vxpose.xlu0.b32.cont [15/16] 0.0, 128
    %8244 = vxpose.xlu0.b32.end [16/16] 0.0, 128
    %v8245 = vpop.trf.xlu0
    %v8246 = vpop.trf.xlu0
    %v8247 = vpop.trf.xlu0
    %v8248 = vpop.trf.xlu0
    %v8249 = vpop.trf.xlu0
    %v8250 = vpop.trf.xlu0
    %v8251 = vpop.trf.xlu0
    %v8252 = vpop.trf.xlu0
    %v8253 = vpop.trf.xlu0
    %v8254 = vpop.trf.xlu0
    %v8255 = vpop.trf.xlu0
    %v8256 = vpop.trf.xlu0
    %v8257 = vpop.trf.xlu0
    %v8258 = vpop.trf.xlu0
    %v8259 = vpop.trf.xlu0
    %v8260 = vpop.trf.xlu0
    %8261 = vxpose.xlu0.b32.start [1/16] %v8190, 128
    %8262 = vxpose.xlu0.b32.cont [2/16] 0.0, 128
    %8263 = vxpose.xlu0.b32.cont [3/16] 0.0, 128
    %8264 = vxpose.xlu0.b32.cont [4/16] 0.0, 128
    %8265 = vxpose.xlu0.b32.cont [5/16] 0.0, 128
    %8266 = vxpose.xlu0.b32.cont [6/16] 0.0, 128
    %8267 = vxpose.xlu0.b32.cont [7/16] 0.0, 128
    %8268 = vxpose.xlu0.b32.cont [8/16] 0.0, 128
    %8269 = vxpose.xlu0.b32.cont [9/16] 0.0, 128
    %8270 = vxpose.xlu0.b32.cont [10/16] 0.0, 128
    %8271 = vxpose.xlu0.b32.cont [11/16] 0.0, 128
    %8272 = vxpose.xlu0.b32.cont [12/16] 0.0, 128
    %8273 = vxpose.xlu0.b32.cont [13/16] 0.0, 128
    %8274 = vxpose.xlu0.b32.cont [14/16] 0.0, 128
    %8275 = vxpose.xlu0.b32.cont [15/16] 0.0, 128
    %8276 = vxpose.xlu0.b32.end [16/16] 0.0, 128
    %v8277 = vpop.trf.xlu0
    %v8278 = vpop.trf.xlu0
    %v8279 = vpop.trf.xlu0
    %v8280 = vpop.trf.xlu0
    %v8281 = vpop.trf.xlu0
    %v8282 = vpop.trf.xlu0
    %v8283 = vpop.trf.xlu0
    %v8284 = vpop.trf.xlu0
    %v8285 = vpop.trf.xlu0
    %v8286 = vpop.trf.xlu0
    %v8287 = vpop.trf.xlu0
    %v8288 = vpop.trf.xlu0
    %v8289 = vpop.trf.xlu0
    %v8290 = vpop.trf.xlu0
    %v8291 = vpop.trf.xlu0
    %v8292 = vpop.trf.xlu0
    %8293 = vxpose.xlu0.b32.start [1/16] %v8192, 128
    %8294 = vxpose.xlu0.b32.cont [2/16] 0.0, 128
    %8295 = vxpose.xlu0.b32.cont [3/16] 0.0, 128
    %8296 = vxpose.xlu0.b32.cont [4/16] 0.0, 128
    %8297 = vxpose.xlu0.b32.cont [5/16] 0.0, 128
    %8298 = vxpose.xlu0.b32.cont [6/16] 0.0, 128
    %8299 = vxpose.xlu0.b32.cont [7/16] 0.0, 128
    %8300 = vxpose.xlu0.b32.cont [8/16] 0.0, 128
    %8301 = vxpose.xlu0.b32.cont [9/16] 0.0, 128
    %8302 = vxpose.xlu0.b32.cont [10/16] 0.0, 128
    %8303 = vxpose.xlu0.b32.cont [11/16] 0.0, 128
    %8304 = vxpose.xlu0.b32.cont [12/16] 0.0, 128
    %8305 = vxpose.xlu0.b32.cont [13/16] 0.0, 128
    %8306 = vxpose.xlu0.b32.cont [14/16] 0.0, 128
    %8307 = vxpose.xlu0.b32.cont [15/16] 0.0, 128
    %8308 = vxpose.xlu0.b32.end [16/16] 0.0, 128
    %v8309 = vpop.trf.xlu0
    %v8310 = vpop.trf.xlu0
    %v8311 = vpop.trf.xlu0
    %v8312 = vpop.trf.xlu0
    %v8313 = vpop.trf.xlu0
    %v8314 = vpop.trf.xlu0
    %v8315 = vpop.trf.xlu0
    %v8316 = vpop.trf.xlu0
    %v8317 = vpop.trf.xlu0
    %v8318 = vpop.trf.xlu0
    %v8319 = vpop.trf.xlu0
    %v8320 = vpop.trf.xlu0
    %v8321 = vpop.trf.xlu0
    %v8322 = vpop.trf.xlu0
    %v8323 = vpop.trf.xlu0
    %v8324 = vpop.trf.xlu0
    %v8326 = vsel %vm800, %v8213, 0
    %v8329 = vsel %vm800, %v8139, 0
    %8331 = vmatpush.xpose.msra.mxu0 0.0
    %8332 = vmatpush.xpose.msra.mxu0 0.0
    %8333 = vmatpush.xpose.msra.mxu0 0.0
    %8334 = vmatpush.xpose.msra.mxu0 0.0
    %8335 = vmatpush.xpose.msra.mxu0 0.0
    %8336 = vmatpush.xpose.msra.mxu0 0.0
    %8337 = vmatpush.xpose.msra.mxu0 0.0
    %8338 = vmatpush.xpose.msra.mxu0 0.0
    %8339 = vmatpush.xpose.msra.mxu0 0.0
    %8340 = vmatpush.xpose.msra.mxu0 0.0
    %8341 = vmatpush.xpose.msra.mxu0 0.0
    %8342 = vmatpush.xpose.msra.mxu0 0.0
    %8343 = vmatpush.xpose.msra.mxu0 0.0
    %8344 = vmatpush.xpose.msra.mxu0 0.0
    %8345 = vmatpush.xpose.msra.mxu0 0.0
    %v8346 = vand.u32 %v8329, 4294901760
    %8347 = vmatpush.xpose.msra.mxu0 %v8346
    %v8348 = vand.u32 %v8326, 4294901760
    %v8349 = vsub.f32 %v8326, %v8348
    %v8350 = vand.u32 %v8349, 4294901760
    %v8351 = vsub.f32 %v8349, %v8350
    %v8352 = vand.u32 %v8351, 4294901760
    %8353 = vmatmul.f32.gmra.mxu0 %v8352
    %v8354 = vpop.f32.mrf.mxu0
    %v8355 = vadd.f32 0.0, %v8354
    %8356 = vdwg.mxu0
    %8357 = vmatpush.xpose.msra.mxu0 0.0
    %8358 = vmatpush.xpose.msra.mxu0 0.0
    %8359 = vmatpush.xpose.msra.mxu0 0.0
    %8360 = vmatpush.xpose.msra.mxu0 0.0
    %8361 = vmatpush.xpose.msra.mxu0 0.0
    %8362 = vmatpush.xpose.msra.mxu0 0.0
    %8363 = vmatpush.xpose.msra.mxu0 0.0
    %8364 = vmatpush.xpose.msra.mxu0 0.0
    %8365 = vmatpush.xpose.msra.mxu0 0.0
    %8366 = vmatpush.xpose.msra.mxu0 0.0
    %8367 = vmatpush.xpose.msra.mxu0 0.0
    %8368 = vmatpush.xpose.msra.mxu0 0.0
    %8369 = vmatpush.xpose.msra.mxu0 0.0
    %8370 = vmatpush.xpose.msra.mxu0 0.0
    %8371 = vmatpush.xpose.msra.mxu0 0.0
    %v8372 = vand.u32 %v8329, 4294901760
    %v8373 = vsub.f32 %v8329, %v8372
    %v8374 = vand.u32 %v8373, 4294901760
    %v8375 = vsub.f32 %v8373, %v8374
    %v8376 = vand.u32 %v8375, 4294901760
    %8377 = vmatpush.xpose.msra.mxu0 %v8376
    %v8378 = vand.u32 %v8326, 4294901760
    %8379 = vmatmul.f32.gmra.mxu0 %v8378
    %v8380 = vpop.f32.mrf.mxu0
    %v8381 = vadd.f32 %v8355, %v8380
    %8382 = vdwg.mxu0
    %8383 = vmatpush.xpose.msra.mxu0 0.0
    %8384 = vmatpush.xpose.msra.mxu0 0.0
    %8385 = vmatpush.xpose.msra.mxu0 0.0
    %8386 = vmatpush.xpose.msra.mxu0 0.0
    %8387 = vmatpush.xpose.msra.mxu0 0.0
    %8388 = vmatpush.xpose.msra.mxu0 0.0
    %8389 = vmatpush.xpose.msra.mxu0 0.0
    %8390 = vmatpush.xpose.msra.mxu0 0.0
    %8391 = vmatpush.xpose.msra.mxu0 0.0
    %8392 = vmatpush.xpose.msra.mxu0 0.0
    %8393 = vmatpush.xpose.msra.mxu0 0.0
    %8394 = vmatpush.xpose.msra.mxu0 0.0
    %8395 = vmatpush.xpose.msra.mxu0 0.0
    %8396 = vmatpush.xpose.msra.mxu0 0.0
    %8397 = vmatpush.xpose.msra.mxu0 0.0
    %v8398 = vand.u32 %v8329, 4294901760
    %v8399 = vsub.f32 %v8329, %v8398
    %8400 = vmatpush.xpose.msra.mxu0 %v8399
    %v8401 = vand.u32 %v8326, 4294901760
    %v8402 = vsub.f32 %v8326, %v8401
    %8403 = vmatmul.f32.gmra.mxu0 %v8402
    %v8404 = vpop.f32.mrf.mxu0
    %v8405 = vadd.f32 %v8381, %v8404
    %8406 = vdwg.mxu0
    %8407 = vmatpush.xpose.msra.mxu0 0.0
    %8408 = vmatpush.xpose.msra.mxu0 0.0
    %8409 = vmatpush.xpose.msra.mxu0 0.0
    %8410 = vmatpush.xpose.msra.mxu0 0.0
    %8411 = vmatpush.xpose.msra.mxu0 0.0
    %8412 = vmatpush.xpose.msra.mxu0 0.0
    %8413 = vmatpush.xpose.msra.mxu0 0.0
    %8414 = vmatpush.xpose.msra.mxu0 0.0
    %8415 = vmatpush.xpose.msra.mxu0 0.0
    %8416 = vmatpush.xpose.msra.mxu0 0.0
    %8417 = vmatpush.xpose.msra.mxu0 0.0
    %8418 = vmatpush.xpose.msra.mxu0 0.0
    %8419 = vmatpush.xpose.msra.mxu0 0.0
    %8420 = vmatpush.xpose.msra.mxu0 0.0
    %8421 = vmatpush.xpose.msra.mxu0 0.0
    %v8422 = vand.u32 %v8329, 4294901760
    %8423 = vmatpush.xpose.msra.mxu0 %v8422
    %v8424 = vand.u32 %v8326, 4294901760
    %v8425 = vsub.f32 %v8326, %v8424
    %v8426 = vand.u32 %v8425, 4294901760
    %8427 = vmatmul.f32.gmra.mxu0 %v8426
    %v8428 = vpop.f32.mrf.mxu0
    %v8429 = vadd.f32 %v8405, %v8428
    %8430 = vdwg.mxu0
    %8431 = vmatpush.xpose.msra.mxu0 0.0
    %8432 = vmatpush.xpose.msra.mxu0 0.0
    %8433 = vmatpush.xpose.msra.mxu0 0.0
    %8434 = vmatpush.xpose.msra.mxu0 0.0
    %8435 = vmatpush.xpose.msra.mxu0 0.0
    %8436 = vmatpush.xpose.msra.mxu0 0.0
    %8437 = vmatpush.xpose.msra.mxu0 0.0
    %8438 = vmatpush.xpose.msra.mxu0 0.0
    %8439 = vmatpush.xpose.msra.mxu0 0.0
    %8440 = vmatpush.xpose.msra.mxu0 0.0
    %8441 = vmatpush.xpose.msra.mxu0 0.0
    %8442 = vmatpush.xpose.msra.mxu0 0.0
    %8443 = vmatpush.xpose.msra.mxu0 0.0
    %8444 = vmatpush.xpose.msra.mxu0 0.0
    %8445 = vmatpush.xpose.msra.mxu0 0.0
    %v8446 = vand.u32 %v8329, 4294901760
    %v8447 = vsub.f32 %v8329, %v8446
    %v8448 = vand.u32 %v8447, 4294901760
    %8449 = vmatpush.xpose.msra.mxu0 %v8448
    %v8450 = vand.u32 %v8326, 4294901760
    %8451 = vmatmul.f32.gmra.mxu0 %v8450
    %v8452 = vpop.f32.mrf.mxu0
    %v8453 = vadd.f32 %v8429, %v8452
    %8454 = vdwg.mxu0
    %8455 = vmatpush.xpose.msra.mxu0 0.0
    %8456 = vmatpush.xpose.msra.mxu0 0.0
    %8457 = vmatpush.xpose.msra.mxu0 0.0
    %8458 = vmatpush.xpose.msra.mxu0 0.0
    %8459 = vmatpush.xpose.msra.mxu0 0.0
    %8460 = vmatpush.xpose.msra.mxu0 0.0
    %8461 = vmatpush.xpose.msra.mxu0 0.0
    %8462 = vmatpush.xpose.msra.mxu0 0.0
    %8463 = vmatpush.xpose.msra.mxu0 0.0
    %8464 = vmatpush.xpose.msra.mxu0 0.0
    %8465 = vmatpush.xpose.msra.mxu0 0.0
    %8466 = vmatpush.xpose.msra.mxu0 0.0
    %8467 = vmatpush.xpose.msra.mxu0 0.0
    %8468 = vmatpush.xpose.msra.mxu0 0.0
    %8469 = vmatpush.xpose.msra.mxu0 0.0
    %v8470 = vand.u32 %v8329, 4294901760
    %8471 = vmatpush.xpose.msra.mxu0 %v8470
    %v8472 = vand.u32 %v8326, 4294901760
    %8473 = vmatmul.f32.gmra.mxu0 %v8472
    %v8474 = vpop.f32.mrf.mxu0
    %v8475 = vadd.f32 %v8453, %v8474
    %8476 = vdwg.mxu0
    %v8478 = vsel %vm800, %v8245, 0
    %v8481 = vsel %vm800, %v8154, 0
    %8483 = vmatpush.xpose.msra.mxu0 0.0
    %8484 = vmatpush.xpose.msra.mxu0 0.0
    %8485 = vmatpush.xpose.msra.mxu0 0.0
    %8486 = vmatpush.xpose.msra.mxu0 0.0
    %8487 = vmatpush.xpose.msra.mxu0 0.0
    %8488 = vmatpush.xpose.msra.mxu0 0.0
    %8489 = vmatpush.xpose.msra.mxu0 0.0
    %8490 = vmatpush.xpose.msra.mxu0 0.0
    %8491 = vmatpush.xpose.msra.mxu0 0.0
    %8492 = vmatpush.xpose.msra.mxu0 0.0
    %8493 = vmatpush.xpose.msra.mxu0 0.0
    %8494 = vmatpush.xpose.msra.mxu0 0.0
    %8495 = vmatpush.xpose.msra.mxu0 0.0
    %8496 = vmatpush.xpose.msra.mxu0 0.0
    %8497 = vmatpush.xpose.msra.mxu0 0.0
    %v8498 = vand.u32 %v8481, 4294901760
    %8499 = vmatpush.xpose.msra.mxu0 %v8498
    %v8500 = vand.u32 %v8478, 4294901760
    %v8501 = vsub.f32 %v8478, %v8500
    %v8502 = vand.u32 %v8501, 4294901760
    %v8503 = vsub.f32 %v8501, %v8502
    %v8504 = vand.u32 %v8503, 4294901760
    %8505 = vmatmul.f32.gmra.mxu0 %v8504
    %v8506 = vpop.f32.mrf.mxu0
    %v8507 = vadd.f32 0.0, %v8506
    %8508 = vdwg.mxu0
    %8509 = vmatpush.xpose.msra.mxu0 0.0
    %8510 = vmatpush.xpose.msra.mxu0 0.0
    %8511 = vmatpush.xpose.msra.mxu0 0.0
    %8512 = vmatpush.xpose.msra.mxu0 0.0
    %8513 = vmatpush.xpose.msra.mxu0 0.0
    %8514 = vmatpush.xpose.msra.mxu0 0.0
    %8515 = vmatpush.xpose.msra.mxu0 0.0
    %8516 = vmatpush.xpose.msra.mxu0 0.0
    %8517 = vmatpush.xpose.msra.mxu0 0.0
    %8518 = vmatpush.xpose.msra.mxu0 0.0
    %8519 = vmatpush.xpose.msra.mxu0 0.0
    %8520 = vmatpush.xpose.msra.mxu0 0.0
    %8521 = vmatpush.xpose.msra.mxu0 0.0
    %8522 = vmatpush.xpose.msra.mxu0 0.0
    %8523 = vmatpush.xpose.msra.mxu0 0.0
    %v8524 = vand.u32 %v8481, 4294901760
    %v8525 = vsub.f32 %v8481, %v8524
    %v8526 = vand.u32 %v8525, 4294901760
    %v8527 = vsub.f32 %v8525, %v8526
    %v8528 = vand.u32 %v8527, 4294901760
    %8529 = vmatpush.xpose.msra.mxu0 %v8528
    %v8530 = vand.u32 %v8478, 4294901760
    %8531 = vmatmul.f32.gmra.mxu0 %v8530
    %v8532 = vpop.f32.mrf.mxu0
    %v8533 = vadd.f32 %v8507, %v8532
    %8534 = vdwg.mxu0
    %8535 = vmatpush.xpose.msra.mxu0 0.0
    %8536 = vmatpush.xpose.msra.mxu0 0.0
    %8537 = vmatpush.xpose.msra.mxu0 0.0
    %8538 = vmatpush.xpose.msra.mxu0 0.0
    %8539 = vmatpush.xpose.msra.mxu0 0.0
    %8540 = vmatpush.xpose.msra.mxu0 0.0
    %8541 = vmatpush.xpose.msra.mxu0 0.0
    %8542 = vmatpush.xpose.msra.mxu0 0.0
    %8543 = vmatpush.xpose.msra.mxu0 0.0
    %8544 = vmatpush.xpose.msra.mxu0 0.0
    %8545 = vmatpush.xpose.msra.mxu0 0.0
    %8546 = vmatpush.xpose.msra.mxu0 0.0
    %8547 = vmatpush.xpose.msra.mxu0 0.0
    %8548 = vmatpush.xpose.msra.mxu0 0.0
    %8549 = vmatpush.xpose.msra.mxu0 0.0
    %v8550 = vand.u32 %v8481, 4294901760
    %v8551 = vsub.f32 %v8481, %v8550
    %8552 = vmatpush.xpose.msra.mxu0 %v8551
    %v8553 = vand.u32 %v8478, 4294901760
    %v8554 = vsub.f32 %v8478, %v8553
    %8555 = vmatmul.f32.gmra.mxu0 %v8554
    %v8556 = vpop.f32.mrf.mxu0
    %v8557 = vadd.f32 %v8533, %v8556
    %8558 = vdwg.mxu0
    %8559 = vmatpush.xpose.msra.mxu0 0.0
    %8560 = vmatpush.xpose.msra.mxu0 0.0
    %8561 = vmatpush.xpose.msra.mxu0 0.0
    %8562 = vmatpush.xpose.msra.mxu0 0.0
    %8563 = vmatpush.xpose.msra.mxu0 0.0
    %8564 = vmatpush.xpose.msra.mxu0 0.0
    %8565 = vmatpush.xpose.msra.mxu0 0.0
    %8566 = vmatpush.xpose.msra.mxu0 0.0
    %8567 = vmatpush.xpose.msra.mxu0 0.0
    %8568 = vmatpush.xpose.msra.mxu0 0.0
    %8569 = vmatpush.xpose.msra.mxu0 0.0
    %8570 = vmatpush.xpose.msra.mxu0 0.0
    %8571 = vmatpush.xpose.msra.mxu0 0.0
    %8572 = vmatpush.xpose.msra.mxu0 0.0
    %8573 = vmatpush.xpose.msra.mxu0 0.0
    %v8574 = vand.u32 %v8481, 4294901760
    %8575 = vmatpush.xpose.msra.mxu0 %v8574
    %v8576 = vand.u32 %v8478, 4294901760
    %v8577 = vsub.f32 %v8478, %v8576
    %v8578 = vand.u32 %v8577, 4294901760
    %8579 = vmatmul.f32.gmra.mxu0 %v8578
    %v8580 = vpop.f32.mrf.mxu0
    %v8581 = vadd.f32 %v8557, %v8580
    %8582 = vdwg.mxu0
    %8583 = vmatpush.xpose.msra.mxu0 0.0
    %8584 = vmatpush.xpose.msra.mxu0 0.0
    %8585 = vmatpush.xpose.msra.mxu0 0.0
    %8586 = vmatpush.xpose.msra.mxu0 0.0
    %8587 = vmatpush.xpose.msra.mxu0 0.0
    %8588 = vmatpush.xpose.msra.mxu0 0.0
    %8589 = vmatpush.xpose.msra.mxu0 0.0
    %8590 = vmatpush.xpose.msra.mxu0 0.0
    %8591 = vmatpush.xpose.msra.mxu0 0.0
    %8592 = vmatpush.xpose.msra.mxu0 0.0
    %8593 = vmatpush.xpose.msra.mxu0 0.0
    %8594 = vmatpush.xpose.msra.mxu0 0.0
    %8595 = vmatpush.xpose.msra.mxu0 0.0
    %8596 = vmatpush.xpose.msra.mxu0 0.0
    %8597 = vmatpush.xpose.msra.mxu0 0.0
    %v8598 = vand.u32 %v8481, 4294901760
    %v8599 = vsub.f32 %v8481, %v8598
    %v8600 = vand.u32 %v8599, 4294901760
    %8601 = vmatpush.xpose.msra.mxu0 %v8600
    %v8602 = vand.u32 %v8478, 4294901760
    %8603 = vmatmul.f32.gmra.mxu0 %v8602
    %v8604 = vpop.f32.mrf.mxu0
    %v8605 = vadd.f32 %v8581, %v8604
    %8606 = vdwg.mxu0
    %8607 = vmatpush.xpose.msra.mxu0 0.0
    %8608 = vmatpush.xpose.msra.mxu0 0.0
    %8609 = vmatpush.xpose.msra.mxu0 0.0
    %8610 = vmatpush.xpose.msra.mxu0 0.0
    %8611 = vmatpush.xpose.msra.mxu0 0.0
    %8612 = vmatpush.xpose.msra.mxu0 0.0
    %8613 = vmatpush.xpose.msra.mxu0 0.0
    %8614 = vmatpush.xpose.msra.mxu0 0.0
    %8615 = vmatpush.xpose.msra.mxu0 0.0
    %8616 = vmatpush.xpose.msra.mxu0 0.0
    %8617 = vmatpush.xpose.msra.mxu0 0.0
    %8618 = vmatpush.xpose.msra.mxu0 0.0
    %8619 = vmatpush.xpose.msra.mxu0 0.0
    %8620 = vmatpush.xpose.msra.mxu0 0.0
    %8621 = vmatpush.xpose.msra.mxu0 0.0
    %v8622 = vand.u32 %v8481, 4294901760
    %8623 = vmatpush.xpose.msra.mxu0 %v8622
    %v8624 = vand.u32 %v8478, 4294901760
    %8625 = vmatmul.f32.gmra.mxu0 %v8624
    %v8626 = vpop.f32.mrf.mxu0
    %v8627 = vadd.f32 %v8605, %v8626
    %8628 = vdwg.mxu0
    %v8630 = vsel %vm800, %v8277, 0
    %v8633 = vsel %vm800, %v8169, 0
    %8635 = vmatpush.xpose.msra.mxu0 0.0
    %8636 = vmatpush.xpose.msra.mxu0 0.0
    %8637 = vmatpush.xpose.msra.mxu0 0.0
    %8638 = vmatpush.xpose.msra.mxu0 0.0
    %8639 = vmatpush.xpose.msra.mxu0 0.0
    %8640 = vmatpush.xpose.msra.mxu0 0.0
    %8641 = vmatpush.xpose.msra.mxu0 0.0
    %8642 = vmatpush.xpose.msra.mxu0 0.0
    %8643 = vmatpush.xpose.msra.mxu0 0.0
    %8644 = vmatpush.xpose.msra.mxu0 0.0
    %8645 = vmatpush.xpose.msra.mxu0 0.0
    %8646 = vmatpush.xpose.msra.mxu0 0.0
    %8647 = vmatpush.xpose.msra.mxu0 0.0
    %8648 = vmatpush.xpose.msra.mxu0 0.0
    %8649 = vmatpush.xpose.msra.mxu0 0.0
    %v8650 = vand.u32 %v8633, 4294901760
    %8651 = vmatpush.xpose.msra.mxu0 %v8650
    %v8652 = vand.u32 %v8630, 4294901760
    %v8653 = vsub.f32 %v8630, %v8652
    %v8654 = vand.u32 %v8653, 4294901760
    %v8655 = vsub.f32 %v8653, %v8654
    %v8656 = vand.u32 %v8655, 4294901760
    %8657 = vmatmul.f32.gmra.mxu0 %v8656
    %v8658 = vpop.f32.mrf.mxu0
    %v8659 = vadd.f32 0.0, %v8658
    %8660 = vdwg.mxu0
    %8661 = vmatpush.xpose.msra.mxu0 0.0
    %8662 = vmatpush.xpose.msra.mxu0 0.0
    %8663 = vmatpush.xpose.msra.mxu0 0.0
    %8664 = vmatpush.xpose.msra.mxu0 0.0
    %8665 = vmatpush.xpose.msra.mxu0 0.0
    %8666 = vmatpush.xpose.msra.mxu0 0.0
    %8667 = vmatpush.xpose.msra.mxu0 0.0
    %8668 = vmatpush.xpose.msra.mxu0 0.0
    %8669 = vmatpush.xpose.msra.mxu0 0.0
    %8670 = vmatpush.xpose.msra.mxu0 0.0
    %8671 = vmatpush.xpose.msra.mxu0 0.0
    %8672 = vmatpush.xpose.msra.mxu0 0.0
    %8673 = vmatpush.xpose.msra.mxu0 0.0
    %8674 = vmatpush.xpose.msra.mxu0 0.0
    %8675 = vmatpush.xpose.msra.mxu0 0.0
    %v8676 = vand.u32 %v8633, 4294901760
    %v8677 = vsub.f32 %v8633, %v8676
    %v8678 = vand.u32 %v8677, 4294901760
    %v8679 = vsub.f32 %v8677, %v8678
    %v8680 = vand.u32 %v8679, 4294901760
    %8681 = vmatpush.xpose.msra.mxu0 %v8680
    %v8682 = vand.u32 %v8630, 4294901760
    %8683 = vmatmul.f32.gmra.mxu0 %v8682
    %v8684 = vpop.f32.mrf.mxu0
    %v8685 = vadd.f32 %v8659, %v8684
    %8686 = vdwg.mxu0
    %8687 = vmatpush.xpose.msra.mxu0 0.0
    %8688 = vmatpush.xpose.msra.mxu0 0.0
    %8689 = vmatpush.xpose.msra.mxu0 0.0
    %8690 = vmatpush.xpose.msra.mxu0 0.0
    %8691 = vmatpush.xpose.msra.mxu0 0.0
    %8692 = vmatpush.xpose.msra.mxu0 0.0
    %8693 = vmatpush.xpose.msra.mxu0 0.0
    %8694 = vmatpush.xpose.msra.mxu0 0.0
    %8695 = vmatpush.xpose.msra.mxu0 0.0
    %8696 = vmatpush.xpose.msra.mxu0 0.0
    %8697 = vmatpush.xpose.msra.mxu0 0.0
    %8698 = vmatpush.xpose.msra.mxu0 0.0
    %8699 = vmatpush.xpose.msra.mxu0 0.0
    %8700 = vmatpush.xpose.msra.mxu0 0.0
    %8701 = vmatpush.xpose.msra.mxu0 0.0
    %v8702 = vand.u32 %v8633, 4294901760
    %v8703 = vsub.f32 %v8633, %v8702
    %8704 = vmatpush.xpose.msra.mxu0 %v8703
    %v8705 = vand.u32 %v8630, 4294901760
    %v8706 = vsub.f32 %v8630, %v8705
    %8707 = vmatmul.f32.gmra.mxu0 %v8706
    %v8708 = vpop.f32.mrf.mxu0
    %v8709 = vadd.f32 %v8685, %v8708
    %8710 = vdwg.mxu0
    %8711 = vmatpush.xpose.msra.mxu0 0.0
    %8712 = vmatpush.xpose.msra.mxu0 0.0
    %8713 = vmatpush.xpose.msra.mxu0 0.0
    %8714 = vmatpush.xpose.msra.mxu0 0.0
    %8715 = vmatpush.xpose.msra.mxu0 0.0
    %8716 = vmatpush.xpose.msra.mxu0 0.0
    %8717 = vmatpush.xpose.msra.mxu0 0.0
    %8718 = vmatpush.xpose.msra.mxu0 0.0
    %8719 = vmatpush.xpose.msra.mxu0 0.0
    %8720 = vmatpush.xpose.msra.mxu0 0.0
    %8721 = vmatpush.xpose.msra.mxu0 0.0
    %8722 = vmatpush.xpose.msra.mxu0 0.0
    %8723 = vmatpush.xpose.msra.mxu0 0.0
    %8724 = vmatpush.xpose.msra.mxu0 0.0
    %8725 = vmatpush.xpose.msra.mxu0 0.0
    %v8726 = vand.u32 %v8633, 4294901760
    %8727 = vmatpush.xpose.msra.mxu0 %v8726
    %v8728 = vand.u32 %v8630, 4294901760
    %v8729 = vsub.f32 %v8630, %v8728
    %v8730 = vand.u32 %v8729, 4294901760
    %8731 = vmatmul.f32.gmra.mxu0 %v8730
    %v8732 = vpop.f32.mrf.mxu0
    %v8733 = vadd.f32 %v8709, %v8732
    %8734 = vdwg.mxu0
    %8735 = vmatpush.xpose.msra.mxu0 0.0
    %8736 = vmatpush.xpose.msra.mxu0 0.0
    %8737 = vmatpush.xpose.msra.mxu0 0.0
    %8738 = vmatpush.xpose.msra.mxu0 0.0
    %8739 = vmatpush.xpose.msra.mxu0 0.0
    %8740 = vmatpush.xpose.msra.mxu0 0.0
    %8741 = vmatpush.xpose.msra.mxu0 0.0
    %8742 = vmatpush.xpose.msra.mxu0 0.0
    %8743 = vmatpush.xpose.msra.mxu0 0.0
    %8744 = vmatpush.xpose.msra.mxu0 0.0
    %8745 = vmatpush.xpose.msra.mxu0 0.0
    %8746 = vmatpush.xpose.msra.mxu0 0.0
    %8747 = vmatpush.xpose.msra.mxu0 0.0
    %8748 = vmatpush.xpose.msra.mxu0 0.0
    %8749 = vmatpush.xpose.msra.mxu0 0.0
    %v8750 = vand.u32 %v8633, 4294901760
    %v8751 = vsub.f32 %v8633, %v8750
    %v8752 = vand.u32 %v8751, 4294901760
    %8753 = vmatpush.xpose.msra.mxu0 %v8752
    %v8754 = vand.u32 %v8630, 4294901760
    %8755 = vmatmul.f32.gmra.mxu0 %v8754
    %v8756 = vpop.f32.mrf.mxu0
    %v8757 = vadd.f32 %v8733, %v8756
    %8758 = vdwg.mxu0
    %8759 = vmatpush.xpose.msra.mxu0 0.0
    %8760 = vmatpush.xpose.msra.mxu0 0.0
    %8761 = vmatpush.xpose.msra.mxu0 0.0
    %8762 = vmatpush.xpose.msra.mxu0 0.0
    %8763 = vmatpush.xpose.msra.mxu0 0.0
    %8764 = vmatpush.xpose.msra.mxu0 0.0
    %8765 = vmatpush.xpose.msra.mxu0 0.0
    %8766 = vmatpush.xpose.msra.mxu0 0.0
    %8767 = vmatpush.xpose.msra.mxu0 0.0
    %8768 = vmatpush.xpose.msra.mxu0 0.0
    %8769 = vmatpush.xpose.msra.mxu0 0.0
    %8770 = vmatpush.xpose.msra.mxu0 0.0
    %8771 = vmatpush.xpose.msra.mxu0 0.0
    %8772 = vmatpush.xpose.msra.mxu0 0.0
    %8773 = vmatpush.xpose.msra.mxu0 0.0
    %v8774 = vand.u32 %v8633, 4294901760
    %8775 = vmatpush.xpose.msra.mxu0 %v8774
    %v8776 = vand.u32 %v8630, 4294901760
    %8777 = vmatmul.f32.gmra.mxu0 %v8776
    %v8778 = vpop.f32.mrf.mxu0
    %v8779 = vadd.f32 %v8757, %v8778
    %8780 = vdwg.mxu0
    %v8782 = vsel %vm800, %v8309, 0
    %v8785 = vsel %vm800, %v8184, 0
    %8787 = vmatpush.xpose.msra.mxu0 0.0
    %8788 = vmatpush.xpose.msra.mxu0 0.0
    %8789 = vmatpush.xpose.msra.mxu0 0.0
    %8790 = vmatpush.xpose.msra.mxu0 0.0
    %8791 = vmatpush.xpose.msra.mxu0 0.0
    %8792 = vmatpush.xpose.msra.mxu0 0.0
    %8793 = vmatpush.xpose.msra.mxu0 0.0
    %8794 = vmatpush.xpose.msra.mxu0 0.0
    %8795 = vmatpush.xpose.msra.mxu0 0.0
    %8796 = vmatpush.xpose.msra.mxu0 0.0
    %8797 = vmatpush.xpose.msra.mxu0 0.0
    %8798 = vmatpush.xpose.msra.mxu0 0.0
    %8799 = vmatpush.xpose.msra.mxu0 0.0
    %8800 = vmatpush.xpose.msra.mxu0 0.0
    %8801 = vmatpush.xpose.msra.mxu0 0.0
    %v8802 = vand.u32 %v8785, 4294901760
    %8803 = vmatpush.xpose.msra.mxu0 %v8802
    %v8804 = vand.u32 %v8782, 4294901760
    %v8805 = vsub.f32 %v8782, %v8804
    %v8806 = vand.u32 %v8805, 4294901760
    %v8807 = vsub.f32 %v8805, %v8806
    %v8808 = vand.u32 %v8807, 4294901760
    %8809 = vmatmul.f32.gmra.mxu0 %v8808
    %v8810 = vpop.f32.mrf.mxu0
    %v8811 = vadd.f32 0.0, %v8810
    %8812 = vdwg.mxu0
    %8813 = vmatpush.xpose.msra.mxu0 0.0
    %8814 = vmatpush.xpose.msra.mxu0 0.0
    %8815 = vmatpush.xpose.msra.mxu0 0.0
    %8816 = vmatpush.xpose.msra.mxu0 0.0
    %8817 = vmatpush.xpose.msra.mxu0 0.0
    %8818 = vmatpush.xpose.msra.mxu0 0.0
    %8819 = vmatpush.xpose.msra.mxu0 0.0
    %8820 = vmatpush.xpose.msra.mxu0 0.0
    %8821 = vmatpush.xpose.msra.mxu0 0.0
    %8822 = vmatpush.xpose.msra.mxu0 0.0
    %8823 = vmatpush.xpose.msra.mxu0 0.0
    %8824 = vmatpush.xpose.msra.mxu0 0.0
    %8825 = vmatpush.xpose.msra.mxu0 0.0
    %8826 = vmatpush.xpose.msra.mxu0 0.0
    %8827 = vmatpush.xpose.msra.mxu0 0.0
    %v8828 = vand.u32 %v8785, 4294901760
    %v8829 = vsub.f32 %v8785, %v8828
    %v8830 = vand.u32 %v8829, 4294901760
    %v8831 = vsub.f32 %v8829, %v8830
    %v8832 = vand.u32 %v8831, 4294901760
    %8833 = vmatpush.xpose.msra.mxu0 %v8832
    %v8834 = vand.u32 %v8782, 4294901760
    %8835 = vmatmul.f32.gmra.mxu0 %v8834
    %v8836 = vpop.f32.mrf.mxu0
    %v8837 = vadd.f32 %v8811, %v8836
    %8838 = vdwg.mxu0
    %8839 = vmatpush.xpose.msra.mxu0 0.0
    %8840 = vmatpush.xpose.msra.mxu0 0.0
    %8841 = vmatpush.xpose.msra.mxu0 0.0
    %8842 = vmatpush.xpose.msra.mxu0 0.0
    %8843 = vmatpush.xpose.msra.mxu0 0.0
    %8844 = vmatpush.xpose.msra.mxu0 0.0
    %8845 = vmatpush.xpose.msra.mxu0 0.0
    %8846 = vmatpush.xpose.msra.mxu0 0.0
    %8847 = vmatpush.xpose.msra.mxu0 0.0
    %8848 = vmatpush.xpose.msra.mxu0 0.0
    %8849 = vmatpush.xpose.msra.mxu0 0.0
    %8850 = vmatpush.xpose.msra.mxu0 0.0
    %8851 = vmatpush.xpose.msra.mxu0 0.0
    %8852 = vmatpush.xpose.msra.mxu0 0.0
    %8853 = vmatpush.xpose.msra.mxu0 0.0
    %v8854 = vand.u32 %v8785, 4294901760
    %v8855 = vsub.f32 %v8785, %v8854
    %8856 = vmatpush.xpose.msra.mxu0 %v8855
    %v8857 = vand.u32 %v8782, 4294901760
    %v8858 = vsub.f32 %v8782, %v8857
    %8859 = vmatmul.f32.gmra.mxu0 %v8858
    %v8860 = vpop.f32.mrf.mxu0
    %v8861 = vadd.f32 %v8837, %v8860
    %8862 = vdwg.mxu0
    %8863 = vmatpush.xpose.msra.mxu0 0.0
    %8864 = vmatpush.xpose.msra.mxu0 0.0
    %8865 = vmatpush.xpose.msra.mxu0 0.0
    %8866 = vmatpush.xpose.msra.mxu0 0.0
    %8867 = vmatpush.xpose.msra.mxu0 0.0
    %8868 = vmatpush.xpose.msra.mxu0 0.0
    %8869 = vmatpush.xpose.msra.mxu0 0.0
    %8870 = vmatpush.xpose.msra.mxu0 0.0
    %8871 = vmatpush.xpose.msra.mxu0 0.0
    %8872 = vmatpush.xpose.msra.mxu0 0.0
    %8873 = vmatpush.xpose.msra.mxu0 0.0
    %8874 = vmatpush.xpose.msra.mxu0 0.0
    %8875 = vmatpush.xpose.msra.mxu0 0.0
    %8876 = vmatpush.xpose.msra.mxu0 0.0
    %8877 = vmatpush.xpose.msra.mxu0 0.0
    %v8878 = vand.u32 %v8785, 4294901760
    %8879 = vmatpush.xpose.msra.mxu0 %v8878
    %v8880 = vand.u32 %v8782, 4294901760
    %v8881 = vsub.f32 %v8782, %v8880
    %v8882 = vand.u32 %v8881, 4294901760
    %8883 = vmatmul.f32.gmra.mxu0 %v8882
    %v8884 = vpop.f32.mrf.mxu0
    %v8885 = vadd.f32 %v8861, %v8884
    %8886 = vdwg.mxu0
    %8887 = vmatpush.xpose.msra.mxu0 0.0
    %8888 = vmatpush.xpose.msra.mxu0 0.0
    %8889 = vmatpush.xpose.msra.mxu0 0.0
    %8890 = vmatpush.xpose.msra.mxu0 0.0
    %8891 = vmatpush.xpose.msra.mxu0 0.0
    %8892 = vmatpush.xpose.msra.mxu0 0.0
    %8893 = vmatpush.xpose.msra.mxu0 0.0
    %8894 = vmatpush.xpose.msra.mxu0 0.0
    %8895 = vmatpush.xpose.msra.mxu0 0.0
    %8896 = vmatpush.xpose.msra.mxu0 0.0
    %8897 = vmatpush.xpose.msra.mxu0 0.0
    %8898 = vmatpush.xpose.msra.mxu0 0.0
    %8899 = vmatpush.xpose.msra.mxu0 0.0
    %8900 = vmatpush.xpose.msra.mxu0 0.0
    %8901 = vmatpush.xpose.msra.mxu0 0.0
    %v8902 = vand.u32 %v8785, 4294901760
    %v8903 = vsub.f32 %v8785, %v8902
    %v8904 = vand.u32 %v8903, 4294901760
    %8905 = vmatpush.xpose.msra.mxu0 %v8904
    %v8906 = vand.u32 %v8782, 4294901760
    %8907 = vmatmul.f32.gmra.mxu0 %v8906
    %v8908 = vpop.f32.mrf.mxu0
    %v8909 = vadd.f32 %v8885, %v8908
    %8910 = vdwg.mxu0
    %8911 = vmatpush.xpose.msra.mxu0 0.0
    %8912 = vmatpush.xpose.msra.mxu0 0.0
    %8913 = vmatpush.xpose.msra.mxu0 0.0
    %8914 = vmatpush.xpose.msra.mxu0 0.0
    %8915 = vmatpush.xpose.msra.mxu0 0.0
    %8916 = vmatpush.xpose.msra.mxu0 0.0
    %8917 = vmatpush.xpose.msra.mxu0 0.0
    %8918 = vmatpush.xpose.msra.mxu0 0.0
    %8919 = vmatpush.xpose.msra.mxu0 0.0
    %8920 = vmatpush.xpose.msra.mxu0 0.0
    %8921 = vmatpush.xpose.msra.mxu0 0.0
    %8922 = vmatpush.xpose.msra.mxu0 0.0
    %8923 = vmatpush.xpose.msra.mxu0 0.0
    %8924 = vmatpush.xpose.msra.mxu0 0.0
    %8925 = vmatpush.xpose.msra.mxu0 0.0
    %v8926 = vand.u32 %v8785, 4294901760
    %8927 = vmatpush.xpose.msra.mxu0 %v8926
    %v8928 = vand.u32 %v8782, 4294901760
    %8929 = vmatmul.f32.gmra.mxu0 %v8928
    %v8930 = vpop.f32.mrf.mxu0
    %v8931 = vadd.f32 %v8909, %v8930
    %8932 = vdwg.mxu0
    %8933 = vxpose.xlu0.b32.start [1/16] %v8475, 128
    %8934 = vxpose.xlu0.b32.cont [2/16] 0.0, 128
    %8935 = vxpose.xlu0.b32.cont [3/16] 0.0, 128
    %8936 = vxpose.xlu0.b32.cont [4/16] 0.0, 128
    %8937 = vxpose.xlu0.b32.cont [5/16] 0.0, 128
    %8938 = vxpose.xlu0.b32.cont [6/16] 0.0, 128
    %8939 = vxpose.xlu0.b32.cont [7/16] 0.0, 128
    %8940 = vxpose.xlu0.b32.cont [8/16] 0.0, 128
    %8941 = vxpose.xlu0.b32.cont [9/16] 0.0, 128
    %8942 = vxpose.xlu0.b32.cont [10/16] 0.0, 128
    %8943 = vxpose.xlu0.b32.cont [11/16] 0.0, 128
    %8944 = vxpose.xlu0.b32.cont [12/16] 0.0, 128
    %8945 = vxpose.xlu0.b32.cont [13/16] 0.0, 128
    %8946 = vxpose.xlu0.b32.cont [14/16] 0.0, 128
    %8947 = vxpose.xlu0.b32.cont [15/16] 0.0, 128
    %8948 = vxpose.xlu0.b32.end [16/16] 0.0, 128
    %v8949 = vpop.trf.xlu0
    %v8950 = vpop.trf.xlu0
    %v8951 = vpop.trf.xlu0
    %v8952 = vpop.trf.xlu0
    %v8953 = vpop.trf.xlu0
    %v8954 = vpop.trf.xlu0
    %v8955 = vpop.trf.xlu0
    %v8956 = vpop.trf.xlu0
    %v8957 = vpop.trf.xlu0
    %v8958 = vpop.trf.xlu0
    %v8959 = vpop.trf.xlu0
    %v8960 = vpop.trf.xlu0
    %v8961 = vpop.trf.xlu0
    %v8962 = vpop.trf.xlu0
    %v8963 = vpop.trf.xlu0
    %v8964 = vpop.trf.xlu0
    %8965 = vxpose.xlu0.b32.start [1/16] %v8627, 128
    %8966 = vxpose.xlu0.b32.cont [2/16] 0.0, 128
    %8967 = vxpose.xlu0.b32.cont [3/16] 0.0, 128
    %8968 = vxpose.xlu0.b32.cont [4/16] 0.0, 128
    %8969 = vxpose.xlu0.b32.cont [5/16] 0.0, 128
    %8970 = vxpose.xlu0.b32.cont [6/16] 0.0, 128
    %8971 = vxpose.xlu0.b32.cont [7/16] 0.0, 128
    %8972 = vxpose.xlu0.b32.cont [8/16] 0.0, 128
    %8973 = vxpose.xlu0.b32.cont [9/16] 0.0, 128
    %8974 = vxpose.xlu0.b32.cont [10/16] 0.0, 128
    %8975 = vxpose.xlu0.b32.cont [11/16] 0.0, 128
    %8976 = vxpose.xlu0.b32.cont [12/16] 0.0, 128
    %8977 = vxpose.xlu0.b32.cont [13/16] 0.0, 128
    %8978 = vxpose.xlu0.b32.cont [14/16] 0.0, 128
    %8979 = vxpose.xlu0.b32.cont [15/16] 0.0, 128
    %8980 = vxpose.xlu0.b32.end [16/16] 0.0, 128
    %v8981 = vpop.trf.xlu0
    %v8982 = vpop.trf.xlu0
    %v8983 = vpop.trf.xlu0
    %v8984 = vpop.trf.xlu0
    %v8985 = vpop.trf.xlu0
    %v8986 = vpop.trf.xlu0
    %v8987 = vpop.trf.xlu0
    %v8988 = vpop.trf.xlu0
    %v8989 = vpop.trf.xlu0
    %v8990 = vpop.trf.xlu0
    %v8991 = vpop.trf.xlu0
    %v8992 = vpop.trf.xlu0
    %v8993 = vpop.trf.xlu0
    %v8994 = vpop.trf.xlu0
    %v8995 = vpop.trf.xlu0
    %v8996 = vpop.trf.xlu0
    %8997 = vxpose.xlu0.b32.start [1/16] %v8779, 128
    %8998 = vxpose.xlu0.b32.cont [2/16] 0.0, 128
    %8999 = vxpose.xlu0.b32.cont [3/16] 0.0, 128
    %9000 = vxpose.xlu0.b32.cont [4/16] 0.0, 128
    %9001 = vxpose.xlu0.b32.cont [5/16] 0.0, 128
    %9002 = vxpose.xlu0.b32.cont [6/16] 0.0, 128
    %9003 = vxpose.xlu0.b32.cont [7/16] 0.0, 128
    %9004 = vxpose.xlu0.b32.cont [8/16] 0.0, 128
    %9005 = vxpose.xlu0.b32.cont [9/16] 0.0, 128
    %9006 = vxpose.xlu0.b32.cont [10/16] 0.0, 128
    %9007 = vxpose.xlu0.b32.cont [11/16] 0.0, 128
    %9008 = vxpose.xlu0.b32.cont [12/16] 0.0, 128
    %9009 = vxpose.xlu0.b32.cont [13/16] 0.0, 128
    %9010 = vxpose.xlu0.b32.cont [14/16] 0.0, 128
    %9011 = vxpose.xlu0.b32.cont [15/16] 0.0, 128
    %9012 = vxpose.xlu0.b32.end [16/16] 0.0, 128
    %v9013 = vpop.trf.xlu0
    %v9014 = vpop.trf.xlu0
    %v9015 = vpop.trf.xlu0
    %v9016 = vpop.trf.xlu0
    %v9017 = vpop.trf.xlu0
    %v9018 = vpop.trf.xlu0
    %v9019 = vpop.trf.xlu0
    %v9020 = vpop.trf.xlu0
    %v9021 = vpop.trf.xlu0
    %v9022 = vpop.trf.xlu0
    %v9023 = vpop.trf.xlu0
    %v9024 = vpop.trf.xlu0
    %v9025 = vpop.trf.xlu0
    %v9026 = vpop.trf.xlu0
    %v9027 = vpop.trf.xlu0
    %v9028 = vpop.trf.xlu0
    %9029 = vxpose.xlu0.b32.start [1/16] %v8931, 128
    %9030 = vxpose.xlu0.b32.cont [2/16] 0.0, 128
    %9031 = vxpose.xlu0.b32.cont [3/16] 0.0, 128
    %9032 = vxpose.xlu0.b32.cont [4/16] 0.0, 128
    %9033 = vxpose.xlu0.b32.cont [5/16] 0.0, 128
    %9034 = vxpose.xlu0.b32.cont [6/16] 0.0, 128
    %9035 = vxpose.xlu0.b32.cont [7/16] 0.0, 128
    %9036 = vxpose.xlu0.b32.cont [8/16] 0.0, 128
    %9037 = vxpose.xlu0.b32.cont [9/16] 0.0, 128
    %9038 = vxpose.xlu0.b32.cont [10/16] 0.0, 128
    %9039 = vxpose.xlu0.b32.cont [11/16] 0.0, 128
    %9040 = vxpose.xlu0.b32.cont [12/16] 0.0, 128
    %9041 = vxpose.xlu0.b32.cont [13/16] 0.0, 128
    %9042 = vxpose.xlu0.b32.cont [14/16] 0.0, 128
    %9043 = vxpose.xlu0.b32.cont [15/16] 0.0, 128
    %9044 = vxpose.xlu0.b32.end [16/16] 0.0, 128
    %v9045 = vpop.trf.xlu0
    %v9046 = vpop.trf.xlu0
    %v9047 = vpop.trf.xlu0
    %v9048 = vpop.trf.xlu0
    %v9049 = vpop.trf.xlu0
    %v9050 = vpop.trf.xlu0
    %v9051 = vpop.trf.xlu0
    %v9052 = vpop.trf.xlu0
    %v9053 = vpop.trf.xlu0
    %v9054 = vpop.trf.xlu0
    %v9055 = vpop.trf.xlu0
    %v9056 = vpop.trf.xlu0
    %v9057 = vpop.trf.xlu0
    %v9058 = vpop.trf.xlu0
    %v9059 = vpop.trf.xlu0
    %v9060 = vpop.trf.xlu0
    %v9061 = vrot.slane %v9013, 4
    %v9062 = vsel %vm2366, %v9061, %v8949
    %v9063 = vrot.slane %v8949, 4
    %v9064 = vsel %vm2366, %v9013, %v9063
    %v9066 = vunpack.c.l.s4 1983009808
    %v9067 = vunpack.c.0.s8 %v9066
    %v9068 = vperm.slane %v9062, %v9067
    %v9070 = vunpack.c.l.s4 1983009808
    %v9071 = vunpack.c.0.s8 %v9070
    %v9072 = vperm.slane %v9064, %v9071
    %v9073 = vrot.slane %v9045, 4
    %v9074 = vsel %vm2366, %v9073, %v8981
    %v9075 = vrot.slane %v8981, 4
    %v9076 = vsel %vm2366, %v9045, %v9075
    %v9078 = vunpack.c.l.s4 1983009808
    %v9079 = vunpack.c.0.s8 %v9078
    %v9080 = vperm.slane %v9074, %v9079
    %v9082 = vunpack.c.l.s4 1983009808
    %v9083 = vunpack.c.0.s8 %v9082
    %v9084 = vperm.slane %v9076, %v9083
    %v9085 = vrot.slane %v9080, 4
    %v9086 = vsel %vm2366, %v9085, %v9068
    %v9087 = vrot.slane %v9068, 4
    %v9088 = vsel %vm2366, %v9080, %v9087
    %v9090 = vunpack.c.l.s4 1934713408
    %v9091 = vunpack.c.0.s8 %v9090
    %v9092 = vperm.slane %v9086, %v9091
    %v9094 = vunpack.c.l.s4 1934713408
    %v9095 = vunpack.c.0.s8 %v9094
    %v9096 = vperm.slane %v9088, %v9095
    %v9097 = vrot.slane %v9084, 4
    %v9098 = vsel %vm2366, %v9097, %v9072
    %v9099 = vrot.slane %v9072, 4
    %v9100 = vsel %vm2366, %v9084, %v9099
    %v9102 = vunpack.c.l.s4 1934713408
    %v9103 = vunpack.c.0.s8 %v9102
    %v9104 = vperm.slane %v9098, %v9103
    %v9106 = vunpack.c.l.s4 1934713408
    %v9107 = vunpack.c.0.s8 %v9106
    %v9108 = vperm.slane %v9100, %v9107
    %v9109 = vrot.slane %v9092, 4
    %v9110 = vsel %vm2366, 0.0, %v9109
    %v9111 = vrot.slane %v9096, 4
    %v9112 = vsel %vm2366, 0.0, %v9111
    %v9113 = vrot.slane %v9104, 4
    %v9114 = vsel %vm2366, 0.0, %v9113
    %v9115 = vrot.slane %v9108, 4
    %v9116 = vsel %vm2366, 0.0, %v9115
    %v9117 = vsel %vm2366, %v9111, %v9092
    %v9119 = vunpack.c.l.s4 1983009808
    %v9120 = vunpack.c.0.s8 %v9119
    %v9121 = vperm.slane %v9117, %v9120
    %v9122 = vrot.slane %v9112, 4
    %v9123 = vsel %vm2366, %v9122, %v9110
    %v9125 = vunpack.c.l.s4 1983009808
    %v9126 = vunpack.c.0.s8 %v9125
    %v9127 = vperm.slane %v9123, %v9126
    %v9128 = vsel %vm2366, %v9115, %v9104
    %v9130 = vunpack.c.l.s4 1983009808
    %v9131 = vunpack.c.0.s8 %v9130
    %v9132 = vperm.slane %v9128, %v9131
    %v9133 = vrot.slane %v9116, 4
    %v9134 = vsel %vm2366, %v9133, %v9114
    %v9136 = vunpack.c.l.s4 1983009808
    %v9137 = vunpack.c.0.s8 %v9136
    %v9138 = vperm.slane %v9134, %v9137
    %v9139 = vrot.slane %v9127, 4
    %v9140 = vsel %vm2366, %v9139, %v9121
    %v9141 = vrot.slane %v9121, 4
    %v9142 = vsel %vm2366, %v9127, %v9141
    %v9144 = vunpack.c.l.s4 1934713408
    %v9145 = vunpack.c.0.s8 %v9144
    %v9146 = vperm.slane %v9140, %v9145
    %v9148 = vunpack.c.l.s4 1934713408
    %v9149 = vunpack.c.0.s8 %v9148
    %v9150 = vperm.slane %v9142, %v9149
    %v9151 = vrot.slane %v9138, 4
    %v9152 = vsel %vm2366, %v9151, %v9132
    %v9153 = vrot.slane %v9132, 4
    %v9154 = vsel %vm2366, %v9138, %v9153
    %v9156 = vunpack.c.l.s4 1934713408
    %v9157 = vunpack.c.0.s8 %v9156
    %v9158 = vperm.slane %v9152, %v9157
    %v9160 = vunpack.c.l.s4 1934713408
    %v9161 = vunpack.c.0.s8 %v9160
    %v9162 = vperm.slane %v9154, %v9161
    %v9163 = vrot.slane %v9158, 4
    %v9164 = vsel %vm2366, %v9163, %v9146
    %v9165 = vrot.slane %v9146, 4
    %v9166 = vsel %vm2366, %v9158, %v9165
    %v9167 = vrot.slane %v9162, 4
    %v9168 = vsel %vm2366, %v9167, %v9150
    %v9169 = vrot.slane %v9150, 4
    %v9170 = vsel %vm2366, %v9162, %v9169
    %9172 = vrot.lane.b32.xlu0 %v9166, 8
    %v9173 = vpop.permute.xlu0 %9172
    %9176 = vrot.lane.b32.xlu0 %v9168, 16
    %v9177 = vpop.permute.xlu0 %9176
    %9180 = vrot.lane.b32.xlu0 %v9170, 24
    %v9181 = vpop.permute.xlu0 %9180
    %v9183 = vsel %vm800, %v9164, %v9173
    %v9184 = vsel %vm2489, %v9183, %v9177
    %v9185 = vsel %vm2491, %v9184, %v9181
    %s9186 = scalar_lea.vmem %s4, 32
    %v9187 = vld [vmem:[%s9186] sm:$0xff]
    %v9188 = vld [vmem:[%s9186 + $0x8] sm:$0xff]
    %v9189 = vld [vmem:[%s9186 + $0x10] sm:$0xff]
    %v9190 = vld [vmem:[%s9186 + $0x18] sm:$0xff]
    %v9191 = vperm.slane %v5286, 1
    %v9193 = vsel %vm430, %v7349, 0
    %v9196 = vsel %vm430, %v9185, 0
    %9198 = vmatpush.msra.mxu0 0.0
    %9199 = vmatpush.msra.mxu0 0.0
    %9200 = vmatpush.msra.mxu0 0.0
    %9201 = vmatpush.msra.mxu0 0.0
    %9202 = vmatpush.msra.mxu0 0.0
    %9203 = vmatpush.msra.mxu0 0.0
    %9204 = vmatpush.msra.mxu0 0.0
    %9205 = vmatpush.msra.mxu0 0.0
    %9206 = vmatpush.msra.mxu0 0.0
    %9207 = vmatpush.msra.mxu0 0.0
    %9208 = vmatpush.msra.mxu0 0.0
    %9209 = vmatpush.msra.mxu0 0.0
    %v9210 = vand.u32 %v9190, 4294901760
    %9211 = vmatpush.msra.mxu0 %v9210
    %v9212 = vand.u32 %v9189, 4294901760
    %9213 = vmatpush.msra.mxu0 %v9212
    %v9214 = vand.u32 %v9188, 4294901760
    %9215 = vmatpush.msra.mxu0 %v9214
    %v9216 = vand.u32 %v9187, 4294901760
    %9217 = vmatpush.msra.mxu0 %v9216
    %v9218 = vand.u32 %v9193, 4294901760
    %v9219 = vsub.f32 %v9193, %v9218
    %v9220 = vand.u32 %v9219, 4294901760
    %v9221 = vsub.f32 %v9219, %v9220
    %v9222 = vand.u32 %v9221, 4294901760
    %9223 = vmatmul.f32.gmra.mxu0 %v9222
    %v9224 = vpop.f32.mrf.mxu0
    %v9225 = vadd.f32 %v9191, %v9224
    %v9226 = vand.u32 %v9196, 4294901760
    %v9227 = vsub.f32 %v9196, %v9226
    %v9228 = vand.u32 %v9227, 4294901760
    %v9229 = vsub.f32 %v9227, %v9228
    %v9230 = vand.u32 %v9229, 4294901760
    %9231 = vmatmul.f32.gmra.mxu0 %v9230
    %v9232 = vpop.f32.mrf.mxu0
    %v9233 = vadd.f32 %v9191, %v9232
    %9234 = vdwg.mxu0
    %9235 = vmatpush.msra.mxu0 0.0
    %9236 = vmatpush.msra.mxu0 0.0
    %9237 = vmatpush.msra.mxu0 0.0
    %9238 = vmatpush.msra.mxu0 0.0
    %9239 = vmatpush.msra.mxu0 0.0
    %9240 = vmatpush.msra.mxu0 0.0
    %9241 = vmatpush.msra.mxu0 0.0
    %9242 = vmatpush.msra.mxu0 0.0
    %9243 = vmatpush.msra.mxu0 0.0
    %9244 = vmatpush.msra.mxu0 0.0
    %9245 = vmatpush.msra.mxu0 0.0
    %9246 = vmatpush.msra.mxu0 0.0
    %v9247 = vand.u32 %v9190, 4294901760
    %v9248 = vsub.f32 %v9190, %v9247
    %v9249 = vand.u32 %v9248, 4294901760
    %v9250 = vsub.f32 %v9248, %v9249
    %v9251 = vand.u32 %v9250, 4294901760
    %9252 = vmatpush.msra.mxu0 %v9251
    %v9253 = vand.u32 %v9189, 4294901760
    %v9254 = vsub.f32 %v9189, %v9253
    %v9255 = vand.u32 %v9254, 4294901760
    %v9256 = vsub.f32 %v9254, %v9255
    %v9257 = vand.u32 %v9256, 4294901760
    %9258 = vmatpush.msra.mxu0 %v9257
    %v9259 = vand.u32 %v9188, 4294901760
    %v9260 = vsub.f32 %v9188, %v9259
    %v9261 = vand.u32 %v9260, 4294901760
    %v9262 = vsub.f32 %v9260, %v9261
    %v9263 = vand.u32 %v9262, 4294901760
    %9264 = vmatpush.msra.mxu0 %v9263
    %v9265 = vand.u32 %v9187, 4294901760
    %v9266 = vsub.f32 %v9187, %v9265
    %v9267 = vand.u32 %v9266, 4294901760
    %v9268 = vsub.f32 %v9266, %v9267
    %v9269 = vand.u32 %v9268, 4294901760
    %9270 = vmatpush.msra.mxu0 %v9269
    %v9271 = vand.u32 %v9193, 4294901760
    %9272 = vmatmul.f32.gmra.mxu0 %v9271
    %v9273 = vpop.f32.mrf.mxu0
    %v9274 = vadd.f32 %v9225, %v9273
    %v9275 = vand.u32 %v9196, 4294901760
    %9276 = vmatmul.f32.gmra.mxu0 %v9275
    %v9277 = vpop.f32.mrf.mxu0
    %v9278 = vadd.f32 %v9233, %v9277
    %9279 = vdwg.mxu0
    %9280 = vmatpush.msra.mxu0 0.0
    %9281 = vmatpush.msra.mxu0 0.0
    %9282 = vmatpush.msra.mxu0 0.0
    %9283 = vmatpush.msra.mxu0 0.0
    %9284 = vmatpush.msra.mxu0 0.0
    %9285 = vmatpush.msra.mxu0 0.0
    %9286 = vmatpush.msra.mxu0 0.0
    %9287 = vmatpush.msra.mxu0 0.0
    %9288 = vmatpush.msra.mxu0 0.0
    %9289 = vmatpush.msra.mxu0 0.0
    %9290 = vmatpush.msra.mxu0 0.0
    %9291 = vmatpush.msra.mxu0 0.0
    %v9292 = vand.u32 %v9190, 4294901760
    %v9293 = vsub.f32 %v9190, %v9292
    %9294 = vmatpush.msra.mxu0 %v9293
    %v9295 = vand.u32 %v9189, 4294901760
    %v9296 = vsub.f32 %v9189, %v9295
    %9297 = vmatpush.msra.mxu0 %v9296
    %v9298 = vand.u32 %v9188, 4294901760
    %v9299 = vsub.f32 %v9188, %v9298
    %9300 = vmatpush.msra.mxu0 %v9299
    %v9301 = vand.u32 %v9187, 4294901760
    %v9302 = vsub.f32 %v9187, %v9301
    %9303 = vmatpush.msra.mxu0 %v9302
    %v9304 = vand.u32 %v9193, 4294901760
    %v9305 = vsub.f32 %v9193, %v9304
    %9306 = vmatmul.f32.gmra.mxu0 %v9305
    %v9307 = vpop.f32.mrf.mxu0
    %v9308 = vadd.f32 %v9274, %v9307
    %v9309 = vand.u32 %v9196, 4294901760
    %v9310 = vsub.f32 %v9196, %v9309
    %9311 = vmatmul.f32.gmra.mxu0 %v9310
    %v9312 = vpop.f32.mrf.mxu0
    %v9313 = vadd.f32 %v9278, %v9312
    %9314 = vdwg.mxu0
    %9315 = vmatpush.msra.mxu0 0.0
    %9316 = vmatpush.msra.mxu0 0.0
    %9317 = vmatpush.msra.mxu0 0.0
    %9318 = vmatpush.msra.mxu0 0.0
    %9319 = vmatpush.msra.mxu0 0.0
    %9320 = vmatpush.msra.mxu0 0.0
    %9321 = vmatpush.msra.mxu0 0.0
    %9322 = vmatpush.msra.mxu0 0.0
    %9323 = vmatpush.msra.mxu0 0.0
    %9324 = vmatpush.msra.mxu0 0.0
    %9325 = vmatpush.msra.mxu0 0.0
    %9326 = vmatpush.msra.mxu0 0.0
    %v9327 = vand.u32 %v9190, 4294901760
    %9328 = vmatpush.msra.mxu0 %v9327
    %v9329 = vand.u32 %v9189, 4294901760
    %9330 = vmatpush.msra.mxu0 %v9329
    %v9331 = vand.u32 %v9188, 4294901760
    %9332 = vmatpush.msra.mxu0 %v9331
    %v9333 = vand.u32 %v9187, 4294901760
    %9334 = vmatpush.msra.mxu0 %v9333
    %v9335 = vand.u32 %v9193, 4294901760
    %v9336 = vsub.f32 %v9193, %v9335
    %v9337 = vand.u32 %v9336, 4294901760
    %9338 = vmatmul.f32.gmra.mxu0 %v9337
    %v9339 = vpop.f32.mrf.mxu0
    %v9340 = vadd.f32 %v9308, %v9339
    %v9341 = vand.u32 %v9196, 4294901760
    %v9342 = vsub.f32 %v9196, %v9341
    %v9343 = vand.u32 %v9342, 4294901760
    %9344 = vmatmul.f32.gmra.mxu0 %v9343
    %v9345 = vpop.f32.mrf.mxu0
    %v9346 = vadd.f32 %v9313, %v9345
    %9347 = vdwg.mxu0
    %9348 = vmatpush.msra.mxu0 0.0
    %9349 = vmatpush.msra.mxu0 0.0
    %9350 = vmatpush.msra.mxu0 0.0
    %9351 = vmatpush.msra.mxu0 0.0
    %9352 = vmatpush.msra.mxu0 0.0
    %9353 = vmatpush.msra.mxu0 0.0
    %9354 = vmatpush.msra.mxu0 0.0
    %9355 = vmatpush.msra.mxu0 0.0
    %9356 = vmatpush.msra.mxu0 0.0
    %9357 = vmatpush.msra.mxu0 0.0
    %9358 = vmatpush.msra.mxu0 0.0
    %9359 = vmatpush.msra.mxu0 0.0
    %v9360 = vand.u32 %v9190, 4294901760
    %v9361 = vsub.f32 %v9190, %v9360
    %v9362 = vand.u32 %v9361, 4294901760
    %9363 = vmatpush.msra.mxu0 %v9362
    %v9364 = vand.u32 %v9189, 4294901760
    %v9365 = vsub.f32 %v9189, %v9364
    %v9366 = vand.u32 %v9365, 4294901760
    %9367 = vmatpush.msra.mxu0 %v9366
    %v9368 = vand.u32 %v9188, 4294901760
    %v9369 = vsub.f32 %v9188, %v9368
    %v9370 = vand.u32 %v9369, 4294901760
    %9371 = vmatpush.msra.mxu0 %v9370
    %v9372 = vand.u32 %v9187, 4294901760
    %v9373 = vsub.f32 %v9187, %v9372
    %v9374 = vand.u32 %v9373, 4294901760
    %9375 = vmatpush.msra.mxu0 %v9374
    %v9376 = vand.u32 %v9193, 4294901760
    %9377 = vmatmul.f32.gmra.mxu0 %v9376
    %v9378 = vpop.f32.mrf.mxu0
    %v9379 = vadd.f32 %v9340, %v9378
    %v9380 = vand.u32 %v9196, 4294901760
    %9381 = vmatmul.f32.gmra.mxu0 %v9380
    %v9382 = vpop.f32.mrf.mxu0
    %v9383 = vadd.f32 %v9346, %v9382
    %9384 = vdwg.mxu0
    %9385 = vmatpush.msra.mxu0 0.0
    %9386 = vmatpush.msra.mxu0 0.0
    %9387 = vmatpush.msra.mxu0 0.0
    %9388 = vmatpush.msra.mxu0 0.0
    %9389 = vmatpush.msra.mxu0 0.0
    %9390 = vmatpush.msra.mxu0 0.0
    %9391 = vmatpush.msra.mxu0 0.0
    %9392 = vmatpush.msra.mxu0 0.0
    %9393 = vmatpush.msra.mxu0 0.0
    %9394 = vmatpush.msra.mxu0 0.0
    %9395 = vmatpush.msra.mxu0 0.0
    %9396 = vmatpush.msra.mxu0 0.0
    %v9397 = vand.u32 %v9190, 4294901760
    %9398 = vmatpush.msra.mxu0 %v9397
    %v9399 = vand.u32 %v9189, 4294901760
    %9400 = vmatpush.msra.mxu0 %v9399
    %v9401 = vand.u32 %v9188, 4294901760
    %9402 = vmatpush.msra.mxu0 %v9401
    %v9403 = vand.u32 %v9187, 4294901760
    %9404 = vmatpush.msra.mxu0 %v9403
    %v9405 = vand.u32 %v9193, 4294901760
    %9406 = vmatmul.f32.gmra.mxu0 %v9405
    %v9407 = vpop.f32.mrf.mxu0
    %v9408 = vadd.f32 %v9379, %v9407
    %v9409 = vand.u32 %v9196, 4294901760
    %9410 = vmatmul.f32.gmra.mxu0 %v9409
    %v9411 = vpop.f32.mrf.mxu0
    %v9412 = vadd.f32 %v9383, %v9411
    %9413 = vdwg.mxu0
    %v9414 = vadd.f32 %v9408, %v5283
    %v9415 = vadd.f32 %v9412, %v5284
    %v9416 = vsel %vm430, %v9414, 0.0
    %9417 = vadd.xlane.f32.xlu0 %v9416
    %v9418 = vpop.xlane.xlu0 %9417
    %v9419 = vsel %vm430, %v9415, 0.0
    %9420 = vadd.xlane.f32.xlu0 %v9419
    %v9421 = vpop.xlane.xlu0 %9420
    %v9422 = vmul.f32 %v9418, %v4570
    %v9423 = vmul.f32 %v9421, %v4570
    %v9424 = vsub.f32 %v9414, %v9422
    %v9425 = vsub.f32 %v9415, %v9423
    %v9426 = vmul.f32 %v9424, %v9424
    %v9427 = vmul.f32 %v9425, %v9425
    %v9428 = vsel %vm430, %v9426, 0.0
    %9429 = vadd.xlane.f32.xlu0 %v9428
    %v9430 = vpop.xlane.xlu0 %9429
    %v9431 = vsel %vm430, %v9427, 0.0
    %9432 = vadd.xlane.f32.xlu0 %v9431
    %v9433 = vpop.xlane.xlu0 %9432
    %v9434 = vmul.f32 %v9430, %v4570
    %v9435 = vmul.f32 %v9433, %v4570
    %v9436 = vadd.f32 %v9434, 1e-05
    %v9437 = vadd.f32 %v9435, 1e-05
    %v9438 = vrsqrt.pop %v9436
    %v9439 = vmul.f32 %v9438, %v9436
    %v9440 = vmul.f32 %v9439, %v9438
    %v9441 = vmul.f32 0.5, %v9440
    %v9442 = vsub.f32 1.5, %v9441
    %v9443 = vmul.f32 %v9438, %v9442
    %vm9444 = vweird.f32 %v9436
    %vm9445 = vweird.f32 %v9438
    %vm9446 = vmor %vm9444, %vm9445
    %v9447 = vsel %vm9446, %v9438, %v9443
    %v9448 = vrsqrt.pop %v9437
    %v9449 = vmul.f32 %v9448, %v9437
    %v9450 = vmul.f32 %v9449, %v9448
    %v9451 = vmul.f32 0.5, %v9450
    %v9452 = vsub.f32 1.5, %v9451
    %v9453 = vmul.f32 %v9448, %v9452
    %vm9454 = vweird.f32 %v9437
    %vm9455 = vweird.f32 %v9448
    %vm9456 = vmor %vm9454, %vm9455
    %v9457 = vsel %vm9456, %v9448, %v9453
    %v9458 = vmul.f32 %v9424, %v9447
    %v9459 = vmul.f32 %v9425, %v9457
    %v9460 = vperm.slane %v5286, 2
    %v9461 = vmul.f32 %v9458, %v9460
    %v9462 = vmul.f32 %v9459, %v9460
    %v9463 = vperm.slane %v5286, 3
    %v9464 = vadd.f32 %v9461, %v9463
    %v9465 = vadd.f32 %v9462, %v9463
    %s9466 = scalar_lea.vmem %s5, 32
    %v9467 = vld [vmem:[%s9466] sm:$0xff]
    %v9468 = vld [vmem:[%s9466 + $0x8] sm:$0xff]
    %v9469 = vld [vmem:[%s9466 + $0x10] sm:$0xff]
    %v9470 = vld [vmem:[%s9466 + $0x18] sm:$0xff]
    %v9471 = vperm.slane %v5286, 0
    %v9473 = vsel %vm430, %v9464, 0
    %v9476 = vsel %vm430, %v9465, 0
    %9478 = vmatpush.msra.mxu0 0.0
    %9479 = vmatpush.msra.mxu0 0.0
    %9480 = vmatpush.msra.mxu0 0.0
    %9481 = vmatpush.msra.mxu0 0.0
    %9482 = vmatpush.msra.mxu0 0.0
    %9483 = vmatpush.msra.mxu0 0.0
    %9484 = vmatpush.msra.mxu0 0.0
    %9485 = vmatpush.msra.mxu0 0.0
    %9486 = vmatpush.msra.mxu0 0.0
    %9487 = vmatpush.msra.mxu0 0.0
    %9488 = vmatpush.msra.mxu0 0.0
    %9489 = vmatpush.msra.mxu0 0.0
    %v9490 = vand.u32 %v9470, 4294901760
    %9491 = vmatpush.msra.mxu0 %v9490
    %v9492 = vand.u32 %v9469, 4294901760
    %9493 = vmatpush.msra.mxu0 %v9492
    %v9494 = vand.u32 %v9468, 4294901760
    %9495 = vmatpush.msra.mxu0 %v9494
    %v9496 = vand.u32 %v9467, 4294901760
    %9497 = vmatpush.msra.mxu0 %v9496
    %v9498 = vand.u32 %v9473, 4294901760
    %v9499 = vsub.f32 %v9473, %v9498
    %v9500 = vand.u32 %v9499, 4294901760
    %v9501 = vsub.f32 %v9499, %v9500
    %v9502 = vand.u32 %v9501, 4294901760
    %9503 = vmatmul.f32.gmra.mxu0 %v9502
    %v9504 = vpop.f32.mrf.mxu0
    %v9505 = vadd.f32 %v9471, %v9504
    %v9506 = vand.u32 %v9476, 4294901760
    %v9507 = vsub.f32 %v9476, %v9506
    %v9508 = vand.u32 %v9507, 4294901760
    %v9509 = vsub.f32 %v9507, %v9508
    %v9510 = vand.u32 %v9509, 4294901760
    %9511 = vmatmul.f32.gmra.mxu0 %v9510
    %v9512 = vpop.f32.mrf.mxu0
    %v9513 = vadd.f32 %v9471, %v9512
    %9514 = vdwg.mxu0
    %9515 = vmatpush.msra.mxu0 0.0
    %9516 = vmatpush.msra.mxu0 0.0
    %9517 = vmatpush.msra.mxu0 0.0
    %9518 = vmatpush.msra.mxu0 0.0
    %9519 = vmatpush.msra.mxu0 0.0
    %9520 = vmatpush.msra.mxu0 0.0
    %9521 = vmatpush.msra.mxu0 0.0
    %9522 = vmatpush.msra.mxu0 0.0
    %9523 = vmatpush.msra.mxu0 0.0
    %9524 = vmatpush.msra.mxu0 0.0
    %9525 = vmatpush.msra.mxu0 0.0
    %9526 = vmatpush.msra.mxu0 0.0
    %v9527 = vand.u32 %v9470, 4294901760
    %v9528 = vsub.f32 %v9470, %v9527
    %v9529 = vand.u32 %v9528, 4294901760
    %v9530 = vsub.f32 %v9528, %v9529
    %v9531 = vand.u32 %v9530, 4294901760
    %9532 = vmatpush.msra.mxu0 %v9531
    %v9533 = vand.u32 %v9469, 4294901760
    %v9534 = vsub.f32 %v9469, %v9533
    %v9535 = vand.u32 %v9534, 4294901760
    %v9536 = vsub.f32 %v9534, %v9535
    %v9537 = vand.u32 %v9536, 4294901760
    %9538 = vmatpush.msra.mxu0 %v9537
    %v9539 = vand.u32 %v9468, 4294901760
    %v9540 = vsub.f32 %v9468, %v9539
    %v9541 = vand.u32 %v9540, 4294901760
    %v9542 = vsub.f32 %v9540, %v9541
    %v9543 = vand.u32 %v9542, 4294901760
    %9544 = vmatpush.msra.mxu0 %v9543
    %v9545 = vand.u32 %v9467, 4294901760
    %v9546 = vsub.f32 %v9467, %v9545
    %v9547 = vand.u32 %v9546, 4294901760
    %v9548 = vsub.f32 %v9546, %v9547
    %v9549 = vand.u32 %v9548, 4294901760
    %9550 = vmatpush.msra.mxu0 %v9549
    %v9551 = vand.u32 %v9473, 4294901760
    %9552 = vmatmul.f32.gmra.mxu0 %v9551
    %v9553 = vpop.f32.mrf.mxu0
    %v9554 = vadd.f32 %v9505, %v9553
    %v9555 = vand.u32 %v9476, 4294901760
    %9556 = vmatmul.f32.gmra.mxu0 %v9555
    %v9557 = vpop.f32.mrf.mxu0
    %v9558 = vadd.f32 %v9513, %v9557
    %9559 = vdwg.mxu0
    %9560 = vmatpush.msra.mxu0 0.0
    %9561 = vmatpush.msra.mxu0 0.0
    %9562 = vmatpush.msra.mxu0 0.0
    %9563 = vmatpush.msra.mxu0 0.0
    %9564 = vmatpush.msra.mxu0 0.0
    %9565 = vmatpush.msra.mxu0 0.0
    %9566 = vmatpush.msra.mxu0 0.0
    %9567 = vmatpush.msra.mxu0 0.0
    %9568 = vmatpush.msra.mxu0 0.0
    %9569 = vmatpush.msra.mxu0 0.0
    %9570 = vmatpush.msra.mxu0 0.0
    %9571 = vmatpush.msra.mxu0 0.0
    %v9572 = vand.u32 %v9470, 4294901760
    %v9573 = vsub.f32 %v9470, %v9572
    %9574 = vmatpush.msra.mxu0 %v9573
    %v9575 = vand.u32 %v9469, 4294901760
    %v9576 = vsub.f32 %v9469, %v9575
    %9577 = vmatpush.msra.mxu0 %v9576
    %v9578 = vand.u32 %v9468, 4294901760
    %v9579 = vsub.f32 %v9468, %v9578
    %9580 = vmatpush.msra.mxu0 %v9579
    %v9581 = vand.u32 %v9467, 4294901760
    %v9582 = vsub.f32 %v9467, %v9581
    %9583 = vmatpush.msra.mxu0 %v9582
    %v9584 = vand.u32 %v9473, 4294901760
    %v9585 = vsub.f32 %v9473, %v9584
    %9586 = vmatmul.f32.gmra.mxu0 %v9585
    %v9587 = vpop.f32.mrf.mxu0
    %v9588 = vadd.f32 %v9554, %v9587
    %v9589 = vand.u32 %v9476, 4294901760
    %v9590 = vsub.f32 %v9476, %v9589
    %9591 = vmatmul.f32.gmra.mxu0 %v9590
    %v9592 = vpop.f32.mrf.mxu0
    %v9593 = vadd.f32 %v9558, %v9592
    %9594 = vdwg.mxu0
    %9595 = vmatpush.msra.mxu0 0.0
    %9596 = vmatpush.msra.mxu0 0.0
    %9597 = vmatpush.msra.mxu0 0.0
    %9598 = vmatpush.msra.mxu0 0.0
    %9599 = vmatpush.msra.mxu0 0.0
    %9600 = vmatpush.msra.mxu0 0.0
    %9601 = vmatpush.msra.mxu0 0.0
    %9602 = vmatpush.msra.mxu0 0.0
    %9603 = vmatpush.msra.mxu0 0.0
    %9604 = vmatpush.msra.mxu0 0.0
    %9605 = vmatpush.msra.mxu0 0.0
    %9606 = vmatpush.msra.mxu0 0.0
    %v9607 = vand.u32 %v9470, 4294901760
    %9608 = vmatpush.msra.mxu0 %v9607
    %v9609 = vand.u32 %v9469, 4294901760
    %9610 = vmatpush.msra.mxu0 %v9609
    %v9611 = vand.u32 %v9468, 4294901760
    %9612 = vmatpush.msra.mxu0 %v9611
    %v9613 = vand.u32 %v9467, 4294901760
    %9614 = vmatpush.msra.mxu0 %v9613
    %v9615 = vand.u32 %v9473, 4294901760
    %v9616 = vsub.f32 %v9473, %v9615
    %v9617 = vand.u32 %v9616, 4294901760
    %9618 = vmatmul.f32.gmra.mxu0 %v9617
    %v9619 = vpop.f32.mrf.mxu0
    %v9620 = vadd.f32 %v9588, %v9619
    %v9621 = vand.u32 %v9476, 4294901760
    %v9622 = vsub.f32 %v9476, %v9621
    %v9623 = vand.u32 %v9622, 4294901760
    %9624 = vmatmul.f32.gmra.mxu0 %v9623
    %v9625 = vpop.f32.mrf.mxu0
    %v9626 = vadd.f32 %v9593, %v9625
    %9627 = vdwg.mxu0
    %9628 = vmatpush.msra.mxu0 0.0
    %9629 = vmatpush.msra.mxu0 0.0
    %9630 = vmatpush.msra.mxu0 0.0
    %9631 = vmatpush.msra.mxu0 0.0
    %9632 = vmatpush.msra.mxu0 0.0
    %9633 = vmatpush.msra.mxu0 0.0
    %9634 = vmatpush.msra.mxu0 0.0
    %9635 = vmatpush.msra.mxu0 0.0
    %9636 = vmatpush.msra.mxu0 0.0
    %9637 = vmatpush.msra.mxu0 0.0
    %9638 = vmatpush.msra.mxu0 0.0
    %9639 = vmatpush.msra.mxu0 0.0
    %v9640 = vand.u32 %v9470, 4294901760
    %v9641 = vsub.f32 %v9470, %v9640
    %v9642 = vand.u32 %v9641, 4294901760
    %9643 = vmatpush.msra.mxu0 %v9642
    %v9644 = vand.u32 %v9469, 4294901760
    %v9645 = vsub.f32 %v9469, %v9644
    %v9646 = vand.u32 %v9645, 4294901760
    %9647 = vmatpush.msra.mxu0 %v9646
    %v9648 = vand.u32 %v9468, 4294901760
    %v9649 = vsub.f32 %v9468, %v9648
    %v9650 = vand.u32 %v9649, 4294901760
    %9651 = vmatpush.msra.mxu0 %v9650
    %v9652 = vand.u32 %v9467, 4294901760
    %v9653 = vsub.f32 %v9467, %v9652
    %v9654 = vand.u32 %v9653, 4294901760
    %9655 = vmatpush.msra.mxu0 %v9654
    %v9656 = vand.u32 %v9473, 4294901760
    %9657 = vmatmul.f32.gmra.mxu0 %v9656
    %v9658 = vpop.f32.mrf.mxu0
    %v9659 = vadd.f32 %v9620, %v9658
    %v9660 = vand.u32 %v9476, 4294901760
    %9661 = vmatmul.f32.gmra.mxu0 %v9660
    %v9662 = vpop.f32.mrf.mxu0
    %v9663 = vadd.f32 %v9626, %v9662
    %9664 = vdwg.mxu0
    %9665 = vmatpush.msra.mxu0 0.0
    %9666 = vmatpush.msra.mxu0 0.0
    %9667 = vmatpush.msra.mxu0 0.0
    %9668 = vmatpush.msra.mxu0 0.0
    %9669 = vmatpush.msra.mxu0 0.0
    %9670 = vmatpush.msra.mxu0 0.0
    %9671 = vmatpush.msra.mxu0 0.0
    %9672 = vmatpush.msra.mxu0 0.0
    %9673 = vmatpush.msra.mxu0 0.0
    %9674 = vmatpush.msra.mxu0 0.0
    %9675 = vmatpush.msra.mxu0 0.0
    %9676 = vmatpush.msra.mxu0 0.0
    %v9677 = vand.u32 %v9470, 4294901760
    %9678 = vmatpush.msra.mxu0 %v9677
    %v9679 = vand.u32 %v9469, 4294901760
    %9680 = vmatpush.msra.mxu0 %v9679
    %v9681 = vand.u32 %v9468, 4294901760
    %9682 = vmatpush.msra.mxu0 %v9681
    %v9683 = vand.u32 %v9467, 4294901760
    %9684 = vmatpush.msra.mxu0 %v9683
    %v9685 = vand.u32 %v9473, 4294901760
    %9686 = vmatmul.f32.gmra.mxu0 %v9685
    %v9687 = vpop.f32.mrf.mxu0
    %v9688 = vadd.f32 %v9659, %v9687
    %v9689 = vand.u32 %v9476, 4294901760
    %9690 = vmatmul.f32.gmra.mxu0 %v9689
    %v9691 = vpop.f32.mrf.mxu0
    %v9692 = vadd.f32 %v9663, %v9691
    %9693 = vdwg.mxu0
    %v9694 = vmax.f32 %v9688, 0.0
    %v9695 = vmax.f32 %v9692, 0.0
    %s9696 = scalar_lea.vmem %s6, 128
    %v9697 = vld [vmem:[%s9696] sm:$0xff]
    %v9698 = vld [vmem:[%s9696 + $0x8] sm:$0xff]
    %v9699 = vld [vmem:[%s9696 + $0x10] sm:$0xff]
    %v9700 = vld [vmem:[%s9696 + $0x18] sm:$0xff]
    %v9701 = vld [vmem:[%s9696 + $0x20] sm:$0xff]
    %v9702 = vld [vmem:[%s9696 + $0x28] sm:$0xff]
    %v9703 = vld [vmem:[%s9696 + $0x30] sm:$0xff]
    %v9704 = vld [vmem:[%s9696 + $0x38] sm:$0xff]
    %v9705 = vld [vmem:[%s9696 + $0x40] sm:$0xff]
    %v9706 = vld [vmem:[%s9696 + $0x48] sm:$0xff]
    %v9707 = vld [vmem:[%s9696 + $0x50] sm:$0xff]
    %v9708 = vld [vmem:[%s9696 + $0x58] sm:$0xff]
    %v9709 = vld [vmem:[%s9696 + $0x60] sm:$0xff]
    %v9710 = vld [vmem:[%s9696 + $0x68] sm:$0xff]
    %v9711 = vld [vmem:[%s9696 + $0x70] sm:$0xff]
    %v9712 = vld [vmem:[%s9696 + $0x78] sm:$0xff]
    %v9713 = vperm.slane %v5286, 4
    %v9714 = vand.u32 %v9712, 4294901760
    %9715 = vmatpush.msra.mxu0 %v9714
    %v9716 = vand.u32 %v9711, 4294901760
    %9717 = vmatpush.msra.mxu0 %v9716
    %v9718 = vand.u32 %v9710, 4294901760
    %9719 = vmatpush.msra.mxu0 %v9718
    %v9720 = vand.u32 %v9709, 4294901760
    %9721 = vmatpush.msra.mxu0 %v9720
    %v9722 = vand.u32 %v9708, 4294901760
    %9723 = vmatpush.msra.mxu0 %v9722
    %v9724 = vand.u32 %v9707, 4294901760
    %9725 = vmatpush.msra.mxu0 %v9724
    %v9726 = vand.u32 %v9706, 4294901760
    %9727 = vmatpush.msra.mxu0 %v9726
    %v9728 = vand.u32 %v9705, 4294901760
    %9729 = vmatpush.msra.mxu0 %v9728
    %v9730 = vand.u32 %v9704, 4294901760
    %9731 = vmatpush.msra.mxu0 %v9730
    %v9732 = vand.u32 %v9703, 4294901760
    %9733 = vmatpush.msra.mxu0 %v9732
    %v9734 = vand.u32 %v9702, 4294901760
    %9735 = vmatpush.msra.mxu0 %v9734
    %v9736 = vand.u32 %v9701, 4294901760
    %9737 = vmatpush.msra.mxu0 %v9736
    %v9738 = vand.u32 %v9700, 4294901760
    %9739 = vmatpush.msra.mxu0 %v9738
    %v9740 = vand.u32 %v9699, 4294901760
    %9741 = vmatpush.msra.mxu0 %v9740
    %v9742 = vand.u32 %v9698, 4294901760
    %9743 = vmatpush.msra.mxu0 %v9742
    %v9744 = vand.u32 %v9697, 4294901760
    %9745 = vmatpush.msra.mxu0 %v9744
    %v9746 = vand.u32 %v9694, 4294901760
    %v9747 = vsub.f32 %v9694, %v9746
    %v9748 = vand.u32 %v9747, 4294901760
    %v9749 = vsub.f32 %v9747, %v9748
    %v9750 = vand.u32 %v9749, 4294901760
    %9751 = vmatmul.f32.gmra.mxu0 %v9750
    %v9752 = vpop.f32.mrf.mxu0
    %v9753 = vadd.f32 %v9713, %v9752
    %v9754 = vand.u32 %v9695, 4294901760
    %v9755 = vsub.f32 %v9695, %v9754
    %v9756 = vand.u32 %v9755, 4294901760
    %v9757 = vsub.f32 %v9755, %v9756
    %v9758 = vand.u32 %v9757, 4294901760
    %9759 = vmatmul.f32.gmra.mxu0 %v9758
    %v9760 = vpop.f32.mrf.mxu0
    %v9761 = vadd.f32 %v9713, %v9760
    %9762 = vdwg.mxu0
    %v9763 = vand.u32 %v9712, 4294901760
    %v9764 = vsub.f32 %v9712, %v9763
    %v9765 = vand.u32 %v9764, 4294901760
    %v9766 = vsub.f32 %v9764, %v9765
    %v9767 = vand.u32 %v9766, 4294901760
    %9768 = vmatpush.msra.mxu0 %v9767
    %v9769 = vand.u32 %v9711, 4294901760
    %v9770 = vsub.f32 %v9711, %v9769
    %v9771 = vand.u32 %v9770, 4294901760
    %v9772 = vsub.f32 %v9770, %v9771
    %v9773 = vand.u32 %v9772, 4294901760
    %9774 = vmatpush.msra.mxu0 %v9773
    %v9775 = vand.u32 %v9710, 4294901760
    %v9776 = vsub.f32 %v9710, %v9775
    %v9777 = vand.u32 %v9776, 4294901760
    %v9778 = vsub.f32 %v9776, %v9777
    %v9779 = vand.u32 %v9778, 4294901760
    %9780 = vmatpush.msra.mxu0 %v9779
    %v9781 = vand.u32 %v9709, 4294901760
    %v9782 = vsub.f32 %v9709, %v9781
    %v9783 = vand.u32 %v9782, 4294901760
    %v9784 = vsub.f32 %v9782, %v9783
    %v9785 = vand.u32 %v9784, 4294901760
    %9786 = vmatpush.msra.mxu0 %v9785
    %v9787 = vand.u32 %v9708, 4294901760
    %v9788 = vsub.f32 %v9708, %v9787
    %v9789 = vand.u32 %v9788, 4294901760
    %v9790 = vsub.f32 %v9788, %v9789
    %v9791 = vand.u32 %v9790, 4294901760
    %9792 = vmatpush.msra.mxu0 %v9791
    %v9793 = vand.u32 %v9707, 4294901760
    %v9794 = vsub.f32 %v9707, %v9793
    %v9795 = vand.u32 %v9794, 4294901760
    %v9796 = vsub.f32 %v9794, %v9795
    %v9797 = vand.u32 %v9796, 4294901760
    %9798 = vmatpush.msra.mxu0 %v9797
    %v9799 = vand.u32 %v9706, 4294901760
    %v9800 = vsub.f32 %v9706, %v9799
    %v9801 = vand.u32 %v9800, 4294901760
    %v9802 = vsub.f32 %v9800, %v9801
    %v9803 = vand.u32 %v9802, 4294901760
    %9804 = vmatpush.msra.mxu0 %v9803
    %v9805 = vand.u32 %v9705, 4294901760
    %v9806 = vsub.f32 %v9705, %v9805
    %v9807 = vand.u32 %v9806, 4294901760
    %v9808 = vsub.f32 %v9806, %v9807
    %v9809 = vand.u32 %v9808, 4294901760
    %9810 = vmatpush.msra.mxu0 %v9809
    %v9811 = vand.u32 %v9704, 4294901760
    %v9812 = vsub.f32 %v9704, %v9811
    %v9813 = vand.u32 %v9812, 4294901760
    %v9814 = vsub.f32 %v9812, %v9813
    %v9815 = vand.u32 %v9814, 4294901760
    %9816 = vmatpush.msra.mxu0 %v9815
    %v9817 = vand.u32 %v9703, 4294901760
    %v9818 = vsub.f32 %v9703, %v9817
    %v9819 = vand.u32 %v9818, 4294901760
    %v9820 = vsub.f32 %v9818, %v9819
    %v9821 = vand.u32 %v9820, 4294901760
    %9822 = vmatpush.msra.mxu0 %v9821
    %v9823 = vand.u32 %v9702, 4294901760
    %v9824 = vsub.f32 %v9702, %v9823
    %v9825 = vand.u32 %v9824, 4294901760
    %v9826 = vsub.f32 %v9824, %v9825
    %v9827 = vand.u32 %v9826, 4294901760
    %9828 = vmatpush.msra.mxu0 %v9827
    %v9829 = vand.u32 %v9701, 4294901760
    %v9830 = vsub.f32 %v9701, %v9829
    %v9831 = vand.u32 %v9830, 4294901760
    %v9832 = vsub.f32 %v9830, %v9831
    %v9833 = vand.u32 %v9832, 4294901760
    %9834 = vmatpush.msra.mxu0 %v9833
    %v9835 = vand.u32 %v9700, 4294901760
    %v9836 = vsub.f32 %v9700, %v9835
    %v9837 = vand.u32 %v9836, 4294901760
    %v9838 = vsub.f32 %v9836, %v9837
    %v9839 = vand.u32 %v9838, 4294901760
    %9840 = vmatpush.msra.mxu0 %v9839
    %v9841 = vand.u32 %v9699, 4294901760
    %v9842 = vsub.f32 %v9699, %v9841
    %v9843 = vand.u32 %v9842, 4294901760
    %v9844 = vsub.f32 %v9842, %v9843
    %v9845 = vand.u32 %v9844, 4294901760
    %9846 = vmatpush.msra.mxu0 %v9845
    %v9847 = vand.u32 %v9698, 4294901760
    %v9848 = vsub.f32 %v9698, %v9847
    %v9849 = vand.u32 %v9848, 4294901760
    %v9850 = vsub.f32 %v9848, %v9849
    %v9851 = vand.u32 %v9850, 4294901760
    %9852 = vmatpush.msra.mxu0 %v9851
    %v9853 = vand.u32 %v9697, 4294901760
    %v9854 = vsub.f32 %v9697, %v9853
    %v9855 = vand.u32 %v9854, 4294901760
    %v9856 = vsub.f32 %v9854, %v9855
    %v9857 = vand.u32 %v9856, 4294901760
    %9858 = vmatpush.msra.mxu0 %v9857
    %v9859 = vand.u32 %v9694, 4294901760
    %9860 = vmatmul.f32.gmra.mxu0 %v9859
    %v9861 = vpop.f32.mrf.mxu0
    %v9862 = vadd.f32 %v9753, %v9861
    %v9863 = vand.u32 %v9695, 4294901760
    %9864 = vmatmul.f32.gmra.mxu0 %v9863
    %v9865 = vpop.f32.mrf.mxu0
    %v9866 = vadd.f32 %v9761, %v9865
    %9867 = vdwg.mxu0
    %v9868 = vand.u32 %v9712, 4294901760
    %v9869 = vsub.f32 %v9712, %v9868
    %9870 = vmatpush.msra.mxu0 %v9869
    %v9871 = vand.u32 %v9711, 4294901760
    %v9872 = vsub.f32 %v9711, %v9871
    %9873 = vmatpush.msra.mxu0 %v9872
    %v9874 = vand.u32 %v9710, 4294901760
    %v9875 = vsub.f32 %v9710, %v9874
    %9876 = vmatpush.msra.mxu0 %v9875
    %v9877 = vand.u32 %v9709, 4294901760
    %v9878 = vsub.f32 %v9709, %v9877
    %9879 = vmatpush.msra.mxu0 %v9878
    %v9880 = vand.u32 %v9708, 4294901760
    %v9881 = vsub.f32 %v9708, %v9880
    %9882 = vmatpush.msra.mxu0 %v9881
    %v9883 = vand.u32 %v9707, 4294901760
    %v9884 = vsub.f32 %v9707, %v9883
    %9885 = vmatpush.msra.mxu0 %v9884
    %v9886 = vand.u32 %v9706, 4294901760
    %v9887 = vsub.f32 %v9706, %v9886
    %9888 = vmatpush.msra.mxu0 %v9887
    %v9889 = vand.u32 %v9705, 4294901760
    %v9890 = vsub.f32 %v9705, %v9889
    %9891 = vmatpush.msra.mxu0 %v9890
    %v9892 = vand.u32 %v9704, 4294901760
    %v9893 = vsub.f32 %v9704, %v9892
    %9894 = vmatpush.msra.mxu0 %v9893
    %v9895 = vand.u32 %v9703, 4294901760
    %v9896 = vsub.f32 %v9703, %v9895
    %9897 = vmatpush.msra.mxu0 %v9896
    %v9898 = vand.u32 %v9702, 4294901760
    %v9899 = vsub.f32 %v9702, %v9898
    %9900 = vmatpush.msra.mxu0 %v9899
    %v9901 = vand.u32 %v9701, 4294901760
    %v9902 = vsub.f32 %v9701, %v9901
    %9903 = vmatpush.msra.mxu0 %v9902
    %v9904 = vand.u32 %v9700, 4294901760
    %v9905 = vsub.f32 %v9700, %v9904
    %9906 = vmatpush.msra.mxu0 %v9905
    %v9907 = vand.u32 %v9699, 4294901760
    %v9908 = vsub.f32 %v9699, %v9907
    %9909 = vmatpush.msra.mxu0 %v9908
    %v9910 = vand.u32 %v9698, 4294901760
    %v9911 = vsub.f32 %v9698, %v9910
    %9912 = vmatpush.msra.mxu0 %v9911
    %v9913 = vand.u32 %v9697, 4294901760
    %v9914 = vsub.f32 %v9697, %v9913
    %9915 = vmatpush.msra.mxu0 %v9914
    %v9916 = vand.u32 %v9694, 4294901760
    %v9917 = vsub.f32 %v9694, %v9916
    %9918 = vmatmul.f32.gmra.mxu0 %v9917
    %v9919 = vpop.f32.mrf.mxu0
    %v9920 = vadd.f32 %v9862, %v9919
    %v9921 = vand.u32 %v9695, 4294901760
    %v9922 = vsub.f32 %v9695, %v9921
    %9923 = vmatmul.f32.gmra.mxu0 %v9922
    %v9924 = vpop.f32.mrf.mxu0
    %v9925 = vadd.f32 %v9866, %v9924
    %9926 = vdwg.mxu0
    %v9927 = vand.u32 %v9712, 4294901760
    %9928 = vmatpush.msra.mxu0 %v9927
    %v9929 = vand.u32 %v9711, 4294901760
    %9930 = vmatpush.msra.mxu0 %v9929
    %v9931 = vand.u32 %v9710, 4294901760
    %9932 = vmatpush.msra.mxu0 %v9931
    %v9933 = vand.u32 %v9709, 4294901760
    %9934 = vmatpush.msra.mxu0 %v9933
    %v9935 = vand.u32 %v9708, 4294901760
    %9936 = vmatpush.msra.mxu0 %v9935
    %v9937 = vand.u32 %v9707, 4294901760
    %9938 = vmatpush.msra.mxu0 %v9937
    %v9939 = vand.u32 %v9706, 4294901760
    %9940 = vmatpush.msra.mxu0 %v9939
    %v9941 = vand.u32 %v9705, 4294901760
    %9942 = vmatpush.msra.mxu0 %v9941
    %v9943 = vand.u32 %v9704, 4294901760
    %9944 = vmatpush.msra.mxu0 %v9943
    %v9945 = vand.u32 %v9703, 4294901760
    %9946 = vmatpush.msra.mxu0 %v9945
    %v9947 = vand.u32 %v9702, 4294901760
    %9948 = vmatpush.msra.mxu0 %v9947
    %v9949 = vand.u32 %v9701, 4294901760
    %9950 = vmatpush.msra.mxu0 %v9949
    %v9951 = vand.u32 %v9700, 4294901760
    %9952 = vmatpush.msra.mxu0 %v9951
    %v9953 = vand.u32 %v9699, 4294901760
    %9954 = vmatpush.msra.mxu0 %v9953
    %v9955 = vand.u32 %v9698, 4294901760
    %9956 = vmatpush.msra.mxu0 %v9955
    %v9957 = vand.u32 %v9697, 4294901760
    %9958 = vmatpush.msra.mxu0 %v9957
    %v9959 = vand.u32 %v9694, 4294901760
    %v9960 = vsub.f32 %v9694, %v9959
    %v9961 = vand.u32 %v9960, 4294901760
    %9962 = vmatmul.f32.gmra.mxu0 %v9961
    %v9963 = vpop.f32.mrf.mxu0
    %v9964 = vadd.f32 %v9920, %v9963
    %v9965 = vand.u32 %v9695, 4294901760
    %v9966 = vsub.f32 %v9695, %v9965
    %v9967 = vand.u32 %v9966, 4294901760
    %9968 = vmatmul.f32.gmra.mxu0 %v9967
    %v9969 = vpop.f32.mrf.mxu0
    %v9970 = vadd.f32 %v9925, %v9969
    %9971 = vdwg.mxu0
    %v9972 = vand.u32 %v9712, 4294901760
    %v9973 = vsub.f32 %v9712, %v9972
    %v9974 = vand.u32 %v9973, 4294901760
    %9975 = vmatpush.msra.mxu0 %v9974
    %v9976 = vand.u32 %v9711, 4294901760
    %v9977 = vsub.f32 %v9711, %v9976
    %v9978 = vand.u32 %v9977, 4294901760
    %9979 = vmatpush.msra.mxu0 %v9978
    %v9980 = vand.u32 %v9710, 4294901760
    %v9981 = vsub.f32 %v9710, %v9980
    %v9982 = vand.u32 %v9981, 4294901760
    %9983 = vmatpush.msra.mxu0 %v9982
    %v9984 = vand.u32 %v9709, 4294901760
    %v9985 = vsub.f32 %v9709, %v9984
    %v9986 = vand.u32 %v9985, 4294901760
    %9987 = vmatpush.msra.mxu0 %v9986
    %v9988 = vand.u32 %v9708, 4294901760
    %v9989 = vsub.f32 %v9708, %v9988
    %v9990 = vand.u32 %v9989, 4294901760
    %9991 = vmatpush.msra.mxu0 %v9990
    %v9992 = vand.u32 %v9707, 4294901760
    %v9993 = vsub.f32 %v9707, %v9992
    %v9994 = vand.u32 %v9993, 4294901760
    %9995 = vmatpush.msra.mxu0 %v9994
    %v9996 = vand.u32 %v9706, 4294901760
    %v9997 = vsub.f32 %v9706, %v9996
    %v9998 = vand.u32 %v9997, 4294901760
    %9999 = vmatpush.msra.mxu0 %v9998
    %v10000 = vand.u32 %v9705, 4294901760
    %v10001 = vsub.f32 %v9705, %v10000
    %v10002 = vand.u32 %v10001, 4294901760
    %10003 = vmatpush.msra.mxu0 %v10002
    %v10004 = vand.u32 %v9704, 4294901760
    %v10005 = vsub.f32 %v9704, %v10004
    %v10006 = vand.u32 %v10005, 4294901760
    %10007 = vmatpush.msra.mxu0 %v10006
    %v10008 = vand.u32 %v9703, 4294901760
    %v10009 = vsub.f32 %v9703, %v10008
    %v10010 = vand.u32 %v10009, 4294901760
    %10011 = vmatpush.msra.mxu0 %v10010
    %v10012 = vand.u32 %v9702, 4294901760
    %v10013 = vsub.f32 %v9702, %v10012
    %v10014 = vand.u32 %v10013, 4294901760
    %10015 = vmatpush.msra.mxu0 %v10014
    %v10016 = vand.u32 %v9701, 4294901760
    %v10017 = vsub.f32 %v9701, %v10016
    %v10018 = vand.u32 %v10017, 4294901760
    %10019 = vmatpush.msra.mxu0 %v10018
    %v10020 = vand.u32 %v9700, 4294901760
    %v10021 = vsub.f32 %v9700, %v10020
    %v10022 = vand.u32 %v10021, 4294901760
    %10023 = vmatpush.msra.mxu0 %v10022
    %v10024 = vand.u32 %v9699, 4294901760
    %v10025 = vsub.f32 %v9699, %v10024
    %v10026 = vand.u32 %v10025, 4294901760
    %10027 = vmatpush.msra.mxu0 %v10026
    %v10028 = vand.u32 %v9698, 4294901760
    %v10029 = vsub.f32 %v9698, %v10028
    %v10030 = vand.u32 %v10029, 4294901760
    %10031 = vmatpush.msra.mxu0 %v10030
    %v10032 = vand.u32 %v9697, 4294901760
    %v10033 = vsub.f32 %v9697, %v10032
    %v10034 = vand.u32 %v10033, 4294901760
    %10035 = vmatpush.msra.mxu0 %v10034
    %v10036 = vand.u32 %v9694, 4294901760
    %10037 = vmatmul.f32.gmra.mxu0 %v10036
    %v10038 = vpop.f32.mrf.mxu0
    %v10039 = vadd.f32 %v9964, %v10038
    %v10040 = vand.u32 %v9695, 4294901760
    %10041 = vmatmul.f32.gmra.mxu0 %v10040
    %v10042 = vpop.f32.mrf.mxu0
    %v10043 = vadd.f32 %v9970, %v10042
    %10044 = vdwg.mxu0
    %v10045 = vand.u32 %v9712, 4294901760
    %10046 = vmatpush.msra.mxu0 %v10045
    %v10047 = vand.u32 %v9711, 4294901760
    %10048 = vmatpush.msra.mxu0 %v10047
    %v10049 = vand.u32 %v9710, 4294901760
    %10050 = vmatpush.msra.mxu0 %v10049
    %v10051 = vand.u32 %v9709, 4294901760
    %10052 = vmatpush.msra.mxu0 %v10051
    %v10053 = vand.u32 %v9708, 4294901760
    %10054 = vmatpush.msra.mxu0 %v10053
    %v10055 = vand.u32 %v9707, 4294901760
    %10056 = vmatpush.msra.mxu0 %v10055
    %v10057 = vand.u32 %v9706, 4294901760
    %10058 = vmatpush.msra.mxu0 %v10057
    %v10059 = vand.u32 %v9705, 4294901760
    %10060 = vmatpush.msra.mxu0 %v10059
    %v10061 = vand.u32 %v9704, 4294901760
    %10062 = vmatpush.msra.mxu0 %v10061
    %v10063 = vand.u32 %v9703, 4294901760
    %10064 = vmatpush.msra.mxu0 %v10063
    %v10065 = vand.u32 %v9702, 4294901760
    %10066 = vmatpush.msra.mxu0 %v10065
    %v10067 = vand.u32 %v9701, 4294901760
    %10068 = vmatpush.msra.mxu0 %v10067
    %v10069 = vand.u32 %v9700, 4294901760
    %10070 = vmatpush.msra.mxu0 %v10069
    %v10071 = vand.u32 %v9699, 4294901760
    %10072 = vmatpush.msra.mxu0 %v10071
    %v10073 = vand.u32 %v9698, 4294901760
    %10074 = vmatpush.msra.mxu0 %v10073
    %v10075 = vand.u32 %v9697, 4294901760
    %10076 = vmatpush.msra.mxu0 %v10075
    %v10077 = vand.u32 %v9694, 4294901760
    %10078 = vmatmul.f32.gmra.mxu0 %v10077
    %v10079 = vpop.f32.mrf.mxu0
    %v10080 = vadd.f32 %v10039, %v10079
    %v10081 = vand.u32 %v9695, 4294901760
    %10082 = vmatmul.f32.gmra.mxu0 %v10081
    %v10083 = vpop.f32.mrf.mxu0
    %v10084 = vadd.f32 %v10043, %v10083
    %10085 = vdwg.mxu0
    %v10086 = vadd.f32 %v10080, %v9464
    %v10087 = vadd.f32 %v10084, %v9465
    %v10088 = vsel %vm430, %v10086, 0.0
    %10089 = vadd.xlane.f32.xlu0 %v10088
    %v10090 = vpop.xlane.xlu0 %10089
    %v10091 = vsel %vm430, %v10087, 0.0
    %10092 = vadd.xlane.f32.xlu0 %v10091
    %v10093 = vpop.xlane.xlu0 %10092
    %v10094 = vmul.f32 %v10090, %v4570
    %v10095 = vmul.f32 %v10093, %v4570
    %v10096 = vsub.f32 %v10086, %v10094
    %v10097 = vsub.f32 %v10087, %v10095
    %v10098 = vmul.f32 %v10096, %v10096
    %v10099 = vmul.f32 %v10097, %v10097
    %v10100 = vsel %vm430, %v10098, 0.0
    %10101 = vadd.xlane.f32.xlu0 %v10100
    %v10102 = vpop.xlane.xlu0 %10101
    %v10103 = vsel %vm430, %v10099, 0.0
    %10104 = vadd.xlane.f32.xlu0 %v10103
    %v10105 = vpop.xlane.xlu0 %10104
    %v10106 = vmul.f32 %v10102, %v4570
    %v10107 = vmul.f32 %v10105, %v4570
    %v10108 = vadd.f32 %v10106, 1e-05
    %v10109 = vadd.f32 %v10107, 1e-05
    %v10110 = vrsqrt.pop %v10108
    %v10111 = vmul.f32 %v10110, %v10108
    %v10112 = vmul.f32 %v10111, %v10110
    %v10113 = vmul.f32 0.5, %v10112
    %v10114 = vsub.f32 1.5, %v10113
    %v10115 = vmul.f32 %v10110, %v10114
    %vm10116 = vweird.f32 %v10108
    %vm10117 = vweird.f32 %v10110
    %vm10118 = vmor %vm10116, %vm10117
    %v10119 = vsel %vm10118, %v10110, %v10115
    %v10120 = vrsqrt.pop %v10109
    %v10121 = vmul.f32 %v10120, %v10109
    %v10122 = vmul.f32 %v10121, %v10120
    %v10123 = vmul.f32 0.5, %v10122
    %v10124 = vsub.f32 1.5, %v10123
    %v10125 = vmul.f32 %v10120, %v10124
    %vm10126 = vweird.f32 %v10109
    %vm10127 = vweird.f32 %v10120
    %vm10128 = vmor %vm10126, %vm10127
    %v10129 = vsel %vm10128, %v10120, %v10125
    %v10130 = vmul.f32 %v10096, %v10119
    %v10131 = vmul.f32 %v10097, %v10129
    %v10132 = vperm.slane %v5286, 5
    %v10133 = vmul.f32 %v10130, %v10132
    %v10134 = vmul.f32 %v10131, %v10132
    %v10135 = vperm.slane %v5286, 6
    %v10136 = vadd.f32 %v10133, %v10135
    %v10137 = vadd.f32 %v10134, %v10135
    %v10138 = vsel %vm430, %v10136, 0.0
    %v10139 = vrot.slane %v10138, 4
    %v10140 = vadd.f32 %v10138, %v10139
    %v10141 = vrot.slane %v10140, 2
    %v10142 = vadd.f32 %v10140, %v10141
    %v10143 = vrot.slane %v10142, 1
    %v10144 = vadd.f32 %v10142, %v10143
    %v10145 = vsel %vm430, %v10137, 0.0
    %v10146 = vrot.slane %v10145, 4
    %v10147 = vadd.f32 %v10145, %v10146
    %v10148 = vrot.slane %v10147, 2
    %v10149 = vadd.f32 %v10147, %v10148
    %v10150 = vrot.slane %v10149, 1
    %v10151 = vadd.f32 %v10149, %v10150
    %v10152 = vrcp.pop 8.0
    %v10153 = vmul.f32 8.0, %v10152
    %v10154 = vsub.f32 1.0, %v10153
    %v10155 = vmul.f32 %v10152, %v10154
    %v10156 = vadd.f32 %v10152, %v10155
    %vm10157 = vweird.f32 %v10152
    %v10158 = vsel %vm10157, %v10152, %v10156
    %v10159 = vmul.f32 %v10144, %v10158
    %v10160 = vmul.f32 %v10151, %v10158
    %v10161 = vld [vmem:[%s8] sm:$0xff]
    %v10162 = vld [vmem:[%s8 + $0x8] sm:$0xff]
    %v10163 = vld [vmem:[%s8 + $0x10] sm:$0xff]
    %v10164 = vld [vmem:[%s8 + $0x18] sm:$0xff]
    %v10165 = vld [vmem:[%s8 + $0x20] sm:$0x1]
    %v10166 = vperm.slane %v10165, 0
    %vm10169 = vcmask 1041409
    %v10170 = vsel %vm10169, %v10160, %v10159
    %v10171 = vsel %vm430, %v10170, 0
    %10173 = vmatpush.msra.mxu0 0.0
    %10174 = vmatpush.msra.mxu0 0.0
    %10175 = vmatpush.msra.mxu0 0.0
    %10176 = vmatpush.msra.mxu0 0.0
    %10177 = vmatpush.msra.mxu0 0.0
    %10178 = vmatpush.msra.mxu0 0.0
    %10179 = vmatpush.msra.mxu0 0.0
    %10180 = vmatpush.msra.mxu0 0.0
    %10181 = vmatpush.msra.mxu0 0.0
    %10182 = vmatpush.msra.mxu0 0.0
    %10183 = vmatpush.msra.mxu0 0.0
    %10184 = vmatpush.msra.mxu0 0.0
    %v10185 = vand.u32 %v10164, 4294901760
    %10186 = vmatpush.msra.mxu0 %v10185
    %v10187 = vand.u32 %v10163, 4294901760
    %10188 = vmatpush.msra.mxu0 %v10187
    %v10189 = vand.u32 %v10162, 4294901760
    %10190 = vmatpush.msra.mxu0 %v10189
    %v10191 = vand.u32 %v10161, 4294901760
    %10192 = vmatpush.msra.mxu0 %v10191
    %v10193 = vand.u32 %v10171, 4294901760
    %v10194 = vsub.f32 %v10171, %v10193
    %v10195 = vand.u32 %v10194, 4294901760
    %v10196 = vsub.f32 %v10194, %v10195
    %v10197 = vand.u32 %v10196, 4294901760
    %10198 = vmatmul.f32.gmra.mxu0 %v10197
    %v10199 = vpop.f32.mrf.mxu0
    %v10200 = vadd.f32 %v10166, %v10199
    %10201 = vdwg.mxu0
    %10202 = vmatpush.msra.mxu0 0.0
    %10203 = vmatpush.msra.mxu0 0.0
    %10204 = vmatpush.msra.mxu0 0.0
    %10205 = vmatpush.msra.mxu0 0.0
    %10206 = vmatpush.msra.mxu0 0.0
    %10207 = vmatpush.msra.mxu0 0.0
    %10208 = vmatpush.msra.mxu0 0.0
    %10209 = vmatpush.msra.mxu0 0.0
    %10210 = vmatpush.msra.mxu0 0.0
    %10211 = vmatpush.msra.mxu0 0.0
    %10212 = vmatpush.msra.mxu0 0.0
    %10213 = vmatpush.msra.mxu0 0.0
    %v10214 = vand.u32 %v10164, 4294901760
    %v10215 = vsub.f32 %v10164, %v10214
    %v10216 = vand.u32 %v10215, 4294901760
    %v10217 = vsub.f32 %v10215, %v10216
    %v10218 = vand.u32 %v10217, 4294901760
    %10219 = vmatpush.msra.mxu0 %v10218
    %v10220 = vand.u32 %v10163, 4294901760
    %v10221 = vsub.f32 %v10163, %v10220
    %v10222 = vand.u32 %v10221, 4294901760
    %v10223 = vsub.f32 %v10221, %v10222
    %v10224 = vand.u32 %v10223, 4294901760
    %10225 = vmatpush.msra.mxu0 %v10224
    %v10226 = vand.u32 %v10162, 4294901760
    %v10227 = vsub.f32 %v10162, %v10226
    %v10228 = vand.u32 %v10227, 4294901760
    %v10229 = vsub.f32 %v10227, %v10228
    %v10230 = vand.u32 %v10229, 4294901760
    %10231 = vmatpush.msra.mxu0 %v10230
    %v10232 = vand.u32 %v10161, 4294901760
    %v10233 = vsub.f32 %v10161, %v10232
    %v10234 = vand.u32 %v10233, 4294901760
    %v10235 = vsub.f32 %v10233, %v10234
    %v10236 = vand.u32 %v10235, 4294901760
    %10237 = vmatpush.msra.mxu0 %v10236
    %v10238 = vand.u32 %v10171, 4294901760
    %10239 = vmatmul.f32.gmra.mxu0 %v10238
    %v10240 = vpop.f32.mrf.mxu0
    %v10241 = vadd.f32 %v10200, %v10240
    %10242 = vdwg.mxu0
    %10243 = vmatpush.msra.mxu0 0.0
    %10244 = vmatpush.msra.mxu0 0.0
    %10245 = vmatpush.msra.mxu0 0.0
    %10246 = vmatpush.msra.mxu0 0.0
    %10247 = vmatpush.msra.mxu0 0.0
    %10248 = vmatpush.msra.mxu0 0.0
    %10249 = vmatpush.msra.mxu0 0.0
    %10250 = vmatpush.msra.mxu0 0.0
    %10251 = vmatpush.msra.mxu0 0.0
    %10252 = vmatpush.msra.mxu0 0.0
    %10253 = vmatpush.msra.mxu0 0.0
    %10254 = vmatpush.msra.mxu0 0.0
    %v10255 = vand.u32 %v10164, 4294901760
    %v10256 = vsub.f32 %v10164, %v10255
    %10257 = vmatpush.msra.mxu0 %v10256
    %v10258 = vand.u32 %v10163, 4294901760
    %v10259 = vsub.f32 %v10163, %v10258
    %10260 = vmatpush.msra.mxu0 %v10259
    %v10261 = vand.u32 %v10162, 4294901760
    %v10262 = vsub.f32 %v10162, %v10261
    %10263 = vmatpush.msra.mxu0 %v10262
    %v10264 = vand.u32 %v10161, 4294901760
    %v10265 = vsub.f32 %v10161, %v10264
    %10266 = vmatpush.msra.mxu0 %v10265
    %v10267 = vand.u32 %v10171, 4294901760
    %v10268 = vsub.f32 %v10171, %v10267
    %10269 = vmatmul.f32.gmra.mxu0 %v10268
    %v10270 = vpop.f32.mrf.mxu0
    %v10271 = vadd.f32 %v10241, %v10270
    %10272 = vdwg.mxu0
    %10273 = vmatpush.msra.mxu0 0.0
    %10274 = vmatpush.msra.mxu0 0.0
    %10275 = vmatpush.msra.mxu0 0.0
    %10276 = vmatpush.msra.mxu0 0.0
    %10277 = vmatpush.msra.mxu0 0.0
    %10278 = vmatpush.msra.mxu0 0.0
    %10279 = vmatpush.msra.mxu0 0.0
    %10280 = vmatpush.msra.mxu0 0.0
    %10281 = vmatpush.msra.mxu0 0.0
    %10282 = vmatpush.msra.mxu0 0.0
    %10283 = vmatpush.msra.mxu0 0.0
    %10284 = vmatpush.msra.mxu0 0.0
    %v10285 = vand.u32 %v10164, 4294901760
    %10286 = vmatpush.msra.mxu0 %v10285
    %v10287 = vand.u32 %v10163, 4294901760
    %10288 = vmatpush.msra.mxu0 %v10287
    %v10289 = vand.u32 %v10162, 4294901760
    %10290 = vmatpush.msra.mxu0 %v10289
    %v10291 = vand.u32 %v10161, 4294901760
    %10292 = vmatpush.msra.mxu0 %v10291
    %v10293 = vand.u32 %v10171, 4294901760
    %v10294 = vsub.f32 %v10171, %v10293
    %v10295 = vand.u32 %v10294, 4294901760
    %10296 = vmatmul.f32.gmra.mxu0 %v10295
    %v10297 = vpop.f32.mrf.mxu0
    %v10298 = vadd.f32 %v10271, %v10297
    %10299 = vdwg.mxu0
    %10300 = vmatpush.msra.mxu0 0.0
    %10301 = vmatpush.msra.mxu0 0.0
    %10302 = vmatpush.msra.mxu0 0.0
    %10303 = vmatpush.msra.mxu0 0.0
    %10304 = vmatpush.msra.mxu0 0.0
    %10305 = vmatpush.msra.mxu0 0.0
    %10306 = vmatpush.msra.mxu0 0.0
    %10307 = vmatpush.msra.mxu0 0.0
    %10308 = vmatpush.msra.mxu0 0.0
    %10309 = vmatpush.msra.mxu0 0.0
    %10310 = vmatpush.msra.mxu0 0.0
    %10311 = vmatpush.msra.mxu0 0.0
    %v10312 = vand.u32 %v10164, 4294901760
    %v10313 = vsub.f32 %v10164, %v10312
    %v10314 = vand.u32 %v10313, 4294901760
    %10315 = vmatpush.msra.mxu0 %v10314
    %v10316 = vand.u32 %v10163, 4294901760
    %v10317 = vsub.f32 %v10163, %v10316
    %v10318 = vand.u32 %v10317, 4294901760
    %10319 = vmatpush.msra.mxu0 %v10318
    %v10320 = vand.u32 %v10162, 4294901760
    %v10321 = vsub.f32 %v10162, %v10320
    %v10322 = vand.u32 %v10321, 4294901760
    %10323 = vmatpush.msra.mxu0 %v10322
    %v10324 = vand.u32 %v10161, 4294901760
    %v10325 = vsub.f32 %v10161, %v10324
    %v10326 = vand.u32 %v10325, 4294901760
    %10327 = vmatpush.msra.mxu0 %v10326
    %v10328 = vand.u32 %v10171, 4294901760
    %10329 = vmatmul.f32.gmra.mxu0 %v10328
    %v10330 = vpop.f32.mrf.mxu0
    %v10331 = vadd.f32 %v10298, %v10330
    %10332 = vdwg.mxu0
    %10333 = vmatpush.msra.mxu0 0.0
    %10334 = vmatpush.msra.mxu0 0.0
    %10335 = vmatpush.msra.mxu0 0.0
    %10336 = vmatpush.msra.mxu0 0.0
    %10337 = vmatpush.msra.mxu0 0.0
    %10338 = vmatpush.msra.mxu0 0.0
    %10339 = vmatpush.msra.mxu0 0.0
    %10340 = vmatpush.msra.mxu0 0.0
    %10341 = vmatpush.msra.mxu0 0.0
    %10342 = vmatpush.msra.mxu0 0.0
    %10343 = vmatpush.msra.mxu0 0.0
    %10344 = vmatpush.msra.mxu0 0.0
    %v10345 = vand.u32 %v10164, 4294901760
    %10346 = vmatpush.msra.mxu0 %v10345
    %v10347 = vand.u32 %v10163, 4294901760
    %10348 = vmatpush.msra.mxu0 %v10347
    %v10349 = vand.u32 %v10162, 4294901760
    %10350 = vmatpush.msra.mxu0 %v10349
    %v10351 = vand.u32 %v10161, 4294901760
    %10352 = vmatpush.msra.mxu0 %v10351
    %v10353 = vand.u32 %v10171, 4294901760
    %10354 = vmatmul.f32.gmra.mxu0 %v10353
    %v10355 = vpop.f32.mrf.mxu0
    %v10356 = vadd.f32 %v10331, %v10355
    %10357 = vdwg.mxu0
    %vm10358 = vcmask 9216
    %10359 = vst.msk [vmem:[#allocation2] sm:$0x3] %vm10358, %v10356
    // Predicated region
    $region38: #{transformer_classifier_forward.1} parent=1 // pred_check
      _
    $region39: #{transformer_classifier_forward.1} parent=1 // pred_check_branch
      %10361 = sbr.rel (0) target = $region41
    $region40: #{transformer_classifier_forward.1} parent=1 // pred_region
      %10363 = vsyncadd [#allocation3], 0
      %s10365 = sshll.u32 [#allocation2], 4
      %s10366 = int_to_ptr.vmem [resolvable:$true] %s10365
      %s10367 = sshll.u32 %s9, 4
      %s10368 = int_to_ptr.hbm [resolvable:$true] %s10367
      %10370 = dma.vmem_to_hbm [thread:$0]  %s10366, 32, %s10368, [#allocation3]
    $region41: #{transformer_classifier_forward.1} parent=1 // pred_fallthru
      _
    // Predicated region
    $region42: #{transformer_classifier_forward.1} parent=1 // pred_check
      _
    $region43: #{transformer_classifier_forward.1} parent=1 // pred_check_branch
      %10372 = sbr.rel (0) target = $region45
    $region44: #{transformer_classifier_forward.1} parent=1 // pred_region
      %10374 = dma.done [#allocation3], 32
    $region45: #{transformer_classifier_forward.1} parent=1 // pred_fallthru
      _
    %10375 = vsyncpa [#allocation3], 1

</llo_original>
